<compile_context>
chip_gen: v6e
topology: v6e:2x2x1
jax: 0.10.0
libtpu: 0.0.40
codegen_flags: <defaults>
</compile_context>

<pallas_src>
import functools

import jax
import jax.numpy as jnp
from jax.experimental import pallas as pl
from jax.experimental.pallas import tpu as pltpu

BATCH_PAD = 8  # one sublane tile


def _round_up(n, m):
    return ((n + m - 1) // m) * m


# ----------------------------------------------------------------------------
# Kernel
# ----------------------------------------------------------------------------
def gru_rnn_kernel(x_ref, h0_ref, wih_ref, bih_ref, whh_ref, bhh_ref,
                   wout_ref, bout_ref, out_ref, i_scr, h_scr):
    rows, _ = x_ref.shape                # rows = seq_len * BATCH_PAD
    bp, h_pad = h0_ref.shape
    seq_len = rows // bp

    # (1) Input-side gate projections for ALL timesteps in one matmul (off the
    #     serial path), staged through VMEM scratch so the (64,1152) result
    #     does not stay live in vregs across the unrolled recurrence.
    #     K = x_dim = 10 is tiny -> kept f32.
    i_scr[...] = (jnp.dot(x_ref[...], wih_ref[...],
                          preferred_element_type=jnp.float32)
                  + bih_ref[...])

    whh = whh_ref[...]                   # (h_pad, 3*h_pad) bf16, read once
    # Hoist the n-gate recurrent-bias broadcast out of the unrolled loop.
    # (r/z parts of b_hh are folded into bih by the packer; only the n-gate
    #  columns of bhh_ref are nonzero.)
    bhh_n = jnp.broadcast_to(bhh_ref[0:1, 2 * h_pad:3 * h_pad], (bp, h_pad))

    # (2) Recurrence: fully unrolled (seq_len small & static); ONE fused wide
    #     bf16 MXU matmul per step; f32 carry + f32 elementwise gate math.
    h = h0_ref[...]                      # (bp, h_pad) f32 carry
    for t in range(seq_len):
        g = jnp.dot(h.astype(jnp.bfloat16), whh,
                    preferred_element_type=jnp.float32)
        i_t = i_scr[pl.ds(t * bp, bp), :]            # tile-aligned static slice
        # 128-aligned gate slices; gate order r, z, n.
        i_r = i_t[:, 0 * h_pad:1 * h_pad]
        i_z = i_t[:, 1 * h_pad:2 * h_pad]
        i_n = i_t[:, 2 * h_pad:3 * h_pad]
        h_r = g[:, 0 * h_pad:1 * h_pad]
        h_z = g[:, 1 * h_pad:2 * h_pad]
        h_n = g[:, 2 * h_pad:3 * h_pad] + bhh_n
        # sigmoid(x) == 0.5*tanh(0.5*x) + 0.5 : one EUP op per gate.
        r = 0.5 * jnp.tanh(0.5 * (i_r + h_r)) + 0.5   # b_ir + b_hr folded into i_r
        z = 0.5 * jnp.tanh(0.5 * (i_z + h_z)) + 0.5   # b_iz + b_hz folded into i_z
        n = jnp.tanh(i_n + r * h_n)                   # = tanh(i_n + b_in + r*(h_n + b_hn))
        h = (1.0 - z) * n + z * h
        h_scr[pl.ds(t * bp, bp), :] = h               # stage per-step h in VMEM

    # (3) Output Linear hoisted out of the loop: one matmul over all steps.
    h_all = h_scr[...].astype(jnp.bfloat16)           # (seq*bp, h_pad)
    out_ref[...] = (jnp.dot(h_all, wout_ref[...],
                            preferred_element_type=jnp.float32)
                    + bout_ref[...]).astype(out_ref.dtype)


# ----------------------------------------------------------------------------
# One-time parameter packing (init-time, NOT per forward call)
# ----------------------------------------------------------------------------
def pack_rnn_params(wih_t, whh_t, bih, bhh, wout_t, bout):
    """Pack nn.GRU / nn.Linear params into the fused-gate, 128-lane-aligned
    layout used by the kernel.  Gate order r, z, n (torch GRU order).

    wih_t: (3, x_dim, hidden)   whh_t: (3, hidden, hidden)   [already W^T]
    bih/bhh: (3, hidden)        wout_t: (hidden, x_dim)      bout: (x_dim,)
    """
    _, x_dim, hidden = wih_t.shape
    h_pad = _round_up(hidden, 128)

    wih_p = jnp.zeros((x_dim, 3 * h_pad), jnp.float32)
    whh_p = jnp.zeros((h_pad, 3 * h_pad), jnp.float32)
    bih_p = jnp.zeros((1, 3 * h_pad), jnp.float32)
    bhh_p = jnp.zeros((1, 3 * h_pad), jnp.float32)
    for g in range(3):
        wih_p = wih_p.at[:, g * h_pad:g * h_pad + hidden].set(wih_t[g])
        whh_p = whh_p.at[:hidden, g * h_pad:g * h_pad + hidden].set(whh_t[g])
    # r/z gates: fold b_ih + b_hh into the precomputed input projection.
    bih_p = bih_p.at[:, 0 * h_pad:0 * h_pad + hidden].set((bih[0] + bhh[0])[None, :])
    bih_p = bih_p.at[:, 1 * h_pad:1 * h_pad + hidden].set((bih[1] + bhh[1])[None, :])
    # n gate must stay split: n = tanh(i_n + b_in + r*(h_n + b_hn)).
    bih_p = bih_p.at[:, 2 * h_pad:2 * h_pad + hidden].set(bih[2][None, :])
    bhh_p = bhh_p.at[:, 2 * h_pad:2 * h_pad + hidden].set(bhh[2][None, :])

    wout_p = jnp.zeros((h_pad, x_dim), jnp.float32).at[:hidden, :].set(wout_t)
    bout_p = bout.reshape(1, x_dim).astype(jnp.float32)

    # Dominant weights stored in bf16 (halves the W_hh HBM->VMEM copy and
    # feeds the MXU single-pass bf16 path); biases / tiny W_ih stay f32.
    return (wih_p,
            bih_p,
            whh_p.astype(jnp.bfloat16),
            bhh_p,
            wout_p.astype(jnp.bfloat16),
            bout_p)


# ----------------------------------------------------------------------------
# Forward wrapper (per-call hot path)
# ----------------------------------------------------------------------------
@jax.jit
def rnn_forward_pallas(inputs, h0, wih_p, bih_p, whh_p, bhh_p, wout_p, bout_p):
    """inputs: (seq_len, batch, x_dim) f32; h0: (batch, hidden) f32.
    Weights must already be packed with pack_rnn_params (init-time)."""
    seq_len, batch, x_dim = inputs.shape
    hidden = h0.shape[-1]
    h_pad = whh_p.shape[0]
    bp = BATCH_PAD

    # Pad batch to one sublane tile and present x / out as 2-D lane-dense slabs
    # so the kernel never reshapes across the sublane dim.
    x2 = (jnp.zeros((seq_len, bp, x_dim), jnp.float32)
          .at[:, :batch, :].set(inputs)
          .reshape(seq_len * bp, x_dim))
    h0_p = jnp.zeros((bp, h_pad), jnp.float32).at[:batch, :hidden].set(h0)

    vmem = pl.BlockSpec(memory_space=pltpu.MemorySpace.VMEM)
    out2 = pl.pallas_call(
        gru_rnn_kernel,
        out_shape=jax.ShapeDtypeStruct((seq_len * bp, x_dim), jnp.float32),
        in_specs=[vmem] * 8,
        out_specs=vmem,
        scratch_shapes=[
            pltpu.VMEM((seq_len * bp, 3 * h_pad), jnp.float32),  # i_all staging
            pltpu.VMEM((seq_len * bp, h_pad), jnp.float32),      # per-step h
        ],
    )(x2, h0_p, wih_p, bih_p, whh_p, bhh_p, wout_p, bout_p)

    return out2.reshape(seq_len, bp, x_dim)[:, :batch, :]


# ----------------------------------------------------------------------------
# Pure-JAX reference (torch nn.GRU + per-step Linear semantics, full f32)
# ----------------------------------------------------------------------------
def rnn_forward_ref(inputs, h0, wih_t, whh_t, bih, bhh, wout_t, bout):
    def step(h, x_t):
        i_r = x_t @ wih_t[0] + bih[0]
        i_z = x_t @ wih_t[1] + bih[1]
        i_n = x_t @ wih_t[2] + bih[2]
        h_r = h @ whh_t[0] + bhh[0]
        h_z = h @ whh_t[1] + bhh[1]
        h_n = h @ whh_t[2] + bhh[2]
        r = jax.nn.sigmoid(i_r + h_r)
        z = jax.nn.sigmoid(i_z + h_z)
        n = jnp.tanh(i_n + r * h_n)
        h_new = (1.0 - z) * n + z * h
        out = h_new @ wout_t + bout
        return h_new, out

    _, outs = jax.lax.scan(step, h0, inputs)
    return outs


if __name__ == "__main__":
    # Module semantics: num_asset=4 -> x_dim = 4*5/2 = 10, hidden_dim = 30*x_dim = 300.
    num_asset = 4
    x_dim = num_asset * (num_asset + 1) // 2       # 10
    hidden_dim = x_dim * 30                        # 300
    seq_len = 8
    batch = 2

    key = jax.random.PRNGKey(0)
    keys = jax.random.split(key, 8)
    bound = 1.0 / jnp.sqrt(hidden_dim)

    # Deterministic parameter init (shapes follow nn.GRU / nn.Linear, gate order r,z,n).
    wih_t = jax.random.uniform(keys[0], (3, x_dim, hidden_dim), jnp.float32, -bound, bound)
    whh_t = jax.random.uniform(keys[1], (3, hidden_dim, hidden_dim), jnp.float32, -bound, bound)
    bih = jax.random.uniform(keys[2], (3, hidden_dim), jnp.float32, -bound, bound)
    bhh = jax.random.uniform(keys[3], (3, hidden_dim), jnp.float32, -bound, bound)
    wout_t = jax.random.uniform(keys[4], (hidden_dim, x_dim), jnp.float32, -bound, bound)
    bout = jax.random.uniform(keys[5], (x_dim,), jnp.float32, -bound, bound)

    # Example inputs; h0 is the torch module's in-forward randn made an
    # explicit deterministic input here.
    inputs = jax.random.normal(keys[6], (seq_len, batch, x_dim), jnp.float32)
    h0 = jax.random.normal(keys[7], (batch, hidden_dim), jnp.float32)

    # One-time, init-time packing (kept out of the per-call hot path).
    packed = pack_rnn_params(wih_t, whh_t, bih, bhh, wout_t, bout)

    out = rnn_forward_pallas(inputs, h0, *packed)
    out = jax.block_until_ready(out)

    ref = rnn_forward_ref(inputs, h0, wih_t, whh_t, bih, bhh, wout_t, bout)
    assert out.shape == (seq_len, batch, x_dim)
    # bf16 MXU operands (f32 carry/accumulation) vs the pure-f32 reference:
    # tolerance loosened per the review's correctness note.
    assert jnp.allclose(out, ref, atol=3e-2, rtol=3e-2), "mismatch vs reference"

    print("KERNEL_OK")
</pallas_src>

<mosaic_0001>
module attributes {stable_mosaic.version = 11 : i64} {
  func.func @gru_rnn_kernel(%arg0: memref<64x10xf32, #tpu.memory_space<vmem>>, %arg1: memref<8x384xf32, #tpu.memory_space<vmem>>, %arg2: memref<10x1152xf32, #tpu.memory_space<vmem>>, %arg3: memref<1x1152xf32, #tpu.memory_space<vmem>>, %arg4: memref<384x1152xbf16, #tpu.memory_space<vmem>>, %arg5: memref<1x1152xf32, #tpu.memory_space<vmem>>, %arg6: memref<384x10xbf16, #tpu.memory_space<vmem>>, %arg7: memref<1x10xf32, #tpu.memory_space<vmem>>, %arg8: memref<64x10xf32, #tpu.memory_space<vmem>>, %arg9: memref<64x1152xf32, #tpu.memory_space<vmem>>, %arg10: memref<64x384xf32, #tpu.memory_space<vmem>>) attributes {dimension_semantics = [], scalar_prefetch = 0 : i64, scratch_operands = 2 : i64, tpu.core_type = #tpu.core_type<tc>} {
    %c0 = arith.constant 0 : index
    %c0_0 = arith.constant 0 : index
    %0 = vector.load %arg0[%c0, %c0_0] : memref<64x10xf32, #tpu.memory_space<vmem>>, vector<64x10xf32>
    %c0_1 = arith.constant 0 : index
    %c0_2 = arith.constant 0 : index
    %1 = vector.load %arg2[%c0_1, %c0_2] : memref<10x1152xf32, #tpu.memory_space<vmem>>, vector<10x1152xf32>
    %cst = arith.constant dense<0.000000e+00> : vector<64x1152xf32>
    %2 = tpu.matmul %0, %1, %cst {dimension_numbers = #tpu.dot_dimension_numbers<[1], [0], [0], [1], [0, 0, 1, 1], [], []>} : vector<64x10xf32>, vector<10x1152xf32>, vector<64x1152xf32> -> vector<64x1152xf32>
    %c0_3 = arith.constant 0 : index
    %c0_4 = arith.constant 0 : index
    %3 = vector.load %arg3[%c0_3, %c0_4] : memref<1x1152xf32, #tpu.memory_space<vmem>>, vector<1x1152xf32>
    %4 = vector.broadcast %3 : vector<1x1152xf32> to vector<64x1152xf32>
    %5 = arith.addf %2, %4 : vector<64x1152xf32>
    %c0_5 = arith.constant 0 : index
    %c0_6 = arith.constant 0 : index
    %6 = vector.load %arg9[%c0_5, %c0_6] : memref<64x1152xf32, #tpu.memory_space<vmem>>, vector<64x1152xf32>
    tpu.vector_store %arg9[%c0_5, %c0_6], %5 {strides = array<i32>} : memref<64x1152xf32, #tpu.memory_space<vmem>>, vector<64x1152xf32>,
    %c0_7 = arith.constant 0 : index
    %c0_8 = arith.constant 0 : index
    %7 = vector.load %arg4[%c0_7, %c0_8] : memref<384x1152xbf16, #tpu.memory_space<vmem>>, vector<384x1152xbf16>
    %c0_9 = arith.constant 0 : index
    %c768 = arith.constant 768 : index
    %8 = vector.load %arg5[%c0_9, %c768] : memref<1x1152xf32, #tpu.memory_space<vmem>>, vector<1x384xf32>
    %9 = vector.shape_cast %8 : vector<1x384xf32> to vector<1x384xf32>
    %10 = vector.broadcast %9 : vector<1x384xf32> to vector<8x384xf32>
    %c0_10 = arith.constant 0 : index
    %c0_11 = arith.constant 0 : index
    %11 = vector.load %arg1[%c0_10, %c0_11] : memref<8x384xf32, #tpu.memory_space<vmem>>, vector<8x384xf32>
    %12 = arith.truncf %11 : vector<8x384xf32> to vector<8x384xbf16>
    %cst_12 = arith.constant dense<0.000000e+00> : vector<8x1152xf32>
    %13 = tpu.matmul %12, %7, %cst_12 {dimension_numbers = #tpu.dot_dimension_numbers<[1], [0], [0], [1], [0, 0, 1, 1], [], []>} : vector<8x384xbf16>, vector<384x1152xbf16>, vector<8x1152xf32> -> vector<8x1152xf32>
    %c0_13 = arith.constant 0 : index
    %c0_14 = arith.constant 0 : index
    %14 = vector.load %arg9[%c0_13, %c0_14] : memref<64x1152xf32, #tpu.memory_space<vmem>>, vector<8x1152xf32>
    %15 = vector.extract_strided_slice %14 {offsets = [0, 0], sizes = [8, 384], strides = [1, 1]} : vector<8x1152xf32> to vector<8x384xf32>
    %16 = vector.extract_strided_slice %14 {offsets = [0, 384], sizes = [8, 384], strides = [1, 1]} : vector<8x1152xf32> to vector<8x384xf32>
    %17 = vector.extract_strided_slice %14 {offsets = [0, 768], sizes = [8, 384], strides = [1, 1]} : vector<8x1152xf32> to vector<8x384xf32>
    %18 = vector.extract_strided_slice %13 {offsets = [0, 0], sizes = [8, 384], strides = [1, 1]} : vector<8x1152xf32> to vector<8x384xf32>
    %19 = vector.extract_strided_slice %13 {offsets = [0, 384], sizes = [8, 384], strides = [1, 1]} : vector<8x1152xf32> to vector<8x384xf32>
    %20 = vector.extract_strided_slice %13 {offsets = [0, 768], sizes = [8, 384], strides = [1, 1]} : vector<8x1152xf32> to vector<8x384xf32>
    %21 = arith.addf %20, %10 : vector<8x384xf32>
    %22 = arith.addf %15, %18 : vector<8x384xf32>
    %cst_15 = arith.constant 5.000000e-01 : f32
    %23 = vector.broadcast %cst_15 : f32 to vector<8x384xf32>
    %24 = arith.mulf %23, %22 : vector<8x384xf32>
    %25 = math.tanh %24 : vector<8x384xf32>
    %cst_16 = arith.constant 5.000000e-01 : f32
    %26 = vector.broadcast %cst_16 : f32 to vector<8x384xf32>
    %27 = arith.mulf %26, %25 : vector<8x384xf32>
    %cst_17 = arith.constant 5.000000e-01 : f32
    %28 = vector.broadcast %cst_17 : f32 to vector<8x384xf32>
    %29 = arith.addf %27, %28 : vector<8x384xf32>
    %30 = arith.addf %16, %19 : vector<8x384xf32>
    %cst_18 = arith.constant 5.000000e-01 : f32
    %31 = vector.broadcast %cst_18 : f32 to vector<8x384xf32>
    %32 = arith.mulf %31, %30 : vector<8x384xf32>
    %33 = math.tanh %32 : vector<8x384xf32>
    %cst_19 = arith.constant 5.000000e-01 : f32
    %34 = vector.broadcast %cst_19 : f32 to vector<8x384xf32>
    %35 = arith.mulf %34, %33 : vector<8x384xf32>
    %cst_20 = arith.constant 5.000000e-01 : f32
    %36 = vector.broadcast %cst_20 : f32 to vector<8x384xf32>
    %37 = arith.addf %35, %36 : vector<8x384xf32>
    %38 = arith.mulf %29, %21 : vector<8x384xf32>
    %39 = arith.addf %17, %38 : vector<8x384xf32>
    %40 = math.tanh %39 : vector<8x384xf32>
    %cst_21 = arith.constant 1.000000e+00 : f32
    %41 = vector.broadcast %cst_21 : f32 to vector<8x384xf32>
    %42 = arith.subf %41, %37 : vector<8x384xf32>
    %43 = arith.mulf %42, %40 : vector<8x384xf32>
    %44 = arith.mulf %37, %11 : vector<8x384xf32>
    %45 = arith.addf %43, %44 : vector<8x384xf32>
    %c0_22 = arith.constant 0 : index
    %c0_23 = arith.constant 0 : index
    %46 = vector.load %arg10[%c0_22, %c0_23] : memref<64x384xf32, #tpu.memory_space<vmem>>, vector<8x384xf32>
    tpu.vector_store %arg10[%c0_22, %c0_23], %45 {strides = array<i32>} : memref<64x384xf32, #tpu.memory_space<vmem>>, vector<8x384xf32>,
    %47 = arith.truncf %45 : vector<8x384xf32> to vector<8x384xbf16>
    %cst_24 = arith.constant dense<0.000000e+00> : vector<8x1152xf32>
    %48 = tpu.matmul %47, %7, %cst_24 {dimension_numbers = #tpu.dot_dimension_numbers<[1], [0], [0], [1], [0, 0, 1, 1], [], []>} : vector<8x384xbf16>, vector<384x1152xbf16>, vector<8x1152xf32> -> vector<8x1152xf32>
    %c8 = arith.constant 8 : index
    %c0_25 = arith.constant 0 : index
    %49 = vector.load %arg9[%c8, %c0_25] : memref<64x1152xf32, #tpu.memory_space<vmem>>, vector<8x1152xf32>
    %50 = vector.extract_strided_slice %49 {offsets = [0, 0], sizes = [8, 384], strides = [1, 1]} : vector<8x1152xf32> to vector<8x384xf32>
    %51 = vector.extract_strided_slice %49 {offsets = [0, 384], sizes = [8, 384], strides = [1, 1]} : vector<8x1152xf32> to vector<8x384xf32>
    %52 = vector.extract_strided_slice %49 {offsets = [0, 768], sizes = [8, 384], strides = [1, 1]} : vector<8x1152xf32> to vector<8x384xf32>
    %53 = vector.extract_strided_slice %48 {offsets = [0, 0], sizes = [8, 384], strides = [1, 1]} : vector<8x1152xf32> to vector<8x384xf32>
    %54 = vector.extract_strided_slice %48 {offsets = [0, 384], sizes = [8, 384], strides = [1, 1]} : vector<8x1152xf32> to vector<8x384xf32>
    %55 = vector.extract_strided_slice %48 {offsets = [0, 768], sizes = [8, 384], strides = [1, 1]} : vector<8x1152xf32> to vector<8x384xf32>
    %56 = arith.addf %55, %10 : vector<8x384xf32>
    %57 = arith.addf %50, %53 : vector<8x384xf32>
    %cst_26 = arith.constant 5.000000e-01 : f32
    %58 = vector.broadcast %cst_26 : f32 to vector<8x384xf32>
    %59 = arith.mulf %58, %57 : vector<8x384xf32>
    %60 = math.tanh %59 : vector<8x384xf32>
    %cst_27 = arith.constant 5.000000e-01 : f32
    %61 = vector.broadcast %cst_27 : f32 to vector<8x384xf32>
    %62 = arith.mulf %61, %60 : vector<8x384xf32>
    %cst_28 = arith.constant 5.000000e-01 : f32
    %63 = vector.broadcast %cst_28 : f32 to vector<8x384xf32>
    %64 = arith.addf %62, %63 : vector<8x384xf32>
    %65 = arith.addf %51, %54 : vector<8x384xf32>
    %cst_29 = arith.constant 5.000000e-01 : f32
    %66 = vector.broadcast %cst_29 : f32 to vector<8x384xf32>
    %67 = arith.mulf %66, %65 : vector<8x384xf32>
    %68 = math.tanh %67 : vector<8x384xf32>
    %cst_30 = arith.constant 5.000000e-01 : f32
    %69 = vector.broadcast %cst_30 : f32 to vector<8x384xf32>
    %70 = arith.mulf %69, %68 : vector<8x384xf32>
    %cst_31 = arith.constant 5.000000e-01 : f32
    %71 = vector.broadcast %cst_31 : f32 to vector<8x384xf32>
    %72 = arith.addf %70, %71 : vector<8x384xf32>
    %73 = arith.mulf %64, %56 : vector<8x384xf32>
    %74 = arith.addf %52, %73 : vector<8x384xf32>
    %75 = math.tanh %74 : vector<8x384xf32>
    %cst_32 = arith.constant 1.000000e+00 : f32
    %76 = vector.broadcast %cst_32 : f32 to vector<8x384xf32>
    %77 = arith.subf %76, %72 : vector<8x384xf32>
    %78 = arith.mulf %77, %75 : vector<8x384xf32>
    %79 = arith.mulf %72, %45 : vector<8x384xf32>
    %80 = arith.addf %78, %79 : vector<8x384xf32>
    %c8_33 = arith.constant 8 : index
    %c0_34 = arith.constant 0 : index
    %81 = vector.load %arg10[%c8_33, %c0_34] : memref<64x384xf32, #tpu.memory_space<vmem>>, vector<8x384xf32>
    tpu.vector_store %arg10[%c8_33, %c0_34], %80 {strides = array<i32>} : memref<64x384xf32, #tpu.memory_space<vmem>>, vector<8x384xf32>,
    %82 = arith.truncf %80 : vector<8x384xf32> to vector<8x384xbf16>
    %cst_35 = arith.constant dense<0.000000e+00> : vector<8x1152xf32>
    %83 = tpu.matmul %82, %7, %cst_35 {dimension_numbers = #tpu.dot_dimension_numbers<[1], [0], [0], [1], [0, 0, 1, 1], [], []>} : vector<8x384xbf16>, vector<384x1152xbf16>, vector<8x1152xf32> -> vector<8x1152xf32>
    %c16 = arith.constant 16 : index
    %c0_36 = arith.constant 0 : index
    %84 = vector.load %arg9[%c16, %c0_36] : memref<64x1152xf32, #tpu.memory_space<vmem>>, vector<8x1152xf32>
    %85 = vector.extract_strided_slice %84 {offsets = [0, 0], sizes = [8, 384], strides = [1, 1]} : vector<8x1152xf32> to vector<8x384xf32>
    %86 = vector.extract_strided_slice %84 {offsets = [0, 384], sizes = [8, 384], strides = [1, 1]} : vector<8x1152xf32> to vector<8x384xf32>
    %87 = vector.extract_strided_slice %84 {offsets = [0, 768], sizes = [8, 384], strides = [1, 1]} : vector<8x1152xf32> to vector<8x384xf32>
    %88 = vector.extract_strided_slice %83 {offsets = [0, 0], sizes = [8, 384], strides = [1, 1]} : vector<8x1152xf32> to vector<8x384xf32>
    %89 = vector.extract_strided_slice %83 {offsets = [0, 384], sizes = [8, 384], strides = [1, 1]} : vector<8x1152xf32> to vector<8x384xf32>
    %90 = vector.extract_strided_slice %83 {offsets = [0, 768], sizes = [8, 384], strides = [1, 1]} : vector<8x1152xf32> to vector<8x384xf32>
    %91 = arith.addf %90, %10 : vector<8x384xf32>
    %92 = arith.addf %85, %88 : vector<8x384xf32>
    %cst_37 = arith.constant 5.000000e-01 : f32
    %93 = vector.broadcast %cst_37 : f32 to vector<8x384xf32>
    %94 = arith.mulf %93, %92 : vector<8x384xf32>
    %95 = math.tanh %94 : vector<8x384xf32>
    %cst_38 = arith.constant 5.000000e-01 : f32
    %96 = vector.broadcast %cst_38 : f32 to vector<8x384xf32>
    %97 = arith.mulf %96, %95 : vector<8x384xf32>
    %cst_39 = arith.constant 5.000000e-01 : f32
    %98 = vector.broadcast %cst_39 : f32 to vector<8x384xf32>
    %99 = arith.addf %97, %98 : vector<8x384xf32>
    %100 = arith.addf %86, %89 : vector<8x384xf32>
    %cst_40 = arith.constant 5.000000e-01 : f32
    %101 = vector.broadcast %cst_40 : f32 to vector<8x384xf32>
    %102 = arith.mulf %101, %100 : vector<8x384xf32>
    %103 = math.tanh %102 : vector<8x384xf32>
    %cst_41 = arith.constant 5.000000e-01 : f32
    %104 = vector.broadcast %cst_41 : f32 to vector<8x384xf32>
    %105 = arith.mulf %104, %103 : vector<8x384xf32>
    %cst_42 = arith.constant 5.000000e-01 : f32
    %106 = vector.broadcast %cst_42 : f32 to vector<8x384xf32>
    %107 = arith.addf %105, %106 : vector<8x384xf32>
    %108 = arith.mulf %99, %91 : vector<8x384xf32>
    %109 = arith.addf %87, %108 : vector<8x384xf32>
    %110 = math.tanh %109 : vector<8x384xf32>
    %cst_43 = arith.constant 1.000000e+00 : f32
    %111 = vector.broadcast %cst_43 : f32 to vector<8x384xf32>
    %112 = arith.subf %111, %107 : vector<8x384xf32>
    %113 = arith.mulf %112, %110 : vector<8x384xf32>
    %114 = arith.mulf %107, %80 : vector<8x384xf32>
    %115 = arith.addf %113, %114 : vector<8x384xf32>
    %c16_44 = arith.constant 16 : index
    %c0_45 = arith.constant 0 : index
    %116 = vector.load %arg10[%c16_44, %c0_45] : memref<64x384xf32, #tpu.memory_space<vmem>>, vector<8x384xf32>
    tpu.vector_store %arg10[%c16_44, %c0_45], %115 {strides = array<i32>} : memref<64x384xf32, #tpu.memory_space<vmem>>, vector<8x384xf32>,
    %117 = arith.truncf %115 : vector<8x384xf32> to vector<8x384xbf16>
    %cst_46 = arith.constant dense<0.000000e+00> : vector<8x1152xf32>
    %118 = tpu.matmul %117, %7, %cst_46 {dimension_numbers = #tpu.dot_dimension_numbers<[1], [0], [0], [1], [0, 0, 1, 1], [], []>} : vector<8x384xbf16>, vector<384x1152xbf16>, vector<8x1152xf32> -> vector<8x1152xf32>
    %c24 = arith.constant 24 : index
    %c0_47 = arith.constant 0 : index
    %119 = vector.load %arg9[%c24, %c0_47] : memref<64x1152xf32, #tpu.memory_space<vmem>>, vector<8x1152xf32>
    %120 = vector.extract_strided_slice %119 {offsets = [0, 0], sizes = [8, 384], strides = [1, 1]} : vector<8x1152xf32> to vector<8x384xf32>
    %121 = vector.extract_strided_slice %119 {offsets = [0, 384], sizes = [8, 384], strides = [1, 1]} : vector<8x1152xf32> to vector<8x384xf32>
    %122 = vector.extract_strided_slice %119 {offsets = [0, 768], sizes = [8, 384], strides = [1, 1]} : vector<8x1152xf32> to vector<8x384xf32>
    %123 = vector.extract_strided_slice %118 {offsets = [0, 0], sizes = [8, 384], strides = [1, 1]} : vector<8x1152xf32> to vector<8x384xf32>
    %124 = vector.extract_strided_slice %118 {offsets = [0, 384], sizes = [8, 384], strides = [1, 1]} : vector<8x1152xf32> to vector<8x384xf32>
    %125 = vector.extract_strided_slice %118 {offsets = [0, 768], sizes = [8, 384], strides = [1, 1]} : vector<8x1152xf32> to vector<8x384xf32>
    %126 = arith.addf %125, %10 : vector<8x384xf32>
    %127 = arith.addf %120, %123 : vector<8x384xf32>
    %cst_48 = arith.constant 5.000000e-01 : f32
    %128 = vector.broadcast %cst_48 : f32 to vector<8x384xf32>
    %129 = arith.mulf %128, %127 : vector<8x384xf32>
    %130 = math.tanh %129 : vector<8x384xf32>
    %cst_49 = arith.constant 5.000000e-01 : f32
    %131 = vector.broadcast %cst_49 : f32 to vector<8x384xf32>
    %132 = arith.mulf %131, %130 : vector<8x384xf32>
    %cst_50 = arith.constant 5.000000e-01 : f32
    %133 = vector.broadcast %cst_50 : f32 to vector<8x384xf32>
    %134 = arith.addf %132, %133 : vector<8x384xf32>
    %135 = arith.addf %121, %124 : vector<8x384xf32>
    %cst_51 = arith.constant 5.000000e-01 : f32
    %136 = vector.broadcast %cst_51 : f32 to vector<8x384xf32>
    %137 = arith.mulf %136, %135 : vector<8x384xf32>
    %138 = math.tanh %137 : vector<8x384xf32>
    %cst_52 = arith.constant 5.000000e-01 : f32
    %139 = vector.broadcast %cst_52 : f32 to vector<8x384xf32>
    %140 = arith.mulf %139, %138 : vector<8x384xf32>
    %cst_53 = arith.constant 5.000000e-01 : f32
    %141 = vector.broadcast %cst_53 : f32 to vector<8x384xf32>
    %142 = arith.addf %140, %141 : vector<8x384xf32>
    %143 = arith.mulf %134, %126 : vector<8x384xf32>
    %144 = arith.addf %122, %143 : vector<8x384xf32>
    %145 = math.tanh %144 : vector<8x384xf32>
    %cst_54 = arith.constant 1.000000e+00 : f32
    %146 = vector.broadcast %cst_54 : f32 to vector<8x384xf32>
    %147 = arith.subf %146, %142 : vector<8x384xf32>
    %148 = arith.mulf %147, %145 : vector<8x384xf32>
    %149 = arith.mulf %142, %115 : vector<8x384xf32>
    %150 = arith.addf %148, %149 : vector<8x384xf32>
    %c24_55 = arith.constant 24 : index
    %c0_56 = arith.constant 0 : index
    %151 = vector.load %arg10[%c24_55, %c0_56] : memref<64x384xf32, #tpu.memory_space<vmem>>, vector<8x384xf32>
    tpu.vector_store %arg10[%c24_55, %c0_56], %150 {strides = array<i32>} : memref<64x384xf32, #tpu.memory_space<vmem>>, vector<8x384xf32>,
    %152 = arith.truncf %150 : vector<8x384xf32> to vector<8x384xbf16>
    %cst_57 = arith.constant dense<0.000000e+00> : vector<8x1152xf32>
    %153 = tpu.matmul %152, %7, %cst_57 {dimension_numbers = #tpu.dot_dimension_numbers<[1], [0], [0], [1], [0, 0, 1, 1], [], []>} : vector<8x384xbf16>, vector<384x1152xbf16>, vector<8x1152xf32> -> vector<8x1152xf32>
    %c32 = arith.constant 32 : index
    %c0_58 = arith.constant 0 : index
    %154 = vector.load %arg9[%c32, %c0_58] : memref<64x1152xf32, #tpu.memory_space<vmem>>, vector<8x1152xf32>
    %155 = vector.extract_strided_slice %154 {offsets = [0, 0], sizes = [8, 384], strides = [1, 1]} : vector<8x1152xf32> to vector<8x384xf32>
    %156 = vector.extract_strided_slice %154 {offsets = [0, 384], sizes = [8, 384], strides = [1, 1]} : vector<8x1152xf32> to vector<8x384xf32>
    %157 = vector.extract_strided_slice %154 {offsets = [0, 768], sizes = [8, 384], strides = [1, 1]} : vector<8x1152xf32> to vector<8x384xf32>
    %158 = vector.extract_strided_slice %153 {offsets = [0, 0], sizes = [8, 384], strides = [1, 1]} : vector<8x1152xf32> to vector<8x384xf32>
    %159 = vector.extract_strided_slice %153 {offsets = [0, 384], sizes = [8, 384], strides = [1, 1]} : vector<8x1152xf32> to vector<8x384xf32>
    %160 = vector.extract_strided_slice %153 {offsets = [0, 768], sizes = [8, 384], strides = [1, 1]} : vector<8x1152xf32> to vector<8x384xf32>
    %161 = arith.addf %160, %10 : vector<8x384xf32>
    %162 = arith.addf %155, %158 : vector<8x384xf32>
    %cst_59 = arith.constant 5.000000e-01 : f32
    %163 = vector.broadcast %cst_59 : f32 to vector<8x384xf32>
    %164 = arith.mulf %163, %162 : vector<8x384xf32>
    %165 = math.tanh %164 : vector<8x384xf32>
    %cst_60 = arith.constant 5.000000e-01 : f32
    %166 = vector.broadcast %cst_60 : f32 to vector<8x384xf32>
    %167 = arith.mulf %166, %165 : vector<8x384xf32>
    %cst_61 = arith.constant 5.000000e-01 : f32
    %168 = vector.broadcast %cst_61 : f32 to vector<8x384xf32>
    %169 = arith.addf %167, %168 : vector<8x384xf32>
    %170 = arith.addf %156, %159 : vector<8x384xf32>
    %cst_62 = arith.constant 5.000000e-01 : f32
    %171 = vector.broadcast %cst_62 : f32 to vector<8x384xf32>
    %172 = arith.mulf %171, %170 : vector<8x384xf32>
    %173 = math.tanh %172 : vector<8x384xf32>
    %cst_63 = arith.constant 5.000000e-01 : f32
    %174 = vector.broadcast %cst_63 : f32 to vector<8x384xf32>
    %175 = arith.mulf %174, %173 : vector<8x384xf32>
    %cst_64 = arith.constant 5.000000e-01 : f32
    %176 = vector.broadcast %cst_64 : f32 to vector<8x384xf32>
    %177 = arith.addf %175, %176 : vector<8x384xf32>
    %178 = arith.mulf %169, %161 : vector<8x384xf32>
    %179 = arith.addf %157, %178 : vector<8x384xf32>
    %180 = math.tanh %179 : vector<8x384xf32>
    %cst_65 = arith.constant 1.000000e+00 : f32
    %181 = vector.broadcast %cst_65 : f32 to vector<8x384xf32>
    %182 = arith.subf %181, %177 : vector<8x384xf32>
    %183 = arith.mulf %182, %180 : vector<8x384xf32>
    %184 = arith.mulf %177, %150 : vector<8x384xf32>
    %185 = arith.addf %183, %184 : vector<8x384xf32>
    %c32_66 = arith.constant 32 : index
    %c0_67 = arith.constant 0 : index
    %186 = vector.load %arg10[%c32_66, %c0_67] : memref<64x384xf32, #tpu.memory_space<vmem>>, vector<8x384xf32>
    tpu.vector_store %arg10[%c32_66, %c0_67], %185 {strides = array<i32>} : memref<64x384xf32, #tpu.memory_space<vmem>>, vector<8x384xf32>,
    %187 = arith.truncf %185 : vector<8x384xf32> to vector<8x384xbf16>
    %cst_68 = arith.constant dense<0.000000e+00> : vector<8x1152xf32>
    %188 = tpu.matmul %187, %7, %cst_68 {dimension_numbers = #tpu.dot_dimension_numbers<[1], [0], [0], [1], [0, 0, 1, 1], [], []>} : vector<8x384xbf16>, vector<384x1152xbf16>, vector<8x1152xf32> -> vector<8x1152xf32>
    %c40 = arith.constant 40 : index
    %c0_69 = arith.constant 0 : index
    %189 = vector.load %arg9[%c40, %c0_69] : memref<64x1152xf32, #tpu.memory_space<vmem>>, vector<8x1152xf32>
    %190 = vector.extract_strided_slice %189 {offsets = [0, 0], sizes = [8, 384], strides = [1, 1]} : vector<8x1152xf32> to vector<8x384xf32>
    %191 = vector.extract_strided_slice %189 {offsets = [0, 384], sizes = [8, 384], strides = [1, 1]} : vector<8x1152xf32> to vector<8x384xf32>
    %192 = vector.extract_strided_slice %189 {offsets = [0, 768], sizes = [8, 384], strides = [1, 1]} : vector<8x1152xf32> to vector<8x384xf32>
    %193 = vector.extract_strided_slice %188 {offsets = [0, 0], sizes = [8, 384], strides = [1, 1]} : vector<8x1152xf32> to vector<8x384xf32>
    %194 = vector.extract_strided_slice %188 {offsets = [0, 384], sizes = [8, 384], strides = [1, 1]} : vector<8x1152xf32> to vector<8x384xf32>
    %195 = vector.extract_strided_slice %188 {offsets = [0, 768], sizes = [8, 384], strides = [1, 1]} : vector<8x1152xf32> to vector<8x384xf32>
    %196 = arith.addf %195, %10 : vector<8x384xf32>
    %197 = arith.addf %190, %193 : vector<8x384xf32>
    %cst_70 = arith.constant 5.000000e-01 : f32
    %198 = vector.broadcast %cst_70 : f32 to vector<8x384xf32>
    %199 = arith.mulf %198, %197 : vector<8x384xf32>
    %200 = math.tanh %199 : vector<8x384xf32>
    %cst_71 = arith.constant 5.000000e-01 : f32
    %201 = vector.broadcast %cst_71 : f32 to vector<8x384xf32>
    %202 = arith.mulf %201, %200 : vector<8x384xf32>
    %cst_72 = arith.constant 5.000000e-01 : f32
    %203 = vector.broadcast %cst_72 : f32 to vector<8x384xf32>
    %204 = arith.addf %202, %203 : vector<8x384xf32>
    %205 = arith.addf %191, %194 : vector<8x384xf32>
    %cst_73 = arith.constant 5.000000e-01 : f32
    %206 = vector.broadcast %cst_73 : f32 to vector<8x384xf32>
    %207 = arith.mulf %206, %205 : vector<8x384xf32>
    %208 = math.tanh %207 : vector<8x384xf32>
    %cst_74 = arith.constant 5.000000e-01 : f32
    %209 = vector.broadcast %cst_74 : f32 to vector<8x384xf32>
    %210 = arith.mulf %209, %208 : vector<8x384xf32>
    %cst_75 = arith.constant 5.000000e-01 : f32
    %211 = vector.broadcast %cst_75 : f32 to vector<8x384xf32>
    %212 = arith.addf %210, %211 : vector<8x384xf32>
    %213 = arith.mulf %204, %196 : vector<8x384xf32>
    %214 = arith.addf %192, %213 : vector<8x384xf32>
    %215 = math.tanh %214 : vector<8x384xf32>
    %cst_76 = arith.constant 1.000000e+00 : f32
    %216 = vector.broadcast %cst_76 : f32 to vector<8x384xf32>
    %217 = arith.subf %216, %212 : vector<8x384xf32>
    %218 = arith.mulf %217, %215 : vector<8x384xf32>
    %219 = arith.mulf %212, %185 : vector<8x384xf32>
    %220 = arith.addf %218, %219 : vector<8x384xf32>
    %c40_77 = arith.constant 40 : index
    %c0_78 = arith.constant 0 : index
    %221 = vector.load %arg10[%c40_77, %c0_78] : memref<64x384xf32, #tpu.memory_space<vmem>>, vector<8x384xf32>
    tpu.vector_store %arg10[%c40_77, %c0_78], %220 {strides = array<i32>} : memref<64x384xf32, #tpu.memory_space<vmem>>, vector<8x384xf32>,
    %222 = arith.truncf %220 : vector<8x384xf32> to vector<8x384xbf16>
    %cst_79 = arith.constant dense<0.000000e+00> : vector<8x1152xf32>
    %223 = tpu.matmul %222, %7, %cst_79 {dimension_numbers = #tpu.dot_dimension_numbers<[1], [0], [0], [1], [0, 0, 1, 1], [], []>} : vector<8x384xbf16>, vector<384x1152xbf16>, vector<8x1152xf32> -> vector<8x1152xf32>
    %c48 = arith.constant 48 : index
    %c0_80 = arith.constant 0 : index
    %224 = vector.load %arg9[%c48, %c0_80] : memref<64x1152xf32, #tpu.memory_space<vmem>>, vector<8x1152xf32>
    %225 = vector.extract_strided_slice %224 {offsets = [0, 0], sizes = [8, 384], strides = [1, 1]} : vector<8x1152xf32> to vector<8x384xf32>
    %226 = vector.extract_strided_slice %224 {offsets = [0, 384], sizes = [8, 384], strides = [1, 1]} : vector<8x1152xf32> to vector<8x384xf32>
    %227 = vector.extract_strided_slice %224 {offsets = [0, 768], sizes = [8, 384], strides = [1, 1]} : vector<8x1152xf32> to vector<8x384xf32>
    %228 = vector.extract_strided_slice %223 {offsets = [0, 0], sizes = [8, 384], strides = [1, 1]} : vector<8x1152xf32> to vector<8x384xf32>
    %229 = vector.extract_strided_slice %223 {offsets = [0, 384], sizes = [8, 384], strides = [1, 1]} : vector<8x1152xf32> to vector<8x384xf32>
    %230 = vector.extract_strided_slice %223 {offsets = [0, 768], sizes = [8, 384], strides = [1, 1]} : vector<8x1152xf32> to vector<8x384xf32>
    %231 = arith.addf %230, %10 : vector<8x384xf32>
    %232 = arith.addf %225, %228 : vector<8x384xf32>
    %cst_81 = arith.constant 5.000000e-01 : f32
    %233 = vector.broadcast %cst_81 : f32 to vector<8x384xf32>
    %234 = arith.mulf %233, %232 : vector<8x384xf32>
    %235 = math.tanh %234 : vector<8x384xf32>
    %cst_82 = arith.constant 5.000000e-01 : f32
    %236 = vector.broadcast %cst_82 : f32 to vector<8x384xf32>
    %237 = arith.mulf %236, %235 : vector<8x384xf32>
    %cst_83 = arith.constant 5.000000e-01 : f32
    %238 = vector.broadcast %cst_83 : f32 to vector<8x384xf32>
    %239 = arith.addf %237, %238 : vector<8x384xf32>
    %240 = arith.addf %226, %229 : vector<8x384xf32>
    %cst_84 = arith.constant 5.000000e-01 : f32
    %241 = vector.broadcast %cst_84 : f32 to vector<8x384xf32>
    %242 = arith.mulf %241, %240 : vector<8x384xf32>
    %243 = math.tanh %242 : vector<8x384xf32>
    %cst_85 = arith.constant 5.000000e-01 : f32
    %244 = vector.broadcast %cst_85 : f32 to vector<8x384xf32>
    %245 = arith.mulf %244, %243 : vector<8x384xf32>
    %cst_86 = arith.constant 5.000000e-01 : f32
    %246 = vector.broadcast %cst_86 : f32 to vector<8x384xf32>
    %247 = arith.addf %245, %246 : vector<8x384xf32>
    %248 = arith.mulf %239, %231 : vector<8x384xf32>
    %249 = arith.addf %227, %248 : vector<8x384xf32>
    %250 = math.tanh %249 : vector<8x384xf32>
    %cst_87 = arith.constant 1.000000e+00 : f32
    %251 = vector.broadcast %cst_87 : f32 to vector<8x384xf32>
    %252 = arith.subf %251, %247 : vector<8x384xf32>
    %253 = arith.mulf %252, %250 : vector<8x384xf32>
    %254 = arith.mulf %247, %220 : vector<8x384xf32>
    %255 = arith.addf %253, %254 : vector<8x384xf32>
    %c48_88 = arith.constant 48 : index
    %c0_89 = arith.constant 0 : index
    %256 = vector.load %arg10[%c48_88, %c0_89] : memref<64x384xf32, #tpu.memory_space<vmem>>, vector<8x384xf32>
    tpu.vector_store %arg10[%c48_88, %c0_89], %255 {strides = array<i32>} : memref<64x384xf32, #tpu.memory_space<vmem>>, vector<8x384xf32>,
    %257 = arith.truncf %255 : vector<8x384xf32> to vector<8x384xbf16>
    %cst_90 = arith.constant dense<0.000000e+00> : vector<8x1152xf32>
    %258 = tpu.matmul %257, %7, %cst_90 {dimension_numbers = #tpu.dot_dimension_numbers<[1], [0], [0], [1], [0, 0, 1, 1], [], []>} : vector<8x384xbf16>, vector<384x1152xbf16>, vector<8x1152xf32> -> vector<8x1152xf32>
    %c56 = arith.constant 56 : index
    %c0_91 = arith.constant 0 : index
    %259 = vector.load %arg9[%c56, %c0_91] : memref<64x1152xf32, #tpu.memory_space<vmem>>, vector<8x1152xf32>
    %260 = vector.extract_strided_slice %259 {offsets = [0, 0], sizes = [8, 384], strides = [1, 1]} : vector<8x1152xf32> to vector<8x384xf32>
    %261 = vector.extract_strided_slice %259 {offsets = [0, 384], sizes = [8, 384], strides = [1, 1]} : vector<8x1152xf32> to vector<8x384xf32>
    %262 = vector.extract_strided_slice %259 {offsets = [0, 768], sizes = [8, 384], strides = [1, 1]} : vector<8x1152xf32> to vector<8x384xf32>
    %263 = vector.extract_strided_slice %258 {offsets = [0, 0], sizes = [8, 384], strides = [1, 1]} : vector<8x1152xf32> to vector<8x384xf32>
    %264 = vector.extract_strided_slice %258 {offsets = [0, 384], sizes = [8, 384], strides = [1, 1]} : vector<8x1152xf32> to vector<8x384xf32>
    %265 = vector.extract_strided_slice %258 {offsets = [0, 768], sizes = [8, 384], strides = [1, 1]} : vector<8x1152xf32> to vector<8x384xf32>
    %266 = arith.addf %265, %10 : vector<8x384xf32>
    %267 = arith.addf %260, %263 : vector<8x384xf32>
    %cst_92 = arith.constant 5.000000e-01 : f32
    %268 = vector.broadcast %cst_92 : f32 to vector<8x384xf32>
    %269 = arith.mulf %268, %267 : vector<8x384xf32>
    %270 = math.tanh %269 : vector<8x384xf32>
    %cst_93 = arith.constant 5.000000e-01 : f32
    %271 = vector.broadcast %cst_93 : f32 to vector<8x384xf32>
    %272 = arith.mulf %271, %270 : vector<8x384xf32>
    %cst_94 = arith.constant 5.000000e-01 : f32
    %273 = vector.broadcast %cst_94 : f32 to vector<8x384xf32>
    %274 = arith.addf %272, %273 : vector<8x384xf32>
    %275 = arith.addf %261, %264 : vector<8x384xf32>
    %cst_95 = arith.constant 5.000000e-01 : f32
    %276 = vector.broadcast %cst_95 : f32 to vector<8x384xf32>
    %277 = arith.mulf %276, %275 : vector<8x384xf32>
    %278 = math.tanh %277 : vector<8x384xf32>
    %cst_96 = arith.constant 5.000000e-01 : f32
    %279 = vector.broadcast %cst_96 : f32 to vector<8x384xf32>
    %280 = arith.mulf %279, %278 : vector<8x384xf32>
    %cst_97 = arith.constant 5.000000e-01 : f32
    %281 = vector.broadcast %cst_97 : f32 to vector<8x384xf32>
    %282 = arith.addf %280, %281 : vector<8x384xf32>
    %283 = arith.mulf %274, %266 : vector<8x384xf32>
    %284 = arith.addf %262, %283 : vector<8x384xf32>
    %285 = math.tanh %284 : vector<8x384xf32>
    %cst_98 = arith.constant 1.000000e+00 : f32
    %286 = vector.broadcast %cst_98 : f32 to vector<8x384xf32>
    %287 = arith.subf %286, %282 : vector<8x384xf32>
    %288 = arith.mulf %287, %285 : vector<8x384xf32>
    %289 = arith.mulf %282, %255 : vector<8x384xf32>
    %290 = arith.addf %288, %289 : vector<8x384xf32>
    %c56_99 = arith.constant 56 : index
    %c0_100 = arith.constant 0 : index
    %291 = vector.load %arg10[%c56_99, %c0_100] : memref<64x384xf32, #tpu.memory_space<vmem>>, vector<8x384xf32>
    tpu.vector_store %arg10[%c56_99, %c0_100], %290 {strides = array<i32>} : memref<64x384xf32, #tpu.memory_space<vmem>>, vector<8x384xf32>,
    %c0_101 = arith.constant 0 : index
    %c0_102 = arith.constant 0 : index
    %292 = vector.load %arg10[%c0_101, %c0_102] : memref<64x384xf32, #tpu.memory_space<vmem>>, vector<64x384xf32>
    %293 = arith.truncf %292 : vector<64x384xf32> to vector<64x384xbf16>
    %c0_103 = arith.constant 0 : index
    %c0_104 = arith.constant 0 : index
    %294 = vector.load %arg6[%c0_103, %c0_104] : memref<384x10xbf16, #tpu.memory_space<vmem>>, vector<384x10xbf16>
    %cst_105 = arith.constant dense<0.000000e+00> : vector<64x10xf32>
    %295 = tpu.matmul %293, %294, %cst_105 {dimension_numbers = #tpu.dot_dimension_numbers<[1], [0], [0], [1], [0, 0, 1, 1], [], []>} : vector<64x384xbf16>, vector<384x10xbf16>, vector<64x10xf32> -> vector<64x10xf32>
    %c0_106 = arith.constant 0 : index
    %c0_107 = arith.constant 0 : index
    %296 = vector.load %arg7[%c0_106, %c0_107] : memref<1x10xf32, #tpu.memory_space<vmem>>, vector<1x10xf32>
    %297 = vector.broadcast %296 : vector<1x10xf32> to vector<64x10xf32>
    %298 = arith.addf %295, %297 : vector<64x10xf32>
    %c0_108 = arith.constant 0 : index
    %c0_109 = arith.constant 0 : index
    %299 = vector.load %arg8[%c0_108, %c0_109] : memref<64x10xf32, #tpu.memory_space<vmem>>, vector<64x10xf32>
    tpu.vector_store %arg8[%c0_108, %c0_109], %298 {strides = array<i32>} : memref<64x10xf32, #tpu.memory_space<vmem>>, vector<64x10xf32>,
    return
  }
}

</mosaic_0001>

<llo_original>
// kernel: rnn_forward_pallas.1
$region0: #{rnn_forward_pallas.1}
  #allocation0 [shape = 'u32[]', space=smem, size = 0x4, offset = 0x4, fixed_abs, tag = 'smem constant byte address 0x4 - core index']
  #allocation1 [shape = 'u32[144,128]{1,0:T(1,128)}', space=vmem, size = 0x12000, scoped, tag = 'internal scratch']
  #allocation2 [shape = 'f32[64,1152]{1,0:T(8,128)}', space=vmem, size = 0x48000, scoped, tag = 'scratch operand']
  #allocation3 [shape = 'f32[64,384]{1,0:T(8,128)}', space=vmem, size = 0x18000, scoped, tag = 'scratch operand']
  %s0 = inlined_call_operand.vmem [shape: f32[64,10], index: 0, kind: input, shape index: {}]
  %s1 = inlined_call_operand.vmem [shape: f32[8,384], index: 1, kind: input, shape index: {}]
  %s2 = inlined_call_operand.vmem [shape: f32[10,1152], index: 2, kind: input, shape index: {}]
  %s3 = inlined_call_operand.vmem [shape: f32[1,1152], index: 3, kind: input, shape index: {}]
  %s4 = inlined_call_operand.hbm [shape: bf16[384,1152], index: 4, kind: input, shape index: {}]
  %s5 = inlined_call_operand.vmem [shape: f32[1,1152], index: 5, kind: input, shape index: {}]
  %s6 = inlined_call_operand.vmem [shape: bf16[384,10], index: 6, kind: input, shape index: {}]
  %s7 = inlined_call_operand.vmem [shape: f32[1,10], index: 7, kind: input, shape index: {}]
  %s8 = inlined_call_operand.vmem [shape: f32[64,10], index: 8, kind: output, shape index: {}]
  %s9 = sld [smem:[#allocation0]]
  $region46: #{rnn_forward_pallas.1} parent=0
    _
  %s11 = ssub.s32 1, %s9
  %s12 = scalar_select 0, %s11, %s9
  $region1: #{rnn_forward_pallas.1} parent=0
    #allocation4 [shape = 'u8[884736]{0}', space=vmem, size = 0xd8000, scoped, tag = 'input window, operand 4, single buffered']
    #allocation5 [shape = 's32[1]{0}', space=sflag, size = 0x4, scoped, tag = 'scoped memory for rnn_forward_pallas.1']
    %13 = vsyncpa [#allocation5], 0
    // Predicated region
    $region2: #{rnn_forward_pallas.1} parent=1 // pred_check
      _
    $region3: #{rnn_forward_pallas.1} parent=1 // pred_check_branch
      %15 = sbr.rel (0) target = $region5
    $region4: #{rnn_forward_pallas.1} parent=1 // pred_region
      _
    $region5: #{rnn_forward_pallas.1} parent=1 // pred_fallthru
      _
    // Predicated region
    $region6: #{rnn_forward_pallas.1} parent=1 // pred_check
      _
    $region7: #{rnn_forward_pallas.1} parent=1 // pred_check_branch
      %17 = sbr.rel (0) target = $region9
    $region8: #{rnn_forward_pallas.1} parent=1 // pred_region
      _
    $region9: #{rnn_forward_pallas.1} parent=1 // pred_fallthru
      _
    // Predicated region
    $region10: #{rnn_forward_pallas.1} parent=1 // pred_check
      _
    $region11: #{rnn_forward_pallas.1} parent=1 // pred_check_branch
      %19 = sbr.rel (0) target = $region13
    $region12: #{rnn_forward_pallas.1} parent=1 // pred_region
      _
    $region13: #{rnn_forward_pallas.1} parent=1 // pred_fallthru
      _
    // Predicated region
    $region14: #{rnn_forward_pallas.1} parent=1 // pred_check
      _
    $region15: #{rnn_forward_pallas.1} parent=1 // pred_check_branch
      %21 = sbr.rel (0) target = $region17
    $region16: #{rnn_forward_pallas.1} parent=1 // pred_region
      _
    $region17: #{rnn_forward_pallas.1} parent=1 // pred_fallthru
      _
    // Predicated region
    $region18: #{rnn_forward_pallas.1} parent=1 // pred_check
      _
    $region19: #{rnn_forward_pallas.1} parent=1 // pred_check_branch
      %23 = sbr.rel (0) target = $region21
    $region20: #{rnn_forward_pallas.1} parent=1 // pred_region
      %s25 = ssub.s32 27648, 27648
      %26 = vsyncadd [#allocation5], %s25
      %s27 = sshll.u32 [#allocation4], 4
      %s28 = int_to_ptr.vmem [resolvable:$true] %s27
      %33 = dma.hbm_to_vmem [thread:$0]  %s4, 27648, %s28, [#allocation5], 576, 576, 36
    $region21: #{rnn_forward_pallas.1} parent=1 // pred_fallthru
      _
    // Predicated region
    $region22: #{rnn_forward_pallas.1} parent=1 // pred_check
      _
    $region23: #{rnn_forward_pallas.1} parent=1 // pred_check_branch
      %35 = sbr.rel (0) target = $region25
    $region24: #{rnn_forward_pallas.1} parent=1 // pred_region
      _
    $region25: #{rnn_forward_pallas.1} parent=1 // pred_fallthru
      _
    // Predicated region
    $region26: #{rnn_forward_pallas.1} parent=1 // pred_check
      _
    $region27: #{rnn_forward_pallas.1} parent=1 // pred_check_branch
      %37 = sbr.rel (0) target = $region29
    $region28: #{rnn_forward_pallas.1} parent=1 // pred_region
      _
    $region29: #{rnn_forward_pallas.1} parent=1 // pred_fallthru
      _
    // Predicated region
    $region30: #{rnn_forward_pallas.1} parent=1 // pred_check
      _
    $region31: #{rnn_forward_pallas.1} parent=1 // pred_check_branch
      %39 = sbr.rel (0) target = $region33
    $region32: #{rnn_forward_pallas.1} parent=1 // pred_region
      _
    $region33: #{rnn_forward_pallas.1} parent=1 // pred_fallthru
      _
    // Predicated region
    $region34: #{rnn_forward_pallas.1} parent=1 // pred_check
      _
    $region35: #{rnn_forward_pallas.1} parent=1 // pred_check_branch
      %41 = sbr.rel (0) target = $region37
    $region36: #{rnn_forward_pallas.1} parent=1 // pred_region
      %42 = dma.done [#allocation5], 27648
    $region37: #{rnn_forward_pallas.1} parent=1 // pred_fallthru
      _
    %v44 = vld [vmem:[%s0] sm:$0xff]
    %v45 = vld [vmem:[%s0 + $0x8] sm:$0xff]
    %v46 = vld [vmem:[%s0 + $0x10] sm:$0xff]
    %v47 = vld [vmem:[%s0 + $0x18] sm:$0xff]
    %v48 = vld [vmem:[%s0 + $0x20] sm:$0xff]
    %v49 = vld [vmem:[%s0 + $0x28] sm:$0xff]
    %v50 = vld [vmem:[%s0 + $0x30] sm:$0xff]
    %v51 = vld [vmem:[%s0 + $0x38] sm:$0xff]
    %v52 = vld [vmem:[%s2] sm:$0xff]
    %v53 = vld [vmem:[%s2 + $0x8] sm:$0xff]
    %v54 = vld [vmem:[%s2 + $0x10] sm:$0xff]
    %v55 = vld [vmem:[%s2 + $0x18] sm:$0xff]
    %v56 = vld [vmem:[%s2 + $0x20] sm:$0xff]
    %v57 = vld [vmem:[%s2 + $0x28] sm:$0xff]
    %v58 = vld [vmem:[%s2 + $0x30] sm:$0xff]
    %v59 = vld [vmem:[%s2 + $0x38] sm:$0xff]
    %v60 = vld [vmem:[%s2 + $0x40] sm:$0xff]
    %v61 = vld [vmem:[%s2 + $0x48] sm:$0x3]
    %v62 = vld [vmem:[%s2 + $0x50] sm:$0x3]
    %v63 = vld [vmem:[%s2 + $0x58] sm:$0x3]
    %v64 = vld [vmem:[%s2 + $0x60] sm:$0x3]
    %v65 = vld [vmem:[%s2 + $0x68] sm:$0x3]
    %v66 = vld [vmem:[%s2 + $0x70] sm:$0x3]
    %v67 = vld [vmem:[%s2 + $0x78] sm:$0x3]
    %v68 = vld [vmem:[%s2 + $0x80] sm:$0x3]
    %v69 = vld [vmem:[%s2 + $0x88] sm:$0x3]
    %v70 = vld [vmem:[%s3] sm:$0xff]
    %v71 = vld [vmem:[%s3 + $0x8] sm:$0x1]
    %v74 = vlaneseq
    %v75 = vshrl.u32 %v74, 7
    %v76 = vsub.s32 0, %v75
    %v77 = vrot.slane %v70, %v76
    %v78 = vlaneseq
    %v79 = vshrl.u32 %v78, 7
    %v80 = vsub.s32 1, %v79
    %v81 = vrot.slane %v70, %v80
    %v82 = vlaneseq
    %v83 = vshrl.u32 %v82, 7
    %v84 = vsub.s32 2, %v83
    %v85 = vrot.slane %v70, %v84
    %v86 = vlaneseq
    %v87 = vshrl.u32 %v86, 7
    %v88 = vsub.s32 3, %v87
    %v89 = vrot.slane %v70, %v88
    %v90 = vlaneseq
    %v91 = vshrl.u32 %v90, 7
    %v92 = vsub.s32 4, %v91
    %v93 = vrot.slane %v70, %v92
    %v94 = vlaneseq
    %v95 = vshrl.u32 %v94, 7
    %v96 = vsub.s32 5, %v95
    %v97 = vrot.slane %v70, %v96
    %v98 = vlaneseq
    %v99 = vshrl.u32 %v98, 7
    %v100 = vsub.s32 6, %v99
    %v101 = vrot.slane %v70, %v100
    %v102 = vlaneseq
    %v103 = vshrl.u32 %v102, 7
    %v104 = vsub.s32 7, %v103
    %v105 = vrot.slane %v70, %v104
    %v106 = vlaneseq
    %v107 = vshrl.u32 %v106, 7
    %v108 = vsub.s32 0, %v107
    %v109 = vrot.slane %v71, %v108
    %vm119 = vcmask 80896
    %v121 = vsel %vm119, %v44, 0
    %v124 = vsel %vm119, %v45, 0
    %v127 = vsel %vm119, %v46, 0
    %v130 = vsel %vm119, %v47, 0
    %v133 = vsel %vm119, %v48, 0
    %v136 = vsel %vm119, %v49, 0
    %v139 = vsel %vm119, %v50, 0
    %v142 = vsel %vm119, %v51, 0
    %vm144 = vcmask 1041408
    %v146 = vsel %vm144, %v61, 0
    %v149 = vsel %vm144, %v62, 0
    %v152 = vsel %vm144, %v63, 0
    %v155 = vsel %vm144, %v64, 0
    %v158 = vsel %vm144, %v65, 0
    %v161 = vsel %vm144, %v66, 0
    %v164 = vsel %vm144, %v67, 0
    %v167 = vsel %vm144, %v68, 0
    %v170 = vsel %vm144, %v69, 0
    %172 = vmatprep.subr.mxu0 0.0
    %173 = vmatpush1.msra.mxu0 0.0
    %174 = vmatprep.subr.mxu0 0.0
    %175 = vmatpush1.msra.mxu0 0.0
    %176 = vmatprep.subr.mxu0 0.0
    %177 = vmatpush1.msra.mxu0 0.0
    %178 = vmatprep.subr.mxu0 0.0
    %179 = vmatpush1.msra.mxu0 0.0
    %180 = vmatprep.subr.mxu0 0.0
    %181 = vmatpush1.msra.mxu0 0.0
    %182 = vmatprep.subr.mxu0 0.0
    %183 = vmatpush1.msra.mxu0 0.0
    %184 = vmatprep.subr.mxu0 0.0
    %185 = vmatpush1.msra.mxu0 0.0
    %186 = vmatprep.subr.mxu0 0.0
    %187 = vmatpush1.msra.mxu0 0.0
    %188 = vmatprep.subr.mxu0 0.0
    %189 = vmatpush1.msra.mxu0 0.0
    %190 = vmatprep.subr.mxu0 0.0
    %191 = vmatpush1.msra.mxu0 0.0
    %192 = vmatprep.subr.mxu0 0.0
    %193 = vmatpush1.msra.mxu0 0.0
    %194 = vmatprep.subr.mxu0 0.0
    %195 = vmatpush1.msra.mxu0 0.0
    %196 = vmatprep.subr.mxu0 0.0
    %197 = vmatpush1.msra.mxu0 0.0
    %198 = vmatprep.subr.mxu0 0.0
    %199 = vmatpush1.msra.mxu0 0.0
    %200 = vmatprep.subr.mxu0 %v149
    %201 = vmatpush1.msra.mxu0 %v146
    %202 = vmatprep.subr.mxu0 %v53
    %203 = vmatpush1.msra.mxu0 %v52
    %204 = vmatprep.subr.mxu0 0.0
    %205 = vmatpush2.msra.mxu0 0.0
    %206 = vmatprep.subr.mxu0 0.0
    %207 = vmatpush2.msra.mxu0 0.0
    %208 = vmatprep.subr.mxu0 0.0
    %209 = vmatpush2.msra.mxu0 0.0
    %210 = vmatprep.subr.mxu0 0.0
    %211 = vmatpush2.msra.mxu0 0.0
    %212 = vmatprep.subr.mxu0 0.0
    %213 = vmatpush2.msra.mxu0 0.0
    %214 = vmatprep.subr.mxu0 0.0
    %215 = vmatpush2.msra.mxu0 0.0
    %216 = vmatprep.subr.mxu0 0.0
    %217 = vmatpush2.msra.mxu0 0.0
    %218 = vmatprep.subr.mxu0 0.0
    %219 = vmatpush2.msra.mxu0 0.0
    %220 = vmatprep.subr.mxu0 0.0
    %221 = vmatpush2.msra.mxu0 0.0
    %222 = vmatprep.subr.mxu0 0.0
    %223 = vmatpush2.msra.mxu0 0.0
    %224 = vmatprep.subr.mxu0 0.0
    %225 = vmatpush2.msra.mxu0 0.0
    %226 = vmatprep.subr.mxu0 0.0
    %227 = vmatpush2.msra.mxu0 0.0
    %228 = vmatprep.subr.mxu0 0.0
    %229 = vmatpush2.msra.mxu0 0.0
    %230 = vmatprep.subr.mxu0 0.0
    %231 = vmatpush2.msra.mxu0 0.0
    %232 = vmatprep.subr.mxu0 0.0
    %233 = vmatpush2.msra.mxu0 0.0
    %234 = vmatprep.subr.mxu0 0.0
    %235 = vmatpush2.msra.mxu0 0.0
    %236 = vmatprep.mubr.f32.mxu0 0.0
    %237 = vmatmul.mubr.f32.gmra.mxu0 %v121
    %v238 = vpop.f32.mrf.mxu0
    %v239 = vadd.f32 %v77, %v238
    %v240 = vpop.f32.mrf.mxu0
    %v241 = vadd.f32 %v81, %v240
    %242 = vmatprep.mubr.f32.mxu0 0.0
    %243 = vmatmul.mubr.f32.gmra.mxu0 %v124
    %v244 = vpop.f32.mrf.mxu0
    %v245 = vadd.f32 %v77, %v244
    %v246 = vpop.f32.mrf.mxu0
    %v247 = vadd.f32 %v81, %v246
    %248 = vmatprep.mubr.f32.mxu0 0.0
    %249 = vmatmul.mubr.f32.gmra.mxu0 %v127
    %v250 = vpop.f32.mrf.mxu0
    %v251 = vadd.f32 %v77, %v250
    %v252 = vpop.f32.mrf.mxu0
    %v253 = vadd.f32 %v81, %v252
    %254 = vmatprep.mubr.f32.mxu0 0.0
    %255 = vmatmul.mubr.f32.gmra.mxu0 %v130
    %v256 = vpop.f32.mrf.mxu0
    %v257 = vadd.f32 %v77, %v256
    %v258 = vpop.f32.mrf.mxu0
    %v259 = vadd.f32 %v81, %v258
    %260 = vmatprep.mubr.f32.mxu0 0.0
    %261 = vmatmul.mubr.f32.gmra.mxu0 %v133
    %v262 = vpop.f32.mrf.mxu0
    %v263 = vadd.f32 %v77, %v262
    %v264 = vpop.f32.mrf.mxu0
    %v265 = vadd.f32 %v81, %v264
    %266 = vmatprep.mubr.f32.mxu0 0.0
    %267 = vmatmul.mubr.f32.gmra.mxu0 %v136
    %v268 = vpop.f32.mrf.mxu0
    %v269 = vadd.f32 %v77, %v268
    %v270 = vpop.f32.mrf.mxu0
    %v271 = vadd.f32 %v81, %v270
    %272 = vmatprep.mubr.f32.mxu0 0.0
    %273 = vmatmul.mubr.f32.gmra.mxu0 %v139
    %v274 = vpop.f32.mrf.mxu0
    %v275 = vadd.f32 %v77, %v274
    %v276 = vpop.f32.mrf.mxu0
    %v277 = vadd.f32 %v81, %v276
    %278 = vmatprep.mubr.f32.mxu0 0.0
    %279 = vmatmul.mubr.f32.gmra.mxu0 %v142
    %v280 = vpop.f32.mrf.mxu0
    %v281 = vadd.f32 %v77, %v280
    %v282 = vpop.f32.mrf.mxu0
    %v283 = vadd.f32 %v81, %v282
    %284 = vdwg.mxu0
    %285 = vmatprep.subr.mxu0 0.0
    %286 = vmatpush1.msra.mxu0 0.0
    %287 = vmatprep.subr.mxu0 0.0
    %288 = vmatpush1.msra.mxu0 0.0
    %289 = vmatprep.subr.mxu0 0.0
    %290 = vmatpush1.msra.mxu0 0.0
    %291 = vmatprep.subr.mxu0 0.0
    %292 = vmatpush1.msra.mxu0 0.0
    %293 = vmatprep.subr.mxu0 0.0
    %294 = vmatpush1.msra.mxu0 0.0
    %295 = vmatprep.subr.mxu0 0.0
    %296 = vmatpush1.msra.mxu0 0.0
    %297 = vmatprep.subr.mxu0 0.0
    %298 = vmatpush1.msra.mxu0 0.0
    %299 = vmatprep.subr.mxu0 0.0
    %300 = vmatpush1.msra.mxu0 0.0
    %301 = vmatprep.subr.mxu0 0.0
    %302 = vmatpush1.msra.mxu0 0.0
    %303 = vmatprep.subr.mxu0 0.0
    %304 = vmatpush1.msra.mxu0 0.0
    %305 = vmatprep.subr.mxu0 0.0
    %306 = vmatpush1.msra.mxu0 0.0
    %307 = vmatprep.subr.mxu0 0.0
    %308 = vmatpush1.msra.mxu0 0.0
    %309 = vmatprep.subr.mxu0 0.0
    %310 = vmatpush1.msra.mxu0 0.0
    %311 = vmatprep.subr.mxu0 0.0
    %312 = vmatpush1.msra.mxu0 0.0
    %313 = vmatprep.subr.mxu0 %v155
    %314 = vmatpush1.msra.mxu0 %v152
    %315 = vmatprep.subr.mxu0 %v55
    %316 = vmatpush1.msra.mxu0 %v54
    %317 = vmatprep.subr.mxu0 0.0
    %318 = vmatpush2.msra.mxu0 0.0
    %319 = vmatprep.subr.mxu0 0.0
    %320 = vmatpush2.msra.mxu0 0.0
    %321 = vmatprep.subr.mxu0 0.0
    %322 = vmatpush2.msra.mxu0 0.0
    %323 = vmatprep.subr.mxu0 0.0
    %324 = vmatpush2.msra.mxu0 0.0
    %325 = vmatprep.subr.mxu0 0.0
    %326 = vmatpush2.msra.mxu0 0.0
    %327 = vmatprep.subr.mxu0 0.0
    %328 = vmatpush2.msra.mxu0 0.0
    %329 = vmatprep.subr.mxu0 0.0
    %330 = vmatpush2.msra.mxu0 0.0
    %331 = vmatprep.subr.mxu0 0.0
    %332 = vmatpush2.msra.mxu0 0.0
    %333 = vmatprep.subr.mxu0 0.0
    %334 = vmatpush2.msra.mxu0 0.0
    %335 = vmatprep.subr.mxu0 0.0
    %336 = vmatpush2.msra.mxu0 0.0
    %337 = vmatprep.subr.mxu0 0.0
    %338 = vmatpush2.msra.mxu0 0.0
    %339 = vmatprep.subr.mxu0 0.0
    %340 = vmatpush2.msra.mxu0 0.0
    %341 = vmatprep.subr.mxu0 0.0
    %342 = vmatpush2.msra.mxu0 0.0
    %343 = vmatprep.subr.mxu0 0.0
    %344 = vmatpush2.msra.mxu0 0.0
    %345 = vmatprep.subr.mxu0 0.0
    %346 = vmatpush2.msra.mxu0 0.0
    %347 = vmatprep.subr.mxu0 0.0
    %348 = vmatpush2.msra.mxu0 0.0
    %349 = vmatprep.mubr.f32.mxu0 0.0
    %350 = vmatmul.mubr.f32.gmra.mxu0 %v121
    %v351 = vpop.f32.mrf.mxu0
    %v352 = vadd.f32 %v85, %v351
    %v353 = vpop.f32.mrf.mxu0
    %v354 = vadd.f32 %v89, %v353
    %355 = vmatprep.mubr.f32.mxu0 0.0
    %356 = vmatmul.mubr.f32.gmra.mxu0 %v124
    %v357 = vpop.f32.mrf.mxu0
    %v358 = vadd.f32 %v85, %v357
    %v359 = vpop.f32.mrf.mxu0
    %v360 = vadd.f32 %v89, %v359
    %361 = vmatprep.mubr.f32.mxu0 0.0
    %362 = vmatmul.mubr.f32.gmra.mxu0 %v127
    %v363 = vpop.f32.mrf.mxu0
    %v364 = vadd.f32 %v85, %v363
    %v365 = vpop.f32.mrf.mxu0
    %v366 = vadd.f32 %v89, %v365
    %367 = vmatprep.mubr.f32.mxu0 0.0
    %368 = vmatmul.mubr.f32.gmra.mxu0 %v130
    %v369 = vpop.f32.mrf.mxu0
    %v370 = vadd.f32 %v85, %v369
    %v371 = vpop.f32.mrf.mxu0
    %v372 = vadd.f32 %v89, %v371
    %373 = vmatprep.mubr.f32.mxu0 0.0
    %374 = vmatmul.mubr.f32.gmra.mxu0 %v133
    %v375 = vpop.f32.mrf.mxu0
    %v376 = vadd.f32 %v85, %v375
    %v377 = vpop.f32.mrf.mxu0
    %v378 = vadd.f32 %v89, %v377
    %379 = vmatprep.mubr.f32.mxu0 0.0
    %380 = vmatmul.mubr.f32.gmra.mxu0 %v136
    %v381 = vpop.f32.mrf.mxu0
    %v382 = vadd.f32 %v85, %v381
    %v383 = vpop.f32.mrf.mxu0
    %v384 = vadd.f32 %v89, %v383
    %385 = vmatprep.mubr.f32.mxu0 0.0
    %386 = vmatmul.mubr.f32.gmra.mxu0 %v139
    %v387 = vpop.f32.mrf.mxu0
    %v388 = vadd.f32 %v85, %v387
    %v389 = vpop.f32.mrf.mxu0
    %v390 = vadd.f32 %v89, %v389
    %391 = vmatprep.mubr.f32.mxu0 0.0
    %392 = vmatmul.mubr.f32.gmra.mxu0 %v142
    %v393 = vpop.f32.mrf.mxu0
    %v394 = vadd.f32 %v85, %v393
    %v395 = vpop.f32.mrf.mxu0
    %v396 = vadd.f32 %v89, %v395
    %397 = vdwg.mxu0
    %398 = vmatprep.subr.mxu0 0.0
    %399 = vmatpush1.msra.mxu0 0.0
    %400 = vmatprep.subr.mxu0 0.0
    %401 = vmatpush1.msra.mxu0 0.0
    %402 = vmatprep.subr.mxu0 0.0
    %403 = vmatpush1.msra.mxu0 0.0
    %404 = vmatprep.subr.mxu0 0.0
    %405 = vmatpush1.msra.mxu0 0.0
    %406 = vmatprep.subr.mxu0 0.0
    %407 = vmatpush1.msra.mxu0 0.0
    %408 = vmatprep.subr.mxu0 0.0
    %409 = vmatpush1.msra.mxu0 0.0
    %410 = vmatprep.subr.mxu0 0.0
    %411 = vmatpush1.msra.mxu0 0.0
    %412 = vmatprep.subr.mxu0 0.0
    %413 = vmatpush1.msra.mxu0 0.0
    %414 = vmatprep.subr.mxu0 0.0
    %415 = vmatpush1.msra.mxu0 0.0
    %416 = vmatprep.subr.mxu0 0.0
    %417 = vmatpush1.msra.mxu0 0.0
    %418 = vmatprep.subr.mxu0 0.0
    %419 = vmatpush1.msra.mxu0 0.0
    %420 = vmatprep.subr.mxu0 0.0
    %421 = vmatpush1.msra.mxu0 0.0
    %422 = vmatprep.subr.mxu0 0.0
    %423 = vmatpush1.msra.mxu0 0.0
    %424 = vmatprep.subr.mxu0 0.0
    %425 = vmatpush1.msra.mxu0 0.0
    %426 = vmatprep.subr.mxu0 %v161
    %427 = vmatpush1.msra.mxu0 %v158
    %428 = vmatprep.subr.mxu0 %v57
    %429 = vmatpush1.msra.mxu0 %v56
    %430 = vmatprep.subr.mxu0 0.0
    %431 = vmatpush2.msra.mxu0 0.0
    %432 = vmatprep.subr.mxu0 0.0
    %433 = vmatpush2.msra.mxu0 0.0
    %434 = vmatprep.subr.mxu0 0.0
    %435 = vmatpush2.msra.mxu0 0.0
    %436 = vmatprep.subr.mxu0 0.0
    %437 = vmatpush2.msra.mxu0 0.0
    %438 = vmatprep.subr.mxu0 0.0
    %439 = vmatpush2.msra.mxu0 0.0
    %440 = vmatprep.subr.mxu0 0.0
    %441 = vmatpush2.msra.mxu0 0.0
    %442 = vmatprep.subr.mxu0 0.0
    %443 = vmatpush2.msra.mxu0 0.0
    %444 = vmatprep.subr.mxu0 0.0
    %445 = vmatpush2.msra.mxu0 0.0
    %446 = vmatprep.subr.mxu0 0.0
    %447 = vmatpush2.msra.mxu0 0.0
    %448 = vmatprep.subr.mxu0 0.0
    %449 = vmatpush2.msra.mxu0 0.0
    %450 = vmatprep.subr.mxu0 0.0
    %451 = vmatpush2.msra.mxu0 0.0
    %452 = vmatprep.subr.mxu0 0.0
    %453 = vmatpush2.msra.mxu0 0.0
    %454 = vmatprep.subr.mxu0 0.0
    %455 = vmatpush2.msra.mxu0 0.0
    %456 = vmatprep.subr.mxu0 0.0
    %457 = vmatpush2.msra.mxu0 0.0
    %458 = vmatprep.subr.mxu0 0.0
    %459 = vmatpush2.msra.mxu0 0.0
    %460 = vmatprep.subr.mxu0 0.0
    %461 = vmatpush2.msra.mxu0 0.0
    %462 = vmatprep.mubr.f32.mxu0 0.0
    %463 = vmatmul.mubr.f32.gmra.mxu0 %v121
    %v464 = vpop.f32.mrf.mxu0
    %v465 = vadd.f32 %v93, %v464
    %v466 = vpop.f32.mrf.mxu0
    %v467 = vadd.f32 %v97, %v466
    %468 = vmatprep.mubr.f32.mxu0 0.0
    %469 = vmatmul.mubr.f32.gmra.mxu0 %v124
    %v470 = vpop.f32.mrf.mxu0
    %v471 = vadd.f32 %v93, %v470
    %v472 = vpop.f32.mrf.mxu0
    %v473 = vadd.f32 %v97, %v472
    %474 = vmatprep.mubr.f32.mxu0 0.0
    %475 = vmatmul.mubr.f32.gmra.mxu0 %v127
    %v476 = vpop.f32.mrf.mxu0
    %v477 = vadd.f32 %v93, %v476
    %v478 = vpop.f32.mrf.mxu0
    %v479 = vadd.f32 %v97, %v478
    %480 = vmatprep.mubr.f32.mxu0 0.0
    %481 = vmatmul.mubr.f32.gmra.mxu0 %v130
    %v482 = vpop.f32.mrf.mxu0
    %v483 = vadd.f32 %v93, %v482
    %v484 = vpop.f32.mrf.mxu0
    %v485 = vadd.f32 %v97, %v484
    %486 = vmatprep.mubr.f32.mxu0 0.0
    %487 = vmatmul.mubr.f32.gmra.mxu0 %v133
    %v488 = vpop.f32.mrf.mxu0
    %v489 = vadd.f32 %v93, %v488
    %v490 = vpop.f32.mrf.mxu0
    %v491 = vadd.f32 %v97, %v490
    %492 = vmatprep.mubr.f32.mxu0 0.0
    %493 = vmatmul.mubr.f32.gmra.mxu0 %v136
    %v494 = vpop.f32.mrf.mxu0
    %v495 = vadd.f32 %v93, %v494
    %v496 = vpop.f32.mrf.mxu0
    %v497 = vadd.f32 %v97, %v496
    %498 = vmatprep.mubr.f32.mxu0 0.0
    %499 = vmatmul.mubr.f32.gmra.mxu0 %v139
    %v500 = vpop.f32.mrf.mxu0
    %v501 = vadd.f32 %v93, %v500
    %v502 = vpop.f32.mrf.mxu0
    %v503 = vadd.f32 %v97, %v502
    %504 = vmatprep.mubr.f32.mxu0 0.0
    %505 = vmatmul.mubr.f32.gmra.mxu0 %v142
    %v506 = vpop.f32.mrf.mxu0
    %v507 = vadd.f32 %v93, %v506
    %v508 = vpop.f32.mrf.mxu0
    %v509 = vadd.f32 %v97, %v508
    %510 = vdwg.mxu0
    %511 = vmatprep.subr.mxu0 0.0
    %512 = vmatpush1.msra.mxu0 0.0
    %513 = vmatprep.subr.mxu0 0.0
    %514 = vmatpush1.msra.mxu0 0.0
    %515 = vmatprep.subr.mxu0 0.0
    %516 = vmatpush1.msra.mxu0 0.0
    %517 = vmatprep.subr.mxu0 0.0
    %518 = vmatpush1.msra.mxu0 0.0
    %519 = vmatprep.subr.mxu0 0.0
    %520 = vmatpush1.msra.mxu0 0.0
    %521 = vmatprep.subr.mxu0 0.0
    %522 = vmatpush1.msra.mxu0 0.0
    %523 = vmatprep.subr.mxu0 0.0
    %524 = vmatpush1.msra.mxu0 0.0
    %525 = vmatprep.subr.mxu0 0.0
    %526 = vmatpush1.msra.mxu0 0.0
    %527 = vmatprep.subr.mxu0 0.0
    %528 = vmatpush1.msra.mxu0 0.0
    %529 = vmatprep.subr.mxu0 0.0
    %530 = vmatpush1.msra.mxu0 0.0
    %531 = vmatprep.subr.mxu0 0.0
    %532 = vmatpush1.msra.mxu0 0.0
    %533 = vmatprep.subr.mxu0 0.0
    %534 = vmatpush1.msra.mxu0 0.0
    %535 = vmatprep.subr.mxu0 0.0
    %536 = vmatpush1.msra.mxu0 0.0
    %537 = vmatprep.subr.mxu0 0.0
    %538 = vmatpush1.msra.mxu0 0.0
    %539 = vmatprep.subr.mxu0 %v167
    %540 = vmatpush1.msra.mxu0 %v164
    %541 = vmatprep.subr.mxu0 %v59
    %542 = vmatpush1.msra.mxu0 %v58
    %543 = vmatprep.subr.mxu0 0.0
    %544 = vmatpush2.msra.mxu0 0.0
    %545 = vmatprep.subr.mxu0 0.0
    %546 = vmatpush2.msra.mxu0 0.0
    %547 = vmatprep.subr.mxu0 0.0
    %548 = vmatpush2.msra.mxu0 0.0
    %549 = vmatprep.subr.mxu0 0.0
    %550 = vmatpush2.msra.mxu0 0.0
    %551 = vmatprep.subr.mxu0 0.0
    %552 = vmatpush2.msra.mxu0 0.0
    %553 = vmatprep.subr.mxu0 0.0
    %554 = vmatpush2.msra.mxu0 0.0
    %555 = vmatprep.subr.mxu0 0.0
    %556 = vmatpush2.msra.mxu0 0.0
    %557 = vmatprep.subr.mxu0 0.0
    %558 = vmatpush2.msra.mxu0 0.0
    %559 = vmatprep.subr.mxu0 0.0
    %560 = vmatpush2.msra.mxu0 0.0
    %561 = vmatprep.subr.mxu0 0.0
    %562 = vmatpush2.msra.mxu0 0.0
    %563 = vmatprep.subr.mxu0 0.0
    %564 = vmatpush2.msra.mxu0 0.0
    %565 = vmatprep.subr.mxu0 0.0
    %566 = vmatpush2.msra.mxu0 0.0
    %567 = vmatprep.subr.mxu0 0.0
    %568 = vmatpush2.msra.mxu0 0.0
    %569 = vmatprep.subr.mxu0 0.0
    %570 = vmatpush2.msra.mxu0 0.0
    %571 = vmatprep.subr.mxu0 0.0
    %572 = vmatpush2.msra.mxu0 0.0
    %573 = vmatprep.subr.mxu0 0.0
    %574 = vmatpush2.msra.mxu0 0.0
    %575 = vmatprep.mubr.f32.mxu0 0.0
    %576 = vmatmul.mubr.f32.gmra.mxu0 %v121
    %v577 = vpop.f32.mrf.mxu0
    %v578 = vadd.f32 %v101, %v577
    %v579 = vpop.f32.mrf.mxu0
    %v580 = vadd.f32 %v105, %v579
    %581 = vmatprep.mubr.f32.mxu0 0.0
    %582 = vmatmul.mubr.f32.gmra.mxu0 %v124
    %v583 = vpop.f32.mrf.mxu0
    %v584 = vadd.f32 %v101, %v583
    %v585 = vpop.f32.mrf.mxu0
    %v586 = vadd.f32 %v105, %v585
    %587 = vmatprep.mubr.f32.mxu0 0.0
    %588 = vmatmul.mubr.f32.gmra.mxu0 %v127
    %v589 = vpop.f32.mrf.mxu0
    %v590 = vadd.f32 %v101, %v589
    %v591 = vpop.f32.mrf.mxu0
    %v592 = vadd.f32 %v105, %v591
    %593 = vmatprep.mubr.f32.mxu0 0.0
    %594 = vmatmul.mubr.f32.gmra.mxu0 %v130
    %v595 = vpop.f32.mrf.mxu0
    %v596 = vadd.f32 %v101, %v595
    %v597 = vpop.f32.mrf.mxu0
    %v598 = vadd.f32 %v105, %v597
    %599 = vmatprep.mubr.f32.mxu0 0.0
    %600 = vmatmul.mubr.f32.gmra.mxu0 %v133
    %v601 = vpop.f32.mrf.mxu0
    %v602 = vadd.f32 %v101, %v601
    %v603 = vpop.f32.mrf.mxu0
    %v604 = vadd.f32 %v105, %v603
    %605 = vmatprep.mubr.f32.mxu0 0.0
    %606 = vmatmul.mubr.f32.gmra.mxu0 %v136
    %v607 = vpop.f32.mrf.mxu0
    %v608 = vadd.f32 %v101, %v607
    %v609 = vpop.f32.mrf.mxu0
    %v610 = vadd.f32 %v105, %v609
    %611 = vmatprep.mubr.f32.mxu0 0.0
    %612 = vmatmul.mubr.f32.gmra.mxu0 %v139
    %v613 = vpop.f32.mrf.mxu0
    %v614 = vadd.f32 %v101, %v613
    %v615 = vpop.f32.mrf.mxu0
    %v616 = vadd.f32 %v105, %v615
    %617 = vmatprep.mubr.f32.mxu0 0.0
    %618 = vmatmul.mubr.f32.gmra.mxu0 %v142
    %v619 = vpop.f32.mrf.mxu0
    %v620 = vadd.f32 %v101, %v619
    %v621 = vpop.f32.mrf.mxu0
    %v622 = vadd.f32 %v105, %v621
    %623 = vdwg.mxu0
    %624 = vmatprep.subr.mxu0 0.0
    %625 = vmatpush1.msra.mxu0 0.0
    %626 = vmatprep.subr.mxu0 0.0
    %627 = vmatpush1.msra.mxu0 0.0
    %628 = vmatprep.subr.mxu0 0.0
    %629 = vmatpush1.msra.mxu0 0.0
    %630 = vmatprep.subr.mxu0 0.0
    %631 = vmatpush1.msra.mxu0 0.0
    %632 = vmatprep.subr.mxu0 0.0
    %633 = vmatpush1.msra.mxu0 0.0
    %634 = vmatprep.subr.mxu0 0.0
    %635 = vmatpush1.msra.mxu0 0.0
    %636 = vmatprep.subr.mxu0 0.0
    %637 = vmatpush1.msra.mxu0 0.0
    %638 = vmatprep.subr.mxu0 0.0
    %639 = vmatpush1.msra.mxu0 0.0
    %640 = vmatprep.subr.mxu0 0.0
    %641 = vmatpush1.msra.mxu0 0.0
    %642 = vmatprep.subr.mxu0 0.0
    %643 = vmatpush1.msra.mxu0 0.0
    %644 = vmatprep.subr.mxu0 0.0
    %645 = vmatpush1.msra.mxu0 0.0
    %646 = vmatprep.subr.mxu0 0.0
    %647 = vmatpush1.msra.mxu0 0.0
    %648 = vmatprep.subr.mxu0 0.0
    %649 = vmatpush1.msra.mxu0 0.0
    %650 = vmatprep.subr.mxu0 0.0
    %651 = vmatpush1.msra.mxu0 0.0
    %652 = vmatprep.subr.mxu0 0.0
    %653 = vmatpush1.msra.mxu0 %v170
    %654 = vmatprep.subr.mxu0 0.0
    %655 = vmatpush1.msra.mxu0 %v60
    %656 = vmatprep.subr.mxu0 0.0
    %657 = vmatpush2.msra.mxu0 0.0
    %658 = vmatprep.subr.mxu0 0.0
    %659 = vmatpush2.msra.mxu0 0.0
    %660 = vmatprep.subr.mxu0 0.0
    %661 = vmatpush2.msra.mxu0 0.0
    %662 = vmatprep.subr.mxu0 0.0
    %663 = vmatpush2.msra.mxu0 0.0
    %664 = vmatprep.subr.mxu0 0.0
    %665 = vmatpush2.msra.mxu0 0.0
    %666 = vmatprep.subr.mxu0 0.0
    %667 = vmatpush2.msra.mxu0 0.0
    %668 = vmatprep.subr.mxu0 0.0
    %669 = vmatpush2.msra.mxu0 0.0
    %670 = vmatprep.subr.mxu0 0.0
    %671 = vmatpush2.msra.mxu0 0.0
    %672 = vmatprep.subr.mxu0 0.0
    %673 = vmatpush2.msra.mxu0 0.0
    %674 = vmatprep.subr.mxu0 0.0
    %675 = vmatpush2.msra.mxu0 0.0
    %676 = vmatprep.subr.mxu0 0.0
    %677 = vmatpush2.msra.mxu0 0.0
    %678 = vmatprep.subr.mxu0 0.0
    %679 = vmatpush2.msra.mxu0 0.0
    %680 = vmatprep.subr.mxu0 0.0
    %681 = vmatpush2.msra.mxu0 0.0
    %682 = vmatprep.subr.mxu0 0.0
    %683 = vmatpush2.msra.mxu0 0.0
    %684 = vmatprep.subr.mxu0 0.0
    %685 = vmatpush2.msra.mxu0 0.0
    %686 = vmatprep.subr.mxu0 0.0
    %687 = vmatpush2.msra.mxu0 0.0
    %688 = vmatprep.mubr.f32.mxu0 0.0
    %689 = vmatmul.mubr.f32.gmra.mxu0 %v121
    %v690 = vpop.f32.mrf.mxu0
    %v691 = vadd.f32 %v109, %v690
    %v692 = vpop.f32.mrf.mxu0
    %693 = vmatprep.mubr.f32.mxu0 0.0
    %694 = vmatmul.mubr.f32.gmra.mxu0 %v124
    %v695 = vpop.f32.mrf.mxu0
    %v696 = vadd.f32 %v109, %v695
    %v697 = vpop.f32.mrf.mxu0
    %698 = vmatprep.mubr.f32.mxu0 0.0
    %699 = vmatmul.mubr.f32.gmra.mxu0 %v127
    %v700 = vpop.f32.mrf.mxu0
    %v701 = vadd.f32 %v109, %v700
    %v702 = vpop.f32.mrf.mxu0
    %703 = vmatprep.mubr.f32.mxu0 0.0
    %704 = vmatmul.mubr.f32.gmra.mxu0 %v130
    %v705 = vpop.f32.mrf.mxu0
    %v706 = vadd.f32 %v109, %v705
    %v707 = vpop.f32.mrf.mxu0
    %708 = vmatprep.mubr.f32.mxu0 0.0
    %709 = vmatmul.mubr.f32.gmra.mxu0 %v133
    %v710 = vpop.f32.mrf.mxu0
    %v711 = vadd.f32 %v109, %v710
    %v712 = vpop.f32.mrf.mxu0
    %713 = vmatprep.mubr.f32.mxu0 0.0
    %714 = vmatmul.mubr.f32.gmra.mxu0 %v136
    %v715 = vpop.f32.mrf.mxu0
    %v716 = vadd.f32 %v109, %v715
    %v717 = vpop.f32.mrf.mxu0
    %718 = vmatprep.mubr.f32.mxu0 0.0
    %719 = vmatmul.mubr.f32.gmra.mxu0 %v139
    %v720 = vpop.f32.mrf.mxu0
    %v721 = vadd.f32 %v109, %v720
    %v722 = vpop.f32.mrf.mxu0
    %723 = vmatprep.mubr.f32.mxu0 0.0
    %724 = vmatmul.mubr.f32.gmra.mxu0 %v142
    %v725 = vpop.f32.mrf.mxu0
    %v726 = vadd.f32 %v109, %v725
    %v727 = vpop.f32.mrf.mxu0
    %728 = vdwg.mxu0
    %729 = vst [vmem:[#allocation2] sm:$0xff] %v239
    %730 = vst [vmem:[#allocation2 + $0x8] sm:$0xff] %v241
    %731 = vst [vmem:[#allocation2 + $0x10] sm:$0xff] %v352
    %732 = vst [vmem:[#allocation2 + $0x18] sm:$0xff] %v354
    %733 = vst [vmem:[#allocation2 + $0x20] sm:$0xff] %v465
    %734 = vst [vmem:[#allocation2 + $0x28] sm:$0xff] %v467
    %735 = vst [vmem:[#allocation2 + $0x30] sm:$0xff] %v578
    %736 = vst [vmem:[#allocation2 + $0x38] sm:$0xff] %v580
    %737 = vst [vmem:[#allocation2 + $0x40] sm:$0xff] %v691
    %738 = vst [vmem:[#allocation2 + $0x48] sm:$0xff] %v245
    %739 = vst [vmem:[#allocation2 + $0x50] sm:$0xff] %v247
    %740 = vst [vmem:[#allocation2 + $0x58] sm:$0xff] %v358
    %741 = vst [vmem:[#allocation2 + $0x60] sm:$0xff] %v360
    %742 = vst [vmem:[#allocation2 + $0x68] sm:$0xff] %v471
    %743 = vst [vmem:[#allocation2 + $0x70] sm:$0xff] %v473
    %744 = vst [vmem:[#allocation2 + $0x78] sm:$0xff] %v584
    %745 = vst [vmem:[#allocation2 + $0x80] sm:$0xff] %v586
    %746 = vst [vmem:[#allocation2 + $0x88] sm:$0xff] %v696
    %747 = vst [vmem:[#allocation2 + $0x90] sm:$0xff] %v251
    %748 = vst [vmem:[#allocation2 + $0x98] sm:$0xff] %v253
    %749 = vst [vmem:[#allocation2 + $0xa0] sm:$0xff] %v364
    %750 = vst [vmem:[#allocation2 + $0xa8] sm:$0xff] %v366
    %751 = vst [vmem:[#allocation2 + $0xb0] sm:$0xff] %v477
    %752 = vst [vmem:[#allocation2 + $0xb8] sm:$0xff] %v479
    %753 = vst [vmem:[#allocation2 + $0xc0] sm:$0xff] %v590
    %754 = vst [vmem:[#allocation2 + $0xc8] sm:$0xff] %v592
    %755 = vst [vmem:[#allocation2 + $0xd0] sm:$0xff] %v701
    %756 = vst [vmem:[#allocation2 + $0xd8] sm:$0xff] %v257
    %757 = vst [vmem:[#allocation2 + $0xe0] sm:$0xff] %v259
    %758 = vst [vmem:[#allocation2 + $0xe8] sm:$0xff] %v370
    %759 = vst [vmem:[#allocation2 + $0xf0] sm:$0xff] %v372
    %760 = vst [vmem:[#allocation2 + $0xf8] sm:$0xff] %v483
    %761 = vst [vmem:[#allocation2 + $0x100] sm:$0xff] %v485
    %762 = vst [vmem:[#allocation2 + $0x108] sm:$0xff] %v596
    %763 = vst [vmem:[#allocation2 + $0x110] sm:$0xff] %v598
    %764 = vst [vmem:[#allocation2 + $0x118] sm:$0xff] %v706
    %765 = vst [vmem:[#allocation2 + $0x120] sm:$0xff] %v263
    %766 = vst [vmem:[#allocation2 + $0x128] sm:$0xff] %v265
    %767 = vst [vmem:[#allocation2 + $0x130] sm:$0xff] %v376
    %768 = vst [vmem:[#allocation2 + $0x138] sm:$0xff] %v378
    %769 = vst [vmem:[#allocation2 + $0x140] sm:$0xff] %v489
    %770 = vst [vmem:[#allocation2 + $0x148] sm:$0xff] %v491
    %771 = vst [vmem:[#allocation2 + $0x150] sm:$0xff] %v602
    %772 = vst [vmem:[#allocation2 + $0x158] sm:$0xff] %v604
    %773 = vst [vmem:[#allocation2 + $0x160] sm:$0xff] %v711
    %774 = vst [vmem:[#allocation2 + $0x168] sm:$0xff] %v269
    %775 = vst [vmem:[#allocation2 + $0x170] sm:$0xff] %v271
    %776 = vst [vmem:[#allocation2 + $0x178] sm:$0xff] %v382
    %777 = vst [vmem:[#allocation2 + $0x180] sm:$0xff] %v384
    %778 = vst [vmem:[#allocation2 + $0x188] sm:$0xff] %v495
    %779 = vst [vmem:[#allocation2 + $0x190] sm:$0xff] %v497
    %780 = vst [vmem:[#allocation2 + $0x198] sm:$0xff] %v608
    %781 = vst [vmem:[#allocation2 + $0x1a0] sm:$0xff] %v610
    %782 = vst [vmem:[#allocation2 + $0x1a8] sm:$0xff] %v716
    %783 = vst [vmem:[#allocation2 + $0x1b0] sm:$0xff] %v275
    %784 = vst [vmem:[#allocation2 + $0x1b8] sm:$0xff] %v277
    %785 = vst [vmem:[#allocation2 + $0x1c0] sm:$0xff] %v388
    %786 = vst [vmem:[#allocation2 + $0x1c8] sm:$0xff] %v390
    %787 = vst [vmem:[#allocation2 + $0x1d0] sm:$0xff] %v501
    %788 = vst [vmem:[#allocation2 + $0x1d8] sm:$0xff] %v503
    %789 = vst [vmem:[#allocation2 + $0x1e0] sm:$0xff] %v614
    %790 = vst [vmem:[#allocation2 + $0x1e8] sm:$0xff] %v616
    %791 = vst [vmem:[#allocation2 + $0x1f0] sm:$0xff] %v721
    %792 = vst [vmem:[#allocation2 + $0x1f8] sm:$0xff] %v281
    %793 = vst [vmem:[#allocation2 + $0x200] sm:$0xff] %v283
    %794 = vst [vmem:[#allocation2 + $0x208] sm:$0xff] %v394
    %795 = vst [vmem:[#allocation2 + $0x210] sm:$0xff] %v396
    %796 = vst [vmem:[#allocation2 + $0x218] sm:$0xff] %v507
    %797 = vst [vmem:[#allocation2 + $0x220] sm:$0xff] %v509
    %798 = vst [vmem:[#allocation2 + $0x228] sm:$0xff] %v620
    %799 = vst [vmem:[#allocation2 + $0x230] sm:$0xff] %v622
    %800 = vst [vmem:[#allocation2 + $0x238] sm:$0xff] %v726
    %v801 = vld [vmem:[#allocation4] sm:$0xff]
    %v802 = vld [vmem:[#allocation4 + $0x8] sm:$0xff]
    %v803 = vld [vmem:[#allocation4 + $0x10] sm:$0xff]
    %v804 = vld [vmem:[#allocation4 + $0x18] sm:$0xff]
    %v805 = vld [vmem:[#allocation4 + $0x20] sm:$0xf]
    %v806 = vld [vmem:[#allocation4 + $0x24] sm:$0xff]
    %v807 = vld [vmem:[#allocation4 + $0x2c] sm:$0xff]
    %v808 = vld [vmem:[#allocation4 + $0x34] sm:$0xff]
    %v809 = vld [vmem:[#allocation4 + $0x3c] sm:$0xff]
    %v810 = vld [vmem:[#allocation4 + $0x44] sm:$0xf]
    %v811 = vld [vmem:[#allocation4 + $0x48] sm:$0xff]
    %v812 = vld [vmem:[#allocation4 + $0x50] sm:$0xff]
    %v813 = vld [vmem:[#allocation4 + $0x58] sm:$0xff]
    %v814 = vld [vmem:[#allocation4 + $0x60] sm:$0xff]
    %v815 = vld [vmem:[#allocation4 + $0x68] sm:$0xf]
    %v816 = vld [vmem:[#allocation4 + $0x6c] sm:$0xff]
    %v817 = vld [vmem:[#allocation4 + $0x74] sm:$0xff]
    %v818 = vld [vmem:[#allocation4 + $0x7c] sm:$0xff]
    %v819 = vld [vmem:[#allocation4 + $0x84] sm:$0xff]
    %v820 = vld [vmem:[#allocation4 + $0x8c] sm:$0xf]
    %v821 = vld [vmem:[#allocation4 + $0x90] sm:$0xff]
    %v822 = vld [vmem:[#allocation4 + $0x98] sm:$0xff]
    %v823 = vld [vmem:[#allocation4 + $0xa0] sm:$0xff]
    %v824 = vld [vmem:[#allocation4 + $0xa8] sm:$0xff]
    %v825 = vld [vmem:[#allocation4 + $0xb0] sm:$0xf]
    %v826 = vld [vmem:[#allocation4 + $0xb4] sm:$0xff]
    %v827 = vld [vmem:[#allocation4 + $0xbc] sm:$0xff]
    %v828 = vld [vmem:[#allocation4 + $0xc4] sm:$0xff]
    %v829 = vld [vmem:[#allocation4 + $0xcc] sm:$0xff]
    %v830 = vld [vmem:[#allocation4 + $0xd4] sm:$0xf]
    %v831 = vld [vmem:[#allocation4 + $0xd8] sm:$0xff]
    %v832 = vld [vmem:[#allocation4 + $0xe0] sm:$0xff]
    %v833 = vld [vmem:[#allocation4 + $0xe8] sm:$0xff]
    %v834 = vld [vmem:[#allocation4 + $0xf0] sm:$0xff]
    %v835 = vld [vmem:[#allocation4 + $0xf8] sm:$0xf]
    %v836 = vld [vmem:[#allocation4 + $0xfc] sm:$0xff]
    %v837 = vld [vmem:[#allocation4 + $0x104] sm:$0xff]
    %v838 = vld [vmem:[#allocation4 + $0x10c] sm:$0xff]
    %v839 = vld [vmem:[#allocation4 + $0x114] sm:$0xff]
    %v840 = vld [vmem:[#allocation4 + $0x11c] sm:$0xf]
    %v841 = vld [vmem:[#allocation4 + $0x120] sm:$0xff]
    %v842 = vld [vmem:[#allocation4 + $0x128] sm:$0xff]
    %v843 = vld [vmem:[#allocation4 + $0x130] sm:$0xff]
    %v844 = vld [vmem:[#allocation4 + $0x138] sm:$0xff]
    %v845 = vld [vmem:[#allocation4 + $0x140] sm:$0xf]
    %v846 = vld [vmem:[#allocation4 + $0x144] sm:$0xff]
    %v847 = vld [vmem:[#allocation4 + $0x14c] sm:$0xff]
    %v848 = vld [vmem:[#allocation4 + $0x154] sm:$0xff]
    %v849 = vld [vmem:[#allocation4 + $0x15c] sm:$0xff]
    %v850 = vld [vmem:[#allocation4 + $0x164] sm:$0xf]
    %v851 = vld [vmem:[#allocation4 + $0x168] sm:$0xff]
    %v852 = vld [vmem:[#allocation4 + $0x170] sm:$0xff]
    %v853 = vld [vmem:[#allocation4 + $0x178] sm:$0xff]
    %v854 = vld [vmem:[#allocation4 + $0x180] sm:$0xff]
    %v855 = vld [vmem:[#allocation4 + $0x188] sm:$0xf]
    %v856 = vld [vmem:[#allocation4 + $0x18c] sm:$0xff]
    %v857 = vld [vmem:[#allocation4 + $0x194] sm:$0xff]
    %v858 = vld [vmem:[#allocation4 + $0x19c] sm:$0xff]
    %v859 = vld [vmem:[#allocation4 + $0x1a4] sm:$0xff]
    %v860 = vld [vmem:[#allocation4 + $0x1ac] sm:$0xf]
    %v861 = vld [vmem:[#allocation4 + $0x1b0] sm:$0xff]
    %v862 = vld [vmem:[#allocation4 + $0x1b8] sm:$0xff]
    %v863 = vld [vmem:[#allocation4 + $0x1c0] sm:$0xff]
    %v864 = vld [vmem:[#allocation4 + $0x1c8] sm:$0xff]
    %v865 = vld [vmem:[#allocation4 + $0x1d0] sm:$0xf]
    %v866 = vld [vmem:[#allocation4 + $0x1d4] sm:$0xff]
    %v867 = vld [vmem:[#allocation4 + $0x1dc] sm:$0xff]
    %v868 = vld [vmem:[#allocation4 + $0x1e4] sm:$0xff]
    %v869 = vld [vmem:[#allocation4 + $0x1ec] sm:$0xff]
    %v870 = vld [vmem:[#allocation4 + $0x1f4] sm:$0xf]
    %v871 = vld [vmem:[#allocation4 + $0x1f8] sm:$0xff]
    %v872 = vld [vmem:[#allocation4 + $0x200] sm:$0xff]
    %v873 = vld [vmem:[#allocation4 + $0x208] sm:$0xff]
    %v874 = vld [vmem:[#allocation4 + $0x210] sm:$0xff]
    %v875 = vld [vmem:[#allocation4 + $0x218] sm:$0xf]
    %v876 = vld [vmem:[#allocation4 + $0x21c] sm:$0xff]
    %v877 = vld [vmem:[#allocation4 + $0x224] sm:$0xff]
    %v878 = vld [vmem:[#allocation4 + $0x22c] sm:$0xff]
    %v879 = vld [vmem:[#allocation4 + $0x234] sm:$0xff]
    %v880 = vld [vmem:[#allocation4 + $0x23c] sm:$0xf]
    %v881 = vld [vmem:[#allocation4 + $0x240] sm:$0xff]
    %v882 = vld [vmem:[#allocation4 + $0x248] sm:$0xff]
    %v883 = vld [vmem:[#allocation4 + $0x250] sm:$0xff]
    %v884 = vld [vmem:[#allocation4 + $0x258] sm:$0xff]
    %v885 = vld [vmem:[#allocation4 + $0x260] sm:$0xf]
    %v886 = vld [vmem:[#allocation4 + $0x264] sm:$0xff]
    %v887 = vld [vmem:[#allocation4 + $0x26c] sm:$0xff]
    %v888 = vld [vmem:[#allocation4 + $0x274] sm:$0xff]
    %v889 = vld [vmem:[#allocation4 + $0x27c] sm:$0xff]
    %v890 = vld [vmem:[#allocation4 + $0x284] sm:$0xf]
    %v891 = vld [vmem:[#allocation4 + $0x288] sm:$0xff]
    %v892 = vld [vmem:[#allocation4 + $0x290] sm:$0xff]
    %v893 = vld [vmem:[#allocation4 + $0x298] sm:$0xff]
    %v894 = vld [vmem:[#allocation4 + $0x2a0] sm:$0xff]
    %v895 = vld [vmem:[#allocation4 + $0x2a8] sm:$0xf]
    %v896 = vld [vmem:[#allocation4 + $0x2ac] sm:$0xff]
    %v897 = vld [vmem:[#allocation4 + $0x2b4] sm:$0xff]
    %v898 = vld [vmem:[#allocation4 + $0x2bc] sm:$0xff]
    %v899 = vld [vmem:[#allocation4 + $0x2c4] sm:$0xff]
    %v900 = vld [vmem:[#allocation4 + $0x2cc] sm:$0xf]
    %v901 = vld [vmem:[#allocation4 + $0x2d0] sm:$0xff]
    %v902 = vld [vmem:[#allocation4 + $0x2d8] sm:$0xff]
    %v903 = vld [vmem:[#allocation4 + $0x2e0] sm:$0xff]
    %v904 = vld [vmem:[#allocation4 + $0x2e8] sm:$0xff]
    %v905 = vld [vmem:[#allocation4 + $0x2f0] sm:$0xf]
    %v906 = vld [vmem:[#allocation4 + $0x2f4] sm:$0xff]
    %v907 = vld [vmem:[#allocation4 + $0x2fc] sm:$0xff]
    %v908 = vld [vmem:[#allocation4 + $0x304] sm:$0xff]
    %v909 = vld [vmem:[#allocation4 + $0x30c] sm:$0xff]
    %v910 = vld [vmem:[#allocation4 + $0x314] sm:$0xf]
    %v911 = vld [vmem:[#allocation4 + $0x318] sm:$0xff]
    %v912 = vld [vmem:[#allocation4 + $0x320] sm:$0xff]
    %v913 = vld [vmem:[#allocation4 + $0x328] sm:$0xff]
    %v914 = vld [vmem:[#allocation4 + $0x330] sm:$0xff]
    %v915 = vld [vmem:[#allocation4 + $0x338] sm:$0xf]
    %v916 = vld [vmem:[#allocation4 + $0x33c] sm:$0xff]
    %v917 = vld [vmem:[#allocation4 + $0x344] sm:$0xff]
    %v918 = vld [vmem:[#allocation4 + $0x34c] sm:$0xff]
    %v919 = vld [vmem:[#allocation4 + $0x354] sm:$0xff]
    %v920 = vld [vmem:[#allocation4 + $0x35c] sm:$0xf]
    %v921 = vld [vmem:[#allocation4 + $0x360] sm:$0xff]
    %v922 = vld [vmem:[#allocation4 + $0x368] sm:$0xff]
    %v923 = vld [vmem:[#allocation4 + $0x370] sm:$0xff]
    %v924 = vld [vmem:[#allocation4 + $0x378] sm:$0xff]
    %v925 = vld [vmem:[#allocation4 + $0x380] sm:$0xf]
    %v926 = vld [vmem:[#allocation4 + $0x384] sm:$0xff]
    %v927 = vld [vmem:[#allocation4 + $0x38c] sm:$0xff]
    %v928 = vld [vmem:[#allocation4 + $0x394] sm:$0xff]
    %v929 = vld [vmem:[#allocation4 + $0x39c] sm:$0xff]
    %v930 = vld [vmem:[#allocation4 + $0x3a4] sm:$0xf]
    %v931 = vld [vmem:[#allocation4 + $0x3a8] sm:$0xff]
    %v932 = vld [vmem:[#allocation4 + $0x3b0] sm:$0xff]
    %v933 = vld [vmem:[#allocation4 + $0x3b8] sm:$0xff]
    %v934 = vld [vmem:[#allocation4 + $0x3c0] sm:$0xff]
    %v935 = vld [vmem:[#allocation4 + $0x3c8] sm:$0xf]
    %v936 = vld [vmem:[#allocation4 + $0x3cc] sm:$0xff]
    %v937 = vld [vmem:[#allocation4 + $0x3d4] sm:$0xff]
    %v938 = vld [vmem:[#allocation4 + $0x3dc] sm:$0xff]
    %v939 = vld [vmem:[#allocation4 + $0x3e4] sm:$0xff]
    %v940 = vld [vmem:[#allocation4 + $0x3ec] sm:$0xf]
    %v941 = vld [vmem:[#allocation4 + $0x3f0] sm:$0xff]
    %v942 = vld [vmem:[#allocation4 + $0x3f8] sm:$0xff]
    %v943 = vld [vmem:[#allocation4 + $0x400] sm:$0xff]
    %v944 = vld [vmem:[#allocation4 + $0x408] sm:$0xff]
    %v945 = vld [vmem:[#allocation4 + $0x410] sm:$0xf]
    %v946 = vld [vmem:[#allocation4 + $0x414] sm:$0xff]
    %v947 = vld [vmem:[#allocation4 + $0x41c] sm:$0xff]
    %v948 = vld [vmem:[#allocation4 + $0x424] sm:$0xff]
    %v949 = vld [vmem:[#allocation4 + $0x42c] sm:$0xff]
    %v950 = vld [vmem:[#allocation4 + $0x434] sm:$0xf]
    %v951 = vld [vmem:[#allocation4 + $0x438] sm:$0xff]
    %v952 = vld [vmem:[#allocation4 + $0x440] sm:$0xff]
    %v953 = vld [vmem:[#allocation4 + $0x448] sm:$0xff]
    %v954 = vld [vmem:[#allocation4 + $0x450] sm:$0xff]
    %v955 = vld [vmem:[#allocation4 + $0x458] sm:$0xf]
    %v956 = vld [vmem:[#allocation4 + $0x45c] sm:$0xff]
    %v957 = vld [vmem:[#allocation4 + $0x464] sm:$0xff]
    %v958 = vld [vmem:[#allocation4 + $0x46c] sm:$0xff]
    %v959 = vld [vmem:[#allocation4 + $0x474] sm:$0xff]
    %v960 = vld [vmem:[#allocation4 + $0x47c] sm:$0xf]
    %v961 = vld [vmem:[#allocation4 + $0x480] sm:$0xff]
    %v962 = vld [vmem:[#allocation4 + $0x488] sm:$0xff]
    %v963 = vld [vmem:[#allocation4 + $0x490] sm:$0xff]
    %v964 = vld [vmem:[#allocation4 + $0x498] sm:$0xff]
    %v965 = vld [vmem:[#allocation4 + $0x4a0] sm:$0xf]
    %v966 = vld [vmem:[#allocation4 + $0x4a4] sm:$0xff]
    %v967 = vld [vmem:[#allocation4 + $0x4ac] sm:$0xff]
    %v968 = vld [vmem:[#allocation4 + $0x4b4] sm:$0xff]
    %v969 = vld [vmem:[#allocation4 + $0x4bc] sm:$0xff]
    %v970 = vld [vmem:[#allocation4 + $0x4c4] sm:$0xf]
    %v971 = vld [vmem:[#allocation4 + $0x4c8] sm:$0xff]
    %v972 = vld [vmem:[#allocation4 + $0x4d0] sm:$0xff]
    %v973 = vld [vmem:[#allocation4 + $0x4d8] sm:$0xff]
    %v974 = vld [vmem:[#allocation4 + $0x4e0] sm:$0xff]
    %v975 = vld [vmem:[#allocation4 + $0x4e8] sm:$0xf]
    %v976 = vld [vmem:[#allocation4 + $0x4ec] sm:$0xff]
    %v977 = vld [vmem:[#allocation4 + $0x4f4] sm:$0xff]
    %v978 = vld [vmem:[#allocation4 + $0x4fc] sm:$0xff]
    %v979 = vld [vmem:[#allocation4 + $0x504] sm:$0xff]
    %v980 = vld [vmem:[#allocation4 + $0x50c] sm:$0xf]
    %v981 = vld [vmem:[#allocation4 + $0x510] sm:$0xff]
    %v982 = vld [vmem:[#allocation4 + $0x518] sm:$0xff]
    %v983 = vld [vmem:[#allocation4 + $0x520] sm:$0xff]
    %v984 = vld [vmem:[#allocation4 + $0x528] sm:$0xff]
    %v985 = vld [vmem:[#allocation4 + $0x530] sm:$0xf]
    %v986 = vld [vmem:[#allocation4 + $0x534] sm:$0xff]
    %v987 = vld [vmem:[#allocation4 + $0x53c] sm:$0xff]
    %v988 = vld [vmem:[#allocation4 + $0x544] sm:$0xff]
    %v989 = vld [vmem:[#allocation4 + $0x54c] sm:$0xff]
    %v990 = vld [vmem:[#allocation4 + $0x554] sm:$0xf]
    %v991 = vld [vmem:[#allocation4 + $0x558] sm:$0xff]
    %v992 = vld [vmem:[#allocation4 + $0x560] sm:$0xff]
    %v993 = vld [vmem:[#allocation4 + $0x568] sm:$0xff]
    %v994 = vld [vmem:[#allocation4 + $0x570] sm:$0xff]
    %v995 = vld [vmem:[#allocation4 + $0x578] sm:$0xf]
    %v996 = vld [vmem:[#allocation4 + $0x57c] sm:$0xff]
    %v997 = vld [vmem:[#allocation4 + $0x584] sm:$0xff]
    %v998 = vld [vmem:[#allocation4 + $0x58c] sm:$0xff]
    %v999 = vld [vmem:[#allocation4 + $0x594] sm:$0xff]
    %v1000 = vld [vmem:[#allocation4 + $0x59c] sm:$0xf]
    %v1001 = vld [vmem:[#allocation4 + $0x5a0] sm:$0xff]
    %v1002 = vld [vmem:[#allocation4 + $0x5a8] sm:$0xff]
    %v1003 = vld [vmem:[#allocation4 + $0x5b0] sm:$0xff]
    %v1004 = vld [vmem:[#allocation4 + $0x5b8] sm:$0xff]
    %v1005 = vld [vmem:[#allocation4 + $0x5c0] sm:$0xf]
    %v1006 = vld [vmem:[#allocation4 + $0x5c4] sm:$0xff]
    %v1007 = vld [vmem:[#allocation4 + $0x5cc] sm:$0xff]
    %v1008 = vld [vmem:[#allocation4 + $0x5d4] sm:$0xff]
    %v1009 = vld [vmem:[#allocation4 + $0x5dc] sm:$0xff]
    %v1010 = vld [vmem:[#allocation4 + $0x5e4] sm:$0xf]
    %v1011 = vld [vmem:[#allocation4 + $0x5e8] sm:$0xff]
    %v1012 = vld [vmem:[#allocation4 + $0x5f0] sm:$0xff]
    %v1013 = vld [vmem:[#allocation4 + $0x5f8] sm:$0xff]
    %v1014 = vld [vmem:[#allocation4 + $0x600] sm:$0xff]
    %v1015 = vld [vmem:[#allocation4 + $0x608] sm:$0xf]
    %v1016 = vld [vmem:[#allocation4 + $0x60c] sm:$0xff]
    %v1017 = vld [vmem:[#allocation4 + $0x614] sm:$0xff]
    %v1018 = vld [vmem:[#allocation4 + $0x61c] sm:$0xff]
    %v1019 = vld [vmem:[#allocation4 + $0x624] sm:$0xff]
    %v1020 = vld [vmem:[#allocation4 + $0x62c] sm:$0xf]
    %v1021 = vld [vmem:[#allocation4 + $0x630] sm:$0xff]
    %v1022 = vld [vmem:[#allocation4 + $0x638] sm:$0xff]
    %v1023 = vld [vmem:[#allocation4 + $0x640] sm:$0xff]
    %v1024 = vld [vmem:[#allocation4 + $0x648] sm:$0xff]
    %v1025 = vld [vmem:[#allocation4 + $0x650] sm:$0xf]
    %v1026 = vld [vmem:[#allocation4 + $0x654] sm:$0xff]
    %v1027 = vld [vmem:[#allocation4 + $0x65c] sm:$0xff]
    %v1028 = vld [vmem:[#allocation4 + $0x664] sm:$0xff]
    %v1029 = vld [vmem:[#allocation4 + $0x66c] sm:$0xff]
    %v1030 = vld [vmem:[#allocation4 + $0x674] sm:$0xf]
    %v1031 = vld [vmem:[#allocation4 + $0x678] sm:$0xff]
    %v1032 = vld [vmem:[#allocation4 + $0x680] sm:$0xff]
    %v1033 = vld [vmem:[#allocation4 + $0x688] sm:$0xff]
    %v1034 = vld [vmem:[#allocation4 + $0x690] sm:$0xff]
    %v1035 = vld [vmem:[#allocation4 + $0x698] sm:$0xf]
    %v1036 = vld [vmem:[#allocation4 + $0x69c] sm:$0xff]
    %v1037 = vld [vmem:[#allocation4 + $0x6a4] sm:$0xff]
    %v1038 = vld [vmem:[#allocation4 + $0x6ac] sm:$0xff]
    %v1039 = vld [vmem:[#allocation4 + $0x6b4] sm:$0xff]
    %v1040 = vld [vmem:[#allocation4 + $0x6bc] sm:$0xf]
    %v1041 = vld [vmem:[%s5 + $0x6] sm:$0x7]
    %v1043 = vlaneseq
    %v1044 = vshrl.u32 %v1043, 7
    %v1045 = vsub.s32 0, %v1044
    %v1046 = vrot.slane %v1041, %v1045
    %v1047 = vlaneseq
    %v1048 = vshrl.u32 %v1047, 7
    %v1049 = vsub.s32 1, %v1048
    %v1050 = vrot.slane %v1041, %v1049
    %v1051 = vlaneseq
    %v1052 = vshrl.u32 %v1051, 7
    %v1053 = vsub.s32 2, %v1052
    %v1054 = vrot.slane %v1041, %v1053
    %v1058 = vld [vmem:[%s1] sm:$0xff]
    %v1059 = vld [vmem:[%s1 + $0x8] sm:$0xff]
    %v1060 = vld [vmem:[%s1 + $0x10] sm:$0xff]
    %v1061 = vpack.c.bf16 %v1058, %v1058
    %v1062 = vpack.c.bf16 %v1059, %v1059
    %v1063 = vpack.c.bf16 %v1060, %v1060
    %v1304 = vunpack.c.l.b16 %v801
    %v1305 = vunpack.c.h.b16 %v801
    %v1306 = vunpack.c.l.b16 %v802
    %v1307 = vunpack.c.h.b16 %v802
    %v1308 = vunpack.c.l.b16 %v803
    %v1309 = vunpack.c.h.b16 %v803
    %v1310 = vunpack.c.l.b16 %v804
    %v1311 = vunpack.c.h.b16 %v804
    %v1312 = vunpack.c.l.b16 %v805
    %v1313 = vunpack.c.l.b16 %v806
    %v1314 = vunpack.c.h.b16 %v806
    %v1315 = vunpack.c.l.b16 %v807
    %v1316 = vunpack.c.h.b16 %v807
    %v1317 = vunpack.c.l.b16 %v808
    %v1318 = vunpack.c.h.b16 %v808
    %v1319 = vunpack.c.l.b16 %v809
    %v1320 = vunpack.c.h.b16 %v809
    %v1321 = vunpack.c.l.b16 %v810
    %v1322 = vunpack.c.l.b16 %v811
    %v1323 = vunpack.c.h.b16 %v811
    %v1324 = vunpack.c.l.b16 %v812
    %v1325 = vunpack.c.h.b16 %v812
    %v1326 = vunpack.c.l.b16 %v813
    %v1327 = vunpack.c.h.b16 %v813
    %v1328 = vunpack.c.l.b16 %v814
    %v1329 = vunpack.c.h.b16 %v814
    %v1330 = vunpack.c.l.b16 %v815
    %v1331 = vunpack.c.l.b16 %v816
    %v1332 = vunpack.c.h.b16 %v816
    %v1333 = vunpack.c.l.b16 %v817
    %v1334 = vunpack.c.h.b16 %v817
    %v1335 = vunpack.c.l.b16 %v818
    %v1336 = vunpack.c.h.b16 %v818
    %v1337 = vunpack.c.l.b16 %v819
    %v1338 = vunpack.c.h.b16 %v819
    %v1339 = vunpack.c.l.b16 %v820
    %v1340 = vunpack.c.l.b16 %v821
    %v1341 = vunpack.c.h.b16 %v821
    %v1342 = vunpack.c.l.b16 %v822
    %v1343 = vunpack.c.h.b16 %v822
    %v1344 = vunpack.c.l.b16 %v823
    %v1345 = vunpack.c.h.b16 %v823
    %v1346 = vunpack.c.l.b16 %v824
    %v1347 = vunpack.c.h.b16 %v824
    %v1348 = vunpack.c.l.b16 %v825
    %v1349 = vunpack.c.l.b16 %v826
    %v1350 = vunpack.c.h.b16 %v826
    %v1351 = vunpack.c.l.b16 %v827
    %v1352 = vunpack.c.h.b16 %v827
    %v1353 = vunpack.c.l.b16 %v828
    %v1354 = vunpack.c.h.b16 %v828
    %v1355 = vunpack.c.l.b16 %v829
    %v1356 = vunpack.c.h.b16 %v829
    %v1357 = vunpack.c.l.b16 %v830
    %v1358 = vunpack.c.l.b16 %v831
    %v1359 = vunpack.c.h.b16 %v831
    %v1360 = vunpack.c.l.b16 %v832
    %v1361 = vunpack.c.h.b16 %v832
    %v1362 = vunpack.c.l.b16 %v833
    %v1363 = vunpack.c.h.b16 %v833
    %v1364 = vunpack.c.l.b16 %v834
    %v1365 = vunpack.c.h.b16 %v834
    %v1366 = vunpack.c.l.b16 %v835
    %v1367 = vunpack.c.l.b16 %v836
    %v1368 = vunpack.c.h.b16 %v836
    %v1369 = vunpack.c.l.b16 %v837
    %v1370 = vunpack.c.h.b16 %v837
    %v1371 = vunpack.c.l.b16 %v838
    %v1372 = vunpack.c.h.b16 %v838
    %v1373 = vunpack.c.l.b16 %v839
    %v1374 = vunpack.c.h.b16 %v839
    %v1375 = vunpack.c.l.b16 %v840
    %v1376 = vunpack.c.l.b16 %v841
    %v1377 = vunpack.c.h.b16 %v841
    %v1378 = vunpack.c.l.b16 %v842
    %v1379 = vunpack.c.h.b16 %v842
    %v1380 = vunpack.c.l.b16 %v843
    %v1381 = vunpack.c.h.b16 %v843
    %v1382 = vunpack.c.l.b16 %v844
    %v1383 = vunpack.c.h.b16 %v844
    %v1384 = vunpack.c.l.b16 %v845
    %v1385 = vunpack.c.l.b16 %v846
    %v1386 = vunpack.c.h.b16 %v846
    %v1387 = vunpack.c.l.b16 %v847
    %v1388 = vunpack.c.h.b16 %v847
    %v1389 = vunpack.c.l.b16 %v848
    %v1390 = vunpack.c.h.b16 %v848
    %v1391 = vunpack.c.l.b16 %v849
    %v1392 = vunpack.c.h.b16 %v849
    %v1393 = vunpack.c.l.b16 %v850
    %v1394 = vunpack.c.l.b16 %v851
    %v1395 = vunpack.c.h.b16 %v851
    %v1396 = vunpack.c.l.b16 %v852
    %v1397 = vunpack.c.h.b16 %v852
    %v1398 = vunpack.c.l.b16 %v853
    %v1399 = vunpack.c.h.b16 %v853
    %v1400 = vunpack.c.l.b16 %v854
    %v1401 = vunpack.c.h.b16 %v854
    %v1402 = vunpack.c.l.b16 %v855
    %v1403 = vunpack.c.l.b16 %v856
    %v1404 = vunpack.c.h.b16 %v856
    %v1405 = vunpack.c.l.b16 %v857
    %v1406 = vunpack.c.h.b16 %v857
    %v1407 = vunpack.c.l.b16 %v858
    %v1408 = vunpack.c.h.b16 %v858
    %v1409 = vunpack.c.l.b16 %v859
    %v1410 = vunpack.c.h.b16 %v859
    %v1411 = vunpack.c.l.b16 %v860
    %v1412 = vunpack.c.l.b16 %v861
    %v1413 = vunpack.c.h.b16 %v861
    %v1414 = vunpack.c.l.b16 %v862
    %v1415 = vunpack.c.h.b16 %v862
    %v1416 = vunpack.c.l.b16 %v863
    %v1417 = vunpack.c.h.b16 %v863
    %v1418 = vunpack.c.l.b16 %v864
    %v1419 = vunpack.c.h.b16 %v864
    %v1420 = vunpack.c.l.b16 %v865
    %v1421 = vunpack.c.l.b16 %v866
    %v1422 = vunpack.c.h.b16 %v866
    %v1423 = vunpack.c.l.b16 %v867
    %v1424 = vunpack.c.h.b16 %v867
    %v1425 = vunpack.c.l.b16 %v868
    %v1426 = vunpack.c.h.b16 %v868
    %v1427 = vunpack.c.l.b16 %v869
    %v1428 = vunpack.c.h.b16 %v869
    %v1429 = vunpack.c.l.b16 %v870
    %v1430 = vunpack.c.l.b16 %v871
    %v1431 = vunpack.c.h.b16 %v871
    %v1432 = vunpack.c.l.b16 %v872
    %v1433 = vunpack.c.h.b16 %v872
    %v1434 = vunpack.c.l.b16 %v873
    %v1435 = vunpack.c.h.b16 %v873
    %v1436 = vunpack.c.l.b16 %v874
    %v1437 = vunpack.c.h.b16 %v874
    %v1438 = vunpack.c.l.b16 %v875
    %v1439 = vunpack.c.l.b16 %v876
    %v1440 = vunpack.c.h.b16 %v876
    %v1441 = vunpack.c.l.b16 %v877
    %v1442 = vunpack.c.h.b16 %v877
    %v1443 = vunpack.c.l.b16 %v878
    %v1444 = vunpack.c.h.b16 %v878
    %v1445 = vunpack.c.l.b16 %v879
    %v1446 = vunpack.c.h.b16 %v879
    %v1447 = vunpack.c.l.b16 %v880
    %v1448 = vunpack.c.l.b16 %v881
    %v1449 = vunpack.c.h.b16 %v881
    %v1450 = vunpack.c.l.b16 %v882
    %v1451 = vunpack.c.h.b16 %v882
    %v1452 = vunpack.c.l.b16 %v883
    %v1453 = vunpack.c.h.b16 %v883
    %v1454 = vunpack.c.l.b16 %v884
    %v1455 = vunpack.c.h.b16 %v884
    %v1456 = vunpack.c.l.b16 %v885
    %v1457 = vunpack.c.l.b16 %v886
    %v1458 = vunpack.c.h.b16 %v886
    %v1459 = vunpack.c.l.b16 %v887
    %v1460 = vunpack.c.h.b16 %v887
    %v1461 = vunpack.c.l.b16 %v888
    %v1462 = vunpack.c.h.b16 %v888
    %v1463 = vunpack.c.l.b16 %v889
    %v1464 = vunpack.c.h.b16 %v889
    %v1465 = vunpack.c.l.b16 %v890
    %v1466 = vunpack.c.l.b16 %v891
    %v1467 = vunpack.c.h.b16 %v891
    %v1468 = vunpack.c.l.b16 %v892
    %v1469 = vunpack.c.h.b16 %v892
    %v1470 = vunpack.c.l.b16 %v893
    %v1471 = vunpack.c.h.b16 %v893
    %v1472 = vunpack.c.l.b16 %v894
    %v1473 = vunpack.c.h.b16 %v894
    %v1474 = vunpack.c.l.b16 %v895
    %v1475 = vunpack.c.l.b16 %v896
    %v1476 = vunpack.c.h.b16 %v896
    %v1477 = vunpack.c.l.b16 %v897
    %v1478 = vunpack.c.h.b16 %v897
    %v1479 = vunpack.c.l.b16 %v898
    %v1480 = vunpack.c.h.b16 %v898
    %v1481 = vunpack.c.l.b16 %v899
    %v1482 = vunpack.c.h.b16 %v899
    %v1483 = vunpack.c.l.b16 %v900
    %v1484 = vunpack.c.l.b16 %v901
    %v1485 = vunpack.c.h.b16 %v901
    %v1486 = vunpack.c.l.b16 %v902
    %v1487 = vunpack.c.h.b16 %v902
    %v1488 = vunpack.c.l.b16 %v903
    %v1489 = vunpack.c.h.b16 %v903
    %v1490 = vunpack.c.l.b16 %v904
    %v1491 = vunpack.c.h.b16 %v904
    %v1492 = vunpack.c.l.b16 %v905
    %v1493 = vunpack.c.l.b16 %v906
    %v1494 = vunpack.c.h.b16 %v906
    %v1495 = vunpack.c.l.b16 %v907
    %v1496 = vunpack.c.h.b16 %v907
    %v1497 = vunpack.c.l.b16 %v908
    %v1498 = vunpack.c.h.b16 %v908
    %v1499 = vunpack.c.l.b16 %v909
    %v1500 = vunpack.c.h.b16 %v909
    %v1501 = vunpack.c.l.b16 %v910
    %v1502 = vunpack.c.l.b16 %v911
    %v1503 = vunpack.c.h.b16 %v911
    %v1504 = vunpack.c.l.b16 %v912
    %v1505 = vunpack.c.h.b16 %v912
    %v1506 = vunpack.c.l.b16 %v913
    %v1507 = vunpack.c.h.b16 %v913
    %v1508 = vunpack.c.l.b16 %v914
    %v1509 = vunpack.c.h.b16 %v914
    %v1510 = vunpack.c.l.b16 %v915
    %v1511 = vunpack.c.l.b16 %v916
    %v1512 = vunpack.c.h.b16 %v916
    %v1513 = vunpack.c.l.b16 %v917
    %v1514 = vunpack.c.h.b16 %v917
    %v1515 = vunpack.c.l.b16 %v918
    %v1516 = vunpack.c.h.b16 %v918
    %v1517 = vunpack.c.l.b16 %v919
    %v1518 = vunpack.c.h.b16 %v919
    %v1519 = vunpack.c.l.b16 %v920
    %v1520 = vunpack.c.l.b16 %v921
    %v1521 = vunpack.c.h.b16 %v921
    %v1522 = vunpack.c.l.b16 %v922
    %v1523 = vunpack.c.h.b16 %v922
    %v1524 = vunpack.c.l.b16 %v923
    %v1525 = vunpack.c.h.b16 %v923
    %v1526 = vunpack.c.l.b16 %v924
    %v1527 = vunpack.c.h.b16 %v924
    %v1528 = vunpack.c.l.b16 %v925
    %v1529 = vunpack.c.l.b16 %v926
    %v1530 = vunpack.c.h.b16 %v926
    %v1531 = vunpack.c.l.b16 %v927
    %v1532 = vunpack.c.h.b16 %v927
    %v1533 = vunpack.c.l.b16 %v928
    %v1534 = vunpack.c.h.b16 %v928
    %v1535 = vunpack.c.l.b16 %v929
    %v1536 = vunpack.c.h.b16 %v929
    %v1537 = vunpack.c.l.b16 %v930
    %v1538 = vunpack.c.l.b16 %v931
    %v1539 = vunpack.c.h.b16 %v931
    %v1540 = vunpack.c.l.b16 %v932
    %v1541 = vunpack.c.h.b16 %v932
    %v1542 = vunpack.c.l.b16 %v933
    %v1543 = vunpack.c.h.b16 %v933
    %v1544 = vunpack.c.l.b16 %v934
    %v1545 = vunpack.c.h.b16 %v934
    %v1546 = vunpack.c.l.b16 %v935
    %v1547 = vunpack.c.l.b16 %v936
    %v1548 = vunpack.c.h.b16 %v936
    %v1549 = vunpack.c.l.b16 %v937
    %v1550 = vunpack.c.h.b16 %v937
    %v1551 = vunpack.c.l.b16 %v938
    %v1552 = vunpack.c.h.b16 %v938
    %v1553 = vunpack.c.l.b16 %v939
    %v1554 = vunpack.c.h.b16 %v939
    %v1555 = vunpack.c.l.b16 %v940
    %v1556 = vunpack.c.l.b16 %v941
    %v1557 = vunpack.c.h.b16 %v941
    %v1558 = vunpack.c.l.b16 %v942
    %v1559 = vunpack.c.h.b16 %v942
    %v1560 = vunpack.c.l.b16 %v943
    %v1561 = vunpack.c.h.b16 %v943
    %v1562 = vunpack.c.l.b16 %v944
    %v1563 = vunpack.c.h.b16 %v944
    %v1564 = vunpack.c.l.b16 %v945
    %v1565 = vunpack.c.l.b16 %v946
    %v1566 = vunpack.c.h.b16 %v946
    %v1567 = vunpack.c.l.b16 %v947
    %v1568 = vunpack.c.h.b16 %v947
    %v1569 = vunpack.c.l.b16 %v948
    %v1570 = vunpack.c.h.b16 %v948
    %v1571 = vunpack.c.l.b16 %v949
    %v1572 = vunpack.c.h.b16 %v949
    %v1573 = vunpack.c.l.b16 %v950
    %v1574 = vunpack.c.l.b16 %v951
    %v1575 = vunpack.c.h.b16 %v951
    %v1576 = vunpack.c.l.b16 %v952
    %v1577 = vunpack.c.h.b16 %v952
    %v1578 = vunpack.c.l.b16 %v953
    %v1579 = vunpack.c.h.b16 %v953
    %v1580 = vunpack.c.l.b16 %v954
    %v1581 = vunpack.c.h.b16 %v954
    %v1582 = vunpack.c.l.b16 %v955
    %v1583 = vunpack.c.l.b16 %v956
    %v1584 = vunpack.c.h.b16 %v956
    %v1585 = vunpack.c.l.b16 %v957
    %v1586 = vunpack.c.h.b16 %v957
    %v1587 = vunpack.c.l.b16 %v958
    %v1588 = vunpack.c.h.b16 %v958
    %v1589 = vunpack.c.l.b16 %v959
    %v1590 = vunpack.c.h.b16 %v959
    %v1591 = vunpack.c.l.b16 %v960
    %v1592 = vunpack.c.l.b16 %v961
    %v1593 = vunpack.c.h.b16 %v961
    %v1594 = vunpack.c.l.b16 %v962
    %v1595 = vunpack.c.h.b16 %v962
    %v1596 = vunpack.c.l.b16 %v963
    %v1597 = vunpack.c.h.b16 %v963
    %v1598 = vunpack.c.l.b16 %v964
    %v1599 = vunpack.c.h.b16 %v964
    %v1600 = vunpack.c.l.b16 %v965
    %v1601 = vunpack.c.l.b16 %v966
    %v1602 = vunpack.c.h.b16 %v966
    %v1603 = vunpack.c.l.b16 %v967
    %v1604 = vunpack.c.h.b16 %v967
    %v1605 = vunpack.c.l.b16 %v968
    %v1606 = vunpack.c.h.b16 %v968
    %v1607 = vunpack.c.l.b16 %v969
    %v1608 = vunpack.c.h.b16 %v969
    %v1609 = vunpack.c.l.b16 %v970
    %v1610 = vunpack.c.l.b16 %v971
    %v1611 = vunpack.c.h.b16 %v971
    %v1612 = vunpack.c.l.b16 %v972
    %v1613 = vunpack.c.h.b16 %v972
    %v1614 = vunpack.c.l.b16 %v973
    %v1615 = vunpack.c.h.b16 %v973
    %v1616 = vunpack.c.l.b16 %v974
    %v1617 = vunpack.c.h.b16 %v974
    %v1618 = vunpack.c.l.b16 %v975
    %v1619 = vunpack.c.l.b16 %v976
    %v1620 = vunpack.c.h.b16 %v976
    %v1621 = vunpack.c.l.b16 %v977
    %v1622 = vunpack.c.h.b16 %v977
    %v1623 = vunpack.c.l.b16 %v978
    %v1624 = vunpack.c.h.b16 %v978
    %v1625 = vunpack.c.l.b16 %v979
    %v1626 = vunpack.c.h.b16 %v979
    %v1627 = vunpack.c.l.b16 %v980
    %v1628 = vunpack.c.l.b16 %v981
    %v1629 = vunpack.c.h.b16 %v981
    %v1630 = vunpack.c.l.b16 %v982
    %v1631 = vunpack.c.h.b16 %v982
    %v1632 = vunpack.c.l.b16 %v983
    %v1633 = vunpack.c.h.b16 %v983
    %v1634 = vunpack.c.l.b16 %v984
    %v1635 = vunpack.c.h.b16 %v984
    %v1636 = vunpack.c.l.b16 %v985
    %v1637 = vunpack.c.l.b16 %v986
    %v1638 = vunpack.c.h.b16 %v986
    %v1639 = vunpack.c.l.b16 %v987
    %v1640 = vunpack.c.h.b16 %v987
    %v1641 = vunpack.c.l.b16 %v988
    %v1642 = vunpack.c.h.b16 %v988
    %v1643 = vunpack.c.l.b16 %v989
    %v1644 = vunpack.c.h.b16 %v989
    %v1645 = vunpack.c.l.b16 %v990
    %v1646 = vunpack.c.l.b16 %v991
    %v1647 = vunpack.c.h.b16 %v991
    %v1648 = vunpack.c.l.b16 %v992
    %v1649 = vunpack.c.h.b16 %v992
    %v1650 = vunpack.c.l.b16 %v993
    %v1651 = vunpack.c.h.b16 %v993
    %v1652 = vunpack.c.l.b16 %v994
    %v1653 = vunpack.c.h.b16 %v994
    %v1654 = vunpack.c.l.b16 %v995
    %v1655 = vunpack.c.l.b16 %v996
    %v1656 = vunpack.c.h.b16 %v996
    %v1657 = vunpack.c.l.b16 %v997
    %v1658 = vunpack.c.h.b16 %v997
    %v1659 = vunpack.c.l.b16 %v998
    %v1660 = vunpack.c.h.b16 %v998
    %v1661 = vunpack.c.l.b16 %v999
    %v1662 = vunpack.c.h.b16 %v999
    %v1663 = vunpack.c.l.b16 %v1000
    %v1664 = vunpack.c.l.b16 %v1001
    %v1665 = vunpack.c.h.b16 %v1001
    %v1666 = vunpack.c.l.b16 %v1002
    %v1667 = vunpack.c.h.b16 %v1002
    %v1668 = vunpack.c.l.b16 %v1003
    %v1669 = vunpack.c.h.b16 %v1003
    %v1670 = vunpack.c.l.b16 %v1004
    %v1671 = vunpack.c.h.b16 %v1004
    %v1672 = vunpack.c.l.b16 %v1005
    %v1673 = vunpack.c.l.b16 %v1006
    %v1674 = vunpack.c.h.b16 %v1006
    %v1675 = vunpack.c.l.b16 %v1007
    %v1676 = vunpack.c.h.b16 %v1007
    %v1677 = vunpack.c.l.b16 %v1008
    %v1678 = vunpack.c.h.b16 %v1008
    %v1679 = vunpack.c.l.b16 %v1009
    %v1680 = vunpack.c.h.b16 %v1009
    %v1681 = vunpack.c.l.b16 %v1010
    %v1682 = vunpack.c.l.b16 %v1011
    %v1683 = vunpack.c.h.b16 %v1011
    %v1684 = vunpack.c.l.b16 %v1012
    %v1685 = vunpack.c.h.b16 %v1012
    %v1686 = vunpack.c.l.b16 %v1013
    %v1687 = vunpack.c.h.b16 %v1013
    %v1688 = vunpack.c.l.b16 %v1014
    %v1689 = vunpack.c.h.b16 %v1014
    %v1690 = vunpack.c.l.b16 %v1015
    %v1691 = vunpack.c.l.b16 %v1016
    %v1692 = vunpack.c.h.b16 %v1016
    %v1693 = vunpack.c.l.b16 %v1017
    %v1694 = vunpack.c.h.b16 %v1017
    %v1695 = vunpack.c.l.b16 %v1018
    %v1696 = vunpack.c.h.b16 %v1018
    %v1697 = vunpack.c.l.b16 %v1019
    %v1698 = vunpack.c.h.b16 %v1019
    %v1699 = vunpack.c.l.b16 %v1020
    %v1700 = vunpack.c.l.b16 %v1021
    %v1701 = vunpack.c.h.b16 %v1021
    %v1702 = vunpack.c.l.b16 %v1022
    %v1703 = vunpack.c.h.b16 %v1022
    %v1704 = vunpack.c.l.b16 %v1023
    %v1705 = vunpack.c.h.b16 %v1023
    %v1706 = vunpack.c.l.b16 %v1024
    %v1707 = vunpack.c.h.b16 %v1024
    %v1708 = vunpack.c.l.b16 %v1025
    %v1709 = vunpack.c.l.b16 %v1026
    %v1710 = vunpack.c.h.b16 %v1026
    %v1711 = vunpack.c.l.b16 %v1027
    %v1712 = vunpack.c.h.b16 %v1027
    %v1713 = vunpack.c.l.b16 %v1028
    %v1714 = vunpack.c.h.b16 %v1028
    %v1715 = vunpack.c.l.b16 %v1029
    %v1716 = vunpack.c.h.b16 %v1029
    %v1717 = vunpack.c.l.b16 %v1030
    %v1718 = vunpack.c.l.b16 %v1031
    %v1719 = vunpack.c.h.b16 %v1031
    %v1720 = vunpack.c.l.b16 %v1032
    %v1721 = vunpack.c.h.b16 %v1032
    %v1722 = vunpack.c.l.b16 %v1033
    %v1723 = vunpack.c.h.b16 %v1033
    %v1724 = vunpack.c.l.b16 %v1034
    %v1725 = vunpack.c.h.b16 %v1034
    %v1726 = vunpack.c.l.b16 %v1035
    %v1727 = vunpack.c.l.b16 %v1036
    %v1728 = vunpack.c.h.b16 %v1036
    %v1729 = vunpack.c.l.b16 %v1037
    %v1730 = vunpack.c.h.b16 %v1037
    %v1731 = vunpack.c.l.b16 %v1038
    %v1732 = vunpack.c.h.b16 %v1038
    %v1733 = vunpack.c.l.b16 %v1039
    %v1734 = vunpack.c.h.b16 %v1039
    %v1735 = vunpack.c.l.b16 %v1040
    %v1736 = vpack.c.b16 %v1313, %v1304
    %v1737 = vpack.c.b16 %v1314, %v1305
    %v1738 = vpack.c.b16 %v1315, %v1306
    %v1739 = vpack.c.b16 %v1316, %v1307
    %v1740 = vpack.c.b16 %v1317, %v1308
    %v1741 = vpack.c.b16 %v1318, %v1309
    %v1742 = vpack.c.b16 %v1319, %v1310
    %v1743 = vpack.c.b16 %v1320, %v1311
    %v1744 = vpack.c.b16 %v1321, %v1312
    %v1745 = vpack.c.b16 %v1331, %v1322
    %v1746 = vpack.c.b16 %v1332, %v1323
    %v1747 = vpack.c.b16 %v1333, %v1324
    %v1748 = vpack.c.b16 %v1334, %v1325
    %v1749 = vpack.c.b16 %v1335, %v1326
    %v1750 = vpack.c.b16 %v1336, %v1327
    %v1751 = vpack.c.b16 %v1337, %v1328
    %v1752 = vpack.c.b16 %v1338, %v1329
    %v1753 = vpack.c.b16 %v1339, %v1330
    %v1754 = vpack.c.b16 %v1349, %v1340
    %v1755 = vpack.c.b16 %v1350, %v1341
    %v1756 = vpack.c.b16 %v1351, %v1342
    %v1757 = vpack.c.b16 %v1352, %v1343
    %v1758 = vpack.c.b16 %v1353, %v1344
    %v1759 = vpack.c.b16 %v1354, %v1345
    %v1760 = vpack.c.b16 %v1355, %v1346
    %v1761 = vpack.c.b16 %v1356, %v1347
    %v1762 = vpack.c.b16 %v1357, %v1348
    %v1763 = vpack.c.b16 %v1367, %v1358
    %v1764 = vpack.c.b16 %v1368, %v1359
    %v1765 = vpack.c.b16 %v1369, %v1360
    %v1766 = vpack.c.b16 %v1370, %v1361
    %v1767 = vpack.c.b16 %v1371, %v1362
    %v1768 = vpack.c.b16 %v1372, %v1363
    %v1769 = vpack.c.b16 %v1373, %v1364
    %v1770 = vpack.c.b16 %v1374, %v1365
    %v1771 = vpack.c.b16 %v1375, %v1366
    %v1772 = vpack.c.b16 %v1385, %v1376
    %v1773 = vpack.c.b16 %v1386, %v1377
    %v1774 = vpack.c.b16 %v1387, %v1378
    %v1775 = vpack.c.b16 %v1388, %v1379
    %v1776 = vpack.c.b16 %v1389, %v1380
    %v1777 = vpack.c.b16 %v1390, %v1381
    %v1778 = vpack.c.b16 %v1391, %v1382
    %v1779 = vpack.c.b16 %v1392, %v1383
    %v1780 = vpack.c.b16 %v1393, %v1384
    %v1781 = vpack.c.b16 %v1403, %v1394
    %v1782 = vpack.c.b16 %v1404, %v1395
    %v1783 = vpack.c.b16 %v1405, %v1396
    %v1784 = vpack.c.b16 %v1406, %v1397
    %v1785 = vpack.c.b16 %v1407, %v1398
    %v1786 = vpack.c.b16 %v1408, %v1399
    %v1787 = vpack.c.b16 %v1409, %v1400
    %v1788 = vpack.c.b16 %v1410, %v1401
    %v1789 = vpack.c.b16 %v1411, %v1402
    %v1790 = vpack.c.b16 %v1421, %v1412
    %v1791 = vpack.c.b16 %v1422, %v1413
    %v1792 = vpack.c.b16 %v1423, %v1414
    %v1793 = vpack.c.b16 %v1424, %v1415
    %v1794 = vpack.c.b16 %v1425, %v1416
    %v1795 = vpack.c.b16 %v1426, %v1417
    %v1796 = vpack.c.b16 %v1427, %v1418
    %v1797 = vpack.c.b16 %v1428, %v1419
    %v1798 = vpack.c.b16 %v1429, %v1420
    %v1799 = vpack.c.b16 %v1439, %v1430
    %v1800 = vpack.c.b16 %v1440, %v1431
    %v1801 = vpack.c.b16 %v1441, %v1432
    %v1802 = vpack.c.b16 %v1442, %v1433
    %v1803 = vpack.c.b16 %v1443, %v1434
    %v1804 = vpack.c.b16 %v1444, %v1435
    %v1805 = vpack.c.b16 %v1445, %v1436
    %v1806 = vpack.c.b16 %v1446, %v1437
    %v1807 = vpack.c.b16 %v1447, %v1438
    %v1808 = vpack.c.b16 %v1457, %v1448
    %v1809 = vpack.c.b16 %v1458, %v1449
    %v1810 = vpack.c.b16 %v1459, %v1450
    %v1811 = vpack.c.b16 %v1460, %v1451
    %v1812 = vpack.c.b16 %v1461, %v1452
    %v1813 = vpack.c.b16 %v1462, %v1453
    %v1814 = vpack.c.b16 %v1463, %v1454
    %v1815 = vpack.c.b16 %v1464, %v1455
    %v1816 = vpack.c.b16 %v1465, %v1456
    %v1817 = vpack.c.b16 %v1475, %v1466
    %v1818 = vpack.c.b16 %v1476, %v1467
    %v1819 = vpack.c.b16 %v1477, %v1468
    %v1820 = vpack.c.b16 %v1478, %v1469
    %v1821 = vpack.c.b16 %v1479, %v1470
    %v1822 = vpack.c.b16 %v1480, %v1471
    %v1823 = vpack.c.b16 %v1481, %v1472
    %v1824 = vpack.c.b16 %v1482, %v1473
    %v1825 = vpack.c.b16 %v1483, %v1474
    %v1826 = vpack.c.b16 %v1493, %v1484
    %v1827 = vpack.c.b16 %v1494, %v1485
    %v1828 = vpack.c.b16 %v1495, %v1486
    %v1829 = vpack.c.b16 %v1496, %v1487
    %v1830 = vpack.c.b16 %v1497, %v1488
    %v1831 = vpack.c.b16 %v1498, %v1489
    %v1832 = vpack.c.b16 %v1499, %v1490
    %v1833 = vpack.c.b16 %v1500, %v1491
    %v1834 = vpack.c.b16 %v1501, %v1492
    %v1835 = vpack.c.b16 %v1511, %v1502
    %v1836 = vpack.c.b16 %v1512, %v1503
    %v1837 = vpack.c.b16 %v1513, %v1504
    %v1838 = vpack.c.b16 %v1514, %v1505
    %v1839 = vpack.c.b16 %v1515, %v1506
    %v1840 = vpack.c.b16 %v1516, %v1507
    %v1841 = vpack.c.b16 %v1517, %v1508
    %v1842 = vpack.c.b16 %v1518, %v1509
    %v1843 = vpack.c.b16 %v1519, %v1510
    %v1844 = vpack.c.b16 %v1529, %v1520
    %v1845 = vpack.c.b16 %v1530, %v1521
    %v1846 = vpack.c.b16 %v1531, %v1522
    %v1847 = vpack.c.b16 %v1532, %v1523
    %v1848 = vpack.c.b16 %v1533, %v1524
    %v1849 = vpack.c.b16 %v1534, %v1525
    %v1850 = vpack.c.b16 %v1535, %v1526
    %v1851 = vpack.c.b16 %v1536, %v1527
    %v1852 = vpack.c.b16 %v1537, %v1528
    %v1853 = vpack.c.b16 %v1547, %v1538
    %v1854 = vpack.c.b16 %v1548, %v1539
    %v1855 = vpack.c.b16 %v1549, %v1540
    %v1856 = vpack.c.b16 %v1550, %v1541
    %v1857 = vpack.c.b16 %v1551, %v1542
    %v1858 = vpack.c.b16 %v1552, %v1543
    %v1859 = vpack.c.b16 %v1553, %v1544
    %v1860 = vpack.c.b16 %v1554, %v1545
    %v1861 = vpack.c.b16 %v1555, %v1546
    %v1862 = vpack.c.b16 %v1565, %v1556
    %v1863 = vpack.c.b16 %v1566, %v1557
    %v1864 = vpack.c.b16 %v1567, %v1558
    %v1865 = vpack.c.b16 %v1568, %v1559
    %v1866 = vpack.c.b16 %v1569, %v1560
    %v1867 = vpack.c.b16 %v1570, %v1561
    %v1868 = vpack.c.b16 %v1571, %v1562
    %v1869 = vpack.c.b16 %v1572, %v1563
    %v1870 = vpack.c.b16 %v1573, %v1564
    %v1871 = vpack.c.b16 %v1583, %v1574
    %v1872 = vpack.c.b16 %v1584, %v1575
    %v1873 = vpack.c.b16 %v1585, %v1576
    %v1874 = vpack.c.b16 %v1586, %v1577
    %v1875 = vpack.c.b16 %v1587, %v1578
    %v1876 = vpack.c.b16 %v1588, %v1579
    %v1877 = vpack.c.b16 %v1589, %v1580
    %v1878 = vpack.c.b16 %v1590, %v1581
    %v1879 = vpack.c.b16 %v1591, %v1582
    %v1880 = vpack.c.b16 %v1601, %v1592
    %v1881 = vpack.c.b16 %v1602, %v1593
    %v1882 = vpack.c.b16 %v1603, %v1594
    %v1883 = vpack.c.b16 %v1604, %v1595
    %v1884 = vpack.c.b16 %v1605, %v1596
    %v1885 = vpack.c.b16 %v1606, %v1597
    %v1886 = vpack.c.b16 %v1607, %v1598
    %v1887 = vpack.c.b16 %v1608, %v1599
    %v1888 = vpack.c.b16 %v1609, %v1600
    %v1889 = vpack.c.b16 %v1619, %v1610
    %v1890 = vpack.c.b16 %v1620, %v1611
    %v1891 = vpack.c.b16 %v1621, %v1612
    %v1892 = vpack.c.b16 %v1622, %v1613
    %v1893 = vpack.c.b16 %v1623, %v1614
    %v1894 = vpack.c.b16 %v1624, %v1615
    %v1895 = vpack.c.b16 %v1625, %v1616
    %v1896 = vpack.c.b16 %v1626, %v1617
    %v1897 = vpack.c.b16 %v1627, %v1618
    %v1898 = vpack.c.b16 %v1637, %v1628
    %v1899 = vpack.c.b16 %v1638, %v1629
    %v1900 = vpack.c.b16 %v1639, %v1630
    %v1901 = vpack.c.b16 %v1640, %v1631
    %v1902 = vpack.c.b16 %v1641, %v1632
    %v1903 = vpack.c.b16 %v1642, %v1633
    %v1904 = vpack.c.b16 %v1643, %v1634
    %v1905 = vpack.c.b16 %v1644, %v1635
    %v1906 = vpack.c.b16 %v1645, %v1636
    %v1907 = vpack.c.b16 %v1655, %v1646
    %v1908 = vpack.c.b16 %v1656, %v1647
    %v1909 = vpack.c.b16 %v1657, %v1648
    %v1910 = vpack.c.b16 %v1658, %v1649
    %v1911 = vpack.c.b16 %v1659, %v1650
    %v1912 = vpack.c.b16 %v1660, %v1651
    %v1913 = vpack.c.b16 %v1661, %v1652
    %v1914 = vpack.c.b16 %v1662, %v1653
    %v1915 = vpack.c.b16 %v1663, %v1654
    %v1916 = vpack.c.b16 %v1673, %v1664
    %v1917 = vpack.c.b16 %v1674, %v1665
    %v1918 = vpack.c.b16 %v1675, %v1666
    %v1919 = vpack.c.b16 %v1676, %v1667
    %v1920 = vpack.c.b16 %v1677, %v1668
    %v1921 = vpack.c.b16 %v1678, %v1669
    %v1922 = vpack.c.b16 %v1679, %v1670
    %v1923 = vpack.c.b16 %v1680, %v1671
    %v1924 = vpack.c.b16 %v1681, %v1672
    %v1925 = vpack.c.b16 %v1691, %v1682
    %v1926 = vpack.c.b16 %v1692, %v1683
    %v1927 = vpack.c.b16 %v1693, %v1684
    %v1928 = vpack.c.b16 %v1694, %v1685
    %v1929 = vpack.c.b16 %v1695, %v1686
    %v1930 = vpack.c.b16 %v1696, %v1687
    %v1931 = vpack.c.b16 %v1697, %v1688
    %v1932 = vpack.c.b16 %v1698, %v1689
    %v1933 = vpack.c.b16 %v1699, %v1690
    %v1934 = vpack.c.b16 %v1709, %v1700
    %v1935 = vpack.c.b16 %v1710, %v1701
    %v1936 = vpack.c.b16 %v1711, %v1702
    %v1937 = vpack.c.b16 %v1712, %v1703
    %v1938 = vpack.c.b16 %v1713, %v1704
    %v1939 = vpack.c.b16 %v1714, %v1705
    %v1940 = vpack.c.b16 %v1715, %v1706
    %v1941 = vpack.c.b16 %v1716, %v1707
    %v1942 = vpack.c.b16 %v1717, %v1708
    %v1943 = vpack.c.b16 %v1727, %v1718
    %v1944 = vpack.c.b16 %v1728, %v1719
    %v1945 = vpack.c.b16 %v1729, %v1720
    %v1946 = vpack.c.b16 %v1730, %v1721
    %v1947 = vpack.c.b16 %v1731, %v1722
    %v1948 = vpack.c.b16 %v1732, %v1723
    %v1949 = vpack.c.b16 %v1733, %v1724
    %v1950 = vpack.c.b16 %v1734, %v1725
    %v1951 = vpack.c.b16 %v1735, %v1726
    %2168 = vmatprep.subr.bf16.mxu0 %v1800
    %2169 = vmatpush1.bf16.msra.mxu0 %v1799
    %2170 = vmatprep.subr.bf16.mxu0 %v1791
    %2171 = vmatpush1.bf16.msra.mxu0 %v1790
    %2172 = vmatprep.subr.bf16.mxu0 %v1782
    %2173 = vmatpush1.bf16.msra.mxu0 %v1781
    %2174 = vmatprep.subr.bf16.mxu0 %v1773
    %2175 = vmatpush1.bf16.msra.mxu0 %v1772
    %2176 = vmatprep.subr.bf16.mxu0 %v1764
    %2177 = vmatpush1.bf16.msra.mxu0 %v1763
    %2178 = vmatprep.subr.bf16.mxu0 %v1755
    %2179 = vmatpush1.bf16.msra.mxu0 %v1754
    %2180 = vmatprep.subr.bf16.mxu0 %v1746
    %2181 = vmatpush1.bf16.msra.mxu0 %v1745
    %2182 = vmatprep.subr.bf16.mxu0 %v1737
    %2183 = vmatpush1.bf16.msra.mxu0 %v1736
    %2184 = vmatprep.subr.bf16.mxu0 %v1872
    %2185 = vmatpush2.bf16.msra.mxu0 %v1871
    %2186 = vmatprep.subr.bf16.mxu0 %v1863
    %2187 = vmatpush2.bf16.msra.mxu0 %v1862
    %2188 = vmatprep.subr.bf16.mxu0 %v1854
    %2189 = vmatpush2.bf16.msra.mxu0 %v1853
    %2190 = vmatprep.subr.bf16.mxu0 %v1845
    %2191 = vmatpush2.bf16.msra.mxu0 %v1844
    %2192 = vmatprep.subr.bf16.mxu0 %v1836
    %2193 = vmatpush2.bf16.msra.mxu0 %v1835
    %2194 = vmatprep.subr.bf16.mxu0 %v1827
    %2195 = vmatpush2.bf16.msra.mxu0 %v1826
    %2196 = vmatprep.subr.bf16.mxu0 %v1818
    %2197 = vmatpush2.bf16.msra.mxu0 %v1817
    %2198 = vmatprep.subr.bf16.mxu0 %v1809
    %2199 = vmatpush2.bf16.msra.mxu0 %v1808
    %2200 = vmatprep.mubr.bf16.mxu0 %v1062
    %2201 = vmatmul.mubr.bf16.gmra.mxu0 %v1061
    %v2202 = vpop.f32.mrf.mxu0
    %v2203 = vadd.f32 0.0, %v2202
    %v2204 = vpop.f32.mrf.mxu0
    %v2205 = vadd.f32 0.0, %v2204
    %v2206 = vpop.f32.mrf.mxu0
    %v2207 = vpop.f32.mrf.mxu0
    %2208 = vdwg.mxu0
    %2209 = vmatprep.subr.bf16.mxu0 %v1944
    %2210 = vmatpush1.bf16.msra.mxu0 %v1943
    %2211 = vmatprep.subr.bf16.mxu0 %v1935
    %2212 = vmatpush1.bf16.msra.mxu0 %v1934
    %2213 = vmatprep.subr.bf16.mxu0 %v1926
    %2214 = vmatpush1.bf16.msra.mxu0 %v1925
    %2215 = vmatprep.subr.bf16.mxu0 %v1917
    %2216 = vmatpush1.bf16.msra.mxu0 %v1916
    %2217 = vmatprep.subr.bf16.mxu0 %v1908
    %2218 = vmatpush1.bf16.msra.mxu0 %v1907
    %2219 = vmatprep.subr.bf16.mxu0 %v1899
    %2220 = vmatpush1.bf16.msra.mxu0 %v1898
    %2221 = vmatprep.subr.bf16.mxu0 %v1890
    %2222 = vmatpush1.bf16.msra.mxu0 %v1889
    %2223 = vmatprep.subr.bf16.mxu0 %v1881
    %2224 = vmatpush1.bf16.msra.mxu0 %v1880
    %2225 = vmatprep.subr.bf16.mxu0 0
    %2226 = vmatpush2.bf16.msra.mxu0 0
    %2227 = vmatprep.subr.bf16.mxu0 0
    %2228 = vmatpush2.bf16.msra.mxu0 0
    %2229 = vmatprep.subr.bf16.mxu0 0
    %2230 = vmatpush2.bf16.msra.mxu0 0
    %2231 = vmatprep.subr.bf16.mxu0 0
    %2232 = vmatpush2.bf16.msra.mxu0 0
    %2233 = vmatprep.subr.bf16.mxu0 0
    %2234 = vmatpush2.bf16.msra.mxu0 0
    %2235 = vmatprep.subr.bf16.mxu0 0
    %2236 = vmatpush2.bf16.msra.mxu0 0
    %2237 = vmatprep.subr.bf16.mxu0 0
    %2238 = vmatpush2.bf16.msra.mxu0 0
    %2239 = vmatprep.subr.bf16.mxu0 0
    %2240 = vmatpush2.bf16.msra.mxu0 0
    %2241 = vmatprep.mubr.bf16.mxu0 0
    %2242 = vmatmul.mubr.bf16.gmra.mxu0 %v1063
    %v2243 = vpop.f32.mrf.mxu0
    %v2244 = vadd.f32 %v2203, %v2243
    %v2245 = vpop.f32.mrf.mxu0
    %v2246 = vadd.f32 %v2205, %v2245
    %v2247 = vpop.f32.mrf.mxu0
    %v2248 = vpop.f32.mrf.mxu0
    %2249 = vdwg.mxu0
    %2250 = vmatprep.subr.bf16.mxu0 %v1802
    %2251 = vmatpush1.bf16.msra.mxu0 %v1801
    %2252 = vmatprep.subr.bf16.mxu0 %v1793
    %2253 = vmatpush1.bf16.msra.mxu0 %v1792
    %2254 = vmatprep.subr.bf16.mxu0 %v1784
    %2255 = vmatpush1.bf16.msra.mxu0 %v1783
    %2256 = vmatprep.subr.bf16.mxu0 %v1775
    %2257 = vmatpush1.bf16.msra.mxu0 %v1774
    %2258 = vmatprep.subr.bf16.mxu0 %v1766
    %2259 = vmatpush1.bf16.msra.mxu0 %v1765
    %2260 = vmatprep.subr.bf16.mxu0 %v1757
    %2261 = vmatpush1.bf16.msra.mxu0 %v1756
    %2262 = vmatprep.subr.bf16.mxu0 %v1748
    %2263 = vmatpush1.bf16.msra.mxu0 %v1747
    %2264 = vmatprep.subr.bf16.mxu0 %v1739
    %2265 = vmatpush1.bf16.msra.mxu0 %v1738
    %2266 = vmatprep.subr.bf16.mxu0 %v1874
    %2267 = vmatpush2.bf16.msra.mxu0 %v1873
    %2268 = vmatprep.subr.bf16.mxu0 %v1865
    %2269 = vmatpush2.bf16.msra.mxu0 %v1864
    %2270 = vmatprep.subr.bf16.mxu0 %v1856
    %2271 = vmatpush2.bf16.msra.mxu0 %v1855
    %2272 = vmatprep.subr.bf16.mxu0 %v1847
    %2273 = vmatpush2.bf16.msra.mxu0 %v1846
    %2274 = vmatprep.subr.bf16.mxu0 %v1838
    %2275 = vmatpush2.bf16.msra.mxu0 %v1837
    %2276 = vmatprep.subr.bf16.mxu0 %v1829
    %2277 = vmatpush2.bf16.msra.mxu0 %v1828
    %2278 = vmatprep.subr.bf16.mxu0 %v1820
    %2279 = vmatpush2.bf16.msra.mxu0 %v1819
    %2280 = vmatprep.subr.bf16.mxu0 %v1811
    %2281 = vmatpush2.bf16.msra.mxu0 %v1810
    %2282 = vmatprep.mubr.bf16.mxu0 %v1062
    %2283 = vmatmul.mubr.bf16.gmra.mxu0 %v1061
    %v2284 = vpop.f32.mrf.mxu0
    %v2285 = vadd.f32 0.0, %v2284
    %v2286 = vpop.f32.mrf.mxu0
    %v2287 = vadd.f32 0.0, %v2286
    %v2288 = vpop.f32.mrf.mxu0
    %v2289 = vpop.f32.mrf.mxu0
    %2290 = vdwg.mxu0
    %2291 = vmatprep.subr.bf16.mxu0 %v1946
    %2292 = vmatpush1.bf16.msra.mxu0 %v1945
    %2293 = vmatprep.subr.bf16.mxu0 %v1937
    %2294 = vmatpush1.bf16.msra.mxu0 %v1936
    %2295 = vmatprep.subr.bf16.mxu0 %v1928
    %2296 = vmatpush1.bf16.msra.mxu0 %v1927
    %2297 = vmatprep.subr.bf16.mxu0 %v1919
    %2298 = vmatpush1.bf16.msra.mxu0 %v1918
    %2299 = vmatprep.subr.bf16.mxu0 %v1910
    %2300 = vmatpush1.bf16.msra.mxu0 %v1909
    %2301 = vmatprep.subr.bf16.mxu0 %v1901
    %2302 = vmatpush1.bf16.msra.mxu0 %v1900
    %2303 = vmatprep.subr.bf16.mxu0 %v1892
    %2304 = vmatpush1.bf16.msra.mxu0 %v1891
    %2305 = vmatprep.subr.bf16.mxu0 %v1883
    %2306 = vmatpush1.bf16.msra.mxu0 %v1882
    %2307 = vmatprep.subr.bf16.mxu0 0
    %2308 = vmatpush2.bf16.msra.mxu0 0
    %2309 = vmatprep.subr.bf16.mxu0 0
    %2310 = vmatpush2.bf16.msra.mxu0 0
    %2311 = vmatprep.subr.bf16.mxu0 0
    %2312 = vmatpush2.bf16.msra.mxu0 0
    %2313 = vmatprep.subr.bf16.mxu0 0
    %2314 = vmatpush2.bf16.msra.mxu0 0
    %2315 = vmatprep.subr.bf16.mxu0 0
    %2316 = vmatpush2.bf16.msra.mxu0 0
    %2317 = vmatprep.subr.bf16.mxu0 0
    %2318 = vmatpush2.bf16.msra.mxu0 0
    %2319 = vmatprep.subr.bf16.mxu0 0
    %2320 = vmatpush2.bf16.msra.mxu0 0
    %2321 = vmatprep.subr.bf16.mxu0 0
    %2322 = vmatpush2.bf16.msra.mxu0 0
    %2323 = vmatprep.mubr.bf16.mxu0 0
    %2324 = vmatmul.mubr.bf16.gmra.mxu0 %v1063
    %v2325 = vpop.f32.mrf.mxu0
    %v2326 = vadd.f32 %v2285, %v2325
    %v2327 = vpop.f32.mrf.mxu0
    %v2328 = vadd.f32 %v2287, %v2327
    %v2329 = vpop.f32.mrf.mxu0
    %v2330 = vpop.f32.mrf.mxu0
    %2331 = vdwg.mxu0
    %2332 = vmatprep.subr.bf16.mxu0 %v1804
    %2333 = vmatpush1.bf16.msra.mxu0 %v1803
    %2334 = vmatprep.subr.bf16.mxu0 %v1795
    %2335 = vmatpush1.bf16.msra.mxu0 %v1794
    %2336 = vmatprep.subr.bf16.mxu0 %v1786
    %2337 = vmatpush1.bf16.msra.mxu0 %v1785
    %2338 = vmatprep.subr.bf16.mxu0 %v1777
    %2339 = vmatpush1.bf16.msra.mxu0 %v1776
    %2340 = vmatprep.subr.bf16.mxu0 %v1768
    %2341 = vmatpush1.bf16.msra.mxu0 %v1767
    %2342 = vmatprep.subr.bf16.mxu0 %v1759
    %2343 = vmatpush1.bf16.msra.mxu0 %v1758
    %2344 = vmatprep.subr.bf16.mxu0 %v1750
    %2345 = vmatpush1.bf16.msra.mxu0 %v1749
    %2346 = vmatprep.subr.bf16.mxu0 %v1741
    %2347 = vmatpush1.bf16.msra.mxu0 %v1740
    %2348 = vmatprep.subr.bf16.mxu0 %v1876
    %2349 = vmatpush2.bf16.msra.mxu0 %v1875
    %2350 = vmatprep.subr.bf16.mxu0 %v1867
    %2351 = vmatpush2.bf16.msra.mxu0 %v1866
    %2352 = vmatprep.subr.bf16.mxu0 %v1858
    %2353 = vmatpush2.bf16.msra.mxu0 %v1857
    %2354 = vmatprep.subr.bf16.mxu0 %v1849
    %2355 = vmatpush2.bf16.msra.mxu0 %v1848
    %2356 = vmatprep.subr.bf16.mxu0 %v1840
    %2357 = vmatpush2.bf16.msra.mxu0 %v1839
    %2358 = vmatprep.subr.bf16.mxu0 %v1831
    %2359 = vmatpush2.bf16.msra.mxu0 %v1830
    %2360 = vmatprep.subr.bf16.mxu0 %v1822
    %2361 = vmatpush2.bf16.msra.mxu0 %v1821
    %2362 = vmatprep.subr.bf16.mxu0 %v1813
    %2363 = vmatpush2.bf16.msra.mxu0 %v1812
    %2364 = vmatprep.mubr.bf16.mxu0 %v1062
    %2365 = vmatmul.mubr.bf16.gmra.mxu0 %v1061
    %v2366 = vpop.f32.mrf.mxu0
    %v2367 = vadd.f32 0.0, %v2366
    %v2368 = vpop.f32.mrf.mxu0
    %v2369 = vadd.f32 0.0, %v2368
    %v2370 = vpop.f32.mrf.mxu0
    %v2371 = vpop.f32.mrf.mxu0
    %2372 = vdwg.mxu0
    %2373 = vmatprep.subr.bf16.mxu0 %v1948
    %2374 = vmatpush1.bf16.msra.mxu0 %v1947
    %2375 = vmatprep.subr.bf16.mxu0 %v1939
    %2376 = vmatpush1.bf16.msra.mxu0 %v1938
    %2377 = vmatprep.subr.bf16.mxu0 %v1930
    %2378 = vmatpush1.bf16.msra.mxu0 %v1929
    %2379 = vmatprep.subr.bf16.mxu0 %v1921
    %2380 = vmatpush1.bf16.msra.mxu0 %v1920
    %2381 = vmatprep.subr.bf16.mxu0 %v1912
    %2382 = vmatpush1.bf16.msra.mxu0 %v1911
    %2383 = vmatprep.subr.bf16.mxu0 %v1903
    %2384 = vmatpush1.bf16.msra.mxu0 %v1902
    %2385 = vmatprep.subr.bf16.mxu0 %v1894
    %2386 = vmatpush1.bf16.msra.mxu0 %v1893
    %2387 = vmatprep.subr.bf16.mxu0 %v1885
    %2388 = vmatpush1.bf16.msra.mxu0 %v1884
    %2389 = vmatprep.subr.bf16.mxu0 0
    %2390 = vmatpush2.bf16.msra.mxu0 0
    %2391 = vmatprep.subr.bf16.mxu0 0
    %2392 = vmatpush2.bf16.msra.mxu0 0
    %2393 = vmatprep.subr.bf16.mxu0 0
    %2394 = vmatpush2.bf16.msra.mxu0 0
    %2395 = vmatprep.subr.bf16.mxu0 0
    %2396 = vmatpush2.bf16.msra.mxu0 0
    %2397 = vmatprep.subr.bf16.mxu0 0
    %2398 = vmatpush2.bf16.msra.mxu0 0
    %2399 = vmatprep.subr.bf16.mxu0 0
    %2400 = vmatpush2.bf16.msra.mxu0 0
    %2401 = vmatprep.subr.bf16.mxu0 0
    %2402 = vmatpush2.bf16.msra.mxu0 0
    %2403 = vmatprep.subr.bf16.mxu0 0
    %2404 = vmatpush2.bf16.msra.mxu0 0
    %2405 = vmatprep.mubr.bf16.mxu0 0
    %2406 = vmatmul.mubr.bf16.gmra.mxu0 %v1063
    %v2407 = vpop.f32.mrf.mxu0
    %v2408 = vadd.f32 %v2367, %v2407
    %v2409 = vpop.f32.mrf.mxu0
    %v2410 = vadd.f32 %v2369, %v2409
    %v2411 = vpop.f32.mrf.mxu0
    %v2412 = vpop.f32.mrf.mxu0
    %2413 = vdwg.mxu0
    %2414 = vmatprep.subr.bf16.mxu0 %v1806
    %2415 = vmatpush1.bf16.msra.mxu0 %v1805
    %2416 = vmatprep.subr.bf16.mxu0 %v1797
    %2417 = vmatpush1.bf16.msra.mxu0 %v1796
    %2418 = vmatprep.subr.bf16.mxu0 %v1788
    %2419 = vmatpush1.bf16.msra.mxu0 %v1787
    %2420 = vmatprep.subr.bf16.mxu0 %v1779
    %2421 = vmatpush1.bf16.msra.mxu0 %v1778
    %2422 = vmatprep.subr.bf16.mxu0 %v1770
    %2423 = vmatpush1.bf16.msra.mxu0 %v1769
    %2424 = vmatprep.subr.bf16.mxu0 %v1761
    %2425 = vmatpush1.bf16.msra.mxu0 %v1760
    %2426 = vmatprep.subr.bf16.mxu0 %v1752
    %2427 = vmatpush1.bf16.msra.mxu0 %v1751
    %2428 = vmatprep.subr.bf16.mxu0 %v1743
    %2429 = vmatpush1.bf16.msra.mxu0 %v1742
    %2430 = vmatprep.subr.bf16.mxu0 %v1878
    %2431 = vmatpush2.bf16.msra.mxu0 %v1877
    %2432 = vmatprep.subr.bf16.mxu0 %v1869
    %2433 = vmatpush2.bf16.msra.mxu0 %v1868
    %2434 = vmatprep.subr.bf16.mxu0 %v1860
    %2435 = vmatpush2.bf16.msra.mxu0 %v1859
    %2436 = vmatprep.subr.bf16.mxu0 %v1851
    %2437 = vmatpush2.bf16.msra.mxu0 %v1850
    %2438 = vmatprep.subr.bf16.mxu0 %v1842
    %2439 = vmatpush2.bf16.msra.mxu0 %v1841
    %2440 = vmatprep.subr.bf16.mxu0 %v1833
    %2441 = vmatpush2.bf16.msra.mxu0 %v1832
    %2442 = vmatprep.subr.bf16.mxu0 %v1824
    %2443 = vmatpush2.bf16.msra.mxu0 %v1823
    %2444 = vmatprep.subr.bf16.mxu0 %v1815
    %2445 = vmatpush2.bf16.msra.mxu0 %v1814
    %2446 = vmatprep.mubr.bf16.mxu0 %v1062
    %2447 = vmatmul.mubr.bf16.gmra.mxu0 %v1061
    %v2448 = vpop.f32.mrf.mxu0
    %v2449 = vadd.f32 0.0, %v2448
    %v2450 = vpop.f32.mrf.mxu0
    %v2451 = vadd.f32 0.0, %v2450
    %v2452 = vpop.f32.mrf.mxu0
    %v2453 = vpop.f32.mrf.mxu0
    %2454 = vdwg.mxu0
    %2455 = vmatprep.subr.bf16.mxu0 %v1950
    %2456 = vmatpush1.bf16.msra.mxu0 %v1949
    %2457 = vmatprep.subr.bf16.mxu0 %v1941
    %2458 = vmatpush1.bf16.msra.mxu0 %v1940
    %2459 = vmatprep.subr.bf16.mxu0 %v1932
    %2460 = vmatpush1.bf16.msra.mxu0 %v1931
    %2461 = vmatprep.subr.bf16.mxu0 %v1923
    %2462 = vmatpush1.bf16.msra.mxu0 %v1922
    %2463 = vmatprep.subr.bf16.mxu0 %v1914
    %2464 = vmatpush1.bf16.msra.mxu0 %v1913
    %2465 = vmatprep.subr.bf16.mxu0 %v1905
    %2466 = vmatpush1.bf16.msra.mxu0 %v1904
    %2467 = vmatprep.subr.bf16.mxu0 %v1896
    %2468 = vmatpush1.bf16.msra.mxu0 %v1895
    %2469 = vmatprep.subr.bf16.mxu0 %v1887
    %2470 = vmatpush1.bf16.msra.mxu0 %v1886
    %2471 = vmatprep.subr.bf16.mxu0 0
    %2472 = vmatpush2.bf16.msra.mxu0 0
    %2473 = vmatprep.subr.bf16.mxu0 0
    %2474 = vmatpush2.bf16.msra.mxu0 0
    %2475 = vmatprep.subr.bf16.mxu0 0
    %2476 = vmatpush2.bf16.msra.mxu0 0
    %2477 = vmatprep.subr.bf16.mxu0 0
    %2478 = vmatpush2.bf16.msra.mxu0 0
    %2479 = vmatprep.subr.bf16.mxu0 0
    %2480 = vmatpush2.bf16.msra.mxu0 0
    %2481 = vmatprep.subr.bf16.mxu0 0
    %2482 = vmatpush2.bf16.msra.mxu0 0
    %2483 = vmatprep.subr.bf16.mxu0 0
    %2484 = vmatpush2.bf16.msra.mxu0 0
    %2485 = vmatprep.subr.bf16.mxu0 0
    %2486 = vmatpush2.bf16.msra.mxu0 0
    %2487 = vmatprep.mubr.bf16.mxu0 0
    %2488 = vmatmul.mubr.bf16.gmra.mxu0 %v1063
    %v2489 = vpop.f32.mrf.mxu0
    %v2490 = vadd.f32 %v2449, %v2489
    %v2491 = vpop.f32.mrf.mxu0
    %v2492 = vadd.f32 %v2451, %v2491
    %v2493 = vpop.f32.mrf.mxu0
    %v2494 = vpop.f32.mrf.mxu0
    %2495 = vdwg.mxu0
    %2496 = vmatprep.subr.bf16.mxu0 0
    %2497 = vmatpush1.bf16.msra.mxu0 %v1807
    %2498 = vmatprep.subr.bf16.mxu0 0
    %2499 = vmatpush1.bf16.msra.mxu0 %v1798
    %2500 = vmatprep.subr.bf16.mxu0 0
    %2501 = vmatpush1.bf16.msra.mxu0 %v1789
    %2502 = vmatprep.subr.bf16.mxu0 0
    %2503 = vmatpush1.bf16.msra.mxu0 %v1780
    %2504 = vmatprep.subr.bf16.mxu0 0
    %2505 = vmatpush1.bf16.msra.mxu0 %v1771
    %2506 = vmatprep.subr.bf16.mxu0 0
    %2507 = vmatpush1.bf16.msra.mxu0 %v1762
    %2508 = vmatprep.subr.bf16.mxu0 0
    %2509 = vmatpush1.bf16.msra.mxu0 %v1753
    %2510 = vmatprep.subr.bf16.mxu0 0
    %2511 = vmatpush1.bf16.msra.mxu0 %v1744
    %2512 = vmatprep.subr.bf16.mxu0 0
    %2513 = vmatpush2.bf16.msra.mxu0 %v1879
    %2514 = vmatprep.subr.bf16.mxu0 0
    %2515 = vmatpush2.bf16.msra.mxu0 %v1870
    %2516 = vmatprep.subr.bf16.mxu0 0
    %2517 = vmatpush2.bf16.msra.mxu0 %v1861
    %2518 = vmatprep.subr.bf16.mxu0 0
    %2519 = vmatpush2.bf16.msra.mxu0 %v1852
    %2520 = vmatprep.subr.bf16.mxu0 0
    %2521 = vmatpush2.bf16.msra.mxu0 %v1843
    %2522 = vmatprep.subr.bf16.mxu0 0
    %2523 = vmatpush2.bf16.msra.mxu0 %v1834
    %2524 = vmatprep.subr.bf16.mxu0 0
    %2525 = vmatpush2.bf16.msra.mxu0 %v1825
    %2526 = vmatprep.subr.bf16.mxu0 0
    %2527 = vmatpush2.bf16.msra.mxu0 %v1816
    %2528 = vmatprep.mubr.bf16.mxu0 %v1062
    %2529 = vmatmul.mubr.bf16.gmra.mxu0 %v1061
    %v2530 = vpop.f32.mrf.mxu0
    %v2531 = vadd.f32 0.0, %v2530
    %v2532 = vpop.f32.mrf.mxu0
    %v2533 = vpop.f32.mrf.mxu0
    %v2534 = vpop.f32.mrf.mxu0
    %2535 = vdwg.mxu0
    %2536 = vmatprep.subr.bf16.mxu0 0
    %2537 = vmatpush1.bf16.msra.mxu0 %v1951
    %2538 = vmatprep.subr.bf16.mxu0 0
    %2539 = vmatpush1.bf16.msra.mxu0 %v1942
    %2540 = vmatprep.subr.bf16.mxu0 0
    %2541 = vmatpush1.bf16.msra.mxu0 %v1933
    %2542 = vmatprep.subr.bf16.mxu0 0
    %2543 = vmatpush1.bf16.msra.mxu0 %v1924
    %2544 = vmatprep.subr.bf16.mxu0 0
    %2545 = vmatpush1.bf16.msra.mxu0 %v1915
    %2546 = vmatprep.subr.bf16.mxu0 0
    %2547 = vmatpush1.bf16.msra.mxu0 %v1906
    %2548 = vmatprep.subr.bf16.mxu0 0
    %2549 = vmatpush1.bf16.msra.mxu0 %v1897
    %2550 = vmatprep.subr.bf16.mxu0 0
    %2551 = vmatpush1.bf16.msra.mxu0 %v1888
    %2552 = vmatprep.subr.bf16.mxu0 0
    %2553 = vmatpush2.bf16.msra.mxu0 0
    %2554 = vmatprep.subr.bf16.mxu0 0
    %2555 = vmatpush2.bf16.msra.mxu0 0
    %2556 = vmatprep.subr.bf16.mxu0 0
    %2557 = vmatpush2.bf16.msra.mxu0 0
    %2558 = vmatprep.subr.bf16.mxu0 0
    %2559 = vmatpush2.bf16.msra.mxu0 0
    %2560 = vmatprep.subr.bf16.mxu0 0
    %2561 = vmatpush2.bf16.msra.mxu0 0
    %2562 = vmatprep.subr.bf16.mxu0 0
    %2563 = vmatpush2.bf16.msra.mxu0 0
    %2564 = vmatprep.subr.bf16.mxu0 0
    %2565 = vmatpush2.bf16.msra.mxu0 0
    %2566 = vmatprep.subr.bf16.mxu0 0
    %2567 = vmatpush2.bf16.msra.mxu0 0
    %2568 = vmatprep.mubr.bf16.mxu0 0
    %2569 = vmatmul.mubr.bf16.gmra.mxu0 %v1063
    %v2570 = vpop.f32.mrf.mxu0
    %v2571 = vadd.f32 %v2531, %v2570
    %v2572 = vpop.f32.mrf.mxu0
    %v2573 = vpop.f32.mrf.mxu0
    %v2574 = vpop.f32.mrf.mxu0
    %2575 = vdwg.mxu0
    %v2576 = vld [vmem:[#allocation2] sm:$0xff]
    %v2577 = vld [vmem:[#allocation2 + $0x8] sm:$0xff]
    %v2578 = vld [vmem:[#allocation2 + $0x10] sm:$0xff]
    %v2579 = vld [vmem:[#allocation2 + $0x18] sm:$0xff]
    %v2580 = vld [vmem:[#allocation2 + $0x20] sm:$0xff]
    %v2581 = vld [vmem:[#allocation2 + $0x28] sm:$0xff]
    %v2582 = vld [vmem:[#allocation2 + $0x30] sm:$0xff]
    %v2583 = vld [vmem:[#allocation2 + $0x38] sm:$0xff]
    %v2584 = vld [vmem:[#allocation2 + $0x40] sm:$0xff]
    %v2585 = vadd.f32 %v2490, %v1046
    %v2586 = vadd.f32 %v2492, %v1050
    %v2587 = vadd.f32 %v2571, %v1054
    %v2588 = vadd.f32 %v2576, %v2244
    %v2589 = vadd.f32 %v2577, %v2246
    %v2590 = vadd.f32 %v2578, %v2326
    %v2591 = vmul.f32 %v2588, 0.5
    %v2592 = vmul.f32 %v2589, 0.5
    %v2593 = vmul.f32 %v2590, 0.5
    %v2594 = vtanh.pop %v2591
    %v2595 = vtanh.pop %v2592
    %v2596 = vtanh.pop %v2593
    %v2597 = vmul.f32 %v2594, 0.5
    %v2598 = vmul.f32 %v2595, 0.5
    %v2599 = vmul.f32 %v2596, 0.5
    %v2600 = vadd.f32 %v2597, 0.5
    %v2601 = vadd.f32 %v2598, 0.5
    %v2602 = vadd.f32 %v2599, 0.5
    %v2603 = vadd.f32 %v2579, %v2328
    %v2604 = vadd.f32 %v2580, %v2408
    %v2605 = vadd.f32 %v2581, %v2410
    %v2606 = vmul.f32 %v2603, 0.5
    %v2607 = vmul.f32 %v2604, 0.5
    %v2608 = vmul.f32 %v2605, 0.5
    %v2609 = vtanh.pop %v2606
    %v2610 = vtanh.pop %v2607
    %v2611 = vtanh.pop %v2608
    %v2612 = vmul.f32 %v2609, 0.5
    %v2613 = vmul.f32 %v2610, 0.5
    %v2614 = vmul.f32 %v2611, 0.5
    %v2615 = vadd.f32 %v2612, 0.5
    %v2616 = vadd.f32 %v2613, 0.5
    %v2617 = vadd.f32 %v2614, 0.5
    %v2618 = vmul.f32 %v2600, %v2585
    %v2619 = vmul.f32 %v2601, %v2586
    %v2620 = vmul.f32 %v2602, %v2587
    %v2621 = vadd.f32 %v2582, %v2618
    %v2622 = vadd.f32 %v2583, %v2619
    %v2623 = vadd.f32 %v2584, %v2620
    %v2624 = vtanh.pop %v2621
    %v2625 = vtanh.pop %v2622
    %v2626 = vtanh.pop %v2623
    %v2627 = vsub.f32 1.0, %v2615
    %v2628 = vsub.f32 1.0, %v2616
    %v2629 = vsub.f32 1.0, %v2617
    %v2630 = vmul.f32 %v2627, %v2624
    %v2631 = vmul.f32 %v2628, %v2625
    %v2632 = vmul.f32 %v2629, %v2626
    %v2633 = vmul.f32 %v2615, %v1058
    %v2634 = vmul.f32 %v2616, %v1059
    %v2635 = vmul.f32 %v2617, %v1060
    %v2636 = vadd.f32 %v2630, %v2633
    %v2637 = vadd.f32 %v2631, %v2634
    %v2638 = vadd.f32 %v2632, %v2635
    %2639 = vst [vmem:[#allocation3] sm:$0xff] %v2636
    %2640 = vst [vmem:[#allocation3 + $0x8] sm:$0xff] %v2637
    %2641 = vst [vmem:[#allocation3 + $0x10] sm:$0xff] %v2638
    %v2642 = vpack.c.bf16 %v2636, %v2636
    %v2643 = vpack.c.bf16 %v2637, %v2637
    %v2644 = vpack.c.bf16 %v2638, %v2638
    %2645 = vmatprep.subr.bf16.mxu0 %v1800
    %2646 = vmatpush1.bf16.msra.mxu0 %v1799
    %2647 = vmatprep.subr.bf16.mxu0 %v1791
    %2648 = vmatpush1.bf16.msra.mxu0 %v1790
    %2649 = vmatprep.subr.bf16.mxu0 %v1782
    %2650 = vmatpush1.bf16.msra.mxu0 %v1781
    %2651 = vmatprep.subr.bf16.mxu0 %v1773
    %2652 = vmatpush1.bf16.msra.mxu0 %v1772
    %2653 = vmatprep.subr.bf16.mxu0 %v1764
    %2654 = vmatpush1.bf16.msra.mxu0 %v1763
    %2655 = vmatprep.subr.bf16.mxu0 %v1755
    %2656 = vmatpush1.bf16.msra.mxu0 %v1754
    %2657 = vmatprep.subr.bf16.mxu0 %v1746
    %2658 = vmatpush1.bf16.msra.mxu0 %v1745
    %2659 = vmatprep.subr.bf16.mxu0 %v1737
    %2660 = vmatpush1.bf16.msra.mxu0 %v1736
    %2661 = vmatprep.subr.bf16.mxu0 %v1872
    %2662 = vmatpush2.bf16.msra.mxu0 %v1871
    %2663 = vmatprep.subr.bf16.mxu0 %v1863
    %2664 = vmatpush2.bf16.msra.mxu0 %v1862
    %2665 = vmatprep.subr.bf16.mxu0 %v1854
    %2666 = vmatpush2.bf16.msra.mxu0 %v1853
    %2667 = vmatprep.subr.bf16.mxu0 %v1845
    %2668 = vmatpush2.bf16.msra.mxu0 %v1844
    %2669 = vmatprep.subr.bf16.mxu0 %v1836
    %2670 = vmatpush2.bf16.msra.mxu0 %v1835
    %2671 = vmatprep.subr.bf16.mxu0 %v1827
    %2672 = vmatpush2.bf16.msra.mxu0 %v1826
    %2673 = vmatprep.subr.bf16.mxu0 %v1818
    %2674 = vmatpush2.bf16.msra.mxu0 %v1817
    %2675 = vmatprep.subr.bf16.mxu0 %v1809
    %2676 = vmatpush2.bf16.msra.mxu0 %v1808
    %2677 = vmatprep.mubr.bf16.mxu0 %v2643
    %2678 = vmatmul.mubr.bf16.gmra.mxu0 %v2642
    %v2679 = vpop.f32.mrf.mxu0
    %v2680 = vadd.f32 0.0, %v2679
    %v2681 = vpop.f32.mrf.mxu0
    %v2682 = vadd.f32 0.0, %v2681
    %v2683 = vpop.f32.mrf.mxu0
    %v2684 = vpop.f32.mrf.mxu0
    %2685 = vdwg.mxu0
    %2686 = vmatprep.subr.bf16.mxu0 %v1944
    %2687 = vmatpush1.bf16.msra.mxu0 %v1943
    %2688 = vmatprep.subr.bf16.mxu0 %v1935
    %2689 = vmatpush1.bf16.msra.mxu0 %v1934
    %2690 = vmatprep.subr.bf16.mxu0 %v1926
    %2691 = vmatpush1.bf16.msra.mxu0 %v1925
    %2692 = vmatprep.subr.bf16.mxu0 %v1917
    %2693 = vmatpush1.bf16.msra.mxu0 %v1916
    %2694 = vmatprep.subr.bf16.mxu0 %v1908
    %2695 = vmatpush1.bf16.msra.mxu0 %v1907
    %2696 = vmatprep.subr.bf16.mxu0 %v1899
    %2697 = vmatpush1.bf16.msra.mxu0 %v1898
    %2698 = vmatprep.subr.bf16.mxu0 %v1890
    %2699 = vmatpush1.bf16.msra.mxu0 %v1889
    %2700 = vmatprep.subr.bf16.mxu0 %v1881
    %2701 = vmatpush1.bf16.msra.mxu0 %v1880
    %2702 = vmatprep.subr.bf16.mxu0 0
    %2703 = vmatpush2.bf16.msra.mxu0 0
    %2704 = vmatprep.subr.bf16.mxu0 0
    %2705 = vmatpush2.bf16.msra.mxu0 0
    %2706 = vmatprep.subr.bf16.mxu0 0
    %2707 = vmatpush2.bf16.msra.mxu0 0
    %2708 = vmatprep.subr.bf16.mxu0 0
    %2709 = vmatpush2.bf16.msra.mxu0 0
    %2710 = vmatprep.subr.bf16.mxu0 0
    %2711 = vmatpush2.bf16.msra.mxu0 0
    %2712 = vmatprep.subr.bf16.mxu0 0
    %2713 = vmatpush2.bf16.msra.mxu0 0
    %2714 = vmatprep.subr.bf16.mxu0 0
    %2715 = vmatpush2.bf16.msra.mxu0 0
    %2716 = vmatprep.subr.bf16.mxu0 0
    %2717 = vmatpush2.bf16.msra.mxu0 0
    %2718 = vmatprep.mubr.bf16.mxu0 0
    %2719 = vmatmul.mubr.bf16.gmra.mxu0 %v2644
    %v2720 = vpop.f32.mrf.mxu0
    %v2721 = vadd.f32 %v2680, %v2720
    %v2722 = vpop.f32.mrf.mxu0
    %v2723 = vadd.f32 %v2682, %v2722
    %v2724 = vpop.f32.mrf.mxu0
    %v2725 = vpop.f32.mrf.mxu0
    %2726 = vdwg.mxu0
    %2727 = vmatprep.subr.bf16.mxu0 %v1802
    %2728 = vmatpush1.bf16.msra.mxu0 %v1801
    %2729 = vmatprep.subr.bf16.mxu0 %v1793
    %2730 = vmatpush1.bf16.msra.mxu0 %v1792
    %2731 = vmatprep.subr.bf16.mxu0 %v1784
    %2732 = vmatpush1.bf16.msra.mxu0 %v1783
    %2733 = vmatprep.subr.bf16.mxu0 %v1775
    %2734 = vmatpush1.bf16.msra.mxu0 %v1774
    %2735 = vmatprep.subr.bf16.mxu0 %v1766
    %2736 = vmatpush1.bf16.msra.mxu0 %v1765
    %2737 = vmatprep.subr.bf16.mxu0 %v1757
    %2738 = vmatpush1.bf16.msra.mxu0 %v1756
    %2739 = vmatprep.subr.bf16.mxu0 %v1748
    %2740 = vmatpush1.bf16.msra.mxu0 %v1747
    %2741 = vmatprep.subr.bf16.mxu0 %v1739
    %2742 = vmatpush1.bf16.msra.mxu0 %v1738
    %2743 = vmatprep.subr.bf16.mxu0 %v1874
    %2744 = vmatpush2.bf16.msra.mxu0 %v1873
    %2745 = vmatprep.subr.bf16.mxu0 %v1865
    %2746 = vmatpush2.bf16.msra.mxu0 %v1864
    %2747 = vmatprep.subr.bf16.mxu0 %v1856
    %2748 = vmatpush2.bf16.msra.mxu0 %v1855
    %2749 = vmatprep.subr.bf16.mxu0 %v1847
    %2750 = vmatpush2.bf16.msra.mxu0 %v1846
    %2751 = vmatprep.subr.bf16.mxu0 %v1838
    %2752 = vmatpush2.bf16.msra.mxu0 %v1837
    %2753 = vmatprep.subr.bf16.mxu0 %v1829
    %2754 = vmatpush2.bf16.msra.mxu0 %v1828
    %2755 = vmatprep.subr.bf16.mxu0 %v1820
    %2756 = vmatpush2.bf16.msra.mxu0 %v1819
    %2757 = vmatprep.subr.bf16.mxu0 %v1811
    %2758 = vmatpush2.bf16.msra.mxu0 %v1810
    %2759 = vmatprep.mubr.bf16.mxu0 %v2643
    %2760 = vmatmul.mubr.bf16.gmra.mxu0 %v2642
    %v2761 = vpop.f32.mrf.mxu0
    %v2762 = vadd.f32 0.0, %v2761
    %v2763 = vpop.f32.mrf.mxu0
    %v2764 = vadd.f32 0.0, %v2763
    %v2765 = vpop.f32.mrf.mxu0
    %v2766 = vpop.f32.mrf.mxu0
    %2767 = vdwg.mxu0
    %2768 = vmatprep.subr.bf16.mxu0 %v1946
    %2769 = vmatpush1.bf16.msra.mxu0 %v1945
    %2770 = vmatprep.subr.bf16.mxu0 %v1937
    %2771 = vmatpush1.bf16.msra.mxu0 %v1936
    %2772 = vmatprep.subr.bf16.mxu0 %v1928
    %2773 = vmatpush1.bf16.msra.mxu0 %v1927
    %2774 = vmatprep.subr.bf16.mxu0 %v1919
    %2775 = vmatpush1.bf16.msra.mxu0 %v1918
    %2776 = vmatprep.subr.bf16.mxu0 %v1910
    %2777 = vmatpush1.bf16.msra.mxu0 %v1909
    %2778 = vmatprep.subr.bf16.mxu0 %v1901
    %2779 = vmatpush1.bf16.msra.mxu0 %v1900
    %2780 = vmatprep.subr.bf16.mxu0 %v1892
    %2781 = vmatpush1.bf16.msra.mxu0 %v1891
    %2782 = vmatprep.subr.bf16.mxu0 %v1883
    %2783 = vmatpush1.bf16.msra.mxu0 %v1882
    %2784 = vmatprep.subr.bf16.mxu0 0
    %2785 = vmatpush2.bf16.msra.mxu0 0
    %2786 = vmatprep.subr.bf16.mxu0 0
    %2787 = vmatpush2.bf16.msra.mxu0 0
    %2788 = vmatprep.subr.bf16.mxu0 0
    %2789 = vmatpush2.bf16.msra.mxu0 0
    %2790 = vmatprep.subr.bf16.mxu0 0
    %2791 = vmatpush2.bf16.msra.mxu0 0
    %2792 = vmatprep.subr.bf16.mxu0 0
    %2793 = vmatpush2.bf16.msra.mxu0 0
    %2794 = vmatprep.subr.bf16.mxu0 0
    %2795 = vmatpush2.bf16.msra.mxu0 0
    %2796 = vmatprep.subr.bf16.mxu0 0
    %2797 = vmatpush2.bf16.msra.mxu0 0
    %2798 = vmatprep.subr.bf16.mxu0 0
    %2799 = vmatpush2.bf16.msra.mxu0 0
    %2800 = vmatprep.mubr.bf16.mxu0 0
    %2801 = vmatmul.mubr.bf16.gmra.mxu0 %v2644
    %v2802 = vpop.f32.mrf.mxu0
    %v2803 = vadd.f32 %v2762, %v2802
    %v2804 = vpop.f32.mrf.mxu0
    %v2805 = vadd.f32 %v2764, %v2804
    %v2806 = vpop.f32.mrf.mxu0
    %v2807 = vpop.f32.mrf.mxu0
    %2808 = vdwg.mxu0
    %2809 = vmatprep.subr.bf16.mxu0 %v1804
    %2810 = vmatpush1.bf16.msra.mxu0 %v1803
    %2811 = vmatprep.subr.bf16.mxu0 %v1795
    %2812 = vmatpush1.bf16.msra.mxu0 %v1794
    %2813 = vmatprep.subr.bf16.mxu0 %v1786
    %2814 = vmatpush1.bf16.msra.mxu0 %v1785
    %2815 = vmatprep.subr.bf16.mxu0 %v1777
    %2816 = vmatpush1.bf16.msra.mxu0 %v1776
    %2817 = vmatprep.subr.bf16.mxu0 %v1768
    %2818 = vmatpush1.bf16.msra.mxu0 %v1767
    %2819 = vmatprep.subr.bf16.mxu0 %v1759
    %2820 = vmatpush1.bf16.msra.mxu0 %v1758
    %2821 = vmatprep.subr.bf16.mxu0 %v1750
    %2822 = vmatpush1.bf16.msra.mxu0 %v1749
    %2823 = vmatprep.subr.bf16.mxu0 %v1741
    %2824 = vmatpush1.bf16.msra.mxu0 %v1740
    %2825 = vmatprep.subr.bf16.mxu0 %v1876
    %2826 = vmatpush2.bf16.msra.mxu0 %v1875
    %2827 = vmatprep.subr.bf16.mxu0 %v1867
    %2828 = vmatpush2.bf16.msra.mxu0 %v1866
    %2829 = vmatprep.subr.bf16.mxu0 %v1858
    %2830 = vmatpush2.bf16.msra.mxu0 %v1857
    %2831 = vmatprep.subr.bf16.mxu0 %v1849
    %2832 = vmatpush2.bf16.msra.mxu0 %v1848
    %2833 = vmatprep.subr.bf16.mxu0 %v1840
    %2834 = vmatpush2.bf16.msra.mxu0 %v1839
    %2835 = vmatprep.subr.bf16.mxu0 %v1831
    %2836 = vmatpush2.bf16.msra.mxu0 %v1830
    %2837 = vmatprep.subr.bf16.mxu0 %v1822
    %2838 = vmatpush2.bf16.msra.mxu0 %v1821
    %2839 = vmatprep.subr.bf16.mxu0 %v1813
    %2840 = vmatpush2.bf16.msra.mxu0 %v1812
    %2841 = vmatprep.mubr.bf16.mxu0 %v2643
    %2842 = vmatmul.mubr.bf16.gmra.mxu0 %v2642
    %v2843 = vpop.f32.mrf.mxu0
    %v2844 = vadd.f32 0.0, %v2843
    %v2845 = vpop.f32.mrf.mxu0
    %v2846 = vadd.f32 0.0, %v2845
    %v2847 = vpop.f32.mrf.mxu0
    %v2848 = vpop.f32.mrf.mxu0
    %2849 = vdwg.mxu0
    %2850 = vmatprep.subr.bf16.mxu0 %v1948
    %2851 = vmatpush1.bf16.msra.mxu0 %v1947
    %2852 = vmatprep.subr.bf16.mxu0 %v1939
    %2853 = vmatpush1.bf16.msra.mxu0 %v1938
    %2854 = vmatprep.subr.bf16.mxu0 %v1930
    %2855 = vmatpush1.bf16.msra.mxu0 %v1929
    %2856 = vmatprep.subr.bf16.mxu0 %v1921
    %2857 = vmatpush1.bf16.msra.mxu0 %v1920
    %2858 = vmatprep.subr.bf16.mxu0 %v1912
    %2859 = vmatpush1.bf16.msra.mxu0 %v1911
    %2860 = vmatprep.subr.bf16.mxu0 %v1903
    %2861 = vmatpush1.bf16.msra.mxu0 %v1902
    %2862 = vmatprep.subr.bf16.mxu0 %v1894
    %2863 = vmatpush1.bf16.msra.mxu0 %v1893
    %2864 = vmatprep.subr.bf16.mxu0 %v1885
    %2865 = vmatpush1.bf16.msra.mxu0 %v1884
    %2866 = vmatprep.subr.bf16.mxu0 0
    %2867 = vmatpush2.bf16.msra.mxu0 0
    %2868 = vmatprep.subr.bf16.mxu0 0
    %2869 = vmatpush2.bf16.msra.mxu0 0
    %2870 = vmatprep.subr.bf16.mxu0 0
    %2871 = vmatpush2.bf16.msra.mxu0 0
    %2872 = vmatprep.subr.bf16.mxu0 0
    %2873 = vmatpush2.bf16.msra.mxu0 0
    %2874 = vmatprep.subr.bf16.mxu0 0
    %2875 = vmatpush2.bf16.msra.mxu0 0
    %2876 = vmatprep.subr.bf16.mxu0 0
    %2877 = vmatpush2.bf16.msra.mxu0 0
    %2878 = vmatprep.subr.bf16.mxu0 0
    %2879 = vmatpush2.bf16.msra.mxu0 0
    %2880 = vmatprep.subr.bf16.mxu0 0
    %2881 = vmatpush2.bf16.msra.mxu0 0
    %2882 = vmatprep.mubr.bf16.mxu0 0
    %2883 = vmatmul.mubr.bf16.gmra.mxu0 %v2644
    %v2884 = vpop.f32.mrf.mxu0
    %v2885 = vadd.f32 %v2844, %v2884
    %v2886 = vpop.f32.mrf.mxu0
    %v2887 = vadd.f32 %v2846, %v2886
    %v2888 = vpop.f32.mrf.mxu0
    %v2889 = vpop.f32.mrf.mxu0
    %2890 = vdwg.mxu0
    %2891 = vmatprep.subr.bf16.mxu0 %v1806
    %2892 = vmatpush1.bf16.msra.mxu0 %v1805
    %2893 = vmatprep.subr.bf16.mxu0 %v1797
    %2894 = vmatpush1.bf16.msra.mxu0 %v1796
    %2895 = vmatprep.subr.bf16.mxu0 %v1788
    %2896 = vmatpush1.bf16.msra.mxu0 %v1787
    %2897 = vmatprep.subr.bf16.mxu0 %v1779
    %2898 = vmatpush1.bf16.msra.mxu0 %v1778
    %2899 = vmatprep.subr.bf16.mxu0 %v1770
    %2900 = vmatpush1.bf16.msra.mxu0 %v1769
    %2901 = vmatprep.subr.bf16.mxu0 %v1761
    %2902 = vmatpush1.bf16.msra.mxu0 %v1760
    %2903 = vmatprep.subr.bf16.mxu0 %v1752
    %2904 = vmatpush1.bf16.msra.mxu0 %v1751
    %2905 = vmatprep.subr.bf16.mxu0 %v1743
    %2906 = vmatpush1.bf16.msra.mxu0 %v1742
    %2907 = vmatprep.subr.bf16.mxu0 %v1878
    %2908 = vmatpush2.bf16.msra.mxu0 %v1877
    %2909 = vmatprep.subr.bf16.mxu0 %v1869
    %2910 = vmatpush2.bf16.msra.mxu0 %v1868
    %2911 = vmatprep.subr.bf16.mxu0 %v1860
    %2912 = vmatpush2.bf16.msra.mxu0 %v1859
    %2913 = vmatprep.subr.bf16.mxu0 %v1851
    %2914 = vmatpush2.bf16.msra.mxu0 %v1850
    %2915 = vmatprep.subr.bf16.mxu0 %v1842
    %2916 = vmatpush2.bf16.msra.mxu0 %v1841
    %2917 = vmatprep.subr.bf16.mxu0 %v1833
    %2918 = vmatpush2.bf16.msra.mxu0 %v1832
    %2919 = vmatprep.subr.bf16.mxu0 %v1824
    %2920 = vmatpush2.bf16.msra.mxu0 %v1823
    %2921 = vmatprep.subr.bf16.mxu0 %v1815
    %2922 = vmatpush2.bf16.msra.mxu0 %v1814
    %2923 = vmatprep.mubr.bf16.mxu0 %v2643
    %2924 = vmatmul.mubr.bf16.gmra.mxu0 %v2642
    %v2925 = vpop.f32.mrf.mxu0
    %v2926 = vadd.f32 0.0, %v2925
    %v2927 = vpop.f32.mrf.mxu0
    %v2928 = vadd.f32 0.0, %v2927
    %v2929 = vpop.f32.mrf.mxu0
    %v2930 = vpop.f32.mrf.mxu0
    %2931 = vdwg.mxu0
    %2932 = vmatprep.subr.bf16.mxu0 %v1950
    %2933 = vmatpush1.bf16.msra.mxu0 %v1949
    %2934 = vmatprep.subr.bf16.mxu0 %v1941
    %2935 = vmatpush1.bf16.msra.mxu0 %v1940
    %2936 = vmatprep.subr.bf16.mxu0 %v1932
    %2937 = vmatpush1.bf16.msra.mxu0 %v1931
    %2938 = vmatprep.subr.bf16.mxu0 %v1923
    %2939 = vmatpush1.bf16.msra.mxu0 %v1922
    %2940 = vmatprep.subr.bf16.mxu0 %v1914
    %2941 = vmatpush1.bf16.msra.mxu0 %v1913
    %2942 = vmatprep.subr.bf16.mxu0 %v1905
    %2943 = vmatpush1.bf16.msra.mxu0 %v1904
    %2944 = vmatprep.subr.bf16.mxu0 %v1896
    %2945 = vmatpush1.bf16.msra.mxu0 %v1895
    %2946 = vmatprep.subr.bf16.mxu0 %v1887
    %2947 = vmatpush1.bf16.msra.mxu0 %v1886
    %2948 = vmatprep.subr.bf16.mxu0 0
    %2949 = vmatpush2.bf16.msra.mxu0 0
    %2950 = vmatprep.subr.bf16.mxu0 0
    %2951 = vmatpush2.bf16.msra.mxu0 0
    %2952 = vmatprep.subr.bf16.mxu0 0
    %2953 = vmatpush2.bf16.msra.mxu0 0
    %2954 = vmatprep.subr.bf16.mxu0 0
    %2955 = vmatpush2.bf16.msra.mxu0 0
    %2956 = vmatprep.subr.bf16.mxu0 0
    %2957 = vmatpush2.bf16.msra.mxu0 0
    %2958 = vmatprep.subr.bf16.mxu0 0
    %2959 = vmatpush2.bf16.msra.mxu0 0
    %2960 = vmatprep.subr.bf16.mxu0 0
    %2961 = vmatpush2.bf16.msra.mxu0 0
    %2962 = vmatprep.subr.bf16.mxu0 0
    %2963 = vmatpush2.bf16.msra.mxu0 0
    %2964 = vmatprep.mubr.bf16.mxu0 0
    %2965 = vmatmul.mubr.bf16.gmra.mxu0 %v2644
    %v2966 = vpop.f32.mrf.mxu0
    %v2967 = vadd.f32 %v2926, %v2966
    %v2968 = vpop.f32.mrf.mxu0
    %v2969 = vadd.f32 %v2928, %v2968
    %v2970 = vpop.f32.mrf.mxu0
    %v2971 = vpop.f32.mrf.mxu0
    %2972 = vdwg.mxu0
    %2973 = vmatprep.subr.bf16.mxu0 0
    %2974 = vmatpush1.bf16.msra.mxu0 %v1807
    %2975 = vmatprep.subr.bf16.mxu0 0
    %2976 = vmatpush1.bf16.msra.mxu0 %v1798
    %2977 = vmatprep.subr.bf16.mxu0 0
    %2978 = vmatpush1.bf16.msra.mxu0 %v1789
    %2979 = vmatprep.subr.bf16.mxu0 0
    %2980 = vmatpush1.bf16.msra.mxu0 %v1780
    %2981 = vmatprep.subr.bf16.mxu0 0
    %2982 = vmatpush1.bf16.msra.mxu0 %v1771
    %2983 = vmatprep.subr.bf16.mxu0 0
    %2984 = vmatpush1.bf16.msra.mxu0 %v1762
    %2985 = vmatprep.subr.bf16.mxu0 0
    %2986 = vmatpush1.bf16.msra.mxu0 %v1753
    %2987 = vmatprep.subr.bf16.mxu0 0
    %2988 = vmatpush1.bf16.msra.mxu0 %v1744
    %2989 = vmatprep.subr.bf16.mxu0 0
    %2990 = vmatpush2.bf16.msra.mxu0 %v1879
    %2991 = vmatprep.subr.bf16.mxu0 0
    %2992 = vmatpush2.bf16.msra.mxu0 %v1870
    %2993 = vmatprep.subr.bf16.mxu0 0
    %2994 = vmatpush2.bf16.msra.mxu0 %v1861
    %2995 = vmatprep.subr.bf16.mxu0 0
    %2996 = vmatpush2.bf16.msra.mxu0 %v1852
    %2997 = vmatprep.subr.bf16.mxu0 0
    %2998 = vmatpush2.bf16.msra.mxu0 %v1843
    %2999 = vmatprep.subr.bf16.mxu0 0
    %3000 = vmatpush2.bf16.msra.mxu0 %v1834
    %3001 = vmatprep.subr.bf16.mxu0 0
    %3002 = vmatpush2.bf16.msra.mxu0 %v1825
    %3003 = vmatprep.subr.bf16.mxu0 0
    %3004 = vmatpush2.bf16.msra.mxu0 %v1816
    %3005 = vmatprep.mubr.bf16.mxu0 %v2643
    %3006 = vmatmul.mubr.bf16.gmra.mxu0 %v2642
    %v3007 = vpop.f32.mrf.mxu0
    %v3008 = vadd.f32 0.0, %v3007
    %v3009 = vpop.f32.mrf.mxu0
    %v3010 = vpop.f32.mrf.mxu0
    %v3011 = vpop.f32.mrf.mxu0
    %3012 = vdwg.mxu0
    %3013 = vmatprep.subr.bf16.mxu0 0
    %3014 = vmatpush1.bf16.msra.mxu0 %v1951
    %3015 = vmatprep.subr.bf16.mxu0 0
    %3016 = vmatpush1.bf16.msra.mxu0 %v1942
    %3017 = vmatprep.subr.bf16.mxu0 0
    %3018 = vmatpush1.bf16.msra.mxu0 %v1933
    %3019 = vmatprep.subr.bf16.mxu0 0
    %3020 = vmatpush1.bf16.msra.mxu0 %v1924
    %3021 = vmatprep.subr.bf16.mxu0 0
    %3022 = vmatpush1.bf16.msra.mxu0 %v1915
    %3023 = vmatprep.subr.bf16.mxu0 0
    %3024 = vmatpush1.bf16.msra.mxu0 %v1906
    %3025 = vmatprep.subr.bf16.mxu0 0
    %3026 = vmatpush1.bf16.msra.mxu0 %v1897
    %3027 = vmatprep.subr.bf16.mxu0 0
    %3028 = vmatpush1.bf16.msra.mxu0 %v1888
    %3029 = vmatprep.subr.bf16.mxu0 0
    %3030 = vmatpush2.bf16.msra.mxu0 0
    %3031 = vmatprep.subr.bf16.mxu0 0
    %3032 = vmatpush2.bf16.msra.mxu0 0
    %3033 = vmatprep.subr.bf16.mxu0 0
    %3034 = vmatpush2.bf16.msra.mxu0 0
    %3035 = vmatprep.subr.bf16.mxu0 0
    %3036 = vmatpush2.bf16.msra.mxu0 0
    %3037 = vmatprep.subr.bf16.mxu0 0
    %3038 = vmatpush2.bf16.msra.mxu0 0
    %3039 = vmatprep.subr.bf16.mxu0 0
    %3040 = vmatpush2.bf16.msra.mxu0 0
    %3041 = vmatprep.subr.bf16.mxu0 0
    %3042 = vmatpush2.bf16.msra.mxu0 0
    %3043 = vmatprep.subr.bf16.mxu0 0
    %3044 = vmatpush2.bf16.msra.mxu0 0
    %3045 = vmatprep.mubr.bf16.mxu0 0
    %3046 = vmatmul.mubr.bf16.gmra.mxu0 %v2644
    %v3047 = vpop.f32.mrf.mxu0
    %v3048 = vadd.f32 %v3008, %v3047
    %v3049 = vpop.f32.mrf.mxu0
    %v3050 = vpop.f32.mrf.mxu0
    %v3051 = vpop.f32.mrf.mxu0
    %3052 = vdwg.mxu0
    %v3053 = vld [vmem:[#allocation2 + $0x48] sm:$0xff]
    %v3054 = vld [vmem:[#allocation2 + $0x50] sm:$0xff]
    %v3055 = vld [vmem:[#allocation2 + $0x58] sm:$0xff]
    %v3056 = vld [vmem:[#allocation2 + $0x60] sm:$0xff]
    %v3057 = vld [vmem:[#allocation2 + $0x68] sm:$0xff]
    %v3058 = vld [vmem:[#allocation2 + $0x70] sm:$0xff]
    %v3059 = vld [vmem:[#allocation2 + $0x78] sm:$0xff]
    %v3060 = vld [vmem:[#allocation2 + $0x80] sm:$0xff]
    %v3061 = vld [vmem:[#allocation2 + $0x88] sm:$0xff]
    %v3062 = vadd.f32 %v2967, %v1046
    %v3063 = vadd.f32 %v2969, %v1050
    %v3064 = vadd.f32 %v3048, %v1054
    %v3065 = vadd.f32 %v3053, %v2721
    %v3066 = vadd.f32 %v3054, %v2723
    %v3067 = vadd.f32 %v3055, %v2803
    %v3068 = vmul.f32 %v3065, 0.5
    %v3069 = vmul.f32 %v3066, 0.5
    %v3070 = vmul.f32 %v3067, 0.5
    %v3071 = vtanh.pop %v3068
    %v3072 = vtanh.pop %v3069
    %v3073 = vtanh.pop %v3070
    %v3074 = vmul.f32 %v3071, 0.5
    %v3075 = vmul.f32 %v3072, 0.5
    %v3076 = vmul.f32 %v3073, 0.5
    %v3077 = vadd.f32 %v3074, 0.5
    %v3078 = vadd.f32 %v3075, 0.5
    %v3079 = vadd.f32 %v3076, 0.5
    %v3080 = vadd.f32 %v3056, %v2805
    %v3081 = vadd.f32 %v3057, %v2885
    %v3082 = vadd.f32 %v3058, %v2887
    %v3083 = vmul.f32 %v3080, 0.5
    %v3084 = vmul.f32 %v3081, 0.5
    %v3085 = vmul.f32 %v3082, 0.5
    %v3086 = vtanh.pop %v3083
    %v3087 = vtanh.pop %v3084
    %v3088 = vtanh.pop %v3085
    %v3089 = vmul.f32 %v3086, 0.5
    %v3090 = vmul.f32 %v3087, 0.5
    %v3091 = vmul.f32 %v3088, 0.5
    %v3092 = vadd.f32 %v3089, 0.5
    %v3093 = vadd.f32 %v3090, 0.5
    %v3094 = vadd.f32 %v3091, 0.5
    %v3095 = vmul.f32 %v3077, %v3062
    %v3096 = vmul.f32 %v3078, %v3063
    %v3097 = vmul.f32 %v3079, %v3064
    %v3098 = vadd.f32 %v3059, %v3095
    %v3099 = vadd.f32 %v3060, %v3096
    %v3100 = vadd.f32 %v3061, %v3097
    %v3101 = vtanh.pop %v3098
    %v3102 = vtanh.pop %v3099
    %v3103 = vtanh.pop %v3100
    %v3104 = vsub.f32 1.0, %v3092
    %v3105 = vsub.f32 1.0, %v3093
    %v3106 = vsub.f32 1.0, %v3094
    %v3107 = vmul.f32 %v3104, %v3101
    %v3108 = vmul.f32 %v3105, %v3102
    %v3109 = vmul.f32 %v3106, %v3103
    %v3110 = vmul.f32 %v3092, %v2636
    %v3111 = vmul.f32 %v3093, %v2637
    %v3112 = vmul.f32 %v3094, %v2638
    %v3113 = vadd.f32 %v3107, %v3110
    %v3114 = vadd.f32 %v3108, %v3111
    %v3115 = vadd.f32 %v3109, %v3112
    %3116 = vst [vmem:[#allocation3 + $0x18] sm:$0xff] %v3113
    %3117 = vst [vmem:[#allocation3 + $0x20] sm:$0xff] %v3114
    %3118 = vst [vmem:[#allocation3 + $0x28] sm:$0xff] %v3115
    %v3119 = vpack.c.bf16 %v3113, %v3113
    %v3120 = vpack.c.bf16 %v3114, %v3114
    %v3121 = vpack.c.bf16 %v3115, %v3115
    %3122 = vmatprep.subr.bf16.mxu0 %v1800
    %3123 = vmatpush1.bf16.msra.mxu0 %v1799
    %3124 = vmatprep.subr.bf16.mxu0 %v1791
    %3125 = vmatpush1.bf16.msra.mxu0 %v1790
    %3126 = vmatprep.subr.bf16.mxu0 %v1782
    %3127 = vmatpush1.bf16.msra.mxu0 %v1781
    %3128 = vmatprep.subr.bf16.mxu0 %v1773
    %3129 = vmatpush1.bf16.msra.mxu0 %v1772
    %3130 = vmatprep.subr.bf16.mxu0 %v1764
    %3131 = vmatpush1.bf16.msra.mxu0 %v1763
    %3132 = vmatprep.subr.bf16.mxu0 %v1755
    %3133 = vmatpush1.bf16.msra.mxu0 %v1754
    %3134 = vmatprep.subr.bf16.mxu0 %v1746
    %3135 = vmatpush1.bf16.msra.mxu0 %v1745
    %3136 = vmatprep.subr.bf16.mxu0 %v1737
    %3137 = vmatpush1.bf16.msra.mxu0 %v1736
    %3138 = vmatprep.subr.bf16.mxu0 %v1872
    %3139 = vmatpush2.bf16.msra.mxu0 %v1871
    %3140 = vmatprep.subr.bf16.mxu0 %v1863
    %3141 = vmatpush2.bf16.msra.mxu0 %v1862
    %3142 = vmatprep.subr.bf16.mxu0 %v1854
    %3143 = vmatpush2.bf16.msra.mxu0 %v1853
    %3144 = vmatprep.subr.bf16.mxu0 %v1845
    %3145 = vmatpush2.bf16.msra.mxu0 %v1844
    %3146 = vmatprep.subr.bf16.mxu0 %v1836
    %3147 = vmatpush2.bf16.msra.mxu0 %v1835
    %3148 = vmatprep.subr.bf16.mxu0 %v1827
    %3149 = vmatpush2.bf16.msra.mxu0 %v1826
    %3150 = vmatprep.subr.bf16.mxu0 %v1818
    %3151 = vmatpush2.bf16.msra.mxu0 %v1817
    %3152 = vmatprep.subr.bf16.mxu0 %v1809
    %3153 = vmatpush2.bf16.msra.mxu0 %v1808
    %3154 = vmatprep.mubr.bf16.mxu0 %v3120
    %3155 = vmatmul.mubr.bf16.gmra.mxu0 %v3119
    %v3156 = vpop.f32.mrf.mxu0
    %v3157 = vadd.f32 0.0, %v3156
    %v3158 = vpop.f32.mrf.mxu0
    %v3159 = vadd.f32 0.0, %v3158
    %v3160 = vpop.f32.mrf.mxu0
    %v3161 = vpop.f32.mrf.mxu0
    %3162 = vdwg.mxu0
    %3163 = vmatprep.subr.bf16.mxu0 %v1944
    %3164 = vmatpush1.bf16.msra.mxu0 %v1943
    %3165 = vmatprep.subr.bf16.mxu0 %v1935
    %3166 = vmatpush1.bf16.msra.mxu0 %v1934
    %3167 = vmatprep.subr.bf16.mxu0 %v1926
    %3168 = vmatpush1.bf16.msra.mxu0 %v1925
    %3169 = vmatprep.subr.bf16.mxu0 %v1917
    %3170 = vmatpush1.bf16.msra.mxu0 %v1916
    %3171 = vmatprep.subr.bf16.mxu0 %v1908
    %3172 = vmatpush1.bf16.msra.mxu0 %v1907
    %3173 = vmatprep.subr.bf16.mxu0 %v1899
    %3174 = vmatpush1.bf16.msra.mxu0 %v1898
    %3175 = vmatprep.subr.bf16.mxu0 %v1890
    %3176 = vmatpush1.bf16.msra.mxu0 %v1889
    %3177 = vmatprep.subr.bf16.mxu0 %v1881
    %3178 = vmatpush1.bf16.msra.mxu0 %v1880
    %3179 = vmatprep.subr.bf16.mxu0 0
    %3180 = vmatpush2.bf16.msra.mxu0 0
    %3181 = vmatprep.subr.bf16.mxu0 0
    %3182 = vmatpush2.bf16.msra.mxu0 0
    %3183 = vmatprep.subr.bf16.mxu0 0
    %3184 = vmatpush2.bf16.msra.mxu0 0
    %3185 = vmatprep.subr.bf16.mxu0 0
    %3186 = vmatpush2.bf16.msra.mxu0 0
    %3187 = vmatprep.subr.bf16.mxu0 0
    %3188 = vmatpush2.bf16.msra.mxu0 0
    %3189 = vmatprep.subr.bf16.mxu0 0
    %3190 = vmatpush2.bf16.msra.mxu0 0
    %3191 = vmatprep.subr.bf16.mxu0 0
    %3192 = vmatpush2.bf16.msra.mxu0 0
    %3193 = vmatprep.subr.bf16.mxu0 0
    %3194 = vmatpush2.bf16.msra.mxu0 0
    %3195 = vmatprep.mubr.bf16.mxu0 0
    %3196 = vmatmul.mubr.bf16.gmra.mxu0 %v3121
    %v3197 = vpop.f32.mrf.mxu0
    %v3198 = vadd.f32 %v3157, %v3197
    %v3199 = vpop.f32.mrf.mxu0
    %v3200 = vadd.f32 %v3159, %v3199
    %v3201 = vpop.f32.mrf.mxu0
    %v3202 = vpop.f32.mrf.mxu0
    %3203 = vdwg.mxu0
    %3204 = vmatprep.subr.bf16.mxu0 %v1802
    %3205 = vmatpush1.bf16.msra.mxu0 %v1801
    %3206 = vmatprep.subr.bf16.mxu0 %v1793
    %3207 = vmatpush1.bf16.msra.mxu0 %v1792
    %3208 = vmatprep.subr.bf16.mxu0 %v1784
    %3209 = vmatpush1.bf16.msra.mxu0 %v1783
    %3210 = vmatprep.subr.bf16.mxu0 %v1775
    %3211 = vmatpush1.bf16.msra.mxu0 %v1774
    %3212 = vmatprep.subr.bf16.mxu0 %v1766
    %3213 = vmatpush1.bf16.msra.mxu0 %v1765
    %3214 = vmatprep.subr.bf16.mxu0 %v1757
    %3215 = vmatpush1.bf16.msra.mxu0 %v1756
    %3216 = vmatprep.subr.bf16.mxu0 %v1748
    %3217 = vmatpush1.bf16.msra.mxu0 %v1747
    %3218 = vmatprep.subr.bf16.mxu0 %v1739
    %3219 = vmatpush1.bf16.msra.mxu0 %v1738
    %3220 = vmatprep.subr.bf16.mxu0 %v1874
    %3221 = vmatpush2.bf16.msra.mxu0 %v1873
    %3222 = vmatprep.subr.bf16.mxu0 %v1865
    %3223 = vmatpush2.bf16.msra.mxu0 %v1864
    %3224 = vmatprep.subr.bf16.mxu0 %v1856
    %3225 = vmatpush2.bf16.msra.mxu0 %v1855
    %3226 = vmatprep.subr.bf16.mxu0 %v1847
    %3227 = vmatpush2.bf16.msra.mxu0 %v1846
    %3228 = vmatprep.subr.bf16.mxu0 %v1838
    %3229 = vmatpush2.bf16.msra.mxu0 %v1837
    %3230 = vmatprep.subr.bf16.mxu0 %v1829
    %3231 = vmatpush2.bf16.msra.mxu0 %v1828
    %3232 = vmatprep.subr.bf16.mxu0 %v1820
    %3233 = vmatpush2.bf16.msra.mxu0 %v1819
    %3234 = vmatprep.subr.bf16.mxu0 %v1811
    %3235 = vmatpush2.bf16.msra.mxu0 %v1810
    %3236 = vmatprep.mubr.bf16.mxu0 %v3120
    %3237 = vmatmul.mubr.bf16.gmra.mxu0 %v3119
    %v3238 = vpop.f32.mrf.mxu0
    %v3239 = vadd.f32 0.0, %v3238
    %v3240 = vpop.f32.mrf.mxu0
    %v3241 = vadd.f32 0.0, %v3240
    %v3242 = vpop.f32.mrf.mxu0
    %v3243 = vpop.f32.mrf.mxu0
    %3244 = vdwg.mxu0
    %3245 = vmatprep.subr.bf16.mxu0 %v1946
    %3246 = vmatpush1.bf16.msra.mxu0 %v1945
    %3247 = vmatprep.subr.bf16.mxu0 %v1937
    %3248 = vmatpush1.bf16.msra.mxu0 %v1936
    %3249 = vmatprep.subr.bf16.mxu0 %v1928
    %3250 = vmatpush1.bf16.msra.mxu0 %v1927
    %3251 = vmatprep.subr.bf16.mxu0 %v1919
    %3252 = vmatpush1.bf16.msra.mxu0 %v1918
    %3253 = vmatprep.subr.bf16.mxu0 %v1910
    %3254 = vmatpush1.bf16.msra.mxu0 %v1909
    %3255 = vmatprep.subr.bf16.mxu0 %v1901
    %3256 = vmatpush1.bf16.msra.mxu0 %v1900
    %3257 = vmatprep.subr.bf16.mxu0 %v1892
    %3258 = vmatpush1.bf16.msra.mxu0 %v1891
    %3259 = vmatprep.subr.bf16.mxu0 %v1883
    %3260 = vmatpush1.bf16.msra.mxu0 %v1882
    %3261 = vmatprep.subr.bf16.mxu0 0
    %3262 = vmatpush2.bf16.msra.mxu0 0
    %3263 = vmatprep.subr.bf16.mxu0 0
    %3264 = vmatpush2.bf16.msra.mxu0 0
    %3265 = vmatprep.subr.bf16.mxu0 0
    %3266 = vmatpush2.bf16.msra.mxu0 0
    %3267 = vmatprep.subr.bf16.mxu0 0
    %3268 = vmatpush2.bf16.msra.mxu0 0
    %3269 = vmatprep.subr.bf16.mxu0 0
    %3270 = vmatpush2.bf16.msra.mxu0 0
    %3271 = vmatprep.subr.bf16.mxu0 0
    %3272 = vmatpush2.bf16.msra.mxu0 0
    %3273 = vmatprep.subr.bf16.mxu0 0
    %3274 = vmatpush2.bf16.msra.mxu0 0
    %3275 = vmatprep.subr.bf16.mxu0 0
    %3276 = vmatpush2.bf16.msra.mxu0 0
    %3277 = vmatprep.mubr.bf16.mxu0 0
    %3278 = vmatmul.mubr.bf16.gmra.mxu0 %v3121
    %v3279 = vpop.f32.mrf.mxu0
    %v3280 = vadd.f32 %v3239, %v3279
    %v3281 = vpop.f32.mrf.mxu0
    %v3282 = vadd.f32 %v3241, %v3281
    %v3283 = vpop.f32.mrf.mxu0
    %v3284 = vpop.f32.mrf.mxu0
    %3285 = vdwg.mxu0
    %3286 = vmatprep.subr.bf16.mxu0 %v1804
    %3287 = vmatpush1.bf16.msra.mxu0 %v1803
    %3288 = vmatprep.subr.bf16.mxu0 %v1795
    %3289 = vmatpush1.bf16.msra.mxu0 %v1794
    %3290 = vmatprep.subr.bf16.mxu0 %v1786
    %3291 = vmatpush1.bf16.msra.mxu0 %v1785
    %3292 = vmatprep.subr.bf16.mxu0 %v1777
    %3293 = vmatpush1.bf16.msra.mxu0 %v1776
    %3294 = vmatprep.subr.bf16.mxu0 %v1768
    %3295 = vmatpush1.bf16.msra.mxu0 %v1767
    %3296 = vmatprep.subr.bf16.mxu0 %v1759
    %3297 = vmatpush1.bf16.msra.mxu0 %v1758
    %3298 = vmatprep.subr.bf16.mxu0 %v1750
    %3299 = vmatpush1.bf16.msra.mxu0 %v1749
    %3300 = vmatprep.subr.bf16.mxu0 %v1741
    %3301 = vmatpush1.bf16.msra.mxu0 %v1740
    %3302 = vmatprep.subr.bf16.mxu0 %v1876
    %3303 = vmatpush2.bf16.msra.mxu0 %v1875
    %3304 = vmatprep.subr.bf16.mxu0 %v1867
    %3305 = vmatpush2.bf16.msra.mxu0 %v1866
    %3306 = vmatprep.subr.bf16.mxu0 %v1858
    %3307 = vmatpush2.bf16.msra.mxu0 %v1857
    %3308 = vmatprep.subr.bf16.mxu0 %v1849
    %3309 = vmatpush2.bf16.msra.mxu0 %v1848
    %3310 = vmatprep.subr.bf16.mxu0 %v1840
    %3311 = vmatpush2.bf16.msra.mxu0 %v1839
    %3312 = vmatprep.subr.bf16.mxu0 %v1831
    %3313 = vmatpush2.bf16.msra.mxu0 %v1830
    %3314 = vmatprep.subr.bf16.mxu0 %v1822
    %3315 = vmatpush2.bf16.msra.mxu0 %v1821
    %3316 = vmatprep.subr.bf16.mxu0 %v1813
    %3317 = vmatpush2.bf16.msra.mxu0 %v1812
    %3318 = vmatprep.mubr.bf16.mxu0 %v3120
    %3319 = vmatmul.mubr.bf16.gmra.mxu0 %v3119
    %v3320 = vpop.f32.mrf.mxu0
    %v3321 = vadd.f32 0.0, %v3320
    %v3322 = vpop.f32.mrf.mxu0
    %v3323 = vadd.f32 0.0, %v3322
    %v3324 = vpop.f32.mrf.mxu0
    %v3325 = vpop.f32.mrf.mxu0
    %3326 = vdwg.mxu0
    %3327 = vmatprep.subr.bf16.mxu0 %v1948
    %3328 = vmatpush1.bf16.msra.mxu0 %v1947
    %3329 = vmatprep.subr.bf16.mxu0 %v1939
    %3330 = vmatpush1.bf16.msra.mxu0 %v1938
    %3331 = vmatprep.subr.bf16.mxu0 %v1930
    %3332 = vmatpush1.bf16.msra.mxu0 %v1929
    %3333 = vmatprep.subr.bf16.mxu0 %v1921
    %3334 = vmatpush1.bf16.msra.mxu0 %v1920
    %3335 = vmatprep.subr.bf16.mxu0 %v1912
    %3336 = vmatpush1.bf16.msra.mxu0 %v1911
    %3337 = vmatprep.subr.bf16.mxu0 %v1903
    %3338 = vmatpush1.bf16.msra.mxu0 %v1902
    %3339 = vmatprep.subr.bf16.mxu0 %v1894
    %3340 = vmatpush1.bf16.msra.mxu0 %v1893
    %3341 = vmatprep.subr.bf16.mxu0 %v1885
    %3342 = vmatpush1.bf16.msra.mxu0 %v1884
    %3343 = vmatprep.subr.bf16.mxu0 0
    %3344 = vmatpush2.bf16.msra.mxu0 0
    %3345 = vmatprep.subr.bf16.mxu0 0
    %3346 = vmatpush2.bf16.msra.mxu0 0
    %3347 = vmatprep.subr.bf16.mxu0 0
    %3348 = vmatpush2.bf16.msra.mxu0 0
    %3349 = vmatprep.subr.bf16.mxu0 0
    %3350 = vmatpush2.bf16.msra.mxu0 0
    %3351 = vmatprep.subr.bf16.mxu0 0
    %3352 = vmatpush2.bf16.msra.mxu0 0
    %3353 = vmatprep.subr.bf16.mxu0 0
    %3354 = vmatpush2.bf16.msra.mxu0 0
    %3355 = vmatprep.subr.bf16.mxu0 0
    %3356 = vmatpush2.bf16.msra.mxu0 0
    %3357 = vmatprep.subr.bf16.mxu0 0
    %3358 = vmatpush2.bf16.msra.mxu0 0
    %3359 = vmatprep.mubr.bf16.mxu0 0
    %3360 = vmatmul.mubr.bf16.gmra.mxu0 %v3121
    %v3361 = vpop.f32.mrf.mxu0
    %v3362 = vadd.f32 %v3321, %v3361
    %v3363 = vpop.f32.mrf.mxu0
    %v3364 = vadd.f32 %v3323, %v3363
    %v3365 = vpop.f32.mrf.mxu0
    %v3366 = vpop.f32.mrf.mxu0
    %3367 = vdwg.mxu0
    %3368 = vmatprep.subr.bf16.mxu0 %v1806
    %3369 = vmatpush1.bf16.msra.mxu0 %v1805
    %3370 = vmatprep.subr.bf16.mxu0 %v1797
    %3371 = vmatpush1.bf16.msra.mxu0 %v1796
    %3372 = vmatprep.subr.bf16.mxu0 %v1788
    %3373 = vmatpush1.bf16.msra.mxu0 %v1787
    %3374 = vmatprep.subr.bf16.mxu0 %v1779
    %3375 = vmatpush1.bf16.msra.mxu0 %v1778
    %3376 = vmatprep.subr.bf16.mxu0 %v1770
    %3377 = vmatpush1.bf16.msra.mxu0 %v1769
    %3378 = vmatprep.subr.bf16.mxu0 %v1761
    %3379 = vmatpush1.bf16.msra.mxu0 %v1760
    %3380 = vmatprep.subr.bf16.mxu0 %v1752
    %3381 = vmatpush1.bf16.msra.mxu0 %v1751
    %3382 = vmatprep.subr.bf16.mxu0 %v1743
    %3383 = vmatpush1.bf16.msra.mxu0 %v1742
    %3384 = vmatprep.subr.bf16.mxu0 %v1878
    %3385 = vmatpush2.bf16.msra.mxu0 %v1877
    %3386 = vmatprep.subr.bf16.mxu0 %v1869
    %3387 = vmatpush2.bf16.msra.mxu0 %v1868
    %3388 = vmatprep.subr.bf16.mxu0 %v1860
    %3389 = vmatpush2.bf16.msra.mxu0 %v1859
    %3390 = vmatprep.subr.bf16.mxu0 %v1851
    %3391 = vmatpush2.bf16.msra.mxu0 %v1850
    %3392 = vmatprep.subr.bf16.mxu0 %v1842
    %3393 = vmatpush2.bf16.msra.mxu0 %v1841
    %3394 = vmatprep.subr.bf16.mxu0 %v1833
    %3395 = vmatpush2.bf16.msra.mxu0 %v1832
    %3396 = vmatprep.subr.bf16.mxu0 %v1824
    %3397 = vmatpush2.bf16.msra.mxu0 %v1823
    %3398 = vmatprep.subr.bf16.mxu0 %v1815
    %3399 = vmatpush2.bf16.msra.mxu0 %v1814
    %3400 = vmatprep.mubr.bf16.mxu0 %v3120
    %3401 = vmatmul.mubr.bf16.gmra.mxu0 %v3119
    %v3402 = vpop.f32.mrf.mxu0
    %v3403 = vadd.f32 0.0, %v3402
    %v3404 = vpop.f32.mrf.mxu0
    %v3405 = vadd.f32 0.0, %v3404
    %v3406 = vpop.f32.mrf.mxu0
    %v3407 = vpop.f32.mrf.mxu0
    %3408 = vdwg.mxu0
    %3409 = vmatprep.subr.bf16.mxu0 %v1950
    %3410 = vmatpush1.bf16.msra.mxu0 %v1949
    %3411 = vmatprep.subr.bf16.mxu0 %v1941
    %3412 = vmatpush1.bf16.msra.mxu0 %v1940
    %3413 = vmatprep.subr.bf16.mxu0 %v1932
    %3414 = vmatpush1.bf16.msra.mxu0 %v1931
    %3415 = vmatprep.subr.bf16.mxu0 %v1923
    %3416 = vmatpush1.bf16.msra.mxu0 %v1922
    %3417 = vmatprep.subr.bf16.mxu0 %v1914
    %3418 = vmatpush1.bf16.msra.mxu0 %v1913
    %3419 = vmatprep.subr.bf16.mxu0 %v1905
    %3420 = vmatpush1.bf16.msra.mxu0 %v1904
    %3421 = vmatprep.subr.bf16.mxu0 %v1896
    %3422 = vmatpush1.bf16.msra.mxu0 %v1895
    %3423 = vmatprep.subr.bf16.mxu0 %v1887
    %3424 = vmatpush1.bf16.msra.mxu0 %v1886
    %3425 = vmatprep.subr.bf16.mxu0 0
    %3426 = vmatpush2.bf16.msra.mxu0 0
    %3427 = vmatprep.subr.bf16.mxu0 0
    %3428 = vmatpush2.bf16.msra.mxu0 0
    %3429 = vmatprep.subr.bf16.mxu0 0
    %3430 = vmatpush2.bf16.msra.mxu0 0
    %3431 = vmatprep.subr.bf16.mxu0 0
    %3432 = vmatpush2.bf16.msra.mxu0 0
    %3433 = vmatprep.subr.bf16.mxu0 0
    %3434 = vmatpush2.bf16.msra.mxu0 0
    %3435 = vmatprep.subr.bf16.mxu0 0
    %3436 = vmatpush2.bf16.msra.mxu0 0
    %3437 = vmatprep.subr.bf16.mxu0 0
    %3438 = vmatpush2.bf16.msra.mxu0 0
    %3439 = vmatprep.subr.bf16.mxu0 0
    %3440 = vmatpush2.bf16.msra.mxu0 0
    %3441 = vmatprep.mubr.bf16.mxu0 0
    %3442 = vmatmul.mubr.bf16.gmra.mxu0 %v3121
    %v3443 = vpop.f32.mrf.mxu0
    %v3444 = vadd.f32 %v3403, %v3443
    %v3445 = vpop.f32.mrf.mxu0
    %v3446 = vadd.f32 %v3405, %v3445
    %v3447 = vpop.f32.mrf.mxu0
    %v3448 = vpop.f32.mrf.mxu0
    %3449 = vdwg.mxu0
    %3450 = vmatprep.subr.bf16.mxu0 0
    %3451 = vmatpush1.bf16.msra.mxu0 %v1807
    %3452 = vmatprep.subr.bf16.mxu0 0
    %3453 = vmatpush1.bf16.msra.mxu0 %v1798
    %3454 = vmatprep.subr.bf16.mxu0 0
    %3455 = vmatpush1.bf16.msra.mxu0 %v1789
    %3456 = vmatprep.subr.bf16.mxu0 0
    %3457 = vmatpush1.bf16.msra.mxu0 %v1780
    %3458 = vmatprep.subr.bf16.mxu0 0
    %3459 = vmatpush1.bf16.msra.mxu0 %v1771
    %3460 = vmatprep.subr.bf16.mxu0 0
    %3461 = vmatpush1.bf16.msra.mxu0 %v1762
    %3462 = vmatprep.subr.bf16.mxu0 0
    %3463 = vmatpush1.bf16.msra.mxu0 %v1753
    %3464 = vmatprep.subr.bf16.mxu0 0
    %3465 = vmatpush1.bf16.msra.mxu0 %v1744
    %3466 = vmatprep.subr.bf16.mxu0 0
    %3467 = vmatpush2.bf16.msra.mxu0 %v1879
    %3468 = vmatprep.subr.bf16.mxu0 0
    %3469 = vmatpush2.bf16.msra.mxu0 %v1870
    %3470 = vmatprep.subr.bf16.mxu0 0
    %3471 = vmatpush2.bf16.msra.mxu0 %v1861
    %3472 = vmatprep.subr.bf16.mxu0 0
    %3473 = vmatpush2.bf16.msra.mxu0 %v1852
    %3474 = vmatprep.subr.bf16.mxu0 0
    %3475 = vmatpush2.bf16.msra.mxu0 %v1843
    %3476 = vmatprep.subr.bf16.mxu0 0
    %3477 = vmatpush2.bf16.msra.mxu0 %v1834
    %3478 = vmatprep.subr.bf16.mxu0 0
    %3479 = vmatpush2.bf16.msra.mxu0 %v1825
    %3480 = vmatprep.subr.bf16.mxu0 0
    %3481 = vmatpush2.bf16.msra.mxu0 %v1816
    %3482 = vmatprep.mubr.bf16.mxu0 %v3120
    %3483 = vmatmul.mubr.bf16.gmra.mxu0 %v3119
    %v3484 = vpop.f32.mrf.mxu0
    %v3485 = vadd.f32 0.0, %v3484
    %v3486 = vpop.f32.mrf.mxu0
    %v3487 = vpop.f32.mrf.mxu0
    %v3488 = vpop.f32.mrf.mxu0
    %3489 = vdwg.mxu0
    %3490 = vmatprep.subr.bf16.mxu0 0
    %3491 = vmatpush1.bf16.msra.mxu0 %v1951
    %3492 = vmatprep.subr.bf16.mxu0 0
    %3493 = vmatpush1.bf16.msra.mxu0 %v1942
    %3494 = vmatprep.subr.bf16.mxu0 0
    %3495 = vmatpush1.bf16.msra.mxu0 %v1933
    %3496 = vmatprep.subr.bf16.mxu0 0
    %3497 = vmatpush1.bf16.msra.mxu0 %v1924
    %3498 = vmatprep.subr.bf16.mxu0 0
    %3499 = vmatpush1.bf16.msra.mxu0 %v1915
    %3500 = vmatprep.subr.bf16.mxu0 0
    %3501 = vmatpush1.bf16.msra.mxu0 %v1906
    %3502 = vmatprep.subr.bf16.mxu0 0
    %3503 = vmatpush1.bf16.msra.mxu0 %v1897
    %3504 = vmatprep.subr.bf16.mxu0 0
    %3505 = vmatpush1.bf16.msra.mxu0 %v1888
    %3506 = vmatprep.subr.bf16.mxu0 0
    %3507 = vmatpush2.bf16.msra.mxu0 0
    %3508 = vmatprep.subr.bf16.mxu0 0
    %3509 = vmatpush2.bf16.msra.mxu0 0
    %3510 = vmatprep.subr.bf16.mxu0 0
    %3511 = vmatpush2.bf16.msra.mxu0 0
    %3512 = vmatprep.subr.bf16.mxu0 0
    %3513 = vmatpush2.bf16.msra.mxu0 0
    %3514 = vmatprep.subr.bf16.mxu0 0
    %3515 = vmatpush2.bf16.msra.mxu0 0
    %3516 = vmatprep.subr.bf16.mxu0 0
    %3517 = vmatpush2.bf16.msra.mxu0 0
    %3518 = vmatprep.subr.bf16.mxu0 0
    %3519 = vmatpush2.bf16.msra.mxu0 0
    %3520 = vmatprep.subr.bf16.mxu0 0
    %3521 = vmatpush2.bf16.msra.mxu0 0
    %3522 = vmatprep.mubr.bf16.mxu0 0
    %3523 = vmatmul.mubr.bf16.gmra.mxu0 %v3121
    %v3524 = vpop.f32.mrf.mxu0
    %v3525 = vadd.f32 %v3485, %v3524
    %v3526 = vpop.f32.mrf.mxu0
    %v3527 = vpop.f32.mrf.mxu0
    %v3528 = vpop.f32.mrf.mxu0
    %3529 = vdwg.mxu0
    %v3530 = vld [vmem:[#allocation2 + $0x90] sm:$0xff]
    %v3531 = vld [vmem:[#allocation2 + $0x98] sm:$0xff]
    %v3532 = vld [vmem:[#allocation2 + $0xa0] sm:$0xff]
    %v3533 = vld [vmem:[#allocation2 + $0xa8] sm:$0xff]
    %v3534 = vld [vmem:[#allocation2 + $0xb0] sm:$0xff]
    %v3535 = vld [vmem:[#allocation2 + $0xb8] sm:$0xff]
    %v3536 = vld [vmem:[#allocation2 + $0xc0] sm:$0xff]
    %v3537 = vld [vmem:[#allocation2 + $0xc8] sm:$0xff]
    %v3538 = vld [vmem:[#allocation2 + $0xd0] sm:$0xff]
    %v3539 = vadd.f32 %v3444, %v1046
    %v3540 = vadd.f32 %v3446, %v1050
    %v3541 = vadd.f32 %v3525, %v1054
    %v3542 = vadd.f32 %v3530, %v3198
    %v3543 = vadd.f32 %v3531, %v3200
    %v3544 = vadd.f32 %v3532, %v3280
    %v3545 = vmul.f32 %v3542, 0.5
    %v3546 = vmul.f32 %v3543, 0.5
    %v3547 = vmul.f32 %v3544, 0.5
    %v3548 = vtanh.pop %v3545
    %v3549 = vtanh.pop %v3546
    %v3550 = vtanh.pop %v3547
    %v3551 = vmul.f32 %v3548, 0.5
    %v3552 = vmul.f32 %v3549, 0.5
    %v3553 = vmul.f32 %v3550, 0.5
    %v3554 = vadd.f32 %v3551, 0.5
    %v3555 = vadd.f32 %v3552, 0.5
    %v3556 = vadd.f32 %v3553, 0.5
    %v3557 = vadd.f32 %v3533, %v3282
    %v3558 = vadd.f32 %v3534, %v3362
    %v3559 = vadd.f32 %v3535, %v3364
    %v3560 = vmul.f32 %v3557, 0.5
    %v3561 = vmul.f32 %v3558, 0.5
    %v3562 = vmul.f32 %v3559, 0.5
    %v3563 = vtanh.pop %v3560
    %v3564 = vtanh.pop %v3561
    %v3565 = vtanh.pop %v3562
    %v3566 = vmul.f32 %v3563, 0.5
    %v3567 = vmul.f32 %v3564, 0.5
    %v3568 = vmul.f32 %v3565, 0.5
    %v3569 = vadd.f32 %v3566, 0.5
    %v3570 = vadd.f32 %v3567, 0.5
    %v3571 = vadd.f32 %v3568, 0.5
    %v3572 = vmul.f32 %v3554, %v3539
    %v3573 = vmul.f32 %v3555, %v3540
    %v3574 = vmul.f32 %v3556, %v3541
    %v3575 = vadd.f32 %v3536, %v3572
    %v3576 = vadd.f32 %v3537, %v3573
    %v3577 = vadd.f32 %v3538, %v3574
    %v3578 = vtanh.pop %v3575
    %v3579 = vtanh.pop %v3576
    %v3580 = vtanh.pop %v3577
    %v3581 = vsub.f32 1.0, %v3569
    %v3582 = vsub.f32 1.0, %v3570
    %v3583 = vsub.f32 1.0, %v3571
    %v3584 = vmul.f32 %v3581, %v3578
    %v3585 = vmul.f32 %v3582, %v3579
    %v3586 = vmul.f32 %v3583, %v3580
    %v3587 = vmul.f32 %v3569, %v3113
    %v3588 = vmul.f32 %v3570, %v3114
    %v3589 = vmul.f32 %v3571, %v3115
    %v3590 = vadd.f32 %v3584, %v3587
    %v3591 = vadd.f32 %v3585, %v3588
    %v3592 = vadd.f32 %v3586, %v3589
    %3593 = vst [vmem:[#allocation3 + $0x30] sm:$0xff] %v3590
    %3594 = vst [vmem:[#allocation3 + $0x38] sm:$0xff] %v3591
    %3595 = vst [vmem:[#allocation3 + $0x40] sm:$0xff] %v3592
    %v3596 = vpack.c.bf16 %v3590, %v3590
    %v3597 = vpack.c.bf16 %v3591, %v3591
    %v3598 = vpack.c.bf16 %v3592, %v3592
    %3599 = vmatprep.subr.bf16.mxu0 %v1800
    %3600 = vmatpush1.bf16.msra.mxu0 %v1799
    %3601 = vmatprep.subr.bf16.mxu0 %v1791
    %3602 = vmatpush1.bf16.msra.mxu0 %v1790
    %3603 = vmatprep.subr.bf16.mxu0 %v1782
    %3604 = vmatpush1.bf16.msra.mxu0 %v1781
    %3605 = vmatprep.subr.bf16.mxu0 %v1773
    %3606 = vmatpush1.bf16.msra.mxu0 %v1772
    %3607 = vmatprep.subr.bf16.mxu0 %v1764
    %3608 = vmatpush1.bf16.msra.mxu0 %v1763
    %3609 = vmatprep.subr.bf16.mxu0 %v1755
    %3610 = vmatpush1.bf16.msra.mxu0 %v1754
    %3611 = vmatprep.subr.bf16.mxu0 %v1746
    %3612 = vmatpush1.bf16.msra.mxu0 %v1745
    %3613 = vmatprep.subr.bf16.mxu0 %v1737
    %3614 = vmatpush1.bf16.msra.mxu0 %v1736
    %3615 = vmatprep.subr.bf16.mxu0 %v1872
    %3616 = vmatpush2.bf16.msra.mxu0 %v1871
    %3617 = vmatprep.subr.bf16.mxu0 %v1863
    %3618 = vmatpush2.bf16.msra.mxu0 %v1862
    %3619 = vmatprep.subr.bf16.mxu0 %v1854
    %3620 = vmatpush2.bf16.msra.mxu0 %v1853
    %3621 = vmatprep.subr.bf16.mxu0 %v1845
    %3622 = vmatpush2.bf16.msra.mxu0 %v1844
    %3623 = vmatprep.subr.bf16.mxu0 %v1836
    %3624 = vmatpush2.bf16.msra.mxu0 %v1835
    %3625 = vmatprep.subr.bf16.mxu0 %v1827
    %3626 = vmatpush2.bf16.msra.mxu0 %v1826
    %3627 = vmatprep.subr.bf16.mxu0 %v1818
    %3628 = vmatpush2.bf16.msra.mxu0 %v1817
    %3629 = vmatprep.subr.bf16.mxu0 %v1809
    %3630 = vmatpush2.bf16.msra.mxu0 %v1808
    %3631 = vmatprep.mubr.bf16.mxu0 %v3597
    %3632 = vmatmul.mubr.bf16.gmra.mxu0 %v3596
    %v3633 = vpop.f32.mrf.mxu0
    %v3634 = vadd.f32 0.0, %v3633
    %v3635 = vpop.f32.mrf.mxu0
    %v3636 = vadd.f32 0.0, %v3635
    %v3637 = vpop.f32.mrf.mxu0
    %v3638 = vpop.f32.mrf.mxu0
    %3639 = vdwg.mxu0
    %3640 = vmatprep.subr.bf16.mxu0 %v1944
    %3641 = vmatpush1.bf16.msra.mxu0 %v1943
    %3642 = vmatprep.subr.bf16.mxu0 %v1935
    %3643 = vmatpush1.bf16.msra.mxu0 %v1934
    %3644 = vmatprep.subr.bf16.mxu0 %v1926
    %3645 = vmatpush1.bf16.msra.mxu0 %v1925
    %3646 = vmatprep.subr.bf16.mxu0 %v1917
    %3647 = vmatpush1.bf16.msra.mxu0 %v1916
    %3648 = vmatprep.subr.bf16.mxu0 %v1908
    %3649 = vmatpush1.bf16.msra.mxu0 %v1907
    %3650 = vmatprep.subr.bf16.mxu0 %v1899
    %3651 = vmatpush1.bf16.msra.mxu0 %v1898
    %3652 = vmatprep.subr.bf16.mxu0 %v1890
    %3653 = vmatpush1.bf16.msra.mxu0 %v1889
    %3654 = vmatprep.subr.bf16.mxu0 %v1881
    %3655 = vmatpush1.bf16.msra.mxu0 %v1880
    %3656 = vmatprep.subr.bf16.mxu0 0
    %3657 = vmatpush2.bf16.msra.mxu0 0
    %3658 = vmatprep.subr.bf16.mxu0 0
    %3659 = vmatpush2.bf16.msra.mxu0 0
    %3660 = vmatprep.subr.bf16.mxu0 0
    %3661 = vmatpush2.bf16.msra.mxu0 0
    %3662 = vmatprep.subr.bf16.mxu0 0
    %3663 = vmatpush2.bf16.msra.mxu0 0
    %3664 = vmatprep.subr.bf16.mxu0 0
    %3665 = vmatpush2.bf16.msra.mxu0 0
    %3666 = vmatprep.subr.bf16.mxu0 0
    %3667 = vmatpush2.bf16.msra.mxu0 0
    %3668 = vmatprep.subr.bf16.mxu0 0
    %3669 = vmatpush2.bf16.msra.mxu0 0
    %3670 = vmatprep.subr.bf16.mxu0 0
    %3671 = vmatpush2.bf16.msra.mxu0 0
    %3672 = vmatprep.mubr.bf16.mxu0 0
    %3673 = vmatmul.mubr.bf16.gmra.mxu0 %v3598
    %v3674 = vpop.f32.mrf.mxu0
    %v3675 = vadd.f32 %v3634, %v3674
    %v3676 = vpop.f32.mrf.mxu0
    %v3677 = vadd.f32 %v3636, %v3676
    %v3678 = vpop.f32.mrf.mxu0
    %v3679 = vpop.f32.mrf.mxu0
    %3680 = vdwg.mxu0
    %3681 = vmatprep.subr.bf16.mxu0 %v1802
    %3682 = vmatpush1.bf16.msra.mxu0 %v1801
    %3683 = vmatprep.subr.bf16.mxu0 %v1793
    %3684 = vmatpush1.bf16.msra.mxu0 %v1792
    %3685 = vmatprep.subr.bf16.mxu0 %v1784
    %3686 = vmatpush1.bf16.msra.mxu0 %v1783
    %3687 = vmatprep.subr.bf16.mxu0 %v1775
    %3688 = vmatpush1.bf16.msra.mxu0 %v1774
    %3689 = vmatprep.subr.bf16.mxu0 %v1766
    %3690 = vmatpush1.bf16.msra.mxu0 %v1765
    %3691 = vmatprep.subr.bf16.mxu0 %v1757
    %3692 = vmatpush1.bf16.msra.mxu0 %v1756
    %3693 = vmatprep.subr.bf16.mxu0 %v1748
    %3694 = vmatpush1.bf16.msra.mxu0 %v1747
    %3695 = vmatprep.subr.bf16.mxu0 %v1739
    %3696 = vmatpush1.bf16.msra.mxu0 %v1738
    %3697 = vmatprep.subr.bf16.mxu0 %v1874
    %3698 = vmatpush2.bf16.msra.mxu0 %v1873
    %3699 = vmatprep.subr.bf16.mxu0 %v1865
    %3700 = vmatpush2.bf16.msra.mxu0 %v1864
    %3701 = vmatprep.subr.bf16.mxu0 %v1856
    %3702 = vmatpush2.bf16.msra.mxu0 %v1855
    %3703 = vmatprep.subr.bf16.mxu0 %v1847
    %3704 = vmatpush2.bf16.msra.mxu0 %v1846
    %3705 = vmatprep.subr.bf16.mxu0 %v1838
    %3706 = vmatpush2.bf16.msra.mxu0 %v1837
    %3707 = vmatprep.subr.bf16.mxu0 %v1829
    %3708 = vmatpush2.bf16.msra.mxu0 %v1828
    %3709 = vmatprep.subr.bf16.mxu0 %v1820
    %3710 = vmatpush2.bf16.msra.mxu0 %v1819
    %3711 = vmatprep.subr.bf16.mxu0 %v1811
    %3712 = vmatpush2.bf16.msra.mxu0 %v1810
    %3713 = vmatprep.mubr.bf16.mxu0 %v3597
    %3714 = vmatmul.mubr.bf16.gmra.mxu0 %v3596
    %v3715 = vpop.f32.mrf.mxu0
    %v3716 = vadd.f32 0.0, %v3715
    %v3717 = vpop.f32.mrf.mxu0
    %v3718 = vadd.f32 0.0, %v3717
    %v3719 = vpop.f32.mrf.mxu0
    %v3720 = vpop.f32.mrf.mxu0
    %3721 = vdwg.mxu0
    %3722 = vmatprep.subr.bf16.mxu0 %v1946
    %3723 = vmatpush1.bf16.msra.mxu0 %v1945
    %3724 = vmatprep.subr.bf16.mxu0 %v1937
    %3725 = vmatpush1.bf16.msra.mxu0 %v1936
    %3726 = vmatprep.subr.bf16.mxu0 %v1928
    %3727 = vmatpush1.bf16.msra.mxu0 %v1927
    %3728 = vmatprep.subr.bf16.mxu0 %v1919
    %3729 = vmatpush1.bf16.msra.mxu0 %v1918
    %3730 = vmatprep.subr.bf16.mxu0 %v1910
    %3731 = vmatpush1.bf16.msra.mxu0 %v1909
    %3732 = vmatprep.subr.bf16.mxu0 %v1901
    %3733 = vmatpush1.bf16.msra.mxu0 %v1900
    %3734 = vmatprep.subr.bf16.mxu0 %v1892
    %3735 = vmatpush1.bf16.msra.mxu0 %v1891
    %3736 = vmatprep.subr.bf16.mxu0 %v1883
    %3737 = vmatpush1.bf16.msra.mxu0 %v1882
    %3738 = vmatprep.subr.bf16.mxu0 0
    %3739 = vmatpush2.bf16.msra.mxu0 0
    %3740 = vmatprep.subr.bf16.mxu0 0
    %3741 = vmatpush2.bf16.msra.mxu0 0
    %3742 = vmatprep.subr.bf16.mxu0 0
    %3743 = vmatpush2.bf16.msra.mxu0 0
    %3744 = vmatprep.subr.bf16.mxu0 0
    %3745 = vmatpush2.bf16.msra.mxu0 0
    %3746 = vmatprep.subr.bf16.mxu0 0
    %3747 = vmatpush2.bf16.msra.mxu0 0
    %3748 = vmatprep.subr.bf16.mxu0 0
    %3749 = vmatpush2.bf16.msra.mxu0 0
    %3750 = vmatprep.subr.bf16.mxu0 0
    %3751 = vmatpush2.bf16.msra.mxu0 0
    %3752 = vmatprep.subr.bf16.mxu0 0
    %3753 = vmatpush2.bf16.msra.mxu0 0
    %3754 = vmatprep.mubr.bf16.mxu0 0
    %3755 = vmatmul.mubr.bf16.gmra.mxu0 %v3598
    %v3756 = vpop.f32.mrf.mxu0
    %v3757 = vadd.f32 %v3716, %v3756
    %v3758 = vpop.f32.mrf.mxu0
    %v3759 = vadd.f32 %v3718, %v3758
    %v3760 = vpop.f32.mrf.mxu0
    %v3761 = vpop.f32.mrf.mxu0
    %3762 = vdwg.mxu0
    %3763 = vmatprep.subr.bf16.mxu0 %v1804
    %3764 = vmatpush1.bf16.msra.mxu0 %v1803
    %3765 = vmatprep.subr.bf16.mxu0 %v1795
    %3766 = vmatpush1.bf16.msra.mxu0 %v1794
    %3767 = vmatprep.subr.bf16.mxu0 %v1786
    %3768 = vmatpush1.bf16.msra.mxu0 %v1785
    %3769 = vmatprep.subr.bf16.mxu0 %v1777
    %3770 = vmatpush1.bf16.msra.mxu0 %v1776
    %3771 = vmatprep.subr.bf16.mxu0 %v1768
    %3772 = vmatpush1.bf16.msra.mxu0 %v1767
    %3773 = vmatprep.subr.bf16.mxu0 %v1759
    %3774 = vmatpush1.bf16.msra.mxu0 %v1758
    %3775 = vmatprep.subr.bf16.mxu0 %v1750
    %3776 = vmatpush1.bf16.msra.mxu0 %v1749
    %3777 = vmatprep.subr.bf16.mxu0 %v1741
    %3778 = vmatpush1.bf16.msra.mxu0 %v1740
    %3779 = vmatprep.subr.bf16.mxu0 %v1876
    %3780 = vmatpush2.bf16.msra.mxu0 %v1875
    %3781 = vmatprep.subr.bf16.mxu0 %v1867
    %3782 = vmatpush2.bf16.msra.mxu0 %v1866
    %3783 = vmatprep.subr.bf16.mxu0 %v1858
    %3784 = vmatpush2.bf16.msra.mxu0 %v1857
    %3785 = vmatprep.subr.bf16.mxu0 %v1849
    %3786 = vmatpush2.bf16.msra.mxu0 %v1848
    %3787 = vmatprep.subr.bf16.mxu0 %v1840
    %3788 = vmatpush2.bf16.msra.mxu0 %v1839
    %3789 = vmatprep.subr.bf16.mxu0 %v1831
    %3790 = vmatpush2.bf16.msra.mxu0 %v1830
    %3791 = vmatprep.subr.bf16.mxu0 %v1822
    %3792 = vmatpush2.bf16.msra.mxu0 %v1821
    %3793 = vmatprep.subr.bf16.mxu0 %v1813
    %3794 = vmatpush2.bf16.msra.mxu0 %v1812
    %3795 = vmatprep.mubr.bf16.mxu0 %v3597
    %3796 = vmatmul.mubr.bf16.gmra.mxu0 %v3596
    %v3797 = vpop.f32.mrf.mxu0
    %v3798 = vadd.f32 0.0, %v3797
    %v3799 = vpop.f32.mrf.mxu0
    %v3800 = vadd.f32 0.0, %v3799
    %v3801 = vpop.f32.mrf.mxu0
    %v3802 = vpop.f32.mrf.mxu0
    %3803 = vdwg.mxu0
    %3804 = vmatprep.subr.bf16.mxu0 %v1948
    %3805 = vmatpush1.bf16.msra.mxu0 %v1947
    %3806 = vmatprep.subr.bf16.mxu0 %v1939
    %3807 = vmatpush1.bf16.msra.mxu0 %v1938
    %3808 = vmatprep.subr.bf16.mxu0 %v1930
    %3809 = vmatpush1.bf16.msra.mxu0 %v1929
    %3810 = vmatprep.subr.bf16.mxu0 %v1921
    %3811 = vmatpush1.bf16.msra.mxu0 %v1920
    %3812 = vmatprep.subr.bf16.mxu0 %v1912
    %3813 = vmatpush1.bf16.msra.mxu0 %v1911
    %3814 = vmatprep.subr.bf16.mxu0 %v1903
    %3815 = vmatpush1.bf16.msra.mxu0 %v1902
    %3816 = vmatprep.subr.bf16.mxu0 %v1894
    %3817 = vmatpush1.bf16.msra.mxu0 %v1893
    %3818 = vmatprep.subr.bf16.mxu0 %v1885
    %3819 = vmatpush1.bf16.msra.mxu0 %v1884
    %3820 = vmatprep.subr.bf16.mxu0 0
    %3821 = vmatpush2.bf16.msra.mxu0 0
    %3822 = vmatprep.subr.bf16.mxu0 0
    %3823 = vmatpush2.bf16.msra.mxu0 0
    %3824 = vmatprep.subr.bf16.mxu0 0
    %3825 = vmatpush2.bf16.msra.mxu0 0
    %3826 = vmatprep.subr.bf16.mxu0 0
    %3827 = vmatpush2.bf16.msra.mxu0 0
    %3828 = vmatprep.subr.bf16.mxu0 0
    %3829 = vmatpush2.bf16.msra.mxu0 0
    %3830 = vmatprep.subr.bf16.mxu0 0
    %3831 = vmatpush2.bf16.msra.mxu0 0
    %3832 = vmatprep.subr.bf16.mxu0 0
    %3833 = vmatpush2.bf16.msra.mxu0 0
    %3834 = vmatprep.subr.bf16.mxu0 0
    %3835 = vmatpush2.bf16.msra.mxu0 0
    %3836 = vmatprep.mubr.bf16.mxu0 0
    %3837 = vmatmul.mubr.bf16.gmra.mxu0 %v3598
    %v3838 = vpop.f32.mrf.mxu0
    %v3839 = vadd.f32 %v3798, %v3838
    %v3840 = vpop.f32.mrf.mxu0
    %v3841 = vadd.f32 %v3800, %v3840
    %v3842 = vpop.f32.mrf.mxu0
    %v3843 = vpop.f32.mrf.mxu0
    %3844 = vdwg.mxu0
    %3845 = vmatprep.subr.bf16.mxu0 %v1806
    %3846 = vmatpush1.bf16.msra.mxu0 %v1805
    %3847 = vmatprep.subr.bf16.mxu0 %v1797
    %3848 = vmatpush1.bf16.msra.mxu0 %v1796
    %3849 = vmatprep.subr.bf16.mxu0 %v1788
    %3850 = vmatpush1.bf16.msra.mxu0 %v1787
    %3851 = vmatprep.subr.bf16.mxu0 %v1779
    %3852 = vmatpush1.bf16.msra.mxu0 %v1778
    %3853 = vmatprep.subr.bf16.mxu0 %v1770
    %3854 = vmatpush1.bf16.msra.mxu0 %v1769
    %3855 = vmatprep.subr.bf16.mxu0 %v1761
    %3856 = vmatpush1.bf16.msra.mxu0 %v1760
    %3857 = vmatprep.subr.bf16.mxu0 %v1752
    %3858 = vmatpush1.bf16.msra.mxu0 %v1751
    %3859 = vmatprep.subr.bf16.mxu0 %v1743
    %3860 = vmatpush1.bf16.msra.mxu0 %v1742
    %3861 = vmatprep.subr.bf16.mxu0 %v1878
    %3862 = vmatpush2.bf16.msra.mxu0 %v1877
    %3863 = vmatprep.subr.bf16.mxu0 %v1869
    %3864 = vmatpush2.bf16.msra.mxu0 %v1868
    %3865 = vmatprep.subr.bf16.mxu0 %v1860
    %3866 = vmatpush2.bf16.msra.mxu0 %v1859
    %3867 = vmatprep.subr.bf16.mxu0 %v1851
    %3868 = vmatpush2.bf16.msra.mxu0 %v1850
    %3869 = vmatprep.subr.bf16.mxu0 %v1842
    %3870 = vmatpush2.bf16.msra.mxu0 %v1841
    %3871 = vmatprep.subr.bf16.mxu0 %v1833
    %3872 = vmatpush2.bf16.msra.mxu0 %v1832
    %3873 = vmatprep.subr.bf16.mxu0 %v1824
    %3874 = vmatpush2.bf16.msra.mxu0 %v1823
    %3875 = vmatprep.subr.bf16.mxu0 %v1815
    %3876 = vmatpush2.bf16.msra.mxu0 %v1814
    %3877 = vmatprep.mubr.bf16.mxu0 %v3597
    %3878 = vmatmul.mubr.bf16.gmra.mxu0 %v3596
    %v3879 = vpop.f32.mrf.mxu0
    %v3880 = vadd.f32 0.0, %v3879
    %v3881 = vpop.f32.mrf.mxu0
    %v3882 = vadd.f32 0.0, %v3881
    %v3883 = vpop.f32.mrf.mxu0
    %v3884 = vpop.f32.mrf.mxu0
    %3885 = vdwg.mxu0
    %3886 = vmatprep.subr.bf16.mxu0 %v1950
    %3887 = vmatpush1.bf16.msra.mxu0 %v1949
    %3888 = vmatprep.subr.bf16.mxu0 %v1941
    %3889 = vmatpush1.bf16.msra.mxu0 %v1940
    %3890 = vmatprep.subr.bf16.mxu0 %v1932
    %3891 = vmatpush1.bf16.msra.mxu0 %v1931
    %3892 = vmatprep.subr.bf16.mxu0 %v1923
    %3893 = vmatpush1.bf16.msra.mxu0 %v1922
    %3894 = vmatprep.subr.bf16.mxu0 %v1914
    %3895 = vmatpush1.bf16.msra.mxu0 %v1913
    %3896 = vmatprep.subr.bf16.mxu0 %v1905
    %3897 = vmatpush1.bf16.msra.mxu0 %v1904
    %3898 = vmatprep.subr.bf16.mxu0 %v1896
    %3899 = vmatpush1.bf16.msra.mxu0 %v1895
    %3900 = vmatprep.subr.bf16.mxu0 %v1887
    %3901 = vmatpush1.bf16.msra.mxu0 %v1886
    %3902 = vmatprep.subr.bf16.mxu0 0
    %3903 = vmatpush2.bf16.msra.mxu0 0
    %3904 = vmatprep.subr.bf16.mxu0 0
    %3905 = vmatpush2.bf16.msra.mxu0 0
    %3906 = vmatprep.subr.bf16.mxu0 0
    %3907 = vmatpush2.bf16.msra.mxu0 0
    %3908 = vmatprep.subr.bf16.mxu0 0
    %3909 = vmatpush2.bf16.msra.mxu0 0
    %3910 = vmatprep.subr.bf16.mxu0 0
    %3911 = vmatpush2.bf16.msra.mxu0 0
    %3912 = vmatprep.subr.bf16.mxu0 0
    %3913 = vmatpush2.bf16.msra.mxu0 0
    %3914 = vmatprep.subr.bf16.mxu0 0
    %3915 = vmatpush2.bf16.msra.mxu0 0
    %3916 = vmatprep.subr.bf16.mxu0 0
    %3917 = vmatpush2.bf16.msra.mxu0 0
    %3918 = vmatprep.mubr.bf16.mxu0 0
    %3919 = vmatmul.mubr.bf16.gmra.mxu0 %v3598
    %v3920 = vpop.f32.mrf.mxu0
    %v3921 = vadd.f32 %v3880, %v3920
    %v3922 = vpop.f32.mrf.mxu0
    %v3923 = vadd.f32 %v3882, %v3922
    %v3924 = vpop.f32.mrf.mxu0
    %v3925 = vpop.f32.mrf.mxu0
    %3926 = vdwg.mxu0
    %3927 = vmatprep.subr.bf16.mxu0 0
    %3928 = vmatpush1.bf16.msra.mxu0 %v1807
    %3929 = vmatprep.subr.bf16.mxu0 0
    %3930 = vmatpush1.bf16.msra.mxu0 %v1798
    %3931 = vmatprep.subr.bf16.mxu0 0
    %3932 = vmatpush1.bf16.msra.mxu0 %v1789
    %3933 = vmatprep.subr.bf16.mxu0 0
    %3934 = vmatpush1.bf16.msra.mxu0 %v1780
    %3935 = vmatprep.subr.bf16.mxu0 0
    %3936 = vmatpush1.bf16.msra.mxu0 %v1771
    %3937 = vmatprep.subr.bf16.mxu0 0
    %3938 = vmatpush1.bf16.msra.mxu0 %v1762
    %3939 = vmatprep.subr.bf16.mxu0 0
    %3940 = vmatpush1.bf16.msra.mxu0 %v1753
    %3941 = vmatprep.subr.bf16.mxu0 0
    %3942 = vmatpush1.bf16.msra.mxu0 %v1744
    %3943 = vmatprep.subr.bf16.mxu0 0
    %3944 = vmatpush2.bf16.msra.mxu0 %v1879
    %3945 = vmatprep.subr.bf16.mxu0 0
    %3946 = vmatpush2.bf16.msra.mxu0 %v1870
    %3947 = vmatprep.subr.bf16.mxu0 0
    %3948 = vmatpush2.bf16.msra.mxu0 %v1861
    %3949 = vmatprep.subr.bf16.mxu0 0
    %3950 = vmatpush2.bf16.msra.mxu0 %v1852
    %3951 = vmatprep.subr.bf16.mxu0 0
    %3952 = vmatpush2.bf16.msra.mxu0 %v1843
    %3953 = vmatprep.subr.bf16.mxu0 0
    %3954 = vmatpush2.bf16.msra.mxu0 %v1834
    %3955 = vmatprep.subr.bf16.mxu0 0
    %3956 = vmatpush2.bf16.msra.mxu0 %v1825
    %3957 = vmatprep.subr.bf16.mxu0 0
    %3958 = vmatpush2.bf16.msra.mxu0 %v1816
    %3959 = vmatprep.mubr.bf16.mxu0 %v3597
    %3960 = vmatmul.mubr.bf16.gmra.mxu0 %v3596
    %v3961 = vpop.f32.mrf.mxu0
    %v3962 = vadd.f32 0.0, %v3961
    %v3963 = vpop.f32.mrf.mxu0
    %v3964 = vpop.f32.mrf.mxu0
    %v3965 = vpop.f32.mrf.mxu0
    %3966 = vdwg.mxu0
    %3967 = vmatprep.subr.bf16.mxu0 0
    %3968 = vmatpush1.bf16.msra.mxu0 %v1951
    %3969 = vmatprep.subr.bf16.mxu0 0
    %3970 = vmatpush1.bf16.msra.mxu0 %v1942
    %3971 = vmatprep.subr.bf16.mxu0 0
    %3972 = vmatpush1.bf16.msra.mxu0 %v1933
    %3973 = vmatprep.subr.bf16.mxu0 0
    %3974 = vmatpush1.bf16.msra.mxu0 %v1924
    %3975 = vmatprep.subr.bf16.mxu0 0
    %3976 = vmatpush1.bf16.msra.mxu0 %v1915
    %3977 = vmatprep.subr.bf16.mxu0 0
    %3978 = vmatpush1.bf16.msra.mxu0 %v1906
    %3979 = vmatprep.subr.bf16.mxu0 0
    %3980 = vmatpush1.bf16.msra.mxu0 %v1897
    %3981 = vmatprep.subr.bf16.mxu0 0
    %3982 = vmatpush1.bf16.msra.mxu0 %v1888
    %3983 = vmatprep.subr.bf16.mxu0 0
    %3984 = vmatpush2.bf16.msra.mxu0 0
    %3985 = vmatprep.subr.bf16.mxu0 0
    %3986 = vmatpush2.bf16.msra.mxu0 0
    %3987 = vmatprep.subr.bf16.mxu0 0
    %3988 = vmatpush2.bf16.msra.mxu0 0
    %3989 = vmatprep.subr.bf16.mxu0 0
    %3990 = vmatpush2.bf16.msra.mxu0 0
    %3991 = vmatprep.subr.bf16.mxu0 0
    %3992 = vmatpush2.bf16.msra.mxu0 0
    %3993 = vmatprep.subr.bf16.mxu0 0
    %3994 = vmatpush2.bf16.msra.mxu0 0
    %3995 = vmatprep.subr.bf16.mxu0 0
    %3996 = vmatpush2.bf16.msra.mxu0 0
    %3997 = vmatprep.subr.bf16.mxu0 0
    %3998 = vmatpush2.bf16.msra.mxu0 0
    %3999 = vmatprep.mubr.bf16.mxu0 0
    %4000 = vmatmul.mubr.bf16.gmra.mxu0 %v3598
    %v4001 = vpop.f32.mrf.mxu0
    %v4002 = vadd.f32 %v3962, %v4001
    %v4003 = vpop.f32.mrf.mxu0
    %v4004 = vpop.f32.mrf.mxu0
    %v4005 = vpop.f32.mrf.mxu0
    %4006 = vdwg.mxu0
    %v4007 = vld [vmem:[#allocation2 + $0xd8] sm:$0xff]
    %v4008 = vld [vmem:[#allocation2 + $0xe0] sm:$0xff]
    %v4009 = vld [vmem:[#allocation2 + $0xe8] sm:$0xff]
    %v4010 = vld [vmem:[#allocation2 + $0xf0] sm:$0xff]
    %v4011 = vld [vmem:[#allocation2 + $0xf8] sm:$0xff]
    %v4012 = vld [vmem:[#allocation2 + $0x100] sm:$0xff]
    %v4013 = vld [vmem:[#allocation2 + $0x108] sm:$0xff]
    %v4014 = vld [vmem:[#allocation2 + $0x110] sm:$0xff]
    %v4015 = vld [vmem:[#allocation2 + $0x118] sm:$0xff]
    %v4016 = vadd.f32 %v3921, %v1046
    %v4017 = vadd.f32 %v3923, %v1050
    %v4018 = vadd.f32 %v4002, %v1054
    %v4019 = vadd.f32 %v4007, %v3675
    %v4020 = vadd.f32 %v4008, %v3677
    %v4021 = vadd.f32 %v4009, %v3757
    %v4022 = vmul.f32 %v4019, 0.5
    %v4023 = vmul.f32 %v4020, 0.5
    %v4024 = vmul.f32 %v4021, 0.5
    %v4025 = vtanh.pop %v4022
    %v4026 = vtanh.pop %v4023
    %v4027 = vtanh.pop %v4024
    %v4028 = vmul.f32 %v4025, 0.5
    %v4029 = vmul.f32 %v4026, 0.5
    %v4030 = vmul.f32 %v4027, 0.5
    %v4031 = vadd.f32 %v4028, 0.5
    %v4032 = vadd.f32 %v4029, 0.5
    %v4033 = vadd.f32 %v4030, 0.5
    %v4034 = vadd.f32 %v4010, %v3759
    %v4035 = vadd.f32 %v4011, %v3839
    %v4036 = vadd.f32 %v4012, %v3841
    %v4037 = vmul.f32 %v4034, 0.5
    %v4038 = vmul.f32 %v4035, 0.5
    %v4039 = vmul.f32 %v4036, 0.5
    %v4040 = vtanh.pop %v4037
    %v4041 = vtanh.pop %v4038
    %v4042 = vtanh.pop %v4039
    %v4043 = vmul.f32 %v4040, 0.5
    %v4044 = vmul.f32 %v4041, 0.5
    %v4045 = vmul.f32 %v4042, 0.5
    %v4046 = vadd.f32 %v4043, 0.5
    %v4047 = vadd.f32 %v4044, 0.5
    %v4048 = vadd.f32 %v4045, 0.5
    %v4049 = vmul.f32 %v4031, %v4016
    %v4050 = vmul.f32 %v4032, %v4017
    %v4051 = vmul.f32 %v4033, %v4018
    %v4052 = vadd.f32 %v4013, %v4049
    %v4053 = vadd.f32 %v4014, %v4050
    %v4054 = vadd.f32 %v4015, %v4051
    %v4055 = vtanh.pop %v4052
    %v4056 = vtanh.pop %v4053
    %v4057 = vtanh.pop %v4054
    %v4058 = vsub.f32 1.0, %v4046
    %v4059 = vsub.f32 1.0, %v4047
    %v4060 = vsub.f32 1.0, %v4048
    %v4061 = vmul.f32 %v4058, %v4055
    %v4062 = vmul.f32 %v4059, %v4056
    %v4063 = vmul.f32 %v4060, %v4057
    %v4064 = vmul.f32 %v4046, %v3590
    %v4065 = vmul.f32 %v4047, %v3591
    %v4066 = vmul.f32 %v4048, %v3592
    %v4067 = vadd.f32 %v4061, %v4064
    %v4068 = vadd.f32 %v4062, %v4065
    %v4069 = vadd.f32 %v4063, %v4066
    %4070 = vst [vmem:[#allocation3 + $0x48] sm:$0xff] %v4067
    %4071 = vst [vmem:[#allocation3 + $0x50] sm:$0xff] %v4068
    %4072 = vst [vmem:[#allocation3 + $0x58] sm:$0xff] %v4069
    %v4073 = vpack.c.bf16 %v4067, %v4067
    %v4074 = vpack.c.bf16 %v4068, %v4068
    %v4075 = vpack.c.bf16 %v4069, %v4069
    %4076 = vmatprep.subr.bf16.mxu0 %v1800
    %4077 = vmatpush1.bf16.msra.mxu0 %v1799
    %4078 = vmatprep.subr.bf16.mxu0 %v1791
    %4079 = vmatpush1.bf16.msra.mxu0 %v1790
    %4080 = vmatprep.subr.bf16.mxu0 %v1782
    %4081 = vmatpush1.bf16.msra.mxu0 %v1781
    %4082 = vmatprep.subr.bf16.mxu0 %v1773
    %4083 = vmatpush1.bf16.msra.mxu0 %v1772
    %4084 = vmatprep.subr.bf16.mxu0 %v1764
    %4085 = vmatpush1.bf16.msra.mxu0 %v1763
    %4086 = vmatprep.subr.bf16.mxu0 %v1755
    %4087 = vmatpush1.bf16.msra.mxu0 %v1754
    %4088 = vmatprep.subr.bf16.mxu0 %v1746
    %4089 = vmatpush1.bf16.msra.mxu0 %v1745
    %4090 = vmatprep.subr.bf16.mxu0 %v1737
    %4091 = vmatpush1.bf16.msra.mxu0 %v1736
    %4092 = vmatprep.subr.bf16.mxu0 %v1872
    %4093 = vmatpush2.bf16.msra.mxu0 %v1871
    %4094 = vmatprep.subr.bf16.mxu0 %v1863
    %4095 = vmatpush2.bf16.msra.mxu0 %v1862
    %4096 = vmatprep.subr.bf16.mxu0 %v1854
    %4097 = vmatpush2.bf16.msra.mxu0 %v1853
    %4098 = vmatprep.subr.bf16.mxu0 %v1845
    %4099 = vmatpush2.bf16.msra.mxu0 %v1844
    %4100 = vmatprep.subr.bf16.mxu0 %v1836
    %4101 = vmatpush2.bf16.msra.mxu0 %v1835
    %4102 = vmatprep.subr.bf16.mxu0 %v1827
    %4103 = vmatpush2.bf16.msra.mxu0 %v1826
    %4104 = vmatprep.subr.bf16.mxu0 %v1818
    %4105 = vmatpush2.bf16.msra.mxu0 %v1817
    %4106 = vmatprep.subr.bf16.mxu0 %v1809
    %4107 = vmatpush2.bf16.msra.mxu0 %v1808
    %4108 = vmatprep.mubr.bf16.mxu0 %v4074
    %4109 = vmatmul.mubr.bf16.gmra.mxu0 %v4073
    %v4110 = vpop.f32.mrf.mxu0
    %v4111 = vadd.f32 0.0, %v4110
    %v4112 = vpop.f32.mrf.mxu0
    %v4113 = vadd.f32 0.0, %v4112
    %v4114 = vpop.f32.mrf.mxu0
    %v4115 = vpop.f32.mrf.mxu0
    %4116 = vdwg.mxu0
    %4117 = vmatprep.subr.bf16.mxu0 %v1944
    %4118 = vmatpush1.bf16.msra.mxu0 %v1943
    %4119 = vmatprep.subr.bf16.mxu0 %v1935
    %4120 = vmatpush1.bf16.msra.mxu0 %v1934
    %4121 = vmatprep.subr.bf16.mxu0 %v1926
    %4122 = vmatpush1.bf16.msra.mxu0 %v1925
    %4123 = vmatprep.subr.bf16.mxu0 %v1917
    %4124 = vmatpush1.bf16.msra.mxu0 %v1916
    %4125 = vmatprep.subr.bf16.mxu0 %v1908
    %4126 = vmatpush1.bf16.msra.mxu0 %v1907
    %4127 = vmatprep.subr.bf16.mxu0 %v1899
    %4128 = vmatpush1.bf16.msra.mxu0 %v1898
    %4129 = vmatprep.subr.bf16.mxu0 %v1890
    %4130 = vmatpush1.bf16.msra.mxu0 %v1889
    %4131 = vmatprep.subr.bf16.mxu0 %v1881
    %4132 = vmatpush1.bf16.msra.mxu0 %v1880
    %4133 = vmatprep.subr.bf16.mxu0 0
    %4134 = vmatpush2.bf16.msra.mxu0 0
    %4135 = vmatprep.subr.bf16.mxu0 0
    %4136 = vmatpush2.bf16.msra.mxu0 0
    %4137 = vmatprep.subr.bf16.mxu0 0
    %4138 = vmatpush2.bf16.msra.mxu0 0
    %4139 = vmatprep.subr.bf16.mxu0 0
    %4140 = vmatpush2.bf16.msra.mxu0 0
    %4141 = vmatprep.subr.bf16.mxu0 0
    %4142 = vmatpush2.bf16.msra.mxu0 0
    %4143 = vmatprep.subr.bf16.mxu0 0
    %4144 = vmatpush2.bf16.msra.mxu0 0
    %4145 = vmatprep.subr.bf16.mxu0 0
    %4146 = vmatpush2.bf16.msra.mxu0 0
    %4147 = vmatprep.subr.bf16.mxu0 0
    %4148 = vmatpush2.bf16.msra.mxu0 0
    %4149 = vmatprep.mubr.bf16.mxu0 0
    %4150 = vmatmul.mubr.bf16.gmra.mxu0 %v4075
    %v4151 = vpop.f32.mrf.mxu0
    %v4152 = vadd.f32 %v4111, %v4151
    %v4153 = vpop.f32.mrf.mxu0
    %v4154 = vadd.f32 %v4113, %v4153
    %v4155 = vpop.f32.mrf.mxu0
    %v4156 = vpop.f32.mrf.mxu0
    %4157 = vdwg.mxu0
    %4158 = vmatprep.subr.bf16.mxu0 %v1802
    %4159 = vmatpush1.bf16.msra.mxu0 %v1801
    %4160 = vmatprep.subr.bf16.mxu0 %v1793
    %4161 = vmatpush1.bf16.msra.mxu0 %v1792
    %4162 = vmatprep.subr.bf16.mxu0 %v1784
    %4163 = vmatpush1.bf16.msra.mxu0 %v1783
    %4164 = vmatprep.subr.bf16.mxu0 %v1775
    %4165 = vmatpush1.bf16.msra.mxu0 %v1774
    %4166 = vmatprep.subr.bf16.mxu0 %v1766
    %4167 = vmatpush1.bf16.msra.mxu0 %v1765
    %4168 = vmatprep.subr.bf16.mxu0 %v1757
    %4169 = vmatpush1.bf16.msra.mxu0 %v1756
    %4170 = vmatprep.subr.bf16.mxu0 %v1748
    %4171 = vmatpush1.bf16.msra.mxu0 %v1747
    %4172 = vmatprep.subr.bf16.mxu0 %v1739
    %4173 = vmatpush1.bf16.msra.mxu0 %v1738
    %4174 = vmatprep.subr.bf16.mxu0 %v1874
    %4175 = vmatpush2.bf16.msra.mxu0 %v1873
    %4176 = vmatprep.subr.bf16.mxu0 %v1865
    %4177 = vmatpush2.bf16.msra.mxu0 %v1864
    %4178 = vmatprep.subr.bf16.mxu0 %v1856
    %4179 = vmatpush2.bf16.msra.mxu0 %v1855
    %4180 = vmatprep.subr.bf16.mxu0 %v1847
    %4181 = vmatpush2.bf16.msra.mxu0 %v1846
    %4182 = vmatprep.subr.bf16.mxu0 %v1838
    %4183 = vmatpush2.bf16.msra.mxu0 %v1837
    %4184 = vmatprep.subr.bf16.mxu0 %v1829
    %4185 = vmatpush2.bf16.msra.mxu0 %v1828
    %4186 = vmatprep.subr.bf16.mxu0 %v1820
    %4187 = vmatpush2.bf16.msra.mxu0 %v1819
    %4188 = vmatprep.subr.bf16.mxu0 %v1811
    %4189 = vmatpush2.bf16.msra.mxu0 %v1810
    %4190 = vmatprep.mubr.bf16.mxu0 %v4074
    %4191 = vmatmul.mubr.bf16.gmra.mxu0 %v4073
    %v4192 = vpop.f32.mrf.mxu0
    %v4193 = vadd.f32 0.0, %v4192
    %v4194 = vpop.f32.mrf.mxu0
    %v4195 = vadd.f32 0.0, %v4194
    %v4196 = vpop.f32.mrf.mxu0
    %v4197 = vpop.f32.mrf.mxu0
    %4198 = vdwg.mxu0
    %4199 = vmatprep.subr.bf16.mxu0 %v1946
    %4200 = vmatpush1.bf16.msra.mxu0 %v1945
    %4201 = vmatprep.subr.bf16.mxu0 %v1937
    %4202 = vmatpush1.bf16.msra.mxu0 %v1936
    %4203 = vmatprep.subr.bf16.mxu0 %v1928
    %4204 = vmatpush1.bf16.msra.mxu0 %v1927
    %4205 = vmatprep.subr.bf16.mxu0 %v1919
    %4206 = vmatpush1.bf16.msra.mxu0 %v1918
    %4207 = vmatprep.subr.bf16.mxu0 %v1910
    %4208 = vmatpush1.bf16.msra.mxu0 %v1909
    %4209 = vmatprep.subr.bf16.mxu0 %v1901
    %4210 = vmatpush1.bf16.msra.mxu0 %v1900
    %4211 = vmatprep.subr.bf16.mxu0 %v1892
    %4212 = vmatpush1.bf16.msra.mxu0 %v1891
    %4213 = vmatprep.subr.bf16.mxu0 %v1883
    %4214 = vmatpush1.bf16.msra.mxu0 %v1882
    %4215 = vmatprep.subr.bf16.mxu0 0
    %4216 = vmatpush2.bf16.msra.mxu0 0
    %4217 = vmatprep.subr.bf16.mxu0 0
    %4218 = vmatpush2.bf16.msra.mxu0 0
    %4219 = vmatprep.subr.bf16.mxu0 0
    %4220 = vmatpush2.bf16.msra.mxu0 0
    %4221 = vmatprep.subr.bf16.mxu0 0
    %4222 = vmatpush2.bf16.msra.mxu0 0
    %4223 = vmatprep.subr.bf16.mxu0 0
    %4224 = vmatpush2.bf16.msra.mxu0 0
    %4225 = vmatprep.subr.bf16.mxu0 0
    %4226 = vmatpush2.bf16.msra.mxu0 0
    %4227 = vmatprep.subr.bf16.mxu0 0
    %4228 = vmatpush2.bf16.msra.mxu0 0
    %4229 = vmatprep.subr.bf16.mxu0 0
    %4230 = vmatpush2.bf16.msra.mxu0 0
    %4231 = vmatprep.mubr.bf16.mxu0 0
    %4232 = vmatmul.mubr.bf16.gmra.mxu0 %v4075
    %v4233 = vpop.f32.mrf.mxu0
    %v4234 = vadd.f32 %v4193, %v4233
    %v4235 = vpop.f32.mrf.mxu0
    %v4236 = vadd.f32 %v4195, %v4235
    %v4237 = vpop.f32.mrf.mxu0
    %v4238 = vpop.f32.mrf.mxu0
    %4239 = vdwg.mxu0
    %4240 = vmatprep.subr.bf16.mxu0 %v1804
    %4241 = vmatpush1.bf16.msra.mxu0 %v1803
    %4242 = vmatprep.subr.bf16.mxu0 %v1795
    %4243 = vmatpush1.bf16.msra.mxu0 %v1794
    %4244 = vmatprep.subr.bf16.mxu0 %v1786
    %4245 = vmatpush1.bf16.msra.mxu0 %v1785
    %4246 = vmatprep.subr.bf16.mxu0 %v1777
    %4247 = vmatpush1.bf16.msra.mxu0 %v1776
    %4248 = vmatprep.subr.bf16.mxu0 %v1768
    %4249 = vmatpush1.bf16.msra.mxu0 %v1767
    %4250 = vmatprep.subr.bf16.mxu0 %v1759
    %4251 = vmatpush1.bf16.msra.mxu0 %v1758
    %4252 = vmatprep.subr.bf16.mxu0 %v1750
    %4253 = vmatpush1.bf16.msra.mxu0 %v1749
    %4254 = vmatprep.subr.bf16.mxu0 %v1741
    %4255 = vmatpush1.bf16.msra.mxu0 %v1740
    %4256 = vmatprep.subr.bf16.mxu0 %v1876
    %4257 = vmatpush2.bf16.msra.mxu0 %v1875
    %4258 = vmatprep.subr.bf16.mxu0 %v1867
    %4259 = vmatpush2.bf16.msra.mxu0 %v1866
    %4260 = vmatprep.subr.bf16.mxu0 %v1858
    %4261 = vmatpush2.bf16.msra.mxu0 %v1857
    %4262 = vmatprep.subr.bf16.mxu0 %v1849
    %4263 = vmatpush2.bf16.msra.mxu0 %v1848
    %4264 = vmatprep.subr.bf16.mxu0 %v1840
    %4265 = vmatpush2.bf16.msra.mxu0 %v1839
    %4266 = vmatprep.subr.bf16.mxu0 %v1831
    %4267 = vmatpush2.bf16.msra.mxu0 %v1830
    %4268 = vmatprep.subr.bf16.mxu0 %v1822
    %4269 = vmatpush2.bf16.msra.mxu0 %v1821
    %4270 = vmatprep.subr.bf16.mxu0 %v1813
    %4271 = vmatpush2.bf16.msra.mxu0 %v1812
    %4272 = vmatprep.mubr.bf16.mxu0 %v4074
    %4273 = vmatmul.mubr.bf16.gmra.mxu0 %v4073
    %v4274 = vpop.f32.mrf.mxu0
    %v4275 = vadd.f32 0.0, %v4274
    %v4276 = vpop.f32.mrf.mxu0
    %v4277 = vadd.f32 0.0, %v4276
    %v4278 = vpop.f32.mrf.mxu0
    %v4279 = vpop.f32.mrf.mxu0
    %4280 = vdwg.mxu0
    %4281 = vmatprep.subr.bf16.mxu0 %v1948
    %4282 = vmatpush1.bf16.msra.mxu0 %v1947
    %4283 = vmatprep.subr.bf16.mxu0 %v1939
    %4284 = vmatpush1.bf16.msra.mxu0 %v1938
    %4285 = vmatprep.subr.bf16.mxu0 %v1930
    %4286 = vmatpush1.bf16.msra.mxu0 %v1929
    %4287 = vmatprep.subr.bf16.mxu0 %v1921
    %4288 = vmatpush1.bf16.msra.mxu0 %v1920
    %4289 = vmatprep.subr.bf16.mxu0 %v1912
    %4290 = vmatpush1.bf16.msra.mxu0 %v1911
    %4291 = vmatprep.subr.bf16.mxu0 %v1903
    %4292 = vmatpush1.bf16.msra.mxu0 %v1902
    %4293 = vmatprep.subr.bf16.mxu0 %v1894
    %4294 = vmatpush1.bf16.msra.mxu0 %v1893
    %4295 = vmatprep.subr.bf16.mxu0 %v1885
    %4296 = vmatpush1.bf16.msra.mxu0 %v1884
    %4297 = vmatprep.subr.bf16.mxu0 0
    %4298 = vmatpush2.bf16.msra.mxu0 0
    %4299 = vmatprep.subr.bf16.mxu0 0
    %4300 = vmatpush2.bf16.msra.mxu0 0
    %4301 = vmatprep.subr.bf16.mxu0 0
    %4302 = vmatpush2.bf16.msra.mxu0 0
    %4303 = vmatprep.subr.bf16.mxu0 0
    %4304 = vmatpush2.bf16.msra.mxu0 0
    %4305 = vmatprep.subr.bf16.mxu0 0
    %4306 = vmatpush2.bf16.msra.mxu0 0
    %4307 = vmatprep.subr.bf16.mxu0 0
    %4308 = vmatpush2.bf16.msra.mxu0 0
    %4309 = vmatprep.subr.bf16.mxu0 0
    %4310 = vmatpush2.bf16.msra.mxu0 0
    %4311 = vmatprep.subr.bf16.mxu0 0
    %4312 = vmatpush2.bf16.msra.mxu0 0
    %4313 = vmatprep.mubr.bf16.mxu0 0
    %4314 = vmatmul.mubr.bf16.gmra.mxu0 %v4075
    %v4315 = vpop.f32.mrf.mxu0
    %v4316 = vadd.f32 %v4275, %v4315
    %v4317 = vpop.f32.mrf.mxu0
    %v4318 = vadd.f32 %v4277, %v4317
    %v4319 = vpop.f32.mrf.mxu0
    %v4320 = vpop.f32.mrf.mxu0
    %4321 = vdwg.mxu0
    %4322 = vmatprep.subr.bf16.mxu0 %v1806
    %4323 = vmatpush1.bf16.msra.mxu0 %v1805
    %4324 = vmatprep.subr.bf16.mxu0 %v1797
    %4325 = vmatpush1.bf16.msra.mxu0 %v1796
    %4326 = vmatprep.subr.bf16.mxu0 %v1788
    %4327 = vmatpush1.bf16.msra.mxu0 %v1787
    %4328 = vmatprep.subr.bf16.mxu0 %v1779
    %4329 = vmatpush1.bf16.msra.mxu0 %v1778
    %4330 = vmatprep.subr.bf16.mxu0 %v1770
    %4331 = vmatpush1.bf16.msra.mxu0 %v1769
    %4332 = vmatprep.subr.bf16.mxu0 %v1761
    %4333 = vmatpush1.bf16.msra.mxu0 %v1760
    %4334 = vmatprep.subr.bf16.mxu0 %v1752
    %4335 = vmatpush1.bf16.msra.mxu0 %v1751
    %4336 = vmatprep.subr.bf16.mxu0 %v1743
    %4337 = vmatpush1.bf16.msra.mxu0 %v1742
    %4338 = vmatprep.subr.bf16.mxu0 %v1878
    %4339 = vmatpush2.bf16.msra.mxu0 %v1877
    %4340 = vmatprep.subr.bf16.mxu0 %v1869
    %4341 = vmatpush2.bf16.msra.mxu0 %v1868
    %4342 = vmatprep.subr.bf16.mxu0 %v1860
    %4343 = vmatpush2.bf16.msra.mxu0 %v1859
    %4344 = vmatprep.subr.bf16.mxu0 %v1851
    %4345 = vmatpush2.bf16.msra.mxu0 %v1850
    %4346 = vmatprep.subr.bf16.mxu0 %v1842
    %4347 = vmatpush2.bf16.msra.mxu0 %v1841
    %4348 = vmatprep.subr.bf16.mxu0 %v1833
    %4349 = vmatpush2.bf16.msra.mxu0 %v1832
    %4350 = vmatprep.subr.bf16.mxu0 %v1824
    %4351 = vmatpush2.bf16.msra.mxu0 %v1823
    %4352 = vmatprep.subr.bf16.mxu0 %v1815
    %4353 = vmatpush2.bf16.msra.mxu0 %v1814
    %4354 = vmatprep.mubr.bf16.mxu0 %v4074
    %4355 = vmatmul.mubr.bf16.gmra.mxu0 %v4073
    %v4356 = vpop.f32.mrf.mxu0
    %v4357 = vadd.f32 0.0, %v4356
    %v4358 = vpop.f32.mrf.mxu0
    %v4359 = vadd.f32 0.0, %v4358
    %v4360 = vpop.f32.mrf.mxu0
    %v4361 = vpop.f32.mrf.mxu0
    %4362 = vdwg.mxu0
    %4363 = vmatprep.subr.bf16.mxu0 %v1950
    %4364 = vmatpush1.bf16.msra.mxu0 %v1949
    %4365 = vmatprep.subr.bf16.mxu0 %v1941
    %4366 = vmatpush1.bf16.msra.mxu0 %v1940
    %4367 = vmatprep.subr.bf16.mxu0 %v1932
    %4368 = vmatpush1.bf16.msra.mxu0 %v1931
    %4369 = vmatprep.subr.bf16.mxu0 %v1923
    %4370 = vmatpush1.bf16.msra.mxu0 %v1922
    %4371 = vmatprep.subr.bf16.mxu0 %v1914
    %4372 = vmatpush1.bf16.msra.mxu0 %v1913
    %4373 = vmatprep.subr.bf16.mxu0 %v1905
    %4374 = vmatpush1.bf16.msra.mxu0 %v1904
    %4375 = vmatprep.subr.bf16.mxu0 %v1896
    %4376 = vmatpush1.bf16.msra.mxu0 %v1895
    %4377 = vmatprep.subr.bf16.mxu0 %v1887
    %4378 = vmatpush1.bf16.msra.mxu0 %v1886
    %4379 = vmatprep.subr.bf16.mxu0 0
    %4380 = vmatpush2.bf16.msra.mxu0 0
    %4381 = vmatprep.subr.bf16.mxu0 0
    %4382 = vmatpush2.bf16.msra.mxu0 0
    %4383 = vmatprep.subr.bf16.mxu0 0
    %4384 = vmatpush2.bf16.msra.mxu0 0
    %4385 = vmatprep.subr.bf16.mxu0 0
    %4386 = vmatpush2.bf16.msra.mxu0 0
    %4387 = vmatprep.subr.bf16.mxu0 0
    %4388 = vmatpush2.bf16.msra.mxu0 0
    %4389 = vmatprep.subr.bf16.mxu0 0
    %4390 = vmatpush2.bf16.msra.mxu0 0
    %4391 = vmatprep.subr.bf16.mxu0 0
    %4392 = vmatpush2.bf16.msra.mxu0 0
    %4393 = vmatprep.subr.bf16.mxu0 0
    %4394 = vmatpush2.bf16.msra.mxu0 0
    %4395 = vmatprep.mubr.bf16.mxu0 0
    %4396 = vmatmul.mubr.bf16.gmra.mxu0 %v4075
    %v4397 = vpop.f32.mrf.mxu0
    %v4398 = vadd.f32 %v4357, %v4397
    %v4399 = vpop.f32.mrf.mxu0
    %v4400 = vadd.f32 %v4359, %v4399
    %v4401 = vpop.f32.mrf.mxu0
    %v4402 = vpop.f32.mrf.mxu0
    %4403 = vdwg.mxu0
    %4404 = vmatprep.subr.bf16.mxu0 0
    %4405 = vmatpush1.bf16.msra.mxu0 %v1807
    %4406 = vmatprep.subr.bf16.mxu0 0
    %4407 = vmatpush1.bf16.msra.mxu0 %v1798
    %4408 = vmatprep.subr.bf16.mxu0 0
    %4409 = vmatpush1.bf16.msra.mxu0 %v1789
    %4410 = vmatprep.subr.bf16.mxu0 0
    %4411 = vmatpush1.bf16.msra.mxu0 %v1780
    %4412 = vmatprep.subr.bf16.mxu0 0
    %4413 = vmatpush1.bf16.msra.mxu0 %v1771
    %4414 = vmatprep.subr.bf16.mxu0 0
    %4415 = vmatpush1.bf16.msra.mxu0 %v1762
    %4416 = vmatprep.subr.bf16.mxu0 0
    %4417 = vmatpush1.bf16.msra.mxu0 %v1753
    %4418 = vmatprep.subr.bf16.mxu0 0
    %4419 = vmatpush1.bf16.msra.mxu0 %v1744
    %4420 = vmatprep.subr.bf16.mxu0 0
    %4421 = vmatpush2.bf16.msra.mxu0 %v1879
    %4422 = vmatprep.subr.bf16.mxu0 0
    %4423 = vmatpush2.bf16.msra.mxu0 %v1870
    %4424 = vmatprep.subr.bf16.mxu0 0
    %4425 = vmatpush2.bf16.msra.mxu0 %v1861
    %4426 = vmatprep.subr.bf16.mxu0 0
    %4427 = vmatpush2.bf16.msra.mxu0 %v1852
    %4428 = vmatprep.subr.bf16.mxu0 0
    %4429 = vmatpush2.bf16.msra.mxu0 %v1843
    %4430 = vmatprep.subr.bf16.mxu0 0
    %4431 = vmatpush2.bf16.msra.mxu0 %v1834
    %4432 = vmatprep.subr.bf16.mxu0 0
    %4433 = vmatpush2.bf16.msra.mxu0 %v1825
    %4434 = vmatprep.subr.bf16.mxu0 0
    %4435 = vmatpush2.bf16.msra.mxu0 %v1816
    %4436 = vmatprep.mubr.bf16.mxu0 %v4074
    %4437 = vmatmul.mubr.bf16.gmra.mxu0 %v4073
    %v4438 = vpop.f32.mrf.mxu0
    %v4439 = vadd.f32 0.0, %v4438
    %v4440 = vpop.f32.mrf.mxu0
    %v4441 = vpop.f32.mrf.mxu0
    %v4442 = vpop.f32.mrf.mxu0
    %4443 = vdwg.mxu0
    %4444 = vmatprep.subr.bf16.mxu0 0
    %4445 = vmatpush1.bf16.msra.mxu0 %v1951
    %4446 = vmatprep.subr.bf16.mxu0 0
    %4447 = vmatpush1.bf16.msra.mxu0 %v1942
    %4448 = vmatprep.subr.bf16.mxu0 0
    %4449 = vmatpush1.bf16.msra.mxu0 %v1933
    %4450 = vmatprep.subr.bf16.mxu0 0
    %4451 = vmatpush1.bf16.msra.mxu0 %v1924
    %4452 = vmatprep.subr.bf16.mxu0 0
    %4453 = vmatpush1.bf16.msra.mxu0 %v1915
    %4454 = vmatprep.subr.bf16.mxu0 0
    %4455 = vmatpush1.bf16.msra.mxu0 %v1906
    %4456 = vmatprep.subr.bf16.mxu0 0
    %4457 = vmatpush1.bf16.msra.mxu0 %v1897
    %4458 = vmatprep.subr.bf16.mxu0 0
    %4459 = vmatpush1.bf16.msra.mxu0 %v1888
    %4460 = vmatprep.subr.bf16.mxu0 0
    %4461 = vmatpush2.bf16.msra.mxu0 0
    %4462 = vmatprep.subr.bf16.mxu0 0
    %4463 = vmatpush2.bf16.msra.mxu0 0
    %4464 = vmatprep.subr.bf16.mxu0 0
    %4465 = vmatpush2.bf16.msra.mxu0 0
    %4466 = vmatprep.subr.bf16.mxu0 0
    %4467 = vmatpush2.bf16.msra.mxu0 0
    %4468 = vmatprep.subr.bf16.mxu0 0
    %4469 = vmatpush2.bf16.msra.mxu0 0
    %4470 = vmatprep.subr.bf16.mxu0 0
    %4471 = vmatpush2.bf16.msra.mxu0 0
    %4472 = vmatprep.subr.bf16.mxu0 0
    %4473 = vmatpush2.bf16.msra.mxu0 0
    %4474 = vmatprep.subr.bf16.mxu0 0
    %4475 = vmatpush2.bf16.msra.mxu0 0
    %4476 = vmatprep.mubr.bf16.mxu0 0
    %4477 = vmatmul.mubr.bf16.gmra.mxu0 %v4075
    %v4478 = vpop.f32.mrf.mxu0
    %v4479 = vadd.f32 %v4439, %v4478
    %v4480 = vpop.f32.mrf.mxu0
    %v4481 = vpop.f32.mrf.mxu0
    %v4482 = vpop.f32.mrf.mxu0
    %4483 = vdwg.mxu0
    %v4484 = vld [vmem:[#allocation2 + $0x120] sm:$0xff]
    %v4485 = vld [vmem:[#allocation2 + $0x128] sm:$0xff]
    %v4486 = vld [vmem:[#allocation2 + $0x130] sm:$0xff]
    %v4487 = vld [vmem:[#allocation2 + $0x138] sm:$0xff]
    %v4488 = vld [vmem:[#allocation2 + $0x140] sm:$0xff]
    %v4489 = vld [vmem:[#allocation2 + $0x148] sm:$0xff]
    %v4490 = vld [vmem:[#allocation2 + $0x150] sm:$0xff]
    %v4491 = vld [vmem:[#allocation2 + $0x158] sm:$0xff]
    %v4492 = vld [vmem:[#allocation2 + $0x160] sm:$0xff]
    %v4493 = vadd.f32 %v4398, %v1046
    %v4494 = vadd.f32 %v4400, %v1050
    %v4495 = vadd.f32 %v4479, %v1054
    %v4496 = vadd.f32 %v4484, %v4152
    %v4497 = vadd.f32 %v4485, %v4154
    %v4498 = vadd.f32 %v4486, %v4234
    %v4499 = vmul.f32 %v4496, 0.5
    %v4500 = vmul.f32 %v4497, 0.5
    %v4501 = vmul.f32 %v4498, 0.5
    %v4502 = vtanh.pop %v4499
    %v4503 = vtanh.pop %v4500
    %v4504 = vtanh.pop %v4501
    %v4505 = vmul.f32 %v4502, 0.5
    %v4506 = vmul.f32 %v4503, 0.5
    %v4507 = vmul.f32 %v4504, 0.5
    %v4508 = vadd.f32 %v4505, 0.5
    %v4509 = vadd.f32 %v4506, 0.5
    %v4510 = vadd.f32 %v4507, 0.5
    %v4511 = vadd.f32 %v4487, %v4236
    %v4512 = vadd.f32 %v4488, %v4316
    %v4513 = vadd.f32 %v4489, %v4318
    %v4514 = vmul.f32 %v4511, 0.5
    %v4515 = vmul.f32 %v4512, 0.5
    %v4516 = vmul.f32 %v4513, 0.5
    %v4517 = vtanh.pop %v4514
    %v4518 = vtanh.pop %v4515
    %v4519 = vtanh.pop %v4516
    %v4520 = vmul.f32 %v4517, 0.5
    %v4521 = vmul.f32 %v4518, 0.5
    %v4522 = vmul.f32 %v4519, 0.5
    %v4523 = vadd.f32 %v4520, 0.5
    %v4524 = vadd.f32 %v4521, 0.5
    %v4525 = vadd.f32 %v4522, 0.5
    %v4526 = vmul.f32 %v4508, %v4493
    %v4527 = vmul.f32 %v4509, %v4494
    %v4528 = vmul.f32 %v4510, %v4495
    %v4529 = vadd.f32 %v4490, %v4526
    %v4530 = vadd.f32 %v4491, %v4527
    %v4531 = vadd.f32 %v4492, %v4528
    %v4532 = vtanh.pop %v4529
    %v4533 = vtanh.pop %v4530
    %v4534 = vtanh.pop %v4531
    %v4535 = vsub.f32 1.0, %v4523
    %v4536 = vsub.f32 1.0, %v4524
    %v4537 = vsub.f32 1.0, %v4525
    %v4538 = vmul.f32 %v4535, %v4532
    %v4539 = vmul.f32 %v4536, %v4533
    %v4540 = vmul.f32 %v4537, %v4534
    %v4541 = vmul.f32 %v4523, %v4067
    %v4542 = vmul.f32 %v4524, %v4068
    %v4543 = vmul.f32 %v4525, %v4069
    %v4544 = vadd.f32 %v4538, %v4541
    %v4545 = vadd.f32 %v4539, %v4542
    %v4546 = vadd.f32 %v4540, %v4543
    %4547 = vst [vmem:[#allocation3 + $0x60] sm:$0xff] %v4544
    %4548 = vst [vmem:[#allocation3 + $0x68] sm:$0xff] %v4545
    %4549 = vst [vmem:[#allocation3 + $0x70] sm:$0xff] %v4546
    %v4550 = vpack.c.bf16 %v4544, %v4544
    %v4551 = vpack.c.bf16 %v4545, %v4545
    %v4552 = vpack.c.bf16 %v4546, %v4546
    %4553 = vmatprep.subr.bf16.mxu0 %v1800
    %4554 = vmatpush1.bf16.msra.mxu0 %v1799
    %4555 = vmatprep.subr.bf16.mxu0 %v1791
    %4556 = vmatpush1.bf16.msra.mxu0 %v1790
    %4557 = vmatprep.subr.bf16.mxu0 %v1782
    %4558 = vmatpush1.bf16.msra.mxu0 %v1781
    %4559 = vmatprep.subr.bf16.mxu0 %v1773
    %4560 = vmatpush1.bf16.msra.mxu0 %v1772
    %4561 = vmatprep.subr.bf16.mxu0 %v1764
    %4562 = vmatpush1.bf16.msra.mxu0 %v1763
    %4563 = vmatprep.subr.bf16.mxu0 %v1755
    %4564 = vmatpush1.bf16.msra.mxu0 %v1754
    %4565 = vmatprep.subr.bf16.mxu0 %v1746
    %4566 = vmatpush1.bf16.msra.mxu0 %v1745
    %4567 = vmatprep.subr.bf16.mxu0 %v1737
    %4568 = vmatpush1.bf16.msra.mxu0 %v1736
    %4569 = vmatprep.subr.bf16.mxu0 %v1872
    %4570 = vmatpush2.bf16.msra.mxu0 %v1871
    %4571 = vmatprep.subr.bf16.mxu0 %v1863
    %4572 = vmatpush2.bf16.msra.mxu0 %v1862
    %4573 = vmatprep.subr.bf16.mxu0 %v1854
    %4574 = vmatpush2.bf16.msra.mxu0 %v1853
    %4575 = vmatprep.subr.bf16.mxu0 %v1845
    %4576 = vmatpush2.bf16.msra.mxu0 %v1844
    %4577 = vmatprep.subr.bf16.mxu0 %v1836
    %4578 = vmatpush2.bf16.msra.mxu0 %v1835
    %4579 = vmatprep.subr.bf16.mxu0 %v1827
    %4580 = vmatpush2.bf16.msra.mxu0 %v1826
    %4581 = vmatprep.subr.bf16.mxu0 %v1818
    %4582 = vmatpush2.bf16.msra.mxu0 %v1817
    %4583 = vmatprep.subr.bf16.mxu0 %v1809
    %4584 = vmatpush2.bf16.msra.mxu0 %v1808
    %4585 = vmatprep.mubr.bf16.mxu0 %v4551
    %4586 = vmatmul.mubr.bf16.gmra.mxu0 %v4550
    %v4587 = vpop.f32.mrf.mxu0
    %v4588 = vadd.f32 0.0, %v4587
    %v4589 = vpop.f32.mrf.mxu0
    %v4590 = vadd.f32 0.0, %v4589
    %v4591 = vpop.f32.mrf.mxu0
    %v4592 = vpop.f32.mrf.mxu0
    %4593 = vdwg.mxu0
    %4594 = vmatprep.subr.bf16.mxu0 %v1944
    %4595 = vmatpush1.bf16.msra.mxu0 %v1943
    %4596 = vmatprep.subr.bf16.mxu0 %v1935
    %4597 = vmatpush1.bf16.msra.mxu0 %v1934
    %4598 = vmatprep.subr.bf16.mxu0 %v1926
    %4599 = vmatpush1.bf16.msra.mxu0 %v1925
    %4600 = vmatprep.subr.bf16.mxu0 %v1917
    %4601 = vmatpush1.bf16.msra.mxu0 %v1916
    %4602 = vmatprep.subr.bf16.mxu0 %v1908
    %4603 = vmatpush1.bf16.msra.mxu0 %v1907
    %4604 = vmatprep.subr.bf16.mxu0 %v1899
    %4605 = vmatpush1.bf16.msra.mxu0 %v1898
    %4606 = vmatprep.subr.bf16.mxu0 %v1890
    %4607 = vmatpush1.bf16.msra.mxu0 %v1889
    %4608 = vmatprep.subr.bf16.mxu0 %v1881
    %4609 = vmatpush1.bf16.msra.mxu0 %v1880
    %4610 = vmatprep.subr.bf16.mxu0 0
    %4611 = vmatpush2.bf16.msra.mxu0 0
    %4612 = vmatprep.subr.bf16.mxu0 0
    %4613 = vmatpush2.bf16.msra.mxu0 0
    %4614 = vmatprep.subr.bf16.mxu0 0
    %4615 = vmatpush2.bf16.msra.mxu0 0
    %4616 = vmatprep.subr.bf16.mxu0 0
    %4617 = vmatpush2.bf16.msra.mxu0 0
    %4618 = vmatprep.subr.bf16.mxu0 0
    %4619 = vmatpush2.bf16.msra.mxu0 0
    %4620 = vmatprep.subr.bf16.mxu0 0
    %4621 = vmatpush2.bf16.msra.mxu0 0
    %4622 = vmatprep.subr.bf16.mxu0 0
    %4623 = vmatpush2.bf16.msra.mxu0 0
    %4624 = vmatprep.subr.bf16.mxu0 0
    %4625 = vmatpush2.bf16.msra.mxu0 0
    %4626 = vmatprep.mubr.bf16.mxu0 0
    %4627 = vmatmul.mubr.bf16.gmra.mxu0 %v4552
    %v4628 = vpop.f32.mrf.mxu0
    %v4629 = vadd.f32 %v4588, %v4628
    %v4630 = vpop.f32.mrf.mxu0
    %v4631 = vadd.f32 %v4590, %v4630
    %v4632 = vpop.f32.mrf.mxu0
    %v4633 = vpop.f32.mrf.mxu0
    %4634 = vdwg.mxu0
    %4635 = vmatprep.subr.bf16.mxu0 %v1802
    %4636 = vmatpush1.bf16.msra.mxu0 %v1801
    %4637 = vmatprep.subr.bf16.mxu0 %v1793
    %4638 = vmatpush1.bf16.msra.mxu0 %v1792
    %4639 = vmatprep.subr.bf16.mxu0 %v1784
    %4640 = vmatpush1.bf16.msra.mxu0 %v1783
    %4641 = vmatprep.subr.bf16.mxu0 %v1775
    %4642 = vmatpush1.bf16.msra.mxu0 %v1774
    %4643 = vmatprep.subr.bf16.mxu0 %v1766
    %4644 = vmatpush1.bf16.msra.mxu0 %v1765
    %4645 = vmatprep.subr.bf16.mxu0 %v1757
    %4646 = vmatpush1.bf16.msra.mxu0 %v1756
    %4647 = vmatprep.subr.bf16.mxu0 %v1748
    %4648 = vmatpush1.bf16.msra.mxu0 %v1747
    %4649 = vmatprep.subr.bf16.mxu0 %v1739
    %4650 = vmatpush1.bf16.msra.mxu0 %v1738
    %4651 = vmatprep.subr.bf16.mxu0 %v1874
    %4652 = vmatpush2.bf16.msra.mxu0 %v1873
    %4653 = vmatprep.subr.bf16.mxu0 %v1865
    %4654 = vmatpush2.bf16.msra.mxu0 %v1864
    %4655 = vmatprep.subr.bf16.mxu0 %v1856
    %4656 = vmatpush2.bf16.msra.mxu0 %v1855
    %4657 = vmatprep.subr.bf16.mxu0 %v1847
    %4658 = vmatpush2.bf16.msra.mxu0 %v1846
    %4659 = vmatprep.subr.bf16.mxu0 %v1838
    %4660 = vmatpush2.bf16.msra.mxu0 %v1837
    %4661 = vmatprep.subr.bf16.mxu0 %v1829
    %4662 = vmatpush2.bf16.msra.mxu0 %v1828
    %4663 = vmatprep.subr.bf16.mxu0 %v1820
    %4664 = vmatpush2.bf16.msra.mxu0 %v1819
    %4665 = vmatprep.subr.bf16.mxu0 %v1811
    %4666 = vmatpush2.bf16.msra.mxu0 %v1810
    %4667 = vmatprep.mubr.bf16.mxu0 %v4551
    %4668 = vmatmul.mubr.bf16.gmra.mxu0 %v4550
    %v4669 = vpop.f32.mrf.mxu0
    %v4670 = vadd.f32 0.0, %v4669
    %v4671 = vpop.f32.mrf.mxu0
    %v4672 = vadd.f32 0.0, %v4671
    %v4673 = vpop.f32.mrf.mxu0
    %v4674 = vpop.f32.mrf.mxu0
    %4675 = vdwg.mxu0
    %4676 = vmatprep.subr.bf16.mxu0 %v1946
    %4677 = vmatpush1.bf16.msra.mxu0 %v1945
    %4678 = vmatprep.subr.bf16.mxu0 %v1937
    %4679 = vmatpush1.bf16.msra.mxu0 %v1936
    %4680 = vmatprep.subr.bf16.mxu0 %v1928
    %4681 = vmatpush1.bf16.msra.mxu0 %v1927
    %4682 = vmatprep.subr.bf16.mxu0 %v1919
    %4683 = vmatpush1.bf16.msra.mxu0 %v1918
    %4684 = vmatprep.subr.bf16.mxu0 %v1910
    %4685 = vmatpush1.bf16.msra.mxu0 %v1909
    %4686 = vmatprep.subr.bf16.mxu0 %v1901
    %4687 = vmatpush1.bf16.msra.mxu0 %v1900
    %4688 = vmatprep.subr.bf16.mxu0 %v1892
    %4689 = vmatpush1.bf16.msra.mxu0 %v1891
    %4690 = vmatprep.subr.bf16.mxu0 %v1883
    %4691 = vmatpush1.bf16.msra.mxu0 %v1882
    %4692 = vmatprep.subr.bf16.mxu0 0
    %4693 = vmatpush2.bf16.msra.mxu0 0
    %4694 = vmatprep.subr.bf16.mxu0 0
    %4695 = vmatpush2.bf16.msra.mxu0 0
    %4696 = vmatprep.subr.bf16.mxu0 0
    %4697 = vmatpush2.bf16.msra.mxu0 0
    %4698 = vmatprep.subr.bf16.mxu0 0
    %4699 = vmatpush2.bf16.msra.mxu0 0
    %4700 = vmatprep.subr.bf16.mxu0 0
    %4701 = vmatpush2.bf16.msra.mxu0 0
    %4702 = vmatprep.subr.bf16.mxu0 0
    %4703 = vmatpush2.bf16.msra.mxu0 0
    %4704 = vmatprep.subr.bf16.mxu0 0
    %4705 = vmatpush2.bf16.msra.mxu0 0
    %4706 = vmatprep.subr.bf16.mxu0 0
    %4707 = vmatpush2.bf16.msra.mxu0 0
    %4708 = vmatprep.mubr.bf16.mxu0 0
    %4709 = vmatmul.mubr.bf16.gmra.mxu0 %v4552
    %v4710 = vpop.f32.mrf.mxu0
    %v4711 = vadd.f32 %v4670, %v4710
    %v4712 = vpop.f32.mrf.mxu0
    %v4713 = vadd.f32 %v4672, %v4712
    %v4714 = vpop.f32.mrf.mxu0
    %v4715 = vpop.f32.mrf.mxu0
    %4716 = vdwg.mxu0
    %4717 = vmatprep.subr.bf16.mxu0 %v1804
    %4718 = vmatpush1.bf16.msra.mxu0 %v1803
    %4719 = vmatprep.subr.bf16.mxu0 %v1795
    %4720 = vmatpush1.bf16.msra.mxu0 %v1794
    %4721 = vmatprep.subr.bf16.mxu0 %v1786
    %4722 = vmatpush1.bf16.msra.mxu0 %v1785
    %4723 = vmatprep.subr.bf16.mxu0 %v1777
    %4724 = vmatpush1.bf16.msra.mxu0 %v1776
    %4725 = vmatprep.subr.bf16.mxu0 %v1768
    %4726 = vmatpush1.bf16.msra.mxu0 %v1767
    %4727 = vmatprep.subr.bf16.mxu0 %v1759
    %4728 = vmatpush1.bf16.msra.mxu0 %v1758
    %4729 = vmatprep.subr.bf16.mxu0 %v1750
    %4730 = vmatpush1.bf16.msra.mxu0 %v1749
    %4731 = vmatprep.subr.bf16.mxu0 %v1741
    %4732 = vmatpush1.bf16.msra.mxu0 %v1740
    %4733 = vmatprep.subr.bf16.mxu0 %v1876
    %4734 = vmatpush2.bf16.msra.mxu0 %v1875
    %4735 = vmatprep.subr.bf16.mxu0 %v1867
    %4736 = vmatpush2.bf16.msra.mxu0 %v1866
    %4737 = vmatprep.subr.bf16.mxu0 %v1858
    %4738 = vmatpush2.bf16.msra.mxu0 %v1857
    %4739 = vmatprep.subr.bf16.mxu0 %v1849
    %4740 = vmatpush2.bf16.msra.mxu0 %v1848
    %4741 = vmatprep.subr.bf16.mxu0 %v1840
    %4742 = vmatpush2.bf16.msra.mxu0 %v1839
    %4743 = vmatprep.subr.bf16.mxu0 %v1831
    %4744 = vmatpush2.bf16.msra.mxu0 %v1830
    %4745 = vmatprep.subr.bf16.mxu0 %v1822
    %4746 = vmatpush2.bf16.msra.mxu0 %v1821
    %4747 = vmatprep.subr.bf16.mxu0 %v1813
    %4748 = vmatpush2.bf16.msra.mxu0 %v1812
    %4749 = vmatprep.mubr.bf16.mxu0 %v4551
    %4750 = vmatmul.mubr.bf16.gmra.mxu0 %v4550
    %v4751 = vpop.f32.mrf.mxu0
    %v4752 = vadd.f32 0.0, %v4751
    %v4753 = vpop.f32.mrf.mxu0
    %v4754 = vadd.f32 0.0, %v4753
    %v4755 = vpop.f32.mrf.mxu0
    %v4756 = vpop.f32.mrf.mxu0
    %4757 = vdwg.mxu0
    %4758 = vmatprep.subr.bf16.mxu0 %v1948
    %4759 = vmatpush1.bf16.msra.mxu0 %v1947
    %4760 = vmatprep.subr.bf16.mxu0 %v1939
    %4761 = vmatpush1.bf16.msra.mxu0 %v1938
    %4762 = vmatprep.subr.bf16.mxu0 %v1930
    %4763 = vmatpush1.bf16.msra.mxu0 %v1929
    %4764 = vmatprep.subr.bf16.mxu0 %v1921
    %4765 = vmatpush1.bf16.msra.mxu0 %v1920
    %4766 = vmatprep.subr.bf16.mxu0 %v1912
    %4767 = vmatpush1.bf16.msra.mxu0 %v1911
    %4768 = vmatprep.subr.bf16.mxu0 %v1903
    %4769 = vmatpush1.bf16.msra.mxu0 %v1902
    %4770 = vmatprep.subr.bf16.mxu0 %v1894
    %4771 = vmatpush1.bf16.msra.mxu0 %v1893
    %4772 = vmatprep.subr.bf16.mxu0 %v1885
    %4773 = vmatpush1.bf16.msra.mxu0 %v1884
    %4774 = vmatprep.subr.bf16.mxu0 0
    %4775 = vmatpush2.bf16.msra.mxu0 0
    %4776 = vmatprep.subr.bf16.mxu0 0
    %4777 = vmatpush2.bf16.msra.mxu0 0
    %4778 = vmatprep.subr.bf16.mxu0 0
    %4779 = vmatpush2.bf16.msra.mxu0 0
    %4780 = vmatprep.subr.bf16.mxu0 0
    %4781 = vmatpush2.bf16.msra.mxu0 0
    %4782 = vmatprep.subr.bf16.mxu0 0
    %4783 = vmatpush2.bf16.msra.mxu0 0
    %4784 = vmatprep.subr.bf16.mxu0 0
    %4785 = vmatpush2.bf16.msra.mxu0 0
    %4786 = vmatprep.subr.bf16.mxu0 0
    %4787 = vmatpush2.bf16.msra.mxu0 0
    %4788 = vmatprep.subr.bf16.mxu0 0
    %4789 = vmatpush2.bf16.msra.mxu0 0
    %4790 = vmatprep.mubr.bf16.mxu0 0
    %4791 = vmatmul.mubr.bf16.gmra.mxu0 %v4552
    %v4792 = vpop.f32.mrf.mxu0
    %v4793 = vadd.f32 %v4752, %v4792
    %v4794 = vpop.f32.mrf.mxu0
    %v4795 = vadd.f32 %v4754, %v4794
    %v4796 = vpop.f32.mrf.mxu0
    %v4797 = vpop.f32.mrf.mxu0
    %4798 = vdwg.mxu0
    %4799 = vmatprep.subr.bf16.mxu0 %v1806
    %4800 = vmatpush1.bf16.msra.mxu0 %v1805
    %4801 = vmatprep.subr.bf16.mxu0 %v1797
    %4802 = vmatpush1.bf16.msra.mxu0 %v1796
    %4803 = vmatprep.subr.bf16.mxu0 %v1788
    %4804 = vmatpush1.bf16.msra.mxu0 %v1787
    %4805 = vmatprep.subr.bf16.mxu0 %v1779
    %4806 = vmatpush1.bf16.msra.mxu0 %v1778
    %4807 = vmatprep.subr.bf16.mxu0 %v1770
    %4808 = vmatpush1.bf16.msra.mxu0 %v1769
    %4809 = vmatprep.subr.bf16.mxu0 %v1761
    %4810 = vmatpush1.bf16.msra.mxu0 %v1760
    %4811 = vmatprep.subr.bf16.mxu0 %v1752
    %4812 = vmatpush1.bf16.msra.mxu0 %v1751
    %4813 = vmatprep.subr.bf16.mxu0 %v1743
    %4814 = vmatpush1.bf16.msra.mxu0 %v1742
    %4815 = vmatprep.subr.bf16.mxu0 %v1878
    %4816 = vmatpush2.bf16.msra.mxu0 %v1877
    %4817 = vmatprep.subr.bf16.mxu0 %v1869
    %4818 = vmatpush2.bf16.msra.mxu0 %v1868
    %4819 = vmatprep.subr.bf16.mxu0 %v1860
    %4820 = vmatpush2.bf16.msra.mxu0 %v1859
    %4821 = vmatprep.subr.bf16.mxu0 %v1851
    %4822 = vmatpush2.bf16.msra.mxu0 %v1850
    %4823 = vmatprep.subr.bf16.mxu0 %v1842
    %4824 = vmatpush2.bf16.msra.mxu0 %v1841
    %4825 = vmatprep.subr.bf16.mxu0 %v1833
    %4826 = vmatpush2.bf16.msra.mxu0 %v1832
    %4827 = vmatprep.subr.bf16.mxu0 %v1824
    %4828 = vmatpush2.bf16.msra.mxu0 %v1823
    %4829 = vmatprep.subr.bf16.mxu0 %v1815
    %4830 = vmatpush2.bf16.msra.mxu0 %v1814
    %4831 = vmatprep.mubr.bf16.mxu0 %v4551
    %4832 = vmatmul.mubr.bf16.gmra.mxu0 %v4550
    %v4833 = vpop.f32.mrf.mxu0
    %v4834 = vadd.f32 0.0, %v4833
    %v4835 = vpop.f32.mrf.mxu0
    %v4836 = vadd.f32 0.0, %v4835
    %v4837 = vpop.f32.mrf.mxu0
    %v4838 = vpop.f32.mrf.mxu0
    %4839 = vdwg.mxu0
    %4840 = vmatprep.subr.bf16.mxu0 %v1950
    %4841 = vmatpush1.bf16.msra.mxu0 %v1949
    %4842 = vmatprep.subr.bf16.mxu0 %v1941
    %4843 = vmatpush1.bf16.msra.mxu0 %v1940
    %4844 = vmatprep.subr.bf16.mxu0 %v1932
    %4845 = vmatpush1.bf16.msra.mxu0 %v1931
    %4846 = vmatprep.subr.bf16.mxu0 %v1923
    %4847 = vmatpush1.bf16.msra.mxu0 %v1922
    %4848 = vmatprep.subr.bf16.mxu0 %v1914
    %4849 = vmatpush1.bf16.msra.mxu0 %v1913
    %4850 = vmatprep.subr.bf16.mxu0 %v1905
    %4851 = vmatpush1.bf16.msra.mxu0 %v1904
    %4852 = vmatprep.subr.bf16.mxu0 %v1896
    %4853 = vmatpush1.bf16.msra.mxu0 %v1895
    %4854 = vmatprep.subr.bf16.mxu0 %v1887
    %4855 = vmatpush1.bf16.msra.mxu0 %v1886
    %4856 = vmatprep.subr.bf16.mxu0 0
    %4857 = vmatpush2.bf16.msra.mxu0 0
    %4858 = vmatprep.subr.bf16.mxu0 0
    %4859 = vmatpush2.bf16.msra.mxu0 0
    %4860 = vmatprep.subr.bf16.mxu0 0
    %4861 = vmatpush2.bf16.msra.mxu0 0
    %4862 = vmatprep.subr.bf16.mxu0 0
    %4863 = vmatpush2.bf16.msra.mxu0 0
    %4864 = vmatprep.subr.bf16.mxu0 0
    %4865 = vmatpush2.bf16.msra.mxu0 0
    %4866 = vmatprep.subr.bf16.mxu0 0
    %4867 = vmatpush2.bf16.msra.mxu0 0
    %4868 = vmatprep.subr.bf16.mxu0 0
    %4869 = vmatpush2.bf16.msra.mxu0 0
    %4870 = vmatprep.subr.bf16.mxu0 0
    %4871 = vmatpush2.bf16.msra.mxu0 0
    %4872 = vmatprep.mubr.bf16.mxu0 0
    %4873 = vmatmul.mubr.bf16.gmra.mxu0 %v4552
    %v4874 = vpop.f32.mrf.mxu0
    %v4875 = vadd.f32 %v4834, %v4874
    %v4876 = vpop.f32.mrf.mxu0
    %v4877 = vadd.f32 %v4836, %v4876
    %v4878 = vpop.f32.mrf.mxu0
    %v4879 = vpop.f32.mrf.mxu0
    %4880 = vdwg.mxu0
    %4881 = vmatprep.subr.bf16.mxu0 0
    %4882 = vmatpush1.bf16.msra.mxu0 %v1807
    %4883 = vmatprep.subr.bf16.mxu0 0
    %4884 = vmatpush1.bf16.msra.mxu0 %v1798
    %4885 = vmatprep.subr.bf16.mxu0 0
    %4886 = vmatpush1.bf16.msra.mxu0 %v1789
    %4887 = vmatprep.subr.bf16.mxu0 0
    %4888 = vmatpush1.bf16.msra.mxu0 %v1780
    %4889 = vmatprep.subr.bf16.mxu0 0
    %4890 = vmatpush1.bf16.msra.mxu0 %v1771
    %4891 = vmatprep.subr.bf16.mxu0 0
    %4892 = vmatpush1.bf16.msra.mxu0 %v1762
    %4893 = vmatprep.subr.bf16.mxu0 0
    %4894 = vmatpush1.bf16.msra.mxu0 %v1753
    %4895 = vmatprep.subr.bf16.mxu0 0
    %4896 = vmatpush1.bf16.msra.mxu0 %v1744
    %4897 = vmatprep.subr.bf16.mxu0 0
    %4898 = vmatpush2.bf16.msra.mxu0 %v1879
    %4899 = vmatprep.subr.bf16.mxu0 0
    %4900 = vmatpush2.bf16.msra.mxu0 %v1870
    %4901 = vmatprep.subr.bf16.mxu0 0
    %4902 = vmatpush2.bf16.msra.mxu0 %v1861
    %4903 = vmatprep.subr.bf16.mxu0 0
    %4904 = vmatpush2.bf16.msra.mxu0 %v1852
    %4905 = vmatprep.subr.bf16.mxu0 0
    %4906 = vmatpush2.bf16.msra.mxu0 %v1843
    %4907 = vmatprep.subr.bf16.mxu0 0
    %4908 = vmatpush2.bf16.msra.mxu0 %v1834
    %4909 = vmatprep.subr.bf16.mxu0 0
    %4910 = vmatpush2.bf16.msra.mxu0 %v1825
    %4911 = vmatprep.subr.bf16.mxu0 0
    %4912 = vmatpush2.bf16.msra.mxu0 %v1816
    %4913 = vmatprep.mubr.bf16.mxu0 %v4551
    %4914 = vmatmul.mubr.bf16.gmra.mxu0 %v4550
    %v4915 = vpop.f32.mrf.mxu0
    %v4916 = vadd.f32 0.0, %v4915
    %v4917 = vpop.f32.mrf.mxu0
    %v4918 = vpop.f32.mrf.mxu0
    %v4919 = vpop.f32.mrf.mxu0
    %4920 = vdwg.mxu0
    %4921 = vmatprep.subr.bf16.mxu0 0
    %4922 = vmatpush1.bf16.msra.mxu0 %v1951
    %4923 = vmatprep.subr.bf16.mxu0 0
    %4924 = vmatpush1.bf16.msra.mxu0 %v1942
    %4925 = vmatprep.subr.bf16.mxu0 0
    %4926 = vmatpush1.bf16.msra.mxu0 %v1933
    %4927 = vmatprep.subr.bf16.mxu0 0
    %4928 = vmatpush1.bf16.msra.mxu0 %v1924
    %4929 = vmatprep.subr.bf16.mxu0 0
    %4930 = vmatpush1.bf16.msra.mxu0 %v1915
    %4931 = vmatprep.subr.bf16.mxu0 0
    %4932 = vmatpush1.bf16.msra.mxu0 %v1906
    %4933 = vmatprep.subr.bf16.mxu0 0
    %4934 = vmatpush1.bf16.msra.mxu0 %v1897
    %4935 = vmatprep.subr.bf16.mxu0 0
    %4936 = vmatpush1.bf16.msra.mxu0 %v1888
    %4937 = vmatprep.subr.bf16.mxu0 0
    %4938 = vmatpush2.bf16.msra.mxu0 0
    %4939 = vmatprep.subr.bf16.mxu0 0
    %4940 = vmatpush2.bf16.msra.mxu0 0
    %4941 = vmatprep.subr.bf16.mxu0 0
    %4942 = vmatpush2.bf16.msra.mxu0 0
    %4943 = vmatprep.subr.bf16.mxu0 0
    %4944 = vmatpush2.bf16.msra.mxu0 0
    %4945 = vmatprep.subr.bf16.mxu0 0
    %4946 = vmatpush2.bf16.msra.mxu0 0
    %4947 = vmatprep.subr.bf16.mxu0 0
    %4948 = vmatpush2.bf16.msra.mxu0 0
    %4949 = vmatprep.subr.bf16.mxu0 0
    %4950 = vmatpush2.bf16.msra.mxu0 0
    %4951 = vmatprep.subr.bf16.mxu0 0
    %4952 = vmatpush2.bf16.msra.mxu0 0
    %4953 = vmatprep.mubr.bf16.mxu0 0
    %4954 = vmatmul.mubr.bf16.gmra.mxu0 %v4552
    %v4955 = vpop.f32.mrf.mxu0
    %v4956 = vadd.f32 %v4916, %v4955
    %v4957 = vpop.f32.mrf.mxu0
    %v4958 = vpop.f32.mrf.mxu0
    %v4959 = vpop.f32.mrf.mxu0
    %4960 = vdwg.mxu0
    %v4961 = vld [vmem:[#allocation2 + $0x168] sm:$0xff]
    %v4962 = vld [vmem:[#allocation2 + $0x170] sm:$0xff]
    %v4963 = vld [vmem:[#allocation2 + $0x178] sm:$0xff]
    %v4964 = vld [vmem:[#allocation2 + $0x180] sm:$0xff]
    %v4965 = vld [vmem:[#allocation2 + $0x188] sm:$0xff]
    %v4966 = vld [vmem:[#allocation2 + $0x190] sm:$0xff]
    %v4967 = vld [vmem:[#allocation2 + $0x198] sm:$0xff]
    %v4968 = vld [vmem:[#allocation2 + $0x1a0] sm:$0xff]
    %v4969 = vld [vmem:[#allocation2 + $0x1a8] sm:$0xff]
    %v4970 = vadd.f32 %v4875, %v1046
    %v4971 = vadd.f32 %v4877, %v1050
    %v4972 = vadd.f32 %v4956, %v1054
    %v4973 = vadd.f32 %v4961, %v4629
    %v4974 = vadd.f32 %v4962, %v4631
    %v4975 = vadd.f32 %v4963, %v4711
    %v4976 = vmul.f32 %v4973, 0.5
    %v4977 = vmul.f32 %v4974, 0.5
    %v4978 = vmul.f32 %v4975, 0.5
    %v4979 = vtanh.pop %v4976
    %v4980 = vtanh.pop %v4977
    %v4981 = vtanh.pop %v4978
    %v4982 = vmul.f32 %v4979, 0.5
    %v4983 = vmul.f32 %v4980, 0.5
    %v4984 = vmul.f32 %v4981, 0.5
    %v4985 = vadd.f32 %v4982, 0.5
    %v4986 = vadd.f32 %v4983, 0.5
    %v4987 = vadd.f32 %v4984, 0.5
    %v4988 = vadd.f32 %v4964, %v4713
    %v4989 = vadd.f32 %v4965, %v4793
    %v4990 = vadd.f32 %v4966, %v4795
    %v4991 = vmul.f32 %v4988, 0.5
    %v4992 = vmul.f32 %v4989, 0.5
    %v4993 = vmul.f32 %v4990, 0.5
    %v4994 = vtanh.pop %v4991
    %v4995 = vtanh.pop %v4992
    %v4996 = vtanh.pop %v4993
    %v4997 = vmul.f32 %v4994, 0.5
    %v4998 = vmul.f32 %v4995, 0.5
    %v4999 = vmul.f32 %v4996, 0.5
    %v5000 = vadd.f32 %v4997, 0.5
    %v5001 = vadd.f32 %v4998, 0.5
    %v5002 = vadd.f32 %v4999, 0.5
    %v5003 = vmul.f32 %v4985, %v4970
    %v5004 = vmul.f32 %v4986, %v4971
    %v5005 = vmul.f32 %v4987, %v4972
    %v5006 = vadd.f32 %v4967, %v5003
    %v5007 = vadd.f32 %v4968, %v5004
    %v5008 = vadd.f32 %v4969, %v5005
    %v5009 = vtanh.pop %v5006
    %v5010 = vtanh.pop %v5007
    %v5011 = vtanh.pop %v5008
    %v5012 = vsub.f32 1.0, %v5000
    %v5013 = vsub.f32 1.0, %v5001
    %v5014 = vsub.f32 1.0, %v5002
    %v5015 = vmul.f32 %v5012, %v5009
    %v5016 = vmul.f32 %v5013, %v5010
    %v5017 = vmul.f32 %v5014, %v5011
    %v5018 = vmul.f32 %v5000, %v4544
    %v5019 = vmul.f32 %v5001, %v4545
    %v5020 = vmul.f32 %v5002, %v4546
    %v5021 = vadd.f32 %v5015, %v5018
    %v5022 = vadd.f32 %v5016, %v5019
    %v5023 = vadd.f32 %v5017, %v5020
    %5024 = vst [vmem:[#allocation3 + $0x78] sm:$0xff] %v5021
    %5025 = vst [vmem:[#allocation3 + $0x80] sm:$0xff] %v5022
    %5026 = vst [vmem:[#allocation3 + $0x88] sm:$0xff] %v5023
    %v5027 = vpack.c.bf16 %v5021, %v5021
    %v5028 = vpack.c.bf16 %v5022, %v5022
    %v5029 = vpack.c.bf16 %v5023, %v5023
    %5030 = vmatprep.subr.bf16.mxu0 %v1800
    %5031 = vmatpush1.bf16.msra.mxu0 %v1799
    %5032 = vmatprep.subr.bf16.mxu0 %v1791
    %5033 = vmatpush1.bf16.msra.mxu0 %v1790
    %5034 = vmatprep.subr.bf16.mxu0 %v1782
    %5035 = vmatpush1.bf16.msra.mxu0 %v1781
    %5036 = vmatprep.subr.bf16.mxu0 %v1773
    %5037 = vmatpush1.bf16.msra.mxu0 %v1772
    %5038 = vmatprep.subr.bf16.mxu0 %v1764
    %5039 = vmatpush1.bf16.msra.mxu0 %v1763
    %5040 = vmatprep.subr.bf16.mxu0 %v1755
    %5041 = vmatpush1.bf16.msra.mxu0 %v1754
    %5042 = vmatprep.subr.bf16.mxu0 %v1746
    %5043 = vmatpush1.bf16.msra.mxu0 %v1745
    %5044 = vmatprep.subr.bf16.mxu0 %v1737
    %5045 = vmatpush1.bf16.msra.mxu0 %v1736
    %5046 = vmatprep.subr.bf16.mxu0 %v1872
    %5047 = vmatpush2.bf16.msra.mxu0 %v1871
    %5048 = vmatprep.subr.bf16.mxu0 %v1863
    %5049 = vmatpush2.bf16.msra.mxu0 %v1862
    %5050 = vmatprep.subr.bf16.mxu0 %v1854
    %5051 = vmatpush2.bf16.msra.mxu0 %v1853
    %5052 = vmatprep.subr.bf16.mxu0 %v1845
    %5053 = vmatpush2.bf16.msra.mxu0 %v1844
    %5054 = vmatprep.subr.bf16.mxu0 %v1836
    %5055 = vmatpush2.bf16.msra.mxu0 %v1835
    %5056 = vmatprep.subr.bf16.mxu0 %v1827
    %5057 = vmatpush2.bf16.msra.mxu0 %v1826
    %5058 = vmatprep.subr.bf16.mxu0 %v1818
    %5059 = vmatpush2.bf16.msra.mxu0 %v1817
    %5060 = vmatprep.subr.bf16.mxu0 %v1809
    %5061 = vmatpush2.bf16.msra.mxu0 %v1808
    %5062 = vmatprep.mubr.bf16.mxu0 %v5028
    %5063 = vmatmul.mubr.bf16.gmra.mxu0 %v5027
    %v5064 = vpop.f32.mrf.mxu0
    %v5065 = vadd.f32 0.0, %v5064
    %v5066 = vpop.f32.mrf.mxu0
    %v5067 = vadd.f32 0.0, %v5066
    %v5068 = vpop.f32.mrf.mxu0
    %v5069 = vpop.f32.mrf.mxu0
    %5070 = vdwg.mxu0
    %5071 = vmatprep.subr.bf16.mxu0 %v1944
    %5072 = vmatpush1.bf16.msra.mxu0 %v1943
    %5073 = vmatprep.subr.bf16.mxu0 %v1935
    %5074 = vmatpush1.bf16.msra.mxu0 %v1934
    %5075 = vmatprep.subr.bf16.mxu0 %v1926
    %5076 = vmatpush1.bf16.msra.mxu0 %v1925
    %5077 = vmatprep.subr.bf16.mxu0 %v1917
    %5078 = vmatpush1.bf16.msra.mxu0 %v1916
    %5079 = vmatprep.subr.bf16.mxu0 %v1908
    %5080 = vmatpush1.bf16.msra.mxu0 %v1907
    %5081 = vmatprep.subr.bf16.mxu0 %v1899
    %5082 = vmatpush1.bf16.msra.mxu0 %v1898
    %5083 = vmatprep.subr.bf16.mxu0 %v1890
    %5084 = vmatpush1.bf16.msra.mxu0 %v1889
    %5085 = vmatprep.subr.bf16.mxu0 %v1881
    %5086 = vmatpush1.bf16.msra.mxu0 %v1880
    %5087 = vmatprep.subr.bf16.mxu0 0
    %5088 = vmatpush2.bf16.msra.mxu0 0
    %5089 = vmatprep.subr.bf16.mxu0 0
    %5090 = vmatpush2.bf16.msra.mxu0 0
    %5091 = vmatprep.subr.bf16.mxu0 0
    %5092 = vmatpush2.bf16.msra.mxu0 0
    %5093 = vmatprep.subr.bf16.mxu0 0
    %5094 = vmatpush2.bf16.msra.mxu0 0
    %5095 = vmatprep.subr.bf16.mxu0 0
    %5096 = vmatpush2.bf16.msra.mxu0 0
    %5097 = vmatprep.subr.bf16.mxu0 0
    %5098 = vmatpush2.bf16.msra.mxu0 0
    %5099 = vmatprep.subr.bf16.mxu0 0
    %5100 = vmatpush2.bf16.msra.mxu0 0
    %5101 = vmatprep.subr.bf16.mxu0 0
    %5102 = vmatpush2.bf16.msra.mxu0 0
    %5103 = vmatprep.mubr.bf16.mxu0 0
    %5104 = vmatmul.mubr.bf16.gmra.mxu0 %v5029
    %v5105 = vpop.f32.mrf.mxu0
    %v5106 = vadd.f32 %v5065, %v5105
    %v5107 = vpop.f32.mrf.mxu0
    %v5108 = vadd.f32 %v5067, %v5107
    %v5109 = vpop.f32.mrf.mxu0
    %v5110 = vpop.f32.mrf.mxu0
    %5111 = vdwg.mxu0
    %5112 = vmatprep.subr.bf16.mxu0 %v1802
    %5113 = vmatpush1.bf16.msra.mxu0 %v1801
    %5114 = vmatprep.subr.bf16.mxu0 %v1793
    %5115 = vmatpush1.bf16.msra.mxu0 %v1792
    %5116 = vmatprep.subr.bf16.mxu0 %v1784
    %5117 = vmatpush1.bf16.msra.mxu0 %v1783
    %5118 = vmatprep.subr.bf16.mxu0 %v1775
    %5119 = vmatpush1.bf16.msra.mxu0 %v1774
    %5120 = vmatprep.subr.bf16.mxu0 %v1766
    %5121 = vmatpush1.bf16.msra.mxu0 %v1765
    %5122 = vmatprep.subr.bf16.mxu0 %v1757
    %5123 = vmatpush1.bf16.msra.mxu0 %v1756
    %5124 = vmatprep.subr.bf16.mxu0 %v1748
    %5125 = vmatpush1.bf16.msra.mxu0 %v1747
    %5126 = vmatprep.subr.bf16.mxu0 %v1739
    %5127 = vmatpush1.bf16.msra.mxu0 %v1738
    %5128 = vmatprep.subr.bf16.mxu0 %v1874
    %5129 = vmatpush2.bf16.msra.mxu0 %v1873
    %5130 = vmatprep.subr.bf16.mxu0 %v1865
    %5131 = vmatpush2.bf16.msra.mxu0 %v1864
    %5132 = vmatprep.subr.bf16.mxu0 %v1856
    %5133 = vmatpush2.bf16.msra.mxu0 %v1855
    %5134 = vmatprep.subr.bf16.mxu0 %v1847
    %5135 = vmatpush2.bf16.msra.mxu0 %v1846
    %5136 = vmatprep.subr.bf16.mxu0 %v1838
    %5137 = vmatpush2.bf16.msra.mxu0 %v1837
    %5138 = vmatprep.subr.bf16.mxu0 %v1829
    %5139 = vmatpush2.bf16.msra.mxu0 %v1828
    %5140 = vmatprep.subr.bf16.mxu0 %v1820
    %5141 = vmatpush2.bf16.msra.mxu0 %v1819
    %5142 = vmatprep.subr.bf16.mxu0 %v1811
    %5143 = vmatpush2.bf16.msra.mxu0 %v1810
    %5144 = vmatprep.mubr.bf16.mxu0 %v5028
    %5145 = vmatmul.mubr.bf16.gmra.mxu0 %v5027
    %v5146 = vpop.f32.mrf.mxu0
    %v5147 = vadd.f32 0.0, %v5146
    %v5148 = vpop.f32.mrf.mxu0
    %v5149 = vadd.f32 0.0, %v5148
    %v5150 = vpop.f32.mrf.mxu0
    %v5151 = vpop.f32.mrf.mxu0
    %5152 = vdwg.mxu0
    %5153 = vmatprep.subr.bf16.mxu0 %v1946
    %5154 = vmatpush1.bf16.msra.mxu0 %v1945
    %5155 = vmatprep.subr.bf16.mxu0 %v1937
    %5156 = vmatpush1.bf16.msra.mxu0 %v1936
    %5157 = vmatprep.subr.bf16.mxu0 %v1928
    %5158 = vmatpush1.bf16.msra.mxu0 %v1927
    %5159 = vmatprep.subr.bf16.mxu0 %v1919
    %5160 = vmatpush1.bf16.msra.mxu0 %v1918
    %5161 = vmatprep.subr.bf16.mxu0 %v1910
    %5162 = vmatpush1.bf16.msra.mxu0 %v1909
    %5163 = vmatprep.subr.bf16.mxu0 %v1901
    %5164 = vmatpush1.bf16.msra.mxu0 %v1900
    %5165 = vmatprep.subr.bf16.mxu0 %v1892
    %5166 = vmatpush1.bf16.msra.mxu0 %v1891
    %5167 = vmatprep.subr.bf16.mxu0 %v1883
    %5168 = vmatpush1.bf16.msra.mxu0 %v1882
    %5169 = vmatprep.subr.bf16.mxu0 0
    %5170 = vmatpush2.bf16.msra.mxu0 0
    %5171 = vmatprep.subr.bf16.mxu0 0
    %5172 = vmatpush2.bf16.msra.mxu0 0
    %5173 = vmatprep.subr.bf16.mxu0 0
    %5174 = vmatpush2.bf16.msra.mxu0 0
    %5175 = vmatprep.subr.bf16.mxu0 0
    %5176 = vmatpush2.bf16.msra.mxu0 0
    %5177 = vmatprep.subr.bf16.mxu0 0
    %5178 = vmatpush2.bf16.msra.mxu0 0
    %5179 = vmatprep.subr.bf16.mxu0 0
    %5180 = vmatpush2.bf16.msra.mxu0 0
    %5181 = vmatprep.subr.bf16.mxu0 0
    %5182 = vmatpush2.bf16.msra.mxu0 0
    %5183 = vmatprep.subr.bf16.mxu0 0
    %5184 = vmatpush2.bf16.msra.mxu0 0
    %5185 = vmatprep.mubr.bf16.mxu0 0
    %5186 = vmatmul.mubr.bf16.gmra.mxu0 %v5029
    %v5187 = vpop.f32.mrf.mxu0
    %v5188 = vadd.f32 %v5147, %v5187
    %v5189 = vpop.f32.mrf.mxu0
    %v5190 = vadd.f32 %v5149, %v5189
    %v5191 = vpop.f32.mrf.mxu0
    %v5192 = vpop.f32.mrf.mxu0
    %5193 = vdwg.mxu0
    %5194 = vmatprep.subr.bf16.mxu0 %v1804
    %5195 = vmatpush1.bf16.msra.mxu0 %v1803
    %5196 = vmatprep.subr.bf16.mxu0 %v1795
    %5197 = vmatpush1.bf16.msra.mxu0 %v1794
    %5198 = vmatprep.subr.bf16.mxu0 %v1786
    %5199 = vmatpush1.bf16.msra.mxu0 %v1785
    %5200 = vmatprep.subr.bf16.mxu0 %v1777
    %5201 = vmatpush1.bf16.msra.mxu0 %v1776
    %5202 = vmatprep.subr.bf16.mxu0 %v1768
    %5203 = vmatpush1.bf16.msra.mxu0 %v1767
    %5204 = vmatprep.subr.bf16.mxu0 %v1759
    %5205 = vmatpush1.bf16.msra.mxu0 %v1758
    %5206 = vmatprep.subr.bf16.mxu0 %v1750
    %5207 = vmatpush1.bf16.msra.mxu0 %v1749
    %5208 = vmatprep.subr.bf16.mxu0 %v1741
    %5209 = vmatpush1.bf16.msra.mxu0 %v1740
    %5210 = vmatprep.subr.bf16.mxu0 %v1876
    %5211 = vmatpush2.bf16.msra.mxu0 %v1875
    %5212 = vmatprep.subr.bf16.mxu0 %v1867
    %5213 = vmatpush2.bf16.msra.mxu0 %v1866
    %5214 = vmatprep.subr.bf16.mxu0 %v1858
    %5215 = vmatpush2.bf16.msra.mxu0 %v1857
    %5216 = vmatprep.subr.bf16.mxu0 %v1849
    %5217 = vmatpush2.bf16.msra.mxu0 %v1848
    %5218 = vmatprep.subr.bf16.mxu0 %v1840
    %5219 = vmatpush2.bf16.msra.mxu0 %v1839
    %5220 = vmatprep.subr.bf16.mxu0 %v1831
    %5221 = vmatpush2.bf16.msra.mxu0 %v1830
    %5222 = vmatprep.subr.bf16.mxu0 %v1822
    %5223 = vmatpush2.bf16.msra.mxu0 %v1821
    %5224 = vmatprep.subr.bf16.mxu0 %v1813
    %5225 = vmatpush2.bf16.msra.mxu0 %v1812
    %5226 = vmatprep.mubr.bf16.mxu0 %v5028
    %5227 = vmatmul.mubr.bf16.gmra.mxu0 %v5027
    %v5228 = vpop.f32.mrf.mxu0
    %v5229 = vadd.f32 0.0, %v5228
    %v5230 = vpop.f32.mrf.mxu0
    %v5231 = vadd.f32 0.0, %v5230
    %v5232 = vpop.f32.mrf.mxu0
    %v5233 = vpop.f32.mrf.mxu0
    %5234 = vdwg.mxu0
    %5235 = vmatprep.subr.bf16.mxu0 %v1948
    %5236 = vmatpush1.bf16.msra.mxu0 %v1947
    %5237 = vmatprep.subr.bf16.mxu0 %v1939
    %5238 = vmatpush1.bf16.msra.mxu0 %v1938
    %5239 = vmatprep.subr.bf16.mxu0 %v1930
    %5240 = vmatpush1.bf16.msra.mxu0 %v1929
    %5241 = vmatprep.subr.bf16.mxu0 %v1921
    %5242 = vmatpush1.bf16.msra.mxu0 %v1920
    %5243 = vmatprep.subr.bf16.mxu0 %v1912
    %5244 = vmatpush1.bf16.msra.mxu0 %v1911
    %5245 = vmatprep.subr.bf16.mxu0 %v1903
    %5246 = vmatpush1.bf16.msra.mxu0 %v1902
    %5247 = vmatprep.subr.bf16.mxu0 %v1894
    %5248 = vmatpush1.bf16.msra.mxu0 %v1893
    %5249 = vmatprep.subr.bf16.mxu0 %v1885
    %5250 = vmatpush1.bf16.msra.mxu0 %v1884
    %5251 = vmatprep.subr.bf16.mxu0 0
    %5252 = vmatpush2.bf16.msra.mxu0 0
    %5253 = vmatprep.subr.bf16.mxu0 0
    %5254 = vmatpush2.bf16.msra.mxu0 0
    %5255 = vmatprep.subr.bf16.mxu0 0
    %5256 = vmatpush2.bf16.msra.mxu0 0
    %5257 = vmatprep.subr.bf16.mxu0 0
    %5258 = vmatpush2.bf16.msra.mxu0 0
    %5259 = vmatprep.subr.bf16.mxu0 0
    %5260 = vmatpush2.bf16.msra.mxu0 0
    %5261 = vmatprep.subr.bf16.mxu0 0
    %5262 = vmatpush2.bf16.msra.mxu0 0
    %5263 = vmatprep.subr.bf16.mxu0 0
    %5264 = vmatpush2.bf16.msra.mxu0 0
    %5265 = vmatprep.subr.bf16.mxu0 0
    %5266 = vmatpush2.bf16.msra.mxu0 0
    %5267 = vmatprep.mubr.bf16.mxu0 0
    %5268 = vmatmul.mubr.bf16.gmra.mxu0 %v5029
    %v5269 = vpop.f32.mrf.mxu0
    %v5270 = vadd.f32 %v5229, %v5269
    %v5271 = vpop.f32.mrf.mxu0
    %v5272 = vadd.f32 %v5231, %v5271
    %v5273 = vpop.f32.mrf.mxu0
    %v5274 = vpop.f32.mrf.mxu0
    %5275 = vdwg.mxu0
    %5276 = vmatprep.subr.bf16.mxu0 %v1806
    %5277 = vmatpush1.bf16.msra.mxu0 %v1805
    %5278 = vmatprep.subr.bf16.mxu0 %v1797
    %5279 = vmatpush1.bf16.msra.mxu0 %v1796
    %5280 = vmatprep.subr.bf16.mxu0 %v1788
    %5281 = vmatpush1.bf16.msra.mxu0 %v1787
    %5282 = vmatprep.subr.bf16.mxu0 %v1779
    %5283 = vmatpush1.bf16.msra.mxu0 %v1778
    %5284 = vmatprep.subr.bf16.mxu0 %v1770
    %5285 = vmatpush1.bf16.msra.mxu0 %v1769
    %5286 = vmatprep.subr.bf16.mxu0 %v1761
    %5287 = vmatpush1.bf16.msra.mxu0 %v1760
    %5288 = vmatprep.subr.bf16.mxu0 %v1752
    %5289 = vmatpush1.bf16.msra.mxu0 %v1751
    %5290 = vmatprep.subr.bf16.mxu0 %v1743
    %5291 = vmatpush1.bf16.msra.mxu0 %v1742
    %5292 = vmatprep.subr.bf16.mxu0 %v1878
    %5293 = vmatpush2.bf16.msra.mxu0 %v1877
    %5294 = vmatprep.subr.bf16.mxu0 %v1869
    %5295 = vmatpush2.bf16.msra.mxu0 %v1868
    %5296 = vmatprep.subr.bf16.mxu0 %v1860
    %5297 = vmatpush2.bf16.msra.mxu0 %v1859
    %5298 = vmatprep.subr.bf16.mxu0 %v1851
    %5299 = vmatpush2.bf16.msra.mxu0 %v1850
    %5300 = vmatprep.subr.bf16.mxu0 %v1842
    %5301 = vmatpush2.bf16.msra.mxu0 %v1841
    %5302 = vmatprep.subr.bf16.mxu0 %v1833
    %5303 = vmatpush2.bf16.msra.mxu0 %v1832
    %5304 = vmatprep.subr.bf16.mxu0 %v1824
    %5305 = vmatpush2.bf16.msra.mxu0 %v1823
    %5306 = vmatprep.subr.bf16.mxu0 %v1815
    %5307 = vmatpush2.bf16.msra.mxu0 %v1814
    %5308 = vmatprep.mubr.bf16.mxu0 %v5028
    %5309 = vmatmul.mubr.bf16.gmra.mxu0 %v5027
    %v5310 = vpop.f32.mrf.mxu0
    %v5311 = vadd.f32 0.0, %v5310
    %v5312 = vpop.f32.mrf.mxu0
    %v5313 = vadd.f32 0.0, %v5312
    %v5314 = vpop.f32.mrf.mxu0
    %v5315 = vpop.f32.mrf.mxu0
    %5316 = vdwg.mxu0
    %5317 = vmatprep.subr.bf16.mxu0 %v1950
    %5318 = vmatpush1.bf16.msra.mxu0 %v1949
    %5319 = vmatprep.subr.bf16.mxu0 %v1941
    %5320 = vmatpush1.bf16.msra.mxu0 %v1940
    %5321 = vmatprep.subr.bf16.mxu0 %v1932
    %5322 = vmatpush1.bf16.msra.mxu0 %v1931
    %5323 = vmatprep.subr.bf16.mxu0 %v1923
    %5324 = vmatpush1.bf16.msra.mxu0 %v1922
    %5325 = vmatprep.subr.bf16.mxu0 %v1914
    %5326 = vmatpush1.bf16.msra.mxu0 %v1913
    %5327 = vmatprep.subr.bf16.mxu0 %v1905
    %5328 = vmatpush1.bf16.msra.mxu0 %v1904
    %5329 = vmatprep.subr.bf16.mxu0 %v1896
    %5330 = vmatpush1.bf16.msra.mxu0 %v1895
    %5331 = vmatprep.subr.bf16.mxu0 %v1887
    %5332 = vmatpush1.bf16.msra.mxu0 %v1886
    %5333 = vmatprep.subr.bf16.mxu0 0
    %5334 = vmatpush2.bf16.msra.mxu0 0
    %5335 = vmatprep.subr.bf16.mxu0 0
    %5336 = vmatpush2.bf16.msra.mxu0 0
    %5337 = vmatprep.subr.bf16.mxu0 0
    %5338 = vmatpush2.bf16.msra.mxu0 0
    %5339 = vmatprep.subr.bf16.mxu0 0
    %5340 = vmatpush2.bf16.msra.mxu0 0
    %5341 = vmatprep.subr.bf16.mxu0 0
    %5342 = vmatpush2.bf16.msra.mxu0 0
    %5343 = vmatprep.subr.bf16.mxu0 0
    %5344 = vmatpush2.bf16.msra.mxu0 0
    %5345 = vmatprep.subr.bf16.mxu0 0
    %5346 = vmatpush2.bf16.msra.mxu0 0
    %5347 = vmatprep.subr.bf16.mxu0 0
    %5348 = vmatpush2.bf16.msra.mxu0 0
    %5349 = vmatprep.mubr.bf16.mxu0 0
    %5350 = vmatmul.mubr.bf16.gmra.mxu0 %v5029
    %v5351 = vpop.f32.mrf.mxu0
    %v5352 = vadd.f32 %v5311, %v5351
    %v5353 = vpop.f32.mrf.mxu0
    %v5354 = vadd.f32 %v5313, %v5353
    %v5355 = vpop.f32.mrf.mxu0
    %v5356 = vpop.f32.mrf.mxu0
    %5357 = vdwg.mxu0
    %5358 = vmatprep.subr.bf16.mxu0 0
    %5359 = vmatpush1.bf16.msra.mxu0 %v1807
    %5360 = vmatprep.subr.bf16.mxu0 0
    %5361 = vmatpush1.bf16.msra.mxu0 %v1798
    %5362 = vmatprep.subr.bf16.mxu0 0
    %5363 = vmatpush1.bf16.msra.mxu0 %v1789
    %5364 = vmatprep.subr.bf16.mxu0 0
    %5365 = vmatpush1.bf16.msra.mxu0 %v1780
    %5366 = vmatprep.subr.bf16.mxu0 0
    %5367 = vmatpush1.bf16.msra.mxu0 %v1771
    %5368 = vmatprep.subr.bf16.mxu0 0
    %5369 = vmatpush1.bf16.msra.mxu0 %v1762
    %5370 = vmatprep.subr.bf16.mxu0 0
    %5371 = vmatpush1.bf16.msra.mxu0 %v1753
    %5372 = vmatprep.subr.bf16.mxu0 0
    %5373 = vmatpush1.bf16.msra.mxu0 %v1744
    %5374 = vmatprep.subr.bf16.mxu0 0
    %5375 = vmatpush2.bf16.msra.mxu0 %v1879
    %5376 = vmatprep.subr.bf16.mxu0 0
    %5377 = vmatpush2.bf16.msra.mxu0 %v1870
    %5378 = vmatprep.subr.bf16.mxu0 0
    %5379 = vmatpush2.bf16.msra.mxu0 %v1861
    %5380 = vmatprep.subr.bf16.mxu0 0
    %5381 = vmatpush2.bf16.msra.mxu0 %v1852
    %5382 = vmatprep.subr.bf16.mxu0 0
    %5383 = vmatpush2.bf16.msra.mxu0 %v1843
    %5384 = vmatprep.subr.bf16.mxu0 0
    %5385 = vmatpush2.bf16.msra.mxu0 %v1834
    %5386 = vmatprep.subr.bf16.mxu0 0
    %5387 = vmatpush2.bf16.msra.mxu0 %v1825
    %5388 = vmatprep.subr.bf16.mxu0 0
    %5389 = vmatpush2.bf16.msra.mxu0 %v1816
    %5390 = vmatprep.mubr.bf16.mxu0 %v5028
    %5391 = vmatmul.mubr.bf16.gmra.mxu0 %v5027
    %v5392 = vpop.f32.mrf.mxu0
    %v5393 = vadd.f32 0.0, %v5392
    %v5394 = vpop.f32.mrf.mxu0
    %v5395 = vpop.f32.mrf.mxu0
    %v5396 = vpop.f32.mrf.mxu0
    %5397 = vdwg.mxu0
    %5398 = vmatprep.subr.bf16.mxu0 0
    %5399 = vmatpush1.bf16.msra.mxu0 %v1951
    %5400 = vmatprep.subr.bf16.mxu0 0
    %5401 = vmatpush1.bf16.msra.mxu0 %v1942
    %5402 = vmatprep.subr.bf16.mxu0 0
    %5403 = vmatpush1.bf16.msra.mxu0 %v1933
    %5404 = vmatprep.subr.bf16.mxu0 0
    %5405 = vmatpush1.bf16.msra.mxu0 %v1924
    %5406 = vmatprep.subr.bf16.mxu0 0
    %5407 = vmatpush1.bf16.msra.mxu0 %v1915
    %5408 = vmatprep.subr.bf16.mxu0 0
    %5409 = vmatpush1.bf16.msra.mxu0 %v1906
    %5410 = vmatprep.subr.bf16.mxu0 0
    %5411 = vmatpush1.bf16.msra.mxu0 %v1897
    %5412 = vmatprep.subr.bf16.mxu0 0
    %5413 = vmatpush1.bf16.msra.mxu0 %v1888
    %5414 = vmatprep.subr.bf16.mxu0 0
    %5415 = vmatpush2.bf16.msra.mxu0 0
    %5416 = vmatprep.subr.bf16.mxu0 0
    %5417 = vmatpush2.bf16.msra.mxu0 0
    %5418 = vmatprep.subr.bf16.mxu0 0
    %5419 = vmatpush2.bf16.msra.mxu0 0
    %5420 = vmatprep.subr.bf16.mxu0 0
    %5421 = vmatpush2.bf16.msra.mxu0 0
    %5422 = vmatprep.subr.bf16.mxu0 0
    %5423 = vmatpush2.bf16.msra.mxu0 0
    %5424 = vmatprep.subr.bf16.mxu0 0
    %5425 = vmatpush2.bf16.msra.mxu0 0
    %5426 = vmatprep.subr.bf16.mxu0 0
    %5427 = vmatpush2.bf16.msra.mxu0 0
    %5428 = vmatprep.subr.bf16.mxu0 0
    %5429 = vmatpush2.bf16.msra.mxu0 0
    %5430 = vmatprep.mubr.bf16.mxu0 0
    %5431 = vmatmul.mubr.bf16.gmra.mxu0 %v5029
    %v5432 = vpop.f32.mrf.mxu0
    %v5433 = vadd.f32 %v5393, %v5432
    %v5434 = vpop.f32.mrf.mxu0
    %v5435 = vpop.f32.mrf.mxu0
    %v5436 = vpop.f32.mrf.mxu0
    %5437 = vdwg.mxu0
    %v5438 = vld [vmem:[#allocation2 + $0x1b0] sm:$0xff]
    %v5439 = vld [vmem:[#allocation2 + $0x1b8] sm:$0xff]
    %v5440 = vld [vmem:[#allocation2 + $0x1c0] sm:$0xff]
    %v5441 = vld [vmem:[#allocation2 + $0x1c8] sm:$0xff]
    %v5442 = vld [vmem:[#allocation2 + $0x1d0] sm:$0xff]
    %v5443 = vld [vmem:[#allocation2 + $0x1d8] sm:$0xff]
    %v5444 = vld [vmem:[#allocation2 + $0x1e0] sm:$0xff]
    %v5445 = vld [vmem:[#allocation2 + $0x1e8] sm:$0xff]
    %v5446 = vld [vmem:[#allocation2 + $0x1f0] sm:$0xff]
    %v5447 = vadd.f32 %v5352, %v1046
    %v5448 = vadd.f32 %v5354, %v1050
    %v5449 = vadd.f32 %v5433, %v1054
    %v5450 = vadd.f32 %v5438, %v5106
    %v5451 = vadd.f32 %v5439, %v5108
    %v5452 = vadd.f32 %v5440, %v5188
    %v5453 = vmul.f32 %v5450, 0.5
    %v5454 = vmul.f32 %v5451, 0.5
    %v5455 = vmul.f32 %v5452, 0.5
    %v5456 = vtanh.pop %v5453
    %v5457 = vtanh.pop %v5454
    %v5458 = vtanh.pop %v5455
    %v5459 = vmul.f32 %v5456, 0.5
    %v5460 = vmul.f32 %v5457, 0.5
    %v5461 = vmul.f32 %v5458, 0.5
    %v5462 = vadd.f32 %v5459, 0.5
    %v5463 = vadd.f32 %v5460, 0.5
    %v5464 = vadd.f32 %v5461, 0.5
    %v5465 = vadd.f32 %v5441, %v5190
    %v5466 = vadd.f32 %v5442, %v5270
    %v5467 = vadd.f32 %v5443, %v5272
    %v5468 = vmul.f32 %v5465, 0.5
    %v5469 = vmul.f32 %v5466, 0.5
    %v5470 = vmul.f32 %v5467, 0.5
    %v5471 = vtanh.pop %v5468
    %v5472 = vtanh.pop %v5469
    %v5473 = vtanh.pop %v5470
    %v5474 = vmul.f32 %v5471, 0.5
    %v5475 = vmul.f32 %v5472, 0.5
    %v5476 = vmul.f32 %v5473, 0.5
    %v5477 = vadd.f32 %v5474, 0.5
    %v5478 = vadd.f32 %v5475, 0.5
    %v5479 = vadd.f32 %v5476, 0.5
    %v5480 = vmul.f32 %v5462, %v5447
    %v5481 = vmul.f32 %v5463, %v5448
    %v5482 = vmul.f32 %v5464, %v5449
    %v5483 = vadd.f32 %v5444, %v5480
    %v5484 = vadd.f32 %v5445, %v5481
    %v5485 = vadd.f32 %v5446, %v5482
    %v5486 = vtanh.pop %v5483
    %v5487 = vtanh.pop %v5484
    %v5488 = vtanh.pop %v5485
    %v5489 = vsub.f32 1.0, %v5477
    %v5490 = vsub.f32 1.0, %v5478
    %v5491 = vsub.f32 1.0, %v5479
    %v5492 = vmul.f32 %v5489, %v5486
    %v5493 = vmul.f32 %v5490, %v5487
    %v5494 = vmul.f32 %v5491, %v5488
    %v5495 = vmul.f32 %v5477, %v5021
    %v5496 = vmul.f32 %v5478, %v5022
    %v5497 = vmul.f32 %v5479, %v5023
    %v5498 = vadd.f32 %v5492, %v5495
    %v5499 = vadd.f32 %v5493, %v5496
    %v5500 = vadd.f32 %v5494, %v5497
    %5501 = vst [vmem:[#allocation3 + $0x90] sm:$0xff] %v5498
    %5502 = vst [vmem:[#allocation3 + $0x98] sm:$0xff] %v5499
    %5503 = vst [vmem:[#allocation3 + $0xa0] sm:$0xff] %v5500
    %v5504 = vpack.c.bf16 %v5498, %v5498
    %v5505 = vpack.c.bf16 %v5499, %v5499
    %v5506 = vpack.c.bf16 %v5500, %v5500
    %5507 = vmatprep.subr.bf16.mxu0 %v1800
    %5508 = vmatpush1.bf16.msra.mxu0 %v1799
    %5509 = vmatprep.subr.bf16.mxu0 %v1791
    %5510 = vmatpush1.bf16.msra.mxu0 %v1790
    %5511 = vmatprep.subr.bf16.mxu0 %v1782
    %5512 = vmatpush1.bf16.msra.mxu0 %v1781
    %5513 = vmatprep.subr.bf16.mxu0 %v1773
    %5514 = vmatpush1.bf16.msra.mxu0 %v1772
    %5515 = vmatprep.subr.bf16.mxu0 %v1764
    %5516 = vmatpush1.bf16.msra.mxu0 %v1763
    %5517 = vmatprep.subr.bf16.mxu0 %v1755
    %5518 = vmatpush1.bf16.msra.mxu0 %v1754
    %5519 = vmatprep.subr.bf16.mxu0 %v1746
    %5520 = vmatpush1.bf16.msra.mxu0 %v1745
    %5521 = vmatprep.subr.bf16.mxu0 %v1737
    %5522 = vmatpush1.bf16.msra.mxu0 %v1736
    %5523 = vmatprep.subr.bf16.mxu0 %v1872
    %5524 = vmatpush2.bf16.msra.mxu0 %v1871
    %5525 = vmatprep.subr.bf16.mxu0 %v1863
    %5526 = vmatpush2.bf16.msra.mxu0 %v1862
    %5527 = vmatprep.subr.bf16.mxu0 %v1854
    %5528 = vmatpush2.bf16.msra.mxu0 %v1853
    %5529 = vmatprep.subr.bf16.mxu0 %v1845
    %5530 = vmatpush2.bf16.msra.mxu0 %v1844
    %5531 = vmatprep.subr.bf16.mxu0 %v1836
    %5532 = vmatpush2.bf16.msra.mxu0 %v1835
    %5533 = vmatprep.subr.bf16.mxu0 %v1827
    %5534 = vmatpush2.bf16.msra.mxu0 %v1826
    %5535 = vmatprep.subr.bf16.mxu0 %v1818
    %5536 = vmatpush2.bf16.msra.mxu0 %v1817
    %5537 = vmatprep.subr.bf16.mxu0 %v1809
    %5538 = vmatpush2.bf16.msra.mxu0 %v1808
    %5539 = vmatprep.mubr.bf16.mxu0 %v5505
    %5540 = vmatmul.mubr.bf16.gmra.mxu0 %v5504
    %v5541 = vpop.f32.mrf.mxu0
    %v5542 = vadd.f32 0.0, %v5541
    %v5543 = vpop.f32.mrf.mxu0
    %v5544 = vadd.f32 0.0, %v5543
    %v5545 = vpop.f32.mrf.mxu0
    %v5546 = vpop.f32.mrf.mxu0
    %5547 = vdwg.mxu0
    %5548 = vmatprep.subr.bf16.mxu0 %v1944
    %5549 = vmatpush1.bf16.msra.mxu0 %v1943
    %5550 = vmatprep.subr.bf16.mxu0 %v1935
    %5551 = vmatpush1.bf16.msra.mxu0 %v1934
    %5552 = vmatprep.subr.bf16.mxu0 %v1926
    %5553 = vmatpush1.bf16.msra.mxu0 %v1925
    %5554 = vmatprep.subr.bf16.mxu0 %v1917
    %5555 = vmatpush1.bf16.msra.mxu0 %v1916
    %5556 = vmatprep.subr.bf16.mxu0 %v1908
    %5557 = vmatpush1.bf16.msra.mxu0 %v1907
    %5558 = vmatprep.subr.bf16.mxu0 %v1899
    %5559 = vmatpush1.bf16.msra.mxu0 %v1898
    %5560 = vmatprep.subr.bf16.mxu0 %v1890
    %5561 = vmatpush1.bf16.msra.mxu0 %v1889
    %5562 = vmatprep.subr.bf16.mxu0 %v1881
    %5563 = vmatpush1.bf16.msra.mxu0 %v1880
    %5564 = vmatprep.subr.bf16.mxu0 0
    %5565 = vmatpush2.bf16.msra.mxu0 0
    %5566 = vmatprep.subr.bf16.mxu0 0
    %5567 = vmatpush2.bf16.msra.mxu0 0
    %5568 = vmatprep.subr.bf16.mxu0 0
    %5569 = vmatpush2.bf16.msra.mxu0 0
    %5570 = vmatprep.subr.bf16.mxu0 0
    %5571 = vmatpush2.bf16.msra.mxu0 0
    %5572 = vmatprep.subr.bf16.mxu0 0
    %5573 = vmatpush2.bf16.msra.mxu0 0
    %5574 = vmatprep.subr.bf16.mxu0 0
    %5575 = vmatpush2.bf16.msra.mxu0 0
    %5576 = vmatprep.subr.bf16.mxu0 0
    %5577 = vmatpush2.bf16.msra.mxu0 0
    %5578 = vmatprep.subr.bf16.mxu0 0
    %5579 = vmatpush2.bf16.msra.mxu0 0
    %5580 = vmatprep.mubr.bf16.mxu0 0
    %5581 = vmatmul.mubr.bf16.gmra.mxu0 %v5506
    %v5582 = vpop.f32.mrf.mxu0
    %v5583 = vadd.f32 %v5542, %v5582
    %v5584 = vpop.f32.mrf.mxu0
    %v5585 = vadd.f32 %v5544, %v5584
    %v5586 = vpop.f32.mrf.mxu0
    %v5587 = vpop.f32.mrf.mxu0
    %5588 = vdwg.mxu0
    %5589 = vmatprep.subr.bf16.mxu0 %v1802
    %5590 = vmatpush1.bf16.msra.mxu0 %v1801
    %5591 = vmatprep.subr.bf16.mxu0 %v1793
    %5592 = vmatpush1.bf16.msra.mxu0 %v1792
    %5593 = vmatprep.subr.bf16.mxu0 %v1784
    %5594 = vmatpush1.bf16.msra.mxu0 %v1783
    %5595 = vmatprep.subr.bf16.mxu0 %v1775
    %5596 = vmatpush1.bf16.msra.mxu0 %v1774
    %5597 = vmatprep.subr.bf16.mxu0 %v1766
    %5598 = vmatpush1.bf16.msra.mxu0 %v1765
    %5599 = vmatprep.subr.bf16.mxu0 %v1757
    %5600 = vmatpush1.bf16.msra.mxu0 %v1756
    %5601 = vmatprep.subr.bf16.mxu0 %v1748
    %5602 = vmatpush1.bf16.msra.mxu0 %v1747
    %5603 = vmatprep.subr.bf16.mxu0 %v1739
    %5604 = vmatpush1.bf16.msra.mxu0 %v1738
    %5605 = vmatprep.subr.bf16.mxu0 %v1874
    %5606 = vmatpush2.bf16.msra.mxu0 %v1873
    %5607 = vmatprep.subr.bf16.mxu0 %v1865
    %5608 = vmatpush2.bf16.msra.mxu0 %v1864
    %5609 = vmatprep.subr.bf16.mxu0 %v1856
    %5610 = vmatpush2.bf16.msra.mxu0 %v1855
    %5611 = vmatprep.subr.bf16.mxu0 %v1847
    %5612 = vmatpush2.bf16.msra.mxu0 %v1846
    %5613 = vmatprep.subr.bf16.mxu0 %v1838
    %5614 = vmatpush2.bf16.msra.mxu0 %v1837
    %5615 = vmatprep.subr.bf16.mxu0 %v1829
    %5616 = vmatpush2.bf16.msra.mxu0 %v1828
    %5617 = vmatprep.subr.bf16.mxu0 %v1820
    %5618 = vmatpush2.bf16.msra.mxu0 %v1819
    %5619 = vmatprep.subr.bf16.mxu0 %v1811
    %5620 = vmatpush2.bf16.msra.mxu0 %v1810
    %5621 = vmatprep.mubr.bf16.mxu0 %v5505
    %5622 = vmatmul.mubr.bf16.gmra.mxu0 %v5504
    %v5623 = vpop.f32.mrf.mxu0
    %v5624 = vadd.f32 0.0, %v5623
    %v5625 = vpop.f32.mrf.mxu0
    %v5626 = vadd.f32 0.0, %v5625
    %v5627 = vpop.f32.mrf.mxu0
    %v5628 = vpop.f32.mrf.mxu0
    %5629 = vdwg.mxu0
    %5630 = vmatprep.subr.bf16.mxu0 %v1946
    %5631 = vmatpush1.bf16.msra.mxu0 %v1945
    %5632 = vmatprep.subr.bf16.mxu0 %v1937
    %5633 = vmatpush1.bf16.msra.mxu0 %v1936
    %5634 = vmatprep.subr.bf16.mxu0 %v1928
    %5635 = vmatpush1.bf16.msra.mxu0 %v1927
    %5636 = vmatprep.subr.bf16.mxu0 %v1919
    %5637 = vmatpush1.bf16.msra.mxu0 %v1918
    %5638 = vmatprep.subr.bf16.mxu0 %v1910
    %5639 = vmatpush1.bf16.msra.mxu0 %v1909
    %5640 = vmatprep.subr.bf16.mxu0 %v1901
    %5641 = vmatpush1.bf16.msra.mxu0 %v1900
    %5642 = vmatprep.subr.bf16.mxu0 %v1892
    %5643 = vmatpush1.bf16.msra.mxu0 %v1891
    %5644 = vmatprep.subr.bf16.mxu0 %v1883
    %5645 = vmatpush1.bf16.msra.mxu0 %v1882
    %5646 = vmatprep.subr.bf16.mxu0 0
    %5647 = vmatpush2.bf16.msra.mxu0 0
    %5648 = vmatprep.subr.bf16.mxu0 0
    %5649 = vmatpush2.bf16.msra.mxu0 0
    %5650 = vmatprep.subr.bf16.mxu0 0
    %5651 = vmatpush2.bf16.msra.mxu0 0
    %5652 = vmatprep.subr.bf16.mxu0 0
    %5653 = vmatpush2.bf16.msra.mxu0 0
    %5654 = vmatprep.subr.bf16.mxu0 0
    %5655 = vmatpush2.bf16.msra.mxu0 0
    %5656 = vmatprep.subr.bf16.mxu0 0
    %5657 = vmatpush2.bf16.msra.mxu0 0
    %5658 = vmatprep.subr.bf16.mxu0 0
    %5659 = vmatpush2.bf16.msra.mxu0 0
    %5660 = vmatprep.subr.bf16.mxu0 0
    %5661 = vmatpush2.bf16.msra.mxu0 0
    %5662 = vmatprep.mubr.bf16.mxu0 0
    %5663 = vmatmul.mubr.bf16.gmra.mxu0 %v5506
    %v5664 = vpop.f32.mrf.mxu0
    %v5665 = vadd.f32 %v5624, %v5664
    %v5666 = vpop.f32.mrf.mxu0
    %v5667 = vadd.f32 %v5626, %v5666
    %v5668 = vpop.f32.mrf.mxu0
    %v5669 = vpop.f32.mrf.mxu0
    %5670 = vdwg.mxu0
    %5671 = vmatprep.subr.bf16.mxu0 %v1804
    %5672 = vmatpush1.bf16.msra.mxu0 %v1803
    %5673 = vmatprep.subr.bf16.mxu0 %v1795
    %5674 = vmatpush1.bf16.msra.mxu0 %v1794
    %5675 = vmatprep.subr.bf16.mxu0 %v1786
    %5676 = vmatpush1.bf16.msra.mxu0 %v1785
    %5677 = vmatprep.subr.bf16.mxu0 %v1777
    %5678 = vmatpush1.bf16.msra.mxu0 %v1776
    %5679 = vmatprep.subr.bf16.mxu0 %v1768
    %5680 = vmatpush1.bf16.msra.mxu0 %v1767
    %5681 = vmatprep.subr.bf16.mxu0 %v1759
    %5682 = vmatpush1.bf16.msra.mxu0 %v1758
    %5683 = vmatprep.subr.bf16.mxu0 %v1750
    %5684 = vmatpush1.bf16.msra.mxu0 %v1749
    %5685 = vmatprep.subr.bf16.mxu0 %v1741
    %5686 = vmatpush1.bf16.msra.mxu0 %v1740
    %5687 = vmatprep.subr.bf16.mxu0 %v1876
    %5688 = vmatpush2.bf16.msra.mxu0 %v1875
    %5689 = vmatprep.subr.bf16.mxu0 %v1867
    %5690 = vmatpush2.bf16.msra.mxu0 %v1866
    %5691 = vmatprep.subr.bf16.mxu0 %v1858
    %5692 = vmatpush2.bf16.msra.mxu0 %v1857
    %5693 = vmatprep.subr.bf16.mxu0 %v1849
    %5694 = vmatpush2.bf16.msra.mxu0 %v1848
    %5695 = vmatprep.subr.bf16.mxu0 %v1840
    %5696 = vmatpush2.bf16.msra.mxu0 %v1839
    %5697 = vmatprep.subr.bf16.mxu0 %v1831
    %5698 = vmatpush2.bf16.msra.mxu0 %v1830
    %5699 = vmatprep.subr.bf16.mxu0 %v1822
    %5700 = vmatpush2.bf16.msra.mxu0 %v1821
    %5701 = vmatprep.subr.bf16.mxu0 %v1813
    %5702 = vmatpush2.bf16.msra.mxu0 %v1812
    %5703 = vmatprep.mubr.bf16.mxu0 %v5505
    %5704 = vmatmul.mubr.bf16.gmra.mxu0 %v5504
    %v5705 = vpop.f32.mrf.mxu0
    %v5706 = vadd.f32 0.0, %v5705
    %v5707 = vpop.f32.mrf.mxu0
    %v5708 = vadd.f32 0.0, %v5707
    %v5709 = vpop.f32.mrf.mxu0
    %v5710 = vpop.f32.mrf.mxu0
    %5711 = vdwg.mxu0
    %5712 = vmatprep.subr.bf16.mxu0 %v1948
    %5713 = vmatpush1.bf16.msra.mxu0 %v1947
    %5714 = vmatprep.subr.bf16.mxu0 %v1939
    %5715 = vmatpush1.bf16.msra.mxu0 %v1938
    %5716 = vmatprep.subr.bf16.mxu0 %v1930
    %5717 = vmatpush1.bf16.msra.mxu0 %v1929
    %5718 = vmatprep.subr.bf16.mxu0 %v1921
    %5719 = vmatpush1.bf16.msra.mxu0 %v1920
    %5720 = vmatprep.subr.bf16.mxu0 %v1912
    %5721 = vmatpush1.bf16.msra.mxu0 %v1911
    %5722 = vmatprep.subr.bf16.mxu0 %v1903
    %5723 = vmatpush1.bf16.msra.mxu0 %v1902
    %5724 = vmatprep.subr.bf16.mxu0 %v1894
    %5725 = vmatpush1.bf16.msra.mxu0 %v1893
    %5726 = vmatprep.subr.bf16.mxu0 %v1885
    %5727 = vmatpush1.bf16.msra.mxu0 %v1884
    %5728 = vmatprep.subr.bf16.mxu0 0
    %5729 = vmatpush2.bf16.msra.mxu0 0
    %5730 = vmatprep.subr.bf16.mxu0 0
    %5731 = vmatpush2.bf16.msra.mxu0 0
    %5732 = vmatprep.subr.bf16.mxu0 0
    %5733 = vmatpush2.bf16.msra.mxu0 0
    %5734 = vmatprep.subr.bf16.mxu0 0
    %5735 = vmatpush2.bf16.msra.mxu0 0
    %5736 = vmatprep.subr.bf16.mxu0 0
    %5737 = vmatpush2.bf16.msra.mxu0 0
    %5738 = vmatprep.subr.bf16.mxu0 0
    %5739 = vmatpush2.bf16.msra.mxu0 0
    %5740 = vmatprep.subr.bf16.mxu0 0
    %5741 = vmatpush2.bf16.msra.mxu0 0
    %5742 = vmatprep.subr.bf16.mxu0 0
    %5743 = vmatpush2.bf16.msra.mxu0 0
    %5744 = vmatprep.mubr.bf16.mxu0 0
    %5745 = vmatmul.mubr.bf16.gmra.mxu0 %v5506
    %v5746 = vpop.f32.mrf.mxu0
    %v5747 = vadd.f32 %v5706, %v5746
    %v5748 = vpop.f32.mrf.mxu0
    %v5749 = vadd.f32 %v5708, %v5748
    %v5750 = vpop.f32.mrf.mxu0
    %v5751 = vpop.f32.mrf.mxu0
    %5752 = vdwg.mxu0
    %5753 = vmatprep.subr.bf16.mxu0 %v1806
    %5754 = vmatpush1.bf16.msra.mxu0 %v1805
    %5755 = vmatprep.subr.bf16.mxu0 %v1797
    %5756 = vmatpush1.bf16.msra.mxu0 %v1796
    %5757 = vmatprep.subr.bf16.mxu0 %v1788
    %5758 = vmatpush1.bf16.msra.mxu0 %v1787
    %5759 = vmatprep.subr.bf16.mxu0 %v1779
    %5760 = vmatpush1.bf16.msra.mxu0 %v1778
    %5761 = vmatprep.subr.bf16.mxu0 %v1770
    %5762 = vmatpush1.bf16.msra.mxu0 %v1769
    %5763 = vmatprep.subr.bf16.mxu0 %v1761
    %5764 = vmatpush1.bf16.msra.mxu0 %v1760
    %5765 = vmatprep.subr.bf16.mxu0 %v1752
    %5766 = vmatpush1.bf16.msra.mxu0 %v1751
    %5767 = vmatprep.subr.bf16.mxu0 %v1743
    %5768 = vmatpush1.bf16.msra.mxu0 %v1742
    %5769 = vmatprep.subr.bf16.mxu0 %v1878
    %5770 = vmatpush2.bf16.msra.mxu0 %v1877
    %5771 = vmatprep.subr.bf16.mxu0 %v1869
    %5772 = vmatpush2.bf16.msra.mxu0 %v1868
    %5773 = vmatprep.subr.bf16.mxu0 %v1860
    %5774 = vmatpush2.bf16.msra.mxu0 %v1859
    %5775 = vmatprep.subr.bf16.mxu0 %v1851
    %5776 = vmatpush2.bf16.msra.mxu0 %v1850
    %5777 = vmatprep.subr.bf16.mxu0 %v1842
    %5778 = vmatpush2.bf16.msra.mxu0 %v1841
    %5779 = vmatprep.subr.bf16.mxu0 %v1833
    %5780 = vmatpush2.bf16.msra.mxu0 %v1832
    %5781 = vmatprep.subr.bf16.mxu0 %v1824
    %5782 = vmatpush2.bf16.msra.mxu0 %v1823
    %5783 = vmatprep.subr.bf16.mxu0 %v1815
    %5784 = vmatpush2.bf16.msra.mxu0 %v1814
    %5785 = vmatprep.mubr.bf16.mxu0 %v5505
    %5786 = vmatmul.mubr.bf16.gmra.mxu0 %v5504
    %v5787 = vpop.f32.mrf.mxu0
    %v5788 = vadd.f32 0.0, %v5787
    %v5789 = vpop.f32.mrf.mxu0
    %v5790 = vadd.f32 0.0, %v5789
    %v5791 = vpop.f32.mrf.mxu0
    %v5792 = vpop.f32.mrf.mxu0
    %5793 = vdwg.mxu0
    %5794 = vmatprep.subr.bf16.mxu0 %v1950
    %5795 = vmatpush1.bf16.msra.mxu0 %v1949
    %5796 = vmatprep.subr.bf16.mxu0 %v1941
    %5797 = vmatpush1.bf16.msra.mxu0 %v1940
    %5798 = vmatprep.subr.bf16.mxu0 %v1932
    %5799 = vmatpush1.bf16.msra.mxu0 %v1931
    %5800 = vmatprep.subr.bf16.mxu0 %v1923
    %5801 = vmatpush1.bf16.msra.mxu0 %v1922
    %5802 = vmatprep.subr.bf16.mxu0 %v1914
    %5803 = vmatpush1.bf16.msra.mxu0 %v1913
    %5804 = vmatprep.subr.bf16.mxu0 %v1905
    %5805 = vmatpush1.bf16.msra.mxu0 %v1904
    %5806 = vmatprep.subr.bf16.mxu0 %v1896
    %5807 = vmatpush1.bf16.msra.mxu0 %v1895
    %5808 = vmatprep.subr.bf16.mxu0 %v1887
    %5809 = vmatpush1.bf16.msra.mxu0 %v1886
    %5810 = vmatprep.subr.bf16.mxu0 0
    %5811 = vmatpush2.bf16.msra.mxu0 0
    %5812 = vmatprep.subr.bf16.mxu0 0
    %5813 = vmatpush2.bf16.msra.mxu0 0
    %5814 = vmatprep.subr.bf16.mxu0 0
    %5815 = vmatpush2.bf16.msra.mxu0 0
    %5816 = vmatprep.subr.bf16.mxu0 0
    %5817 = vmatpush2.bf16.msra.mxu0 0
    %5818 = vmatprep.subr.bf16.mxu0 0
    %5819 = vmatpush2.bf16.msra.mxu0 0
    %5820 = vmatprep.subr.bf16.mxu0 0
    %5821 = vmatpush2.bf16.msra.mxu0 0
    %5822 = vmatprep.subr.bf16.mxu0 0
    %5823 = vmatpush2.bf16.msra.mxu0 0
    %5824 = vmatprep.subr.bf16.mxu0 0
    %5825 = vmatpush2.bf16.msra.mxu0 0
    %5826 = vmatprep.mubr.bf16.mxu0 0
    %5827 = vmatmul.mubr.bf16.gmra.mxu0 %v5506
    %v5828 = vpop.f32.mrf.mxu0
    %v5829 = vadd.f32 %v5788, %v5828
    %v5830 = vpop.f32.mrf.mxu0
    %v5831 = vadd.f32 %v5790, %v5830
    %v5832 = vpop.f32.mrf.mxu0
    %v5833 = vpop.f32.mrf.mxu0
    %5834 = vdwg.mxu0
    %5835 = vmatprep.subr.bf16.mxu0 0
    %5836 = vmatpush1.bf16.msra.mxu0 %v1807
    %5837 = vmatprep.subr.bf16.mxu0 0
    %5838 = vmatpush1.bf16.msra.mxu0 %v1798
    %5839 = vmatprep.subr.bf16.mxu0 0
    %5840 = vmatpush1.bf16.msra.mxu0 %v1789
    %5841 = vmatprep.subr.bf16.mxu0 0
    %5842 = vmatpush1.bf16.msra.mxu0 %v1780
    %5843 = vmatprep.subr.bf16.mxu0 0
    %5844 = vmatpush1.bf16.msra.mxu0 %v1771
    %5845 = vmatprep.subr.bf16.mxu0 0
    %5846 = vmatpush1.bf16.msra.mxu0 %v1762
    %5847 = vmatprep.subr.bf16.mxu0 0
    %5848 = vmatpush1.bf16.msra.mxu0 %v1753
    %5849 = vmatprep.subr.bf16.mxu0 0
    %5850 = vmatpush1.bf16.msra.mxu0 %v1744
    %5851 = vmatprep.subr.bf16.mxu0 0
    %5852 = vmatpush2.bf16.msra.mxu0 %v1879
    %5853 = vmatprep.subr.bf16.mxu0 0
    %5854 = vmatpush2.bf16.msra.mxu0 %v1870
    %5855 = vmatprep.subr.bf16.mxu0 0
    %5856 = vmatpush2.bf16.msra.mxu0 %v1861
    %5857 = vmatprep.subr.bf16.mxu0 0
    %5858 = vmatpush2.bf16.msra.mxu0 %v1852
    %5859 = vmatprep.subr.bf16.mxu0 0
    %5860 = vmatpush2.bf16.msra.mxu0 %v1843
    %5861 = vmatprep.subr.bf16.mxu0 0
    %5862 = vmatpush2.bf16.msra.mxu0 %v1834
    %5863 = vmatprep.subr.bf16.mxu0 0
    %5864 = vmatpush2.bf16.msra.mxu0 %v1825
    %5865 = vmatprep.subr.bf16.mxu0 0
    %5866 = vmatpush2.bf16.msra.mxu0 %v1816
    %5867 = vmatprep.mubr.bf16.mxu0 %v5505
    %5868 = vmatmul.mubr.bf16.gmra.mxu0 %v5504
    %v5869 = vpop.f32.mrf.mxu0
    %v5870 = vadd.f32 0.0, %v5869
    %v5871 = vpop.f32.mrf.mxu0
    %v5872 = vpop.f32.mrf.mxu0
    %v5873 = vpop.f32.mrf.mxu0
    %5874 = vdwg.mxu0
    %5875 = vmatprep.subr.bf16.mxu0 0
    %5876 = vmatpush1.bf16.msra.mxu0 %v1951
    %5877 = vmatprep.subr.bf16.mxu0 0
    %5878 = vmatpush1.bf16.msra.mxu0 %v1942
    %5879 = vmatprep.subr.bf16.mxu0 0
    %5880 = vmatpush1.bf16.msra.mxu0 %v1933
    %5881 = vmatprep.subr.bf16.mxu0 0
    %5882 = vmatpush1.bf16.msra.mxu0 %v1924
    %5883 = vmatprep.subr.bf16.mxu0 0
    %5884 = vmatpush1.bf16.msra.mxu0 %v1915
    %5885 = vmatprep.subr.bf16.mxu0 0
    %5886 = vmatpush1.bf16.msra.mxu0 %v1906
    %5887 = vmatprep.subr.bf16.mxu0 0
    %5888 = vmatpush1.bf16.msra.mxu0 %v1897
    %5889 = vmatprep.subr.bf16.mxu0 0
    %5890 = vmatpush1.bf16.msra.mxu0 %v1888
    %5891 = vmatprep.subr.bf16.mxu0 0
    %5892 = vmatpush2.bf16.msra.mxu0 0
    %5893 = vmatprep.subr.bf16.mxu0 0
    %5894 = vmatpush2.bf16.msra.mxu0 0
    %5895 = vmatprep.subr.bf16.mxu0 0
    %5896 = vmatpush2.bf16.msra.mxu0 0
    %5897 = vmatprep.subr.bf16.mxu0 0
    %5898 = vmatpush2.bf16.msra.mxu0 0
    %5899 = vmatprep.subr.bf16.mxu0 0
    %5900 = vmatpush2.bf16.msra.mxu0 0
    %5901 = vmatprep.subr.bf16.mxu0 0
    %5902 = vmatpush2.bf16.msra.mxu0 0
    %5903 = vmatprep.subr.bf16.mxu0 0
    %5904 = vmatpush2.bf16.msra.mxu0 0
    %5905 = vmatprep.subr.bf16.mxu0 0
    %5906 = vmatpush2.bf16.msra.mxu0 0
    %5907 = vmatprep.mubr.bf16.mxu0 0
    %5908 = vmatmul.mubr.bf16.gmra.mxu0 %v5506
    %v5909 = vpop.f32.mrf.mxu0
    %v5910 = vadd.f32 %v5870, %v5909
    %v5911 = vpop.f32.mrf.mxu0
    %v5912 = vpop.f32.mrf.mxu0
    %v5913 = vpop.f32.mrf.mxu0
    %5914 = vdwg.mxu0
    %v5915 = vld [vmem:[#allocation2 + $0x1f8] sm:$0xff]
    %v5916 = vld [vmem:[#allocation2 + $0x200] sm:$0xff]
    %v5917 = vld [vmem:[#allocation2 + $0x208] sm:$0xff]
    %v5918 = vld [vmem:[#allocation2 + $0x210] sm:$0xff]
    %v5919 = vld [vmem:[#allocation2 + $0x218] sm:$0xff]
    %v5920 = vld [vmem:[#allocation2 + $0x220] sm:$0xff]
    %v5921 = vld [vmem:[#allocation2 + $0x228] sm:$0xff]
    %v5922 = vld [vmem:[#allocation2 + $0x230] sm:$0xff]
    %v5923 = vld [vmem:[#allocation2 + $0x238] sm:$0xff]
    %v5924 = vadd.f32 %v5829, %v1046
    %v5925 = vadd.f32 %v5831, %v1050
    %v5926 = vadd.f32 %v5910, %v1054
    %v5927 = vadd.f32 %v5915, %v5583
    %v5928 = vadd.f32 %v5916, %v5585
    %v5929 = vadd.f32 %v5917, %v5665
    %v5930 = vmul.f32 %v5927, 0.5
    %v5931 = vmul.f32 %v5928, 0.5
    %v5932 = vmul.f32 %v5929, 0.5
    %v5933 = vtanh.pop %v5930
    %v5934 = vtanh.pop %v5931
    %v5935 = vtanh.pop %v5932
    %v5936 = vmul.f32 %v5933, 0.5
    %v5937 = vmul.f32 %v5934, 0.5
    %v5938 = vmul.f32 %v5935, 0.5
    %v5939 = vadd.f32 %v5936, 0.5
    %v5940 = vadd.f32 %v5937, 0.5
    %v5941 = vadd.f32 %v5938, 0.5
    %v5942 = vadd.f32 %v5918, %v5667
    %v5943 = vadd.f32 %v5919, %v5747
    %v5944 = vadd.f32 %v5920, %v5749
    %v5945 = vmul.f32 %v5942, 0.5
    %v5946 = vmul.f32 %v5943, 0.5
    %v5947 = vmul.f32 %v5944, 0.5
    %v5948 = vtanh.pop %v5945
    %v5949 = vtanh.pop %v5946
    %v5950 = vtanh.pop %v5947
    %v5951 = vmul.f32 %v5948, 0.5
    %v5952 = vmul.f32 %v5949, 0.5
    %v5953 = vmul.f32 %v5950, 0.5
    %v5954 = vadd.f32 %v5951, 0.5
    %v5955 = vadd.f32 %v5952, 0.5
    %v5956 = vadd.f32 %v5953, 0.5
    %v5957 = vmul.f32 %v5939, %v5924
    %v5958 = vmul.f32 %v5940, %v5925
    %v5959 = vmul.f32 %v5941, %v5926
    %v5960 = vadd.f32 %v5921, %v5957
    %v5961 = vadd.f32 %v5922, %v5958
    %v5962 = vadd.f32 %v5923, %v5959
    %v5963 = vtanh.pop %v5960
    %v5964 = vtanh.pop %v5961
    %v5965 = vtanh.pop %v5962
    %v5966 = vsub.f32 1.0, %v5954
    %v5967 = vsub.f32 1.0, %v5955
    %v5968 = vsub.f32 1.0, %v5956
    %v5969 = vmul.f32 %v5966, %v5963
    %v5970 = vmul.f32 %v5967, %v5964
    %v5971 = vmul.f32 %v5968, %v5965
    %v5972 = vmul.f32 %v5954, %v5498
    %v5973 = vmul.f32 %v5955, %v5499
    %v5974 = vmul.f32 %v5956, %v5500
    %v5975 = vadd.f32 %v5969, %v5972
    %v5976 = vadd.f32 %v5970, %v5973
    %v5977 = vadd.f32 %v5971, %v5974
    %5978 = vst [vmem:[#allocation3 + $0xa8] sm:$0xff] %v5975
    %5979 = vst [vmem:[#allocation3 + $0xb0] sm:$0xff] %v5976
    %5980 = vst [vmem:[#allocation3 + $0xb8] sm:$0xff] %v5977
    %v5981 = vld [vmem:[#allocation3] sm:$0xff]
    %v5982 = vld [vmem:[#allocation3 + $0x8] sm:$0xff]
    %v5983 = vld [vmem:[#allocation3 + $0x10] sm:$0xff]
    %v5984 = vld [vmem:[#allocation3 + $0x18] sm:$0xff]
    %v5985 = vld [vmem:[#allocation3 + $0x20] sm:$0xff]
    %v5986 = vld [vmem:[#allocation3 + $0x28] sm:$0xff]
    %v5987 = vld [vmem:[#allocation3 + $0x30] sm:$0xff]
    %v5988 = vld [vmem:[#allocation3 + $0x38] sm:$0xff]
    %v5989 = vld [vmem:[#allocation3 + $0x40] sm:$0xff]
    %v5990 = vld [vmem:[#allocation3 + $0x48] sm:$0xff]
    %v5991 = vld [vmem:[#allocation3 + $0x50] sm:$0xff]
    %v5992 = vld [vmem:[#allocation3 + $0x58] sm:$0xff]
    %v5993 = vld [vmem:[#allocation3 + $0x60] sm:$0xff]
    %v5994 = vld [vmem:[#allocation3 + $0x68] sm:$0xff]
    %v5995 = vld [vmem:[#allocation3 + $0x70] sm:$0xff]
    %v5996 = vld [vmem:[#allocation3 + $0x78] sm:$0xff]
    %v5997 = vld [vmem:[#allocation3 + $0x80] sm:$0xff]
    %v5998 = vld [vmem:[#allocation3 + $0x88] sm:$0xff]
    %v5999 = vld [vmem:[#allocation3 + $0x90] sm:$0xff]
    %v6000 = vld [vmem:[#allocation3 + $0x98] sm:$0xff]
    %v6001 = vld [vmem:[#allocation3 + $0xa0] sm:$0xff]
    %v6002 = vld [vmem:[#allocation3 + $0xa8] sm:$0xff]
    %v6003 = vld [vmem:[#allocation3 + $0xb0] sm:$0xff]
    %v6004 = vld [vmem:[#allocation3 + $0xb8] sm:$0xff]
    %v6005 = vpack.c.bf16 %v5984, %v5981
    %v6006 = vpack.c.bf16 %v5985, %v5982
    %v6007 = vpack.c.bf16 %v5986, %v5983
    %v6008 = vpack.c.bf16 %v5990, %v5987
    %v6009 = vpack.c.bf16 %v5991, %v5988
    %v6010 = vpack.c.bf16 %v5992, %v5989
    %v6011 = vpack.c.bf16 %v5996, %v5993
    %v6012 = vpack.c.bf16 %v5997, %v5994
    %v6013 = vpack.c.bf16 %v5998, %v5995
    %v6014 = vpack.c.bf16 %v6002, %v5999
    %v6015 = vpack.c.bf16 %v6003, %v6000
    %v6016 = vpack.c.bf16 %v6004, %v6001
    %v6017 = vld [vmem:[%s6] sm:$0xf]
    %v6018 = vld [vmem:[%s6 + $0x4] sm:$0xf]
    %v6019 = vld [vmem:[%s6 + $0x8] sm:$0xf]
    %v6020 = vld [vmem:[%s6 + $0xc] sm:$0xf]
    %v6021 = vld [vmem:[%s6 + $0x10] sm:$0xf]
    %v6022 = vld [vmem:[%s6 + $0x14] sm:$0xf]
    %v6023 = vld [vmem:[%s6 + $0x18] sm:$0xf]
    %v6024 = vld [vmem:[%s6 + $0x1c] sm:$0xf]
    %v6025 = vld [vmem:[%s6 + $0x20] sm:$0xf]
    %v6026 = vld [vmem:[%s6 + $0x24] sm:$0xf]
    %v6027 = vld [vmem:[%s6 + $0x28] sm:$0xf]
    %v6028 = vld [vmem:[%s6 + $0x2c] sm:$0xf]
    %v6029 = vld [vmem:[%s6 + $0x30] sm:$0xf]
    %v6030 = vld [vmem:[%s6 + $0x34] sm:$0xf]
    %v6031 = vld [vmem:[%s6 + $0x38] sm:$0xf]
    %v6032 = vld [vmem:[%s6 + $0x3c] sm:$0xf]
    %v6033 = vld [vmem:[%s6 + $0x40] sm:$0xf]
    %v6034 = vld [vmem:[%s6 + $0x44] sm:$0xf]
    %v6035 = vld [vmem:[%s6 + $0x48] sm:$0xf]
    %v6036 = vld [vmem:[%s6 + $0x4c] sm:$0xf]
    %v6037 = vld [vmem:[%s6 + $0x50] sm:$0xf]
    %v6038 = vld [vmem:[%s6 + $0x54] sm:$0xf]
    %v6039 = vld [vmem:[%s6 + $0x58] sm:$0xf]
    %v6040 = vld [vmem:[%s6 + $0x5c] sm:$0xf]
    %v6041 = vld [vmem:[%s6 + $0x60] sm:$0xf]
    %v6042 = vld [vmem:[%s6 + $0x64] sm:$0xf]
    %v6043 = vld [vmem:[%s6 + $0x68] sm:$0xf]
    %v6044 = vld [vmem:[%s6 + $0x6c] sm:$0xf]
    %v6045 = vld [vmem:[%s6 + $0x70] sm:$0xf]
    %v6046 = vld [vmem:[%s6 + $0x74] sm:$0xf]
    %v6047 = vld [vmem:[%s6 + $0x78] sm:$0xf]
    %v6048 = vld [vmem:[%s6 + $0x7c] sm:$0xf]
    %v6049 = vld [vmem:[%s6 + $0x80] sm:$0xf]
    %v6050 = vld [vmem:[%s6 + $0x84] sm:$0xf]
    %v6051 = vld [vmem:[%s6 + $0x88] sm:$0xf]
    %v6052 = vld [vmem:[%s6 + $0x8c] sm:$0xf]
    %v6053 = vld [vmem:[%s6 + $0x90] sm:$0xf]
    %v6054 = vld [vmem:[%s6 + $0x94] sm:$0xf]
    %v6055 = vld [vmem:[%s6 + $0x98] sm:$0xf]
    %v6056 = vld [vmem:[%s6 + $0x9c] sm:$0xf]
    %v6057 = vld [vmem:[%s6 + $0xa0] sm:$0xf]
    %v6058 = vld [vmem:[%s6 + $0xa4] sm:$0xf]
    %v6059 = vld [vmem:[%s6 + $0xa8] sm:$0xf]
    %v6060 = vld [vmem:[%s6 + $0xac] sm:$0xf]
    %v6061 = vld [vmem:[%s6 + $0xb0] sm:$0xf]
    %v6062 = vld [vmem:[%s6 + $0xb4] sm:$0xf]
    %v6063 = vld [vmem:[%s6 + $0xb8] sm:$0xf]
    %v6064 = vld [vmem:[%s6 + $0xbc] sm:$0xf]
    %v6065 = vld [vmem:[%s7] sm:$0x1]
    %v6067 = vlaneseq
    %v6068 = vshrl.u32 %v6067, 7
    %v6069 = vsub.s32 0, %v6068
    %v6070 = vrot.slane %v6065, %v6069
    %v6120 = vunpack.c.l.b16 %v6017
    %v6121 = vunpack.c.l.b16 %v6018
    %v6122 = vunpack.c.l.b16 %v6019
    %v6123 = vunpack.c.l.b16 %v6020
    %v6124 = vunpack.c.l.b16 %v6021
    %v6125 = vunpack.c.l.b16 %v6022
    %v6126 = vunpack.c.l.b16 %v6023
    %v6127 = vunpack.c.l.b16 %v6024
    %v6128 = vunpack.c.l.b16 %v6025
    %v6129 = vunpack.c.l.b16 %v6026
    %v6130 = vunpack.c.l.b16 %v6027
    %v6131 = vunpack.c.l.b16 %v6028
    %v6132 = vunpack.c.l.b16 %v6029
    %v6133 = vunpack.c.l.b16 %v6030
    %v6134 = vunpack.c.l.b16 %v6031
    %v6135 = vunpack.c.l.b16 %v6032
    %v6136 = vunpack.c.l.b16 %v6033
    %v6137 = vunpack.c.l.b16 %v6034
    %v6138 = vunpack.c.l.b16 %v6035
    %v6139 = vunpack.c.l.b16 %v6036
    %v6140 = vunpack.c.l.b16 %v6037
    %v6141 = vunpack.c.l.b16 %v6038
    %v6142 = vunpack.c.l.b16 %v6039
    %v6143 = vunpack.c.l.b16 %v6040
    %v6144 = vunpack.c.l.b16 %v6041
    %v6145 = vunpack.c.l.b16 %v6042
    %v6146 = vunpack.c.l.b16 %v6043
    %v6147 = vunpack.c.l.b16 %v6044
    %v6148 = vunpack.c.l.b16 %v6045
    %v6149 = vunpack.c.l.b16 %v6046
    %v6150 = vunpack.c.l.b16 %v6047
    %v6151 = vunpack.c.l.b16 %v6048
    %v6152 = vunpack.c.l.b16 %v6049
    %v6153 = vunpack.c.l.b16 %v6050
    %v6154 = vunpack.c.l.b16 %v6051
    %v6155 = vunpack.c.l.b16 %v6052
    %v6156 = vunpack.c.l.b16 %v6053
    %v6157 = vunpack.c.l.b16 %v6054
    %v6158 = vunpack.c.l.b16 %v6055
    %v6159 = vunpack.c.l.b16 %v6056
    %v6160 = vunpack.c.l.b16 %v6057
    %v6161 = vunpack.c.l.b16 %v6058
    %v6162 = vunpack.c.l.b16 %v6059
    %v6163 = vunpack.c.l.b16 %v6060
    %v6164 = vunpack.c.l.b16 %v6061
    %v6165 = vunpack.c.l.b16 %v6062
    %v6166 = vunpack.c.l.b16 %v6063
    %v6167 = vunpack.c.l.b16 %v6064
    %v6168 = vpack.c.b16 %v6121, %v6120
    %v6169 = vpack.c.b16 %v6123, %v6122
    %v6170 = vpack.c.b16 %v6125, %v6124
    %v6171 = vpack.c.b16 %v6127, %v6126
    %v6172 = vpack.c.b16 %v6129, %v6128
    %v6173 = vpack.c.b16 %v6131, %v6130
    %v6174 = vpack.c.b16 %v6133, %v6132
    %v6175 = vpack.c.b16 %v6135, %v6134
    %v6176 = vpack.c.b16 %v6137, %v6136
    %v6177 = vpack.c.b16 %v6139, %v6138
    %v6178 = vpack.c.b16 %v6141, %v6140
    %v6179 = vpack.c.b16 %v6143, %v6142
    %v6180 = vpack.c.b16 %v6145, %v6144
    %v6181 = vpack.c.b16 %v6147, %v6146
    %v6182 = vpack.c.b16 %v6149, %v6148
    %v6183 = vpack.c.b16 %v6151, %v6150
    %v6184 = vpack.c.b16 %v6153, %v6152
    %v6185 = vpack.c.b16 %v6155, %v6154
    %v6186 = vpack.c.b16 %v6157, %v6156
    %v6187 = vpack.c.b16 %v6159, %v6158
    %v6188 = vpack.c.b16 %v6161, %v6160
    %v6189 = vpack.c.b16 %v6163, %v6162
    %v6190 = vpack.c.b16 %v6165, %v6164
    %v6191 = vpack.c.b16 %v6167, %v6166
    %6216 = vmatprep.subr.bf16.mxu0 0
    %6217 = vmatpush1.bf16.msra.mxu0 %v6175
    %6218 = vmatprep.subr.bf16.mxu0 0
    %6219 = vmatpush1.bf16.msra.mxu0 %v6174
    %6220 = vmatprep.subr.bf16.mxu0 0
    %6221 = vmatpush1.bf16.msra.mxu0 %v6173
    %6222 = vmatprep.subr.bf16.mxu0 0
    %6223 = vmatpush1.bf16.msra.mxu0 %v6172
    %6224 = vmatprep.subr.bf16.mxu0 0
    %6225 = vmatpush1.bf16.msra.mxu0 %v6171
    %6226 = vmatprep.subr.bf16.mxu0 0
    %6227 = vmatpush1.bf16.msra.mxu0 %v6170
    %6228 = vmatprep.subr.bf16.mxu0 0
    %6229 = vmatpush1.bf16.msra.mxu0 %v6169
    %6230 = vmatprep.subr.bf16.mxu0 0
    %6231 = vmatpush1.bf16.msra.mxu0 %v6168
    %6232 = vmatprep.subr.bf16.mxu0 0
    %6233 = vmatpush2.bf16.msra.mxu0 %v6183
    %6234 = vmatprep.subr.bf16.mxu0 0
    %6235 = vmatpush2.bf16.msra.mxu0 %v6182
    %6236 = vmatprep.subr.bf16.mxu0 0
    %6237 = vmatpush2.bf16.msra.mxu0 %v6181
    %6238 = vmatprep.subr.bf16.mxu0 0
    %6239 = vmatpush2.bf16.msra.mxu0 %v6180
    %6240 = vmatprep.subr.bf16.mxu0 0
    %6241 = vmatpush2.bf16.msra.mxu0 %v6179
    %6242 = vmatprep.subr.bf16.mxu0 0
    %6243 = vmatpush2.bf16.msra.mxu0 %v6178
    %6244 = vmatprep.subr.bf16.mxu0 0
    %6245 = vmatpush2.bf16.msra.mxu0 %v6177
    %6246 = vmatprep.subr.bf16.mxu0 0
    %6247 = vmatpush2.bf16.msra.mxu0 %v6176
    %6248 = vmatprep.mubr.bf16.mxu0 %v6006
    %6249 = vmatmul.mubr.bf16.gmra.mxu0 %v6005
    %v6250 = vpop.f32.mrf.mxu0
    %v6251 = vadd.f32 %v6070, %v6250
    %v6252 = vpop.f32.mrf.mxu0
    %v6253 = vpop.f32.mrf.mxu0
    %v6254 = vadd.f32 %v6070, %v6253
    %v6255 = vpop.f32.mrf.mxu0
    %6256 = vmatprep.mubr.bf16.mxu0 %v6009
    %6257 = vmatmul.mubr.bf16.gmra.mxu0 %v6008
    %v6258 = vpop.f32.mrf.mxu0
    %v6259 = vadd.f32 %v6070, %v6258
    %v6260 = vpop.f32.mrf.mxu0
    %v6261 = vpop.f32.mrf.mxu0
    %v6262 = vadd.f32 %v6070, %v6261
    %v6263 = vpop.f32.mrf.mxu0
    %6264 = vmatprep.mubr.bf16.mxu0 %v6012
    %6265 = vmatmul.mubr.bf16.gmra.mxu0 %v6011
    %v6266 = vpop.f32.mrf.mxu0
    %v6267 = vadd.f32 %v6070, %v6266
    %v6268 = vpop.f32.mrf.mxu0
    %v6269 = vpop.f32.mrf.mxu0
    %v6270 = vadd.f32 %v6070, %v6269
    %v6271 = vpop.f32.mrf.mxu0
    %6272 = vmatprep.mubr.bf16.mxu0 %v6015
    %6273 = vmatmul.mubr.bf16.gmra.mxu0 %v6014
    %v6274 = vpop.f32.mrf.mxu0
    %v6275 = vadd.f32 %v6070, %v6274
    %v6276 = vpop.f32.mrf.mxu0
    %v6277 = vpop.f32.mrf.mxu0
    %v6278 = vadd.f32 %v6070, %v6277
    %v6279 = vpop.f32.mrf.mxu0
    %6280 = vdwg.mxu0
    %6281 = vmatprep.subr.bf16.mxu0 0
    %6282 = vmatpush1.bf16.msra.mxu0 %v6191
    %6283 = vmatprep.subr.bf16.mxu0 0
    %6284 = vmatpush1.bf16.msra.mxu0 %v6190
    %6285 = vmatprep.subr.bf16.mxu0 0
    %6286 = vmatpush1.bf16.msra.mxu0 %v6189
    %6287 = vmatprep.subr.bf16.mxu0 0
    %6288 = vmatpush1.bf16.msra.mxu0 %v6188
    %6289 = vmatprep.subr.bf16.mxu0 0
    %6290 = vmatpush1.bf16.msra.mxu0 %v6187
    %6291 = vmatprep.subr.bf16.mxu0 0
    %6292 = vmatpush1.bf16.msra.mxu0 %v6186
    %6293 = vmatprep.subr.bf16.mxu0 0
    %6294 = vmatpush1.bf16.msra.mxu0 %v6185
    %6295 = vmatprep.subr.bf16.mxu0 0
    %6296 = vmatpush1.bf16.msra.mxu0 %v6184
    %6297 = vmatprep.subr.bf16.mxu0 0
    %6298 = vmatpush2.bf16.msra.mxu0 0
    %6299 = vmatprep.subr.bf16.mxu0 0
    %6300 = vmatpush2.bf16.msra.mxu0 0
    %6301 = vmatprep.subr.bf16.mxu0 0
    %6302 = vmatpush2.bf16.msra.mxu0 0
    %6303 = vmatprep.subr.bf16.mxu0 0
    %6304 = vmatpush2.bf16.msra.mxu0 0
    %6305 = vmatprep.subr.bf16.mxu0 0
    %6306 = vmatpush2.bf16.msra.mxu0 0
    %6307 = vmatprep.subr.bf16.mxu0 0
    %6308 = vmatpush2.bf16.msra.mxu0 0
    %6309 = vmatprep.subr.bf16.mxu0 0
    %6310 = vmatpush2.bf16.msra.mxu0 0
    %6311 = vmatprep.subr.bf16.mxu0 0
    %6312 = vmatpush2.bf16.msra.mxu0 0
    %6313 = vmatprep.mubr.bf16.mxu0 0
    %6314 = vmatmul.mubr.bf16.gmra.mxu0 %v6007
    %v6315 = vpop.f32.mrf.mxu0
    %v6316 = vadd.f32 %v6251, %v6315
    %v6317 = vpop.f32.mrf.mxu0
    %v6318 = vpop.f32.mrf.mxu0
    %v6319 = vadd.f32 %v6254, %v6318
    %v6320 = vpop.f32.mrf.mxu0
    %6321 = vmatprep.mubr.bf16.mxu0 0
    %6322 = vmatmul.mubr.bf16.gmra.mxu0 %v6010
    %v6323 = vpop.f32.mrf.mxu0
    %v6324 = vadd.f32 %v6259, %v6323
    %v6325 = vpop.f32.mrf.mxu0
    %v6326 = vpop.f32.mrf.mxu0
    %v6327 = vadd.f32 %v6262, %v6326
    %v6328 = vpop.f32.mrf.mxu0
    %6329 = vmatprep.mubr.bf16.mxu0 0
    %6330 = vmatmul.mubr.bf16.gmra.mxu0 %v6013
    %v6331 = vpop.f32.mrf.mxu0
    %v6332 = vadd.f32 %v6267, %v6331
    %v6333 = vpop.f32.mrf.mxu0
    %v6334 = vpop.f32.mrf.mxu0
    %v6335 = vadd.f32 %v6270, %v6334
    %v6336 = vpop.f32.mrf.mxu0
    %6337 = vmatprep.mubr.bf16.mxu0 0
    %6338 = vmatmul.mubr.bf16.gmra.mxu0 %v6016
    %v6339 = vpop.f32.mrf.mxu0
    %v6340 = vadd.f32 %v6275, %v6339
    %v6341 = vpop.f32.mrf.mxu0
    %v6342 = vpop.f32.mrf.mxu0
    %v6343 = vadd.f32 %v6278, %v6342
    %v6344 = vpop.f32.mrf.mxu0
    %6345 = vdwg.mxu0
    %6346 = vst.msk [vmem:[%s8] sm:$0xff] %vm119, %v6316
    %6347 = vst.msk [vmem:[%s8 + $0x8] sm:$0xff] %vm119, %v6319
    %6348 = vst.msk [vmem:[%s8 + $0x10] sm:$0xff] %vm119, %v6324
    %6349 = vst.msk [vmem:[%s8 + $0x18] sm:$0xff] %vm119, %v6327
    %6350 = vst.msk [vmem:[%s8 + $0x20] sm:$0xff] %vm119, %v6332
    %6351 = vst.msk [vmem:[%s8 + $0x28] sm:$0xff] %vm119, %v6335
    %6352 = vst.msk [vmem:[%s8 + $0x30] sm:$0xff] %vm119, %v6340
    %6353 = vst.msk [vmem:[%s8 + $0x38] sm:$0xff] %vm119, %v6343
    // Predicated region
    $region38: #{rnn_forward_pallas.1} parent=1 // pred_check
      _
    $region39: #{rnn_forward_pallas.1} parent=1 // pred_check_branch
      %6355 = sbr.rel (0) target = $region41
    $region40: #{rnn_forward_pallas.1} parent=1 // pred_region
      _
    $region41: #{rnn_forward_pallas.1} parent=1 // pred_fallthru
      _
    // Predicated region
    $region42: #{rnn_forward_pallas.1} parent=1 // pred_check
      _
    $region43: #{rnn_forward_pallas.1} parent=1 // pred_check_branch
      %6357 = sbr.rel (0) target = $region45
    $region44: #{rnn_forward_pallas.1} parent=1 // pred_region
      _
    $region45: #{rnn_forward_pallas.1} parent=1 // pred_fallthru
      _
    %6358 = vsyncpa [#allocation5], 1

</llo_original>
